<compile_context>
chip_gen: v7x
topology: tpu7x:2x2x1
jax: 0.10.0
libtpu: 0.0.40
codegen_flags: <defaults>
</compile_context>

<pallas_src>
import jax
import jax.numpy as jnp
from jax import lax
from jax.experimental import pallas as pl
from jax.experimental.pallas import tpu as pltpu


def _round_up(x, m):
    return (x + m - 1) // m * m


# ---------------------------------------------------------------------------
# GRU gate math (H is lane-aligned, so the 0/H/2H slices are 128-aligned); f32.
# ---------------------------------------------------------------------------
def _gru_gates(gi, gh, h, H):
    i_r, i_z, i_n = gi[:, :H], gi[:, H:2 * H], gi[:, 2 * H:]
    h_r, h_z, h_n = gh[:, :H], gh[:, H:2 * H], gh[:, 2 * H:]
    r = jax.nn.sigmoid(i_r + h_r)
    z = jax.nn.sigmoid(i_z + h_z)
    n = jnp.tanh(i_n + r * h_n)
    return (1.0 - z) * n + z * h


# ---------------------------------------------------------------------------
# fused kernel: encoder GRU -> decoder GRU -> batched attention -> combine ->
# output projection + log_softmax
# (teacher_forcing_ratio = 1, so decoder inputs are the embedded targets)
# ---------------------------------------------------------------------------
def dns_fused_kernel(x_ref, y_ref, h0_ref,
                     ewih_ref, ewhh_ref, ebih_ref, ebhh_ref,
                     dwih_ref, dwhh_ref, dbih_ref, dbhh_ref,
                     wcd_ref, wcc_ref, bc_ref, wout_ref, bout_ref,
                     logp_ref, hT_ref,
                     gi_enc, gi_dec, enc_out, h_all):
    Tenc, B, E = x_ref.shape
    Td = y_ref.shape[0]
    H = hT_ref.shape[-1]
    V = logp_ref.shape[-1]

    # ---------------- encoder ----------------
    # batched input-side projection for ALL encoder steps: one bf16 MXU call, f32 acc.
    x2d = x_ref[...].reshape(Tenc * B, E)
    gi_enc[...] = (jnp.dot(x2d, ewih_ref[...], preferred_element_type=jnp.float32)
                   + ebih_ref[...])

    ewhh = ewhh_ref[...]                                   # bf16, loop-invariant
    ebhh = jnp.broadcast_to(ebhh_ref[...], (B, 3 * H))     # hoisted broadcast

    # TODO(synk): for long sequences, hold whh in MXU weight registers across the
    # recurrence via pltpu.matmul_push_rhs / matmul_acc_lhs (loop-invariant RHS).
    h = h0_ref[...]
    for t in range(Tenc):                                  # short static T -> unrolled
        gi = gi_enc[t * B:(t + 1) * B, :]
        gh = jnp.dot(h.astype(jnp.bfloat16), ewhh,
                     preferred_element_type=jnp.float32) + ebhh
        h = _gru_gates(gi, gh, h, H)
        enc_out[t] = h.astype(jnp.bfloat16)                # full lane-dense slab store

    # ---------------- decoder recurrence (GRU cell is the ONLY op in the loop) ------
    y2d = y_ref[...].reshape(Td * B, E)
    gi_dec[...] = (jnp.dot(y2d, dwih_ref[...], preferred_element_type=jnp.float32)
                   + dbih_ref[...])

    dwhh = dwhh_ref[...]
    dbhh = jnp.broadcast_to(dbhh_ref[...], (B, 3 * H))

    for t in range(Td):
        gi = gi_dec[t * B:(t + 1) * B, :]
        gh = jnp.dot(h.astype(jnp.bfloat16), dwhh,
                     preferred_element_type=jnp.float32) + dbhh
        h = _gru_gates(gi, gh, h, H)
        h_all[t] = h.astype(jnp.bfloat16)                  # park for post-loop work
    hT_ref[...] = h

    # ---------------- batched dot-product attention (off the recurrence path) -------
    # Per padded-batch-row 2D MXU matmuls (B is tiny & static); batching over B cannot
    # merge into the MXU M dimension anyway, and plain 2D dot_generals lower robustly.
    enc_all = enc_out[...]                                 # [Tenc, B, H] bf16
    hall_all = h_all[...]                                  # [Td,   B, H] bf16
    ctx_cols = []
    for b in range(B):
        h_b = hall_all[:, b, :]                            # [Td,   H] bf16
        e_b = enc_all[:, b, :]                             # [Tenc, H] bf16
        s_b = lax.dot_general(h_b, e_b, (((1,), (1,)), ((), ())),
                              preferred_element_type=jnp.float32)      # [Td, Tenc]
        m_b = jnp.max(s_b, axis=-1, keepdims=True)
        p_b = jnp.exp(s_b - m_b)
        a_b = p_b / jnp.sum(p_b, axis=-1, keepdims=True)   # exact divide, f32
        c_b = jnp.dot(a_b.astype(jnp.bfloat16), e_b,
                      preferred_element_type=jnp.float32)              # [Td, H]
        ctx_cols.append(c_b[:, None, :])
    ctx = jnp.concatenate(ctx_cols, axis=1).reshape(Td * B, H)         # (t, b) rows

    # ---------------- batched combine + output projection + log_softmax -------------
    h2d = hall_all.reshape(Td * B, H)                      # bf16, (t, b) rows
    comb = jnp.tanh(
        jnp.dot(h2d, wcd_ref[...], preferred_element_type=jnp.float32)
        + jnp.dot(ctx.astype(jnp.bfloat16), wcc_ref[...],
                  preferred_element_type=jnp.float32)
        + bc_ref[...])

    # TODO(synk): at production vocab sizes, tile V with a 'parallel' grid axis
    # (two-pass logsumexp) and budget VMEM against v7x's 64 MiB physical limit.
    logits = (jnp.dot(comb.astype(jnp.bfloat16), wout_ref[...],
                      preferred_element_type=jnp.float32)
              + bout_ref[...])                             # [Td*B, V] f32
    lm = jnp.max(logits, axis=-1, keepdims=True)
    lse = lm + jnp.log(jnp.sum(jnp.exp(logits - lm), axis=-1, keepdims=True))
    logp_ref[...] = (logits - lse).reshape(Td, B, V)       # single lane-dense store


# ---------------------------------------------------------------------------
# padding helpers (zero padding keeps the math exact; see comments in dns_forward)
# ---------------------------------------------------------------------------
def _pad_axis(x, axis, new_size, value=0):
    pad = [(0, 0)] * x.ndim
    pad[axis] = (0, new_size - x.shape[axis])
    return jnp.pad(x, pad, constant_values=value)


def _pad_gates(w, H, H_p):
    """[in, 3H] -> [in, 3*H_p], keeping the r/z/n gate blocks at offsets 0, H_p, 2*H_p."""
    gates = [_pad_axis(w[:, g * H:(g + 1) * H], 1, H_p) for g in range(3)]
    return jnp.concatenate(gates, axis=1)


# ---------------------------------------------------------------------------
# DNS forward (wrapper, equivalent to DNS.forward with gru->gru cells)
# ---------------------------------------------------------------------------
def dns_forward(params, input_tokens, target_tokens):
    E = params["enc_emb"].shape[1]
    H = params["enc_whh"].shape[0]
    V = params["wout"].shape[1]
    B, T_enc = input_tokens.shape
    T_dec = target_tokens.shape[1]

    # vreg-aligned padded dims: 8 sublanes (batch), 128 lanes (feature dims).
    B_p = _round_up(B, 8)
    E_p = _round_up(E, 128)
    H_p = _round_up(H, 128)
    V_p = _round_up(V, 128)

    # --- pad / cast parameters (zero weight padding => padded dims stay exactly 0) ---
    enc_emb = _pad_axis(params["enc_emb"], 1, E_p).astype(jnp.bfloat16)
    dec_emb = _pad_axis(params["dec_emb"], 1, E_p).astype(jnp.bfloat16)

    enc_wih = _pad_axis(_pad_gates(params["enc_wih"], H, H_p), 0, E_p).astype(jnp.bfloat16)
    enc_whh = _pad_axis(_pad_gates(params["enc_whh"], H, H_p), 0, H_p).astype(jnp.bfloat16)
    enc_bih = _pad_gates(params["enc_bih"], H, H_p)
    enc_bhh = _pad_gates(params["enc_bhh"], H, H_p)

    dec_wih = _pad_axis(_pad_gates(params["dec_wih"], H, H_p), 0, E_p).astype(jnp.bfloat16)
    dec_whh = _pad_axis(_pad_gates(params["dec_whh"], H, H_p), 0, H_p).astype(jnp.bfloat16)
    dec_bih = _pad_gates(params["dec_bih"], H, H_p)
    dec_bhh = _pad_gates(params["dec_bhh"], H, H_p)

    wc_dec = _pad_axis(_pad_axis(params["wc_dec"], 1, H_p), 0, H_p).astype(jnp.bfloat16)
    wc_ctx = _pad_axis(_pad_axis(params["wc_ctx"], 1, H_p), 0, H_p).astype(jnp.bfloat16)
    bc = _pad_axis(params["bc"], 1, H_p)
    wout = _pad_axis(_pad_axis(params["wout"], 1, V_p), 0, H_p).astype(jnp.bfloat16)
    # padded vocab columns get -1e30 logits (logits/LSE stay f32) -> exp underflows to
    # 0 and the log_softmax over the real columns is exact.
    bout = _pad_axis(params["bout"], 1, V_p, value=-1e30)

    # --- embeddings (glue); gather directly in time-major layout, pad the batch ---
    # TODO(synk): move these gathers in-kernel (scalar-prefetch token ids + VMEM table)
    # to avoid materializing E-padded embeddings in HBM.
    # TODO(synk): input_lengths / pack_padded_sequence masking is not modeled.
    inp = _pad_axis(input_tokens, 0, B_p)
    tgt = _pad_axis(target_tokens, 0, B_p)
    x_emb = jnp.take(enc_emb, inp.T, axis=0)      # [Tenc, B_p, E_p] bf16
    y_emb = jnp.take(dec_emb, tgt.T, axis=0)      # [Tdec, B_p, E_p] bf16

    h0 = jnp.zeros((B_p, H_p), jnp.float32)

    vmem = pl.BlockSpec(memory_space=pltpu.MemorySpace.VMEM)
    logp_p, dec_hidden_p = pl.pallas_call(
        dns_fused_kernel,
        out_shape=(jax.ShapeDtypeStruct((T_dec, B_p, V_p), jnp.float32),
                   jax.ShapeDtypeStruct((B_p, H_p), jnp.float32)),
        in_specs=[vmem] * 16,
        out_specs=(vmem, vmem),
        scratch_shapes=[pltpu.VMEM((T_enc * B_p, 3 * H_p), jnp.float32),  # enc gate-in
                        pltpu.VMEM((T_dec * B_p, 3 * H_p), jnp.float32),  # dec gate-in
                        pltpu.VMEM((T_enc, B_p, H_p), jnp.bfloat16),      # enc outputs
                        pltpu.VMEM((T_dec, B_p, H_p), jnp.bfloat16)],     # decoder h_t
        compiler_params=pltpu.CompilerParams(vmem_limit_bytes=32 * 1024 * 1024),
    )(x_emb, y_emb, h0,
      enc_wih, enc_whh, enc_bih, enc_bhh,
      dec_wih, dec_whh, dec_bih, dec_bhh,
      wc_dec, wc_ctx, bc, wout, bout)

    # strip padding: per-step log-softmax distributions [Tdec, B, V] + final hidden
    log_probs = logp_p[:, :B, :V]
    dec_hidden = dec_hidden_p[:B, :H]
    return log_probs, dec_hidden


# ---------------------------------------------------------------------------
# deterministic parameter init (PyTorch-style uniform(-1/sqrt(H), 1/sqrt(H)))
# ---------------------------------------------------------------------------
def init_params(key, vocab_size, n_classes, embed_dim, hidden_dim):
    ks = jax.random.split(key, 14)
    s = 1.0 / jnp.sqrt(hidden_dim)
    u = lambda k, shape: jax.random.uniform(k, shape, jnp.float32, -s, s)
    return {
        "enc_emb": u(ks[0], (vocab_size, embed_dim)),
        "dec_emb": u(ks[1], (n_classes, embed_dim)),
        "enc_wih": u(ks[2], (embed_dim, 3 * hidden_dim)),
        "enc_whh": u(ks[3], (hidden_dim, 3 * hidden_dim)),
        "enc_bih": u(ks[4], (1, 3 * hidden_dim)),
        "enc_bhh": u(ks[5], (1, 3 * hidden_dim)),
        "dec_wih": u(ks[6], (embed_dim, 3 * hidden_dim)),
        "dec_whh": u(ks[7], (hidden_dim, 3 * hidden_dim)),
        "dec_bih": u(ks[8], (1, 3 * hidden_dim)),
        "dec_bhh": u(ks[9], (1, 3 * hidden_dim)),
        "wc_dec": u(ks[10], (hidden_dim, hidden_dim)),
        "wc_ctx": u(ks[11], (hidden_dim, hidden_dim)),
        "bc": jnp.zeros((1, hidden_dim), jnp.float32),
        "wout": u(ks[12], (hidden_dim, n_classes)),
        "bout": jnp.zeros((1, n_classes), jnp.float32),
    }


if __name__ == "__main__":
    B, T_ENC, T_DEC = 2, 8, 8
    VOCAB, N_CLASSES = 20, 16
    EMBED, HIDDEN = 32, 32

    key = jax.random.PRNGKey(0)
    kp, ki, kt = jax.random.split(key, 3)
    params = init_params(kp, VOCAB, N_CLASSES, EMBED, HIDDEN)

    input_tokens = jax.random.randint(ki, (B, T_ENC), 0, VOCAB, dtype=jnp.int32)
    target_tokens = jax.random.randint(kt, (B, T_DEC), 0, N_CLASSES, dtype=jnp.int32)

    log_probs, dec_hidden = jax.jit(dns_forward)(params, input_tokens, target_tokens)
    jax.block_until_ready((log_probs, dec_hidden))

    assert log_probs.shape == (T_DEC, B, N_CLASSES)
    assert dec_hidden.shape == (B, HIDDEN)
    # rows of log_probs must be valid log-distributions
    assert bool(jnp.allclose(jnp.sum(jnp.exp(log_probs), axis=-1), 1.0, atol=1e-4))
    print("KERNEL_OK")
</pallas_src>

<mosaic_0001>
module attributes {stable_mosaic.version = 11 : i64} {
  func.func @dns_fused_kernel(%arg0: memref<8x8x128xbf16, #tpu.memory_space<vmem>>, %arg1: memref<8x8x128xbf16, #tpu.memory_space<vmem>>, %arg2: memref<8x128xf32, #tpu.memory_space<vmem>>, %arg3: memref<128x384xbf16, #tpu.memory_space<vmem>>, %arg4: memref<128x384xbf16, #tpu.memory_space<vmem>>, %arg5: memref<1x384xf32, #tpu.memory_space<vmem>>, %arg6: memref<1x384xf32, #tpu.memory_space<vmem>>, %arg7: memref<128x384xbf16, #tpu.memory_space<vmem>>, %arg8: memref<128x384xbf16, #tpu.memory_space<vmem>>, %arg9: memref<1x384xf32, #tpu.memory_space<vmem>>, %arg10: memref<1x384xf32, #tpu.memory_space<vmem>>, %arg11: memref<128x128xbf16, #tpu.memory_space<vmem>>, %arg12: memref<128x128xbf16, #tpu.memory_space<vmem>>, %arg13: memref<1x128xf32, #tpu.memory_space<vmem>>, %arg14: memref<128x128xbf16, #tpu.memory_space<vmem>>, %arg15: memref<1x128xf32, #tpu.memory_space<vmem>>, %arg16: memref<8x8x128xf32, #tpu.memory_space<vmem>>, %arg17: memref<8x128xf32, #tpu.memory_space<vmem>>, %arg18: memref<64x384xf32, #tpu.memory_space<vmem>>, %arg19: memref<64x384xf32, #tpu.memory_space<vmem>>, %arg20: memref<8x8x128xbf16, #tpu.memory_space<vmem>>, %arg21: memref<8x8x128xbf16, #tpu.memory_space<vmem>>) attributes {dimension_semantics = [], scalar_prefetch = 0 : i64, scratch_operands = 4 : i64, tpu.core_type = #tpu.core_type<tc>} {
    %c0 = arith.constant 0 : index
    %c0_0 = arith.constant 0 : index
    %c0_1 = arith.constant 0 : index
    %0 = vector.load %arg0[%c0, %c0_0, %c0_1] : memref<8x8x128xbf16, #tpu.memory_space<vmem>>, vector<8x8x128xbf16>
    %1 = vector.shape_cast %0 : vector<8x8x128xbf16> to vector<64x128xbf16>
    %c0_2 = arith.constant 0 : index
    %c0_3 = arith.constant 0 : index
    %2 = vector.load %arg3[%c0_2, %c0_3] : memref<128x384xbf16, #tpu.memory_space<vmem>>, vector<128x384xbf16>
    %cst = arith.constant dense<0.000000e+00> : vector<64x384xf32>
    %3 = tpu.matmul %1, %2, %cst {dimension_numbers = #tpu.dot_dimension_numbers<[1], [0], [0], [1], [0, 0, 1, 1], [], []>} : vector<64x128xbf16>, vector<128x384xbf16>, vector<64x384xf32> -> vector<64x384xf32>
    %c0_4 = arith.constant 0 : index
    %c0_5 = arith.constant 0 : index
    %4 = vector.load %arg5[%c0_4, %c0_5] : memref<1x384xf32, #tpu.memory_space<vmem>>, vector<1x384xf32>
    %5 = vector.broadcast %4 : vector<1x384xf32> to vector<64x384xf32>
    %6 = arith.addf %3, %5 : vector<64x384xf32>
    %c0_6 = arith.constant 0 : index
    %c0_7 = arith.constant 0 : index
    %7 = vector.load %arg18[%c0_6, %c0_7] : memref<64x384xf32, #tpu.memory_space<vmem>>, vector<64x384xf32>
    tpu.vector_store %arg18[%c0_6, %c0_7], %6 {strides = array<i32>} : memref<64x384xf32, #tpu.memory_space<vmem>>, vector<64x384xf32>,
    %c0_8 = arith.constant 0 : index
    %c0_9 = arith.constant 0 : index
    %8 = vector.load %arg4[%c0_8, %c0_9] : memref<128x384xbf16, #tpu.memory_space<vmem>>, vector<128x384xbf16>
    %c0_10 = arith.constant 0 : index
    %c0_11 = arith.constant 0 : index
    %9 = vector.load %arg6[%c0_10, %c0_11] : memref<1x384xf32, #tpu.memory_space<vmem>>, vector<1x384xf32>
    %10 = vector.shape_cast %9 : vector<1x384xf32> to vector<1x384xf32>
    %11 = vector.broadcast %10 : vector<1x384xf32> to vector<8x384xf32>
    %c0_12 = arith.constant 0 : index
    %c0_13 = arith.constant 0 : index
    %12 = vector.load %arg2[%c0_12, %c0_13] : memref<8x128xf32, #tpu.memory_space<vmem>>, vector<8x128xf32>
    %c0_14 = arith.constant 0 : index
    %c0_15 = arith.constant 0 : index
    %13 = vector.load %arg18[%c0_14, %c0_15] : memref<64x384xf32, #tpu.memory_space<vmem>>, vector<8x384xf32>
    %14 = arith.truncf %12 : vector<8x128xf32> to vector<8x128xbf16>
    %cst_16 = arith.constant dense<0.000000e+00> : vector<8x384xf32>
    %15 = tpu.matmul %14, %8, %cst_16 {dimension_numbers = #tpu.dot_dimension_numbers<[1], [0], [0], [1], [0, 0, 1, 1], [], []>} : vector<8x128xbf16>, vector<128x384xbf16>, vector<8x384xf32> -> vector<8x384xf32>
    %16 = arith.addf %15, %11 : vector<8x384xf32>
    %17 = vector.extract_strided_slice %13 {offsets = [0, 0], sizes = [8, 128], strides = [1, 1]} : vector<8x384xf32> to vector<8x128xf32>
    %18 = vector.extract_strided_slice %13 {offsets = [0, 128], sizes = [8, 128], strides = [1, 1]} : vector<8x384xf32> to vector<8x128xf32>
    %19 = vector.extract_strided_slice %13 {offsets = [0, 256], sizes = [8, 128], strides = [1, 1]} : vector<8x384xf32> to vector<8x128xf32>
    %20 = vector.extract_strided_slice %16 {offsets = [0, 0], sizes = [8, 128], strides = [1, 1]} : vector<8x384xf32> to vector<8x128xf32>
    %21 = vector.extract_strided_slice %16 {offsets = [0, 128], sizes = [8, 128], strides = [1, 1]} : vector<8x384xf32> to vector<8x128xf32>
    %22 = vector.extract_strided_slice %16 {offsets = [0, 256], sizes = [8, 128], strides = [1, 1]} : vector<8x384xf32> to vector<8x128xf32>
    %23 = arith.addf %17, %20 : vector<8x128xf32>
    %24 = arith.negf %23 : vector<8x128xf32>
    %25 = math.exp %24 : vector<8x128xf32>
    %cst_17 = arith.constant 1.000000e+00 : f32
    %26 = vector.broadcast %cst_17 : f32 to vector<8x128xf32>
    %27 = arith.addf %26, %25 : vector<8x128xf32>
    %28 = arith.divf %26, %27 : vector<8x128xf32>
    %29 = arith.addf %18, %21 : vector<8x128xf32>
    %30 = arith.negf %29 : vector<8x128xf32>
    %31 = math.exp %30 : vector<8x128xf32>
    %cst_18 = arith.constant 1.000000e+00 : f32
    %32 = vector.broadcast %cst_18 : f32 to vector<8x128xf32>
    %33 = arith.addf %32, %31 : vector<8x128xf32>
    %34 = arith.divf %32, %33 : vector<8x128xf32>
    %35 = arith.mulf %28, %22 : vector<8x128xf32>
    %36 = arith.addf %19, %35 : vector<8x128xf32>
    %37 = math.tanh %36 : vector<8x128xf32>
    %cst_19 = arith.constant 1.000000e+00 : f32
    %38 = vector.broadcast %cst_19 : f32 to vector<8x128xf32>
    %39 = arith.subf %38, %34 : vector<8x128xf32>
    %40 = arith.mulf %39, %37 : vector<8x128xf32>
    %41 = arith.mulf %34, %12 : vector<8x128xf32>
    %42 = arith.addf %40, %41 : vector<8x128xf32>
    %43 = arith.truncf %42 : vector<8x128xf32> to vector<8x128xbf16>
    %c0_20 = arith.constant 0 : index
    %c0_21 = arith.constant 0 : index
    %c0_22 = arith.constant 0 : index
    %44 = vector.load %arg20[%c0_20, %c0_21, %c0_22] : memref<8x8x128xbf16, #tpu.memory_space<vmem>>, vector<1x8x128xbf16>
    %45 = vector.shape_cast %44 : vector<1x8x128xbf16> to vector<8x128xbf16>
    %46 = vector.shape_cast %43 : vector<8x128xbf16> to vector<1x8x128xbf16>
    tpu.vector_store %arg20[%c0_20, %c0_21, %c0_22], %46 {strides = array<i32>} : memref<8x8x128xbf16, #tpu.memory_space<vmem>>, vector<1x8x128xbf16>,
    %c8 = arith.constant 8 : index
    %c0_23 = arith.constant 0 : index
    %47 = vector.load %arg18[%c8, %c0_23] : memref<64x384xf32, #tpu.memory_space<vmem>>, vector<8x384xf32>
    %48 = arith.truncf %42 : vector<8x128xf32> to vector<8x128xbf16>
    %cst_24 = arith.constant dense<0.000000e+00> : vector<8x384xf32>
    %49 = tpu.matmul %48, %8, %cst_24 {dimension_numbers = #tpu.dot_dimension_numbers<[1], [0], [0], [1], [0, 0, 1, 1], [], []>} : vector<8x128xbf16>, vector<128x384xbf16>, vector<8x384xf32> -> vector<8x384xf32>
    %50 = arith.addf %49, %11 : vector<8x384xf32>
    %51 = vector.extract_strided_slice %47 {offsets = [0, 0], sizes = [8, 128], strides = [1, 1]} : vector<8x384xf32> to vector<8x128xf32>
    %52 = vector.extract_strided_slice %47 {offsets = [0, 128], sizes = [8, 128], strides = [1, 1]} : vector<8x384xf32> to vector<8x128xf32>
    %53 = vector.extract_strided_slice %47 {offsets = [0, 256], sizes = [8, 128], strides = [1, 1]} : vector<8x384xf32> to vector<8x128xf32>
    %54 = vector.extract_strided_slice %50 {offsets = [0, 0], sizes = [8, 128], strides = [1, 1]} : vector<8x384xf32> to vector<8x128xf32>
    %55 = vector.extract_strided_slice %50 {offsets = [0, 128], sizes = [8, 128], strides = [1, 1]} : vector<8x384xf32> to vector<8x128xf32>
    %56 = vector.extract_strided_slice %50 {offsets = [0, 256], sizes = [8, 128], strides = [1, 1]} : vector<8x384xf32> to vector<8x128xf32>
    %57 = arith.addf %51, %54 : vector<8x128xf32>
    %58 = arith.negf %57 : vector<8x128xf32>
    %59 = math.exp %58 : vector<8x128xf32>
    %cst_25 = arith.constant 1.000000e+00 : f32
    %60 = vector.broadcast %cst_25 : f32 to vector<8x128xf32>
    %61 = arith.addf %60, %59 : vector<8x128xf32>
    %62 = arith.divf %60, %61 : vector<8x128xf32>
    %63 = arith.addf %52, %55 : vector<8x128xf32>
    %64 = arith.negf %63 : vector<8x128xf32>
    %65 = math.exp %64 : vector<8x128xf32>
    %cst_26 = arith.constant 1.000000e+00 : f32
    %66 = vector.broadcast %cst_26 : f32 to vector<8x128xf32>
    %67 = arith.addf %66, %65 : vector<8x128xf32>
    %68 = arith.divf %66, %67 : vector<8x128xf32>
    %69 = arith.mulf %62, %56 : vector<8x128xf32>
    %70 = arith.addf %53, %69 : vector<8x128xf32>
    %71 = math.tanh %70 : vector<8x128xf32>
    %cst_27 = arith.constant 1.000000e+00 : f32
    %72 = vector.broadcast %cst_27 : f32 to vector<8x128xf32>
    %73 = arith.subf %72, %68 : vector<8x128xf32>
    %74 = arith.mulf %73, %71 : vector<8x128xf32>
    %75 = arith.mulf %68, %42 : vector<8x128xf32>
    %76 = arith.addf %74, %75 : vector<8x128xf32>
    %77 = arith.truncf %76 : vector<8x128xf32> to vector<8x128xbf16>
    %c1 = arith.constant 1 : index
    %c0_28 = arith.constant 0 : index
    %c0_29 = arith.constant 0 : index
    %78 = vector.load %arg20[%c1, %c0_28, %c0_29] : memref<8x8x128xbf16, #tpu.memory_space<vmem>>, vector<1x8x128xbf16>
    %79 = vector.shape_cast %78 : vector<1x8x128xbf16> to vector<8x128xbf16>
    %80 = vector.shape_cast %77 : vector<8x128xbf16> to vector<1x8x128xbf16>
    tpu.vector_store %arg20[%c1, %c0_28, %c0_29], %80 {strides = array<i32>} : memref<8x8x128xbf16, #tpu.memory_space<vmem>>, vector<1x8x128xbf16>,
    %c16 = arith.constant 16 : index
    %c0_30 = arith.constant 0 : index
    %81 = vector.load %arg18[%c16, %c0_30] : memref<64x384xf32, #tpu.memory_space<vmem>>, vector<8x384xf32>
    %82 = arith.truncf %76 : vector<8x128xf32> to vector<8x128xbf16>
    %cst_31 = arith.constant dense<0.000000e+00> : vector<8x384xf32>
    %83 = tpu.matmul %82, %8, %cst_31 {dimension_numbers = #tpu.dot_dimension_numbers<[1], [0], [0], [1], [0, 0, 1, 1], [], []>} : vector<8x128xbf16>, vector<128x384xbf16>, vector<8x384xf32> -> vector<8x384xf32>
    %84 = arith.addf %83, %11 : vector<8x384xf32>
    %85 = vector.extract_strided_slice %81 {offsets = [0, 0], sizes = [8, 128], strides = [1, 1]} : vector<8x384xf32> to vector<8x128xf32>
    %86 = vector.extract_strided_slice %81 {offsets = [0, 128], sizes = [8, 128], strides = [1, 1]} : vector<8x384xf32> to vector<8x128xf32>
    %87 = vector.extract_strided_slice %81 {offsets = [0, 256], sizes = [8, 128], strides = [1, 1]} : vector<8x384xf32> to vector<8x128xf32>
    %88 = vector.extract_strided_slice %84 {offsets = [0, 0], sizes = [8, 128], strides = [1, 1]} : vector<8x384xf32> to vector<8x128xf32>
    %89 = vector.extract_strided_slice %84 {offsets = [0, 128], sizes = [8, 128], strides = [1, 1]} : vector<8x384xf32> to vector<8x128xf32>
    %90 = vector.extract_strided_slice %84 {offsets = [0, 256], sizes = [8, 128], strides = [1, 1]} : vector<8x384xf32> to vector<8x128xf32>
    %91 = arith.addf %85, %88 : vector<8x128xf32>
    %92 = arith.negf %91 : vector<8x128xf32>
    %93 = math.exp %92 : vector<8x128xf32>
    %cst_32 = arith.constant 1.000000e+00 : f32
    %94 = vector.broadcast %cst_32 : f32 to vector<8x128xf32>
    %95 = arith.addf %94, %93 : vector<8x128xf32>
    %96 = arith.divf %94, %95 : vector<8x128xf32>
    %97 = arith.addf %86, %89 : vector<8x128xf32>
    %98 = arith.negf %97 : vector<8x128xf32>
    %99 = math.exp %98 : vector<8x128xf32>
    %cst_33 = arith.constant 1.000000e+00 : f32
    %100 = vector.broadcast %cst_33 : f32 to vector<8x128xf32>
    %101 = arith.addf %100, %99 : vector<8x128xf32>
    %102 = arith.divf %100, %101 : vector<8x128xf32>
    %103 = arith.mulf %96, %90 : vector<8x128xf32>
    %104 = arith.addf %87, %103 : vector<8x128xf32>
    %105 = math.tanh %104 : vector<8x128xf32>
    %cst_34 = arith.constant 1.000000e+00 : f32
    %106 = vector.broadcast %cst_34 : f32 to vector<8x128xf32>
    %107 = arith.subf %106, %102 : vector<8x128xf32>
    %108 = arith.mulf %107, %105 : vector<8x128xf32>
    %109 = arith.mulf %102, %76 : vector<8x128xf32>
    %110 = arith.addf %108, %109 : vector<8x128xf32>
    %111 = arith.truncf %110 : vector<8x128xf32> to vector<8x128xbf16>
    %c2 = arith.constant 2 : index
    %c0_35 = arith.constant 0 : index
    %c0_36 = arith.constant 0 : index
    %112 = vector.load %arg20[%c2, %c0_35, %c0_36] : memref<8x8x128xbf16, #tpu.memory_space<vmem>>, vector<1x8x128xbf16>
    %113 = vector.shape_cast %112 : vector<1x8x128xbf16> to vector<8x128xbf16>
    %114 = vector.shape_cast %111 : vector<8x128xbf16> to vector<1x8x128xbf16>
    tpu.vector_store %arg20[%c2, %c0_35, %c0_36], %114 {strides = array<i32>} : memref<8x8x128xbf16, #tpu.memory_space<vmem>>, vector<1x8x128xbf16>,
    %c24 = arith.constant 24 : index
    %c0_37 = arith.constant 0 : index
    %115 = vector.load %arg18[%c24, %c0_37] : memref<64x384xf32, #tpu.memory_space<vmem>>, vector<8x384xf32>
    %116 = arith.truncf %110 : vector<8x128xf32> to vector<8x128xbf16>
    %cst_38 = arith.constant dense<0.000000e+00> : vector<8x384xf32>
    %117 = tpu.matmul %116, %8, %cst_38 {dimension_numbers = #tpu.dot_dimension_numbers<[1], [0], [0], [1], [0, 0, 1, 1], [], []>} : vector<8x128xbf16>, vector<128x384xbf16>, vector<8x384xf32> -> vector<8x384xf32>
    %118 = arith.addf %117, %11 : vector<8x384xf32>
    %119 = vector.extract_strided_slice %115 {offsets = [0, 0], sizes = [8, 128], strides = [1, 1]} : vector<8x384xf32> to vector<8x128xf32>
    %120 = vector.extract_strided_slice %115 {offsets = [0, 128], sizes = [8, 128], strides = [1, 1]} : vector<8x384xf32> to vector<8x128xf32>
    %121 = vector.extract_strided_slice %115 {offsets = [0, 256], sizes = [8, 128], strides = [1, 1]} : vector<8x384xf32> to vector<8x128xf32>
    %122 = vector.extract_strided_slice %118 {offsets = [0, 0], sizes = [8, 128], strides = [1, 1]} : vector<8x384xf32> to vector<8x128xf32>
    %123 = vector.extract_strided_slice %118 {offsets = [0, 128], sizes = [8, 128], strides = [1, 1]} : vector<8x384xf32> to vector<8x128xf32>
    %124 = vector.extract_strided_slice %118 {offsets = [0, 256], sizes = [8, 128], strides = [1, 1]} : vector<8x384xf32> to vector<8x128xf32>
    %125 = arith.addf %119, %122 : vector<8x128xf32>
    %126 = arith.negf %125 : vector<8x128xf32>
    %127 = math.exp %126 : vector<8x128xf32>
    %cst_39 = arith.constant 1.000000e+00 : f32
    %128 = vector.broadcast %cst_39 : f32 to vector<8x128xf32>
    %129 = arith.addf %128, %127 : vector<8x128xf32>
    %130 = arith.divf %128, %129 : vector<8x128xf32>
    %131 = arith.addf %120, %123 : vector<8x128xf32>
    %132 = arith.negf %131 : vector<8x128xf32>
    %133 = math.exp %132 : vector<8x128xf32>
    %cst_40 = arith.constant 1.000000e+00 : f32
    %134 = vector.broadcast %cst_40 : f32 to vector<8x128xf32>
    %135 = arith.addf %134, %133 : vector<8x128xf32>
    %136 = arith.divf %134, %135 : vector<8x128xf32>
    %137 = arith.mulf %130, %124 : vector<8x128xf32>
    %138 = arith.addf %121, %137 : vector<8x128xf32>
    %139 = math.tanh %138 : vector<8x128xf32>
    %cst_41 = arith.constant 1.000000e+00 : f32
    %140 = vector.broadcast %cst_41 : f32 to vector<8x128xf32>
    %141 = arith.subf %140, %136 : vector<8x128xf32>
    %142 = arith.mulf %141, %139 : vector<8x128xf32>
    %143 = arith.mulf %136, %110 : vector<8x128xf32>
    %144 = arith.addf %142, %143 : vector<8x128xf32>
    %145 = arith.truncf %144 : vector<8x128xf32> to vector<8x128xbf16>
    %c3 = arith.constant 3 : index
    %c0_42 = arith.constant 0 : index
    %c0_43 = arith.constant 0 : index
    %146 = vector.load %arg20[%c3, %c0_42, %c0_43] : memref<8x8x128xbf16, #tpu.memory_space<vmem>>, vector<1x8x128xbf16>
    %147 = vector.shape_cast %146 : vector<1x8x128xbf16> to vector<8x128xbf16>
    %148 = vector.shape_cast %145 : vector<8x128xbf16> to vector<1x8x128xbf16>
    tpu.vector_store %arg20[%c3, %c0_42, %c0_43], %148 {strides = array<i32>} : memref<8x8x128xbf16, #tpu.memory_space<vmem>>, vector<1x8x128xbf16>,
    %c32 = arith.constant 32 : index
    %c0_44 = arith.constant 0 : index
    %149 = vector.load %arg18[%c32, %c0_44] : memref<64x384xf32, #tpu.memory_space<vmem>>, vector<8x384xf32>
    %150 = arith.truncf %144 : vector<8x128xf32> to vector<8x128xbf16>
    %cst_45 = arith.constant dense<0.000000e+00> : vector<8x384xf32>
    %151 = tpu.matmul %150, %8, %cst_45 {dimension_numbers = #tpu.dot_dimension_numbers<[1], [0], [0], [1], [0, 0, 1, 1], [], []>} : vector<8x128xbf16>, vector<128x384xbf16>, vector<8x384xf32> -> vector<8x384xf32>
    %152 = arith.addf %151, %11 : vector<8x384xf32>
    %153 = vector.extract_strided_slice %149 {offsets = [0, 0], sizes = [8, 128], strides = [1, 1]} : vector<8x384xf32> to vector<8x128xf32>
    %154 = vector.extract_strided_slice %149 {offsets = [0, 128], sizes = [8, 128], strides = [1, 1]} : vector<8x384xf32> to vector<8x128xf32>
    %155 = vector.extract_strided_slice %149 {offsets = [0, 256], sizes = [8, 128], strides = [1, 1]} : vector<8x384xf32> to vector<8x128xf32>
    %156 = vector.extract_strided_slice %152 {offsets = [0, 0], sizes = [8, 128], strides = [1, 1]} : vector<8x384xf32> to vector<8x128xf32>
    %157 = vector.extract_strided_slice %152 {offsets = [0, 128], sizes = [8, 128], strides = [1, 1]} : vector<8x384xf32> to vector<8x128xf32>
    %158 = vector.extract_strided_slice %152 {offsets = [0, 256], sizes = [8, 128], strides = [1, 1]} : vector<8x384xf32> to vector<8x128xf32>
    %159 = arith.addf %153, %156 : vector<8x128xf32>
    %160 = arith.negf %159 : vector<8x128xf32>
    %161 = math.exp %160 : vector<8x128xf32>
    %cst_46 = arith.constant 1.000000e+00 : f32
    %162 = vector.broadcast %cst_46 : f32 to vector<8x128xf32>
    %163 = arith.addf %162, %161 : vector<8x128xf32>
    %164 = arith.divf %162, %163 : vector<8x128xf32>
    %165 = arith.addf %154, %157 : vector<8x128xf32>
    %166 = arith.negf %165 : vector<8x128xf32>
    %167 = math.exp %166 : vector<8x128xf32>
    %cst_47 = arith.constant 1.000000e+00 : f32
    %168 = vector.broadcast %cst_47 : f32 to vector<8x128xf32>
    %169 = arith.addf %168, %167 : vector<8x128xf32>
    %170 = arith.divf %168, %169 : vector<8x128xf32>
    %171 = arith.mulf %164, %158 : vector<8x128xf32>
    %172 = arith.addf %155, %171 : vector<8x128xf32>
    %173 = math.tanh %172 : vector<8x128xf32>
    %cst_48 = arith.constant 1.000000e+00 : f32
    %174 = vector.broadcast %cst_48 : f32 to vector<8x128xf32>
    %175 = arith.subf %174, %170 : vector<8x128xf32>
    %176 = arith.mulf %175, %173 : vector<8x128xf32>
    %177 = arith.mulf %170, %144 : vector<8x128xf32>
    %178 = arith.addf %176, %177 : vector<8x128xf32>
    %179 = arith.truncf %178 : vector<8x128xf32> to vector<8x128xbf16>
    %c4 = arith.constant 4 : index
    %c0_49 = arith.constant 0 : index
    %c0_50 = arith.constant 0 : index
    %180 = vector.load %arg20[%c4, %c0_49, %c0_50] : memref<8x8x128xbf16, #tpu.memory_space<vmem>>, vector<1x8x128xbf16>
    %181 = vector.shape_cast %180 : vector<1x8x128xbf16> to vector<8x128xbf16>
    %182 = vector.shape_cast %179 : vector<8x128xbf16> to vector<1x8x128xbf16>
    tpu.vector_store %arg20[%c4, %c0_49, %c0_50], %182 {strides = array<i32>} : memref<8x8x128xbf16, #tpu.memory_space<vmem>>, vector<1x8x128xbf16>,
    %c40 = arith.constant 40 : index
    %c0_51 = arith.constant 0 : index
    %183 = vector.load %arg18[%c40, %c0_51] : memref<64x384xf32, #tpu.memory_space<vmem>>, vector<8x384xf32>
    %184 = arith.truncf %178 : vector<8x128xf32> to vector<8x128xbf16>
    %cst_52 = arith.constant dense<0.000000e+00> : vector<8x384xf32>
    %185 = tpu.matmul %184, %8, %cst_52 {dimension_numbers = #tpu.dot_dimension_numbers<[1], [0], [0], [1], [0, 0, 1, 1], [], []>} : vector<8x128xbf16>, vector<128x384xbf16>, vector<8x384xf32> -> vector<8x384xf32>
    %186 = arith.addf %185, %11 : vector<8x384xf32>
    %187 = vector.extract_strided_slice %183 {offsets = [0, 0], sizes = [8, 128], strides = [1, 1]} : vector<8x384xf32> to vector<8x128xf32>
    %188 = vector.extract_strided_slice %183 {offsets = [0, 128], sizes = [8, 128], strides = [1, 1]} : vector<8x384xf32> to vector<8x128xf32>
    %189 = vector.extract_strided_slice %183 {offsets = [0, 256], sizes = [8, 128], strides = [1, 1]} : vector<8x384xf32> to vector<8x128xf32>
    %190 = vector.extract_strided_slice %186 {offsets = [0, 0], sizes = [8, 128], strides = [1, 1]} : vector<8x384xf32> to vector<8x128xf32>
    %191 = vector.extract_strided_slice %186 {offsets = [0, 128], sizes = [8, 128], strides = [1, 1]} : vector<8x384xf32> to vector<8x128xf32>
    %192 = vector.extract_strided_slice %186 {offsets = [0, 256], sizes = [8, 128], strides = [1, 1]} : vector<8x384xf32> to vector<8x128xf32>
    %193 = arith.addf %187, %190 : vector<8x128xf32>
    %194 = arith.negf %193 : vector<8x128xf32>
    %195 = math.exp %194 : vector<8x128xf32>
    %cst_53 = arith.constant 1.000000e+00 : f32
    %196 = vector.broadcast %cst_53 : f32 to vector<8x128xf32>
    %197 = arith.addf %196, %195 : vector<8x128xf32>
    %198 = arith.divf %196, %197 : vector<8x128xf32>
    %199 = arith.addf %188, %191 : vector<8x128xf32>
    %200 = arith.negf %199 : vector<8x128xf32>
    %201 = math.exp %200 : vector<8x128xf32>
    %cst_54 = arith.constant 1.000000e+00 : f32
    %202 = vector.broadcast %cst_54 : f32 to vector<8x128xf32>
    %203 = arith.addf %202, %201 : vector<8x128xf32>
    %204 = arith.divf %202, %203 : vector<8x128xf32>
    %205 = arith.mulf %198, %192 : vector<8x128xf32>
    %206 = arith.addf %189, %205 : vector<8x128xf32>
    %207 = math.tanh %206 : vector<8x128xf32>
    %cst_55 = arith.constant 1.000000e+00 : f32
    %208 = vector.broadcast %cst_55 : f32 to vector<8x128xf32>
    %209 = arith.subf %208, %204 : vector<8x128xf32>
    %210 = arith.mulf %209, %207 : vector<8x128xf32>
    %211 = arith.mulf %204, %178 : vector<8x128xf32>
    %212 = arith.addf %210, %211 : vector<8x128xf32>
    %213 = arith.truncf %212 : vector<8x128xf32> to vector<8x128xbf16>
    %c5 = arith.constant 5 : index
    %c0_56 = arith.constant 0 : index
    %c0_57 = arith.constant 0 : index
    %214 = vector.load %arg20[%c5, %c0_56, %c0_57] : memref<8x8x128xbf16, #tpu.memory_space<vmem>>, vector<1x8x128xbf16>
    %215 = vector.shape_cast %214 : vector<1x8x128xbf16> to vector<8x128xbf16>
    %216 = vector.shape_cast %213 : vector<8x128xbf16> to vector<1x8x128xbf16>
    tpu.vector_store %arg20[%c5, %c0_56, %c0_57], %216 {strides = array<i32>} : memref<8x8x128xbf16, #tpu.memory_space<vmem>>, vector<1x8x128xbf16>,
    %c48 = arith.constant 48 : index
    %c0_58 = arith.constant 0 : index
    %217 = vector.load %arg18[%c48, %c0_58] : memref<64x384xf32, #tpu.memory_space<vmem>>, vector<8x384xf32>
    %218 = arith.truncf %212 : vector<8x128xf32> to vector<8x128xbf16>
    %cst_59 = arith.constant dense<0.000000e+00> : vector<8x384xf32>
    %219 = tpu.matmul %218, %8, %cst_59 {dimension_numbers = #tpu.dot_dimension_numbers<[1], [0], [0], [1], [0, 0, 1, 1], [], []>} : vector<8x128xbf16>, vector<128x384xbf16>, vector<8x384xf32> -> vector<8x384xf32>
    %220 = arith.addf %219, %11 : vector<8x384xf32>
    %221 = vector.extract_strided_slice %217 {offsets = [0, 0], sizes = [8, 128], strides = [1, 1]} : vector<8x384xf32> to vector<8x128xf32>
    %222 = vector.extract_strided_slice %217 {offsets = [0, 128], sizes = [8, 128], strides = [1, 1]} : vector<8x384xf32> to vector<8x128xf32>
    %223 = vector.extract_strided_slice %217 {offsets = [0, 256], sizes = [8, 128], strides = [1, 1]} : vector<8x384xf32> to vector<8x128xf32>
    %224 = vector.extract_strided_slice %220 {offsets = [0, 0], sizes = [8, 128], strides = [1, 1]} : vector<8x384xf32> to vector<8x128xf32>
    %225 = vector.extract_strided_slice %220 {offsets = [0, 128], sizes = [8, 128], strides = [1, 1]} : vector<8x384xf32> to vector<8x128xf32>
    %226 = vector.extract_strided_slice %220 {offsets = [0, 256], sizes = [8, 128], strides = [1, 1]} : vector<8x384xf32> to vector<8x128xf32>
    %227 = arith.addf %221, %224 : vector<8x128xf32>
    %228 = arith.negf %227 : vector<8x128xf32>
    %229 = math.exp %228 : vector<8x128xf32>
    %cst_60 = arith.constant 1.000000e+00 : f32
    %230 = vector.broadcast %cst_60 : f32 to vector<8x128xf32>
    %231 = arith.addf %230, %229 : vector<8x128xf32>
    %232 = arith.divf %230, %231 : vector<8x128xf32>
    %233 = arith.addf %222, %225 : vector<8x128xf32>
    %234 = arith.negf %233 : vector<8x128xf32>
    %235 = math.exp %234 : vector<8x128xf32>
    %cst_61 = arith.constant 1.000000e+00 : f32
    %236 = vector.broadcast %cst_61 : f32 to vector<8x128xf32>
    %237 = arith.addf %236, %235 : vector<8x128xf32>
    %238 = arith.divf %236, %237 : vector<8x128xf32>
    %239 = arith.mulf %232, %226 : vector<8x128xf32>
    %240 = arith.addf %223, %239 : vector<8x128xf32>
    %241 = math.tanh %240 : vector<8x128xf32>
    %cst_62 = arith.constant 1.000000e+00 : f32
    %242 = vector.broadcast %cst_62 : f32 to vector<8x128xf32>
    %243 = arith.subf %242, %238 : vector<8x128xf32>
    %244 = arith.mulf %243, %241 : vector<8x128xf32>
    %245 = arith.mulf %238, %212 : vector<8x128xf32>
    %246 = arith.addf %244, %245 : vector<8x128xf32>
    %247 = arith.truncf %246 : vector<8x128xf32> to vector<8x128xbf16>
    %c6 = arith.constant 6 : index
    %c0_63 = arith.constant 0 : index
    %c0_64 = arith.constant 0 : index
    %248 = vector.load %arg20[%c6, %c0_63, %c0_64] : memref<8x8x128xbf16, #tpu.memory_space<vmem>>, vector<1x8x128xbf16>
    %249 = vector.shape_cast %248 : vector<1x8x128xbf16> to vector<8x128xbf16>
    %250 = vector.shape_cast %247 : vector<8x128xbf16> to vector<1x8x128xbf16>
    tpu.vector_store %arg20[%c6, %c0_63, %c0_64], %250 {strides = array<i32>} : memref<8x8x128xbf16, #tpu.memory_space<vmem>>, vector<1x8x128xbf16>,
    %c56 = arith.constant 56 : index
    %c0_65 = arith.constant 0 : index
    %251 = vector.load %arg18[%c56, %c0_65] : memref<64x384xf32, #tpu.memory_space<vmem>>, vector<8x384xf32>
    %252 = arith.truncf %246 : vector<8x128xf32> to vector<8x128xbf16>
    %cst_66 = arith.constant dense<0.000000e+00> : vector<8x384xf32>
    %253 = tpu.matmul %252, %8, %cst_66 {dimension_numbers = #tpu.dot_dimension_numbers<[1], [0], [0], [1], [0, 0, 1, 1], [], []>} : vector<8x128xbf16>, vector<128x384xbf16>, vector<8x384xf32> -> vector<8x384xf32>
    %254 = arith.addf %253, %11 : vector<8x384xf32>
    %255 = vector.extract_strided_slice %251 {offsets = [0, 0], sizes = [8, 128], strides = [1, 1]} : vector<8x384xf32> to vector<8x128xf32>
    %256 = vector.extract_strided_slice %251 {offsets = [0, 128], sizes = [8, 128], strides = [1, 1]} : vector<8x384xf32> to vector<8x128xf32>
    %257 = vector.extract_strided_slice %251 {offsets = [0, 256], sizes = [8, 128], strides = [1, 1]} : vector<8x384xf32> to vector<8x128xf32>
    %258 = vector.extract_strided_slice %254 {offsets = [0, 0], sizes = [8, 128], strides = [1, 1]} : vector<8x384xf32> to vector<8x128xf32>
    %259 = vector.extract_strided_slice %254 {offsets = [0, 128], sizes = [8, 128], strides = [1, 1]} : vector<8x384xf32> to vector<8x128xf32>
    %260 = vector.extract_strided_slice %254 {offsets = [0, 256], sizes = [8, 128], strides = [1, 1]} : vector<8x384xf32> to vector<8x128xf32>
    %261 = arith.addf %255, %258 : vector<8x128xf32>
    %262 = arith.negf %261 : vector<8x128xf32>
    %263 = math.exp %262 : vector<8x128xf32>
    %cst_67 = arith.constant 1.000000e+00 : f32
    %264 = vector.broadcast %cst_67 : f32 to vector<8x128xf32>
    %265 = arith.addf %264, %263 : vector<8x128xf32>
    %266 = arith.divf %264, %265 : vector<8x128xf32>
    %267 = arith.addf %256, %259 : vector<8x128xf32>
    %268 = arith.negf %267 : vector<8x128xf32>
    %269 = math.exp %268 : vector<8x128xf32>
    %cst_68 = arith.constant 1.000000e+00 : f32
    %270 = vector.broadcast %cst_68 : f32 to vector<8x128xf32>
    %271 = arith.addf %270, %269 : vector<8x128xf32>
    %272 = arith.divf %270, %271 : vector<8x128xf32>
    %273 = arith.mulf %266, %260 : vector<8x128xf32>
    %274 = arith.addf %257, %273 : vector<8x128xf32>
    %275 = math.tanh %274 : vector<8x128xf32>
    %cst_69 = arith.constant 1.000000e+00 : f32
    %276 = vector.broadcast %cst_69 : f32 to vector<8x128xf32>
    %277 = arith.subf %276, %272 : vector<8x128xf32>
    %278 = arith.mulf %277, %275 : vector<8x128xf32>
    %279 = arith.mulf %272, %246 : vector<8x128xf32>
    %280 = arith.addf %278, %279 : vector<8x128xf32>
    %281 = arith.truncf %280 : vector<8x128xf32> to vector<8x128xbf16>
    %c7 = arith.constant 7 : index
    %c0_70 = arith.constant 0 : index
    %c0_71 = arith.constant 0 : index
    %282 = vector.load %arg20[%c7, %c0_70, %c0_71] : memref<8x8x128xbf16, #tpu.memory_space<vmem>>, vector<1x8x128xbf16>
    %283 = vector.shape_cast %282 : vector<1x8x128xbf16> to vector<8x128xbf16>
    %284 = vector.shape_cast %281 : vector<8x128xbf16> to vector<1x8x128xbf16>
    tpu.vector_store %arg20[%c7, %c0_70, %c0_71], %284 {strides = array<i32>} : memref<8x8x128xbf16, #tpu.memory_space<vmem>>, vector<1x8x128xbf16>,
    %c0_72 = arith.constant 0 : index
    %c0_73 = arith.constant 0 : index
    %c0_74 = arith.constant 0 : index
    %285 = vector.load %arg1[%c0_72, %c0_73, %c0_74] : memref<8x8x128xbf16, #tpu.memory_space<vmem>>, vector<8x8x128xbf16>
    %286 = vector.shape_cast %285 : vector<8x8x128xbf16> to vector<64x128xbf16>
    %c0_75 = arith.constant 0 : index
    %c0_76 = arith.constant 0 : index
    %287 = vector.load %arg7[%c0_75, %c0_76] : memref<128x384xbf16, #tpu.memory_space<vmem>>, vector<128x384xbf16>
    %cst_77 = arith.constant dense<0.000000e+00> : vector<64x384xf32>
    %288 = tpu.matmul %286, %287, %cst_77 {dimension_numbers = #tpu.dot_dimension_numbers<[1], [0], [0], [1], [0, 0, 1, 1], [], []>} : vector<64x128xbf16>, vector<128x384xbf16>, vector<64x384xf32> -> vector<64x384xf32>
    %c0_78 = arith.constant 0 : index
    %c0_79 = arith.constant 0 : index
    %289 = vector.load %arg9[%c0_78, %c0_79] : memref<1x384xf32, #tpu.memory_space<vmem>>, vector<1x384xf32>
    %290 = vector.broadcast %289 : vector<1x384xf32> to vector<64x384xf32>
    %291 = arith.addf %288, %290 : vector<64x384xf32>
    %c0_80 = arith.constant 0 : index
    %c0_81 = arith.constant 0 : index
    %292 = vector.load %arg19[%c0_80, %c0_81] : memref<64x384xf32, #tpu.memory_space<vmem>>, vector<64x384xf32>
    tpu.vector_store %arg19[%c0_80, %c0_81], %291 {strides = array<i32>} : memref<64x384xf32, #tpu.memory_space<vmem>>, vector<64x384xf32>,
    %c0_82 = arith.constant 0 : index
    %c0_83 = arith.constant 0 : index
    %293 = vector.load %arg8[%c0_82, %c0_83] : memref<128x384xbf16, #tpu.memory_space<vmem>>, vector<128x384xbf16>
    %c0_84 = arith.constant 0 : index
    %c0_85 = arith.constant 0 : index
    %294 = vector.load %arg10[%c0_84, %c0_85] : memref<1x384xf32, #tpu.memory_space<vmem>>, vector<1x384xf32>
    %295 = vector.shape_cast %294 : vector<1x384xf32> to vector<1x384xf32>
    %296 = vector.broadcast %295 : vector<1x384xf32> to vector<8x384xf32>
    %c0_86 = arith.constant 0 : index
    %c0_87 = arith.constant 0 : index
    %297 = vector.load %arg19[%c0_86, %c0_87] : memref<64x384xf32, #tpu.memory_space<vmem>>, vector<8x384xf32>
    %298 = arith.truncf %280 : vector<8x128xf32> to vector<8x128xbf16>
    %cst_88 = arith.constant dense<0.000000e+00> : vector<8x384xf32>
    %299 = tpu.matmul %298, %293, %cst_88 {dimension_numbers = #tpu.dot_dimension_numbers<[1], [0], [0], [1], [0, 0, 1, 1], [], []>} : vector<8x128xbf16>, vector<128x384xbf16>, vector<8x384xf32> -> vector<8x384xf32>
    %300 = arith.addf %299, %296 : vector<8x384xf32>
    %301 = vector.extract_strided_slice %297 {offsets = [0, 0], sizes = [8, 128], strides = [1, 1]} : vector<8x384xf32> to vector<8x128xf32>
    %302 = vector.extract_strided_slice %297 {offsets = [0, 128], sizes = [8, 128], strides = [1, 1]} : vector<8x384xf32> to vector<8x128xf32>
    %303 = vector.extract_strided_slice %297 {offsets = [0, 256], sizes = [8, 128], strides = [1, 1]} : vector<8x384xf32> to vector<8x128xf32>
    %304 = vector.extract_strided_slice %300 {offsets = [0, 0], sizes = [8, 128], strides = [1, 1]} : vector<8x384xf32> to vector<8x128xf32>
    %305 = vector.extract_strided_slice %300 {offsets = [0, 128], sizes = [8, 128], strides = [1, 1]} : vector<8x384xf32> to vector<8x128xf32>
    %306 = vector.extract_strided_slice %300 {offsets = [0, 256], sizes = [8, 128], strides = [1, 1]} : vector<8x384xf32> to vector<8x128xf32>
    %307 = arith.addf %301, %304 : vector<8x128xf32>
    %308 = arith.negf %307 : vector<8x128xf32>
    %309 = math.exp %308 : vector<8x128xf32>
    %cst_89 = arith.constant 1.000000e+00 : f32
    %310 = vector.broadcast %cst_89 : f32 to vector<8x128xf32>
    %311 = arith.addf %310, %309 : vector<8x128xf32>
    %312 = arith.divf %310, %311 : vector<8x128xf32>
    %313 = arith.addf %302, %305 : vector<8x128xf32>
    %314 = arith.negf %313 : vector<8x128xf32>
    %315 = math.exp %314 : vector<8x128xf32>
    %cst_90 = arith.constant 1.000000e+00 : f32
    %316 = vector.broadcast %cst_90 : f32 to vector<8x128xf32>
    %317 = arith.addf %316, %315 : vector<8x128xf32>
    %318 = arith.divf %316, %317 : vector<8x128xf32>
    %319 = arith.mulf %312, %306 : vector<8x128xf32>
    %320 = arith.addf %303, %319 : vector<8x128xf32>
    %321 = math.tanh %320 : vector<8x128xf32>
    %cst_91 = arith.constant 1.000000e+00 : f32
    %322 = vector.broadcast %cst_91 : f32 to vector<8x128xf32>
    %323 = arith.subf %322, %318 : vector<8x128xf32>
    %324 = arith.mulf %323, %321 : vector<8x128xf32>
    %325 = arith.mulf %318, %280 : vector<8x128xf32>
    %326 = arith.addf %324, %325 : vector<8x128xf32>
    %327 = arith.truncf %326 : vector<8x128xf32> to vector<8x128xbf16>
    %c0_92 = arith.constant 0 : index
    %c0_93 = arith.constant 0 : index
    %c0_94 = arith.constant 0 : index
    %328 = vector.load %arg21[%c0_92, %c0_93, %c0_94] : memref<8x8x128xbf16, #tpu.memory_space<vmem>>, vector<1x8x128xbf16>
    %329 = vector.shape_cast %328 : vector<1x8x128xbf16> to vector<8x128xbf16>
    %330 = vector.shape_cast %327 : vector<8x128xbf16> to vector<1x8x128xbf16>
    tpu.vector_store %arg21[%c0_92, %c0_93, %c0_94], %330 {strides = array<i32>} : memref<8x8x128xbf16, #tpu.memory_space<vmem>>, vector<1x8x128xbf16>,
    %c8_95 = arith.constant 8 : index
    %c0_96 = arith.constant 0 : index
    %331 = vector.load %arg19[%c8_95, %c0_96] : memref<64x384xf32, #tpu.memory_space<vmem>>, vector<8x384xf32>
    %332 = arith.truncf %326 : vector<8x128xf32> to vector<8x128xbf16>
    %cst_97 = arith.constant dense<0.000000e+00> : vector<8x384xf32>
    %333 = tpu.matmul %332, %293, %cst_97 {dimension_numbers = #tpu.dot_dimension_numbers<[1], [0], [0], [1], [0, 0, 1, 1], [], []>} : vector<8x128xbf16>, vector<128x384xbf16>, vector<8x384xf32> -> vector<8x384xf32>
    %334 = arith.addf %333, %296 : vector<8x384xf32>
    %335 = vector.extract_strided_slice %331 {offsets = [0, 0], sizes = [8, 128], strides = [1, 1]} : vector<8x384xf32> to vector<8x128xf32>
    %336 = vector.extract_strided_slice %331 {offsets = [0, 128], sizes = [8, 128], strides = [1, 1]} : vector<8x384xf32> to vector<8x128xf32>
    %337 = vector.extract_strided_slice %331 {offsets = [0, 256], sizes = [8, 128], strides = [1, 1]} : vector<8x384xf32> to vector<8x128xf32>
    %338 = vector.extract_strided_slice %334 {offsets = [0, 0], sizes = [8, 128], strides = [1, 1]} : vector<8x384xf32> to vector<8x128xf32>
    %339 = vector.extract_strided_slice %334 {offsets = [0, 128], sizes = [8, 128], strides = [1, 1]} : vector<8x384xf32> to vector<8x128xf32>
    %340 = vector.extract_strided_slice %334 {offsets = [0, 256], sizes = [8, 128], strides = [1, 1]} : vector<8x384xf32> to vector<8x128xf32>
    %341 = arith.addf %335, %338 : vector<8x128xf32>
    %342 = arith.negf %341 : vector<8x128xf32>
    %343 = math.exp %342 : vector<8x128xf32>
    %cst_98 = arith.constant 1.000000e+00 : f32
    %344 = vector.broadcast %cst_98 : f32 to vector<8x128xf32>
    %345 = arith.addf %344, %343 : vector<8x128xf32>
    %346 = arith.divf %344, %345 : vector<8x128xf32>
    %347 = arith.addf %336, %339 : vector<8x128xf32>
    %348 = arith.negf %347 : vector<8x128xf32>
    %349 = math.exp %348 : vector<8x128xf32>
    %cst_99 = arith.constant 1.000000e+00 : f32
    %350 = vector.broadcast %cst_99 : f32 to vector<8x128xf32>
    %351 = arith.addf %350, %349 : vector<8x128xf32>
    %352 = arith.divf %350, %351 : vector<8x128xf32>
    %353 = arith.mulf %346, %340 : vector<8x128xf32>
    %354 = arith.addf %337, %353 : vector<8x128xf32>
    %355 = math.tanh %354 : vector<8x128xf32>
    %cst_100 = arith.constant 1.000000e+00 : f32
    %356 = vector.broadcast %cst_100 : f32 to vector<8x128xf32>
    %357 = arith.subf %356, %352 : vector<8x128xf32>
    %358 = arith.mulf %357, %355 : vector<8x128xf32>
    %359 = arith.mulf %352, %326 : vector<8x128xf32>
    %360 = arith.addf %358, %359 : vector<8x128xf32>
    %361 = arith.truncf %360 : vector<8x128xf32> to vector<8x128xbf16>
    %c1_101 = arith.constant 1 : index
    %c0_102 = arith.constant 0 : index
    %c0_103 = arith.constant 0 : index
    %362 = vector.load %arg21[%c1_101, %c0_102, %c0_103] : memref<8x8x128xbf16, #tpu.memory_space<vmem>>, vector<1x8x128xbf16>
    %363 = vector.shape_cast %362 : vector<1x8x128xbf16> to vector<8x128xbf16>
    %364 = vector.shape_cast %361 : vector<8x128xbf16> to vector<1x8x128xbf16>
    tpu.vector_store %arg21[%c1_101, %c0_102, %c0_103], %364 {strides = array<i32>} : memref<8x8x128xbf16, #tpu.memory_space<vmem>>, vector<1x8x128xbf16>,
    %c16_104 = arith.constant 16 : index
    %c0_105 = arith.constant 0 : index
    %365 = vector.load %arg19[%c16_104, %c0_105] : memref<64x384xf32, #tpu.memory_space<vmem>>, vector<8x384xf32>
    %366 = arith.truncf %360 : vector<8x128xf32> to vector<8x128xbf16>
    %cst_106 = arith.constant dense<0.000000e+00> : vector<8x384xf32>
    %367 = tpu.matmul %366, %293, %cst_106 {dimension_numbers = #tpu.dot_dimension_numbers<[1], [0], [0], [1], [0, 0, 1, 1], [], []>} : vector<8x128xbf16>, vector<128x384xbf16>, vector<8x384xf32> -> vector<8x384xf32>
    %368 = arith.addf %367, %296 : vector<8x384xf32>
    %369 = vector.extract_strided_slice %365 {offsets = [0, 0], sizes = [8, 128], strides = [1, 1]} : vector<8x384xf32> to vector<8x128xf32>
    %370 = vector.extract_strided_slice %365 {offsets = [0, 128], sizes = [8, 128], strides = [1, 1]} : vector<8x384xf32> to vector<8x128xf32>
    %371 = vector.extract_strided_slice %365 {offsets = [0, 256], sizes = [8, 128], strides = [1, 1]} : vector<8x384xf32> to vector<8x128xf32>
    %372 = vector.extract_strided_slice %368 {offsets = [0, 0], sizes = [8, 128], strides = [1, 1]} : vector<8x384xf32> to vector<8x128xf32>
    %373 = vector.extract_strided_slice %368 {offsets = [0, 128], sizes = [8, 128], strides = [1, 1]} : vector<8x384xf32> to vector<8x128xf32>
    %374 = vector.extract_strided_slice %368 {offsets = [0, 256], sizes = [8, 128], strides = [1, 1]} : vector<8x384xf32> to vector<8x128xf32>
    %375 = arith.addf %369, %372 : vector<8x128xf32>
    %376 = arith.negf %375 : vector<8x128xf32>
    %377 = math.exp %376 : vector<8x128xf32>
    %cst_107 = arith.constant 1.000000e+00 : f32
    %378 = vector.broadcast %cst_107 : f32 to vector<8x128xf32>
    %379 = arith.addf %378, %377 : vector<8x128xf32>
    %380 = arith.divf %378, %379 : vector<8x128xf32>
    %381 = arith.addf %370, %373 : vector<8x128xf32>
    %382 = arith.negf %381 : vector<8x128xf32>
    %383 = math.exp %382 : vector<8x128xf32>
    %cst_108 = arith.constant 1.000000e+00 : f32
    %384 = vector.broadcast %cst_108 : f32 to vector<8x128xf32>
    %385 = arith.addf %384, %383 : vector<8x128xf32>
    %386 = arith.divf %384, %385 : vector<8x128xf32>
    %387 = arith.mulf %380, %374 : vector<8x128xf32>
    %388 = arith.addf %371, %387 : vector<8x128xf32>
    %389 = math.tanh %388 : vector<8x128xf32>
    %cst_109 = arith.constant 1.000000e+00 : f32
    %390 = vector.broadcast %cst_109 : f32 to vector<8x128xf32>
    %391 = arith.subf %390, %386 : vector<8x128xf32>
    %392 = arith.mulf %391, %389 : vector<8x128xf32>
    %393 = arith.mulf %386, %360 : vector<8x128xf32>
    %394 = arith.addf %392, %393 : vector<8x128xf32>
    %395 = arith.truncf %394 : vector<8x128xf32> to vector<8x128xbf16>
    %c2_110 = arith.constant 2 : index
    %c0_111 = arith.constant 0 : index
    %c0_112 = arith.constant 0 : index
    %396 = vector.load %arg21[%c2_110, %c0_111, %c0_112] : memref<8x8x128xbf16, #tpu.memory_space<vmem>>, vector<1x8x128xbf16>
    %397 = vector.shape_cast %396 : vector<1x8x128xbf16> to vector<8x128xbf16>
    %398 = vector.shape_cast %395 : vector<8x128xbf16> to vector<1x8x128xbf16>
    tpu.vector_store %arg21[%c2_110, %c0_111, %c0_112], %398 {strides = array<i32>} : memref<8x8x128xbf16, #tpu.memory_space<vmem>>, vector<1x8x128xbf16>,
    %c24_113 = arith.constant 24 : index
    %c0_114 = arith.constant 0 : index
    %399 = vector.load %arg19[%c24_113, %c0_114] : memref<64x384xf32, #tpu.memory_space<vmem>>, vector<8x384xf32>
    %400 = arith.truncf %394 : vector<8x128xf32> to vector<8x128xbf16>
    %cst_115 = arith.constant dense<0.000000e+00> : vector<8x384xf32>
    %401 = tpu.matmul %400, %293, %cst_115 {dimension_numbers = #tpu.dot_dimension_numbers<[1], [0], [0], [1], [0, 0, 1, 1], [], []>} : vector<8x128xbf16>, vector<128x384xbf16>, vector<8x384xf32> -> vector<8x384xf32>
    %402 = arith.addf %401, %296 : vector<8x384xf32>
    %403 = vector.extract_strided_slice %399 {offsets = [0, 0], sizes = [8, 128], strides = [1, 1]} : vector<8x384xf32> to vector<8x128xf32>
    %404 = vector.extract_strided_slice %399 {offsets = [0, 128], sizes = [8, 128], strides = [1, 1]} : vector<8x384xf32> to vector<8x128xf32>
    %405 = vector.extract_strided_slice %399 {offsets = [0, 256], sizes = [8, 128], strides = [1, 1]} : vector<8x384xf32> to vector<8x128xf32>
    %406 = vector.extract_strided_slice %402 {offsets = [0, 0], sizes = [8, 128], strides = [1, 1]} : vector<8x384xf32> to vector<8x128xf32>
    %407 = vector.extract_strided_slice %402 {offsets = [0, 128], sizes = [8, 128], strides = [1, 1]} : vector<8x384xf32> to vector<8x128xf32>
    %408 = vector.extract_strided_slice %402 {offsets = [0, 256], sizes = [8, 128], strides = [1, 1]} : vector<8x384xf32> to vector<8x128xf32>
    %409 = arith.addf %403, %406 : vector<8x128xf32>
    %410 = arith.negf %409 : vector<8x128xf32>
    %411 = math.exp %410 : vector<8x128xf32>
    %cst_116 = arith.constant 1.000000e+00 : f32
    %412 = vector.broadcast %cst_116 : f32 to vector<8x128xf32>
    %413 = arith.addf %412, %411 : vector<8x128xf32>
    %414 = arith.divf %412, %413 : vector<8x128xf32>
    %415 = arith.addf %404, %407 : vector<8x128xf32>
    %416 = arith.negf %415 : vector<8x128xf32>
    %417 = math.exp %416 : vector<8x128xf32>
    %cst_117 = arith.constant 1.000000e+00 : f32
    %418 = vector.broadcast %cst_117 : f32 to vector<8x128xf32>
    %419 = arith.addf %418, %417 : vector<8x128xf32>
    %420 = arith.divf %418, %419 : vector<8x128xf32>
    %421 = arith.mulf %414, %408 : vector<8x128xf32>
    %422 = arith.addf %405, %421 : vector<8x128xf32>
    %423 = math.tanh %422 : vector<8x128xf32>
    %cst_118 = arith.constant 1.000000e+00 : f32
    %424 = vector.broadcast %cst_118 : f32 to vector<8x128xf32>
    %425 = arith.subf %424, %420 : vector<8x128xf32>
    %426 = arith.mulf %425, %423 : vector<8x128xf32>
    %427 = arith.mulf %420, %394 : vector<8x128xf32>
    %428 = arith.addf %426, %427 : vector<8x128xf32>
    %429 = arith.truncf %428 : vector<8x128xf32> to vector<8x128xbf16>
    %c3_119 = arith.constant 3 : index
    %c0_120 = arith.constant 0 : index
    %c0_121 = arith.constant 0 : index
    %430 = vector.load %arg21[%c3_119, %c0_120, %c0_121] : memref<8x8x128xbf16, #tpu.memory_space<vmem>>, vector<1x8x128xbf16>
    %431 = vector.shape_cast %430 : vector<1x8x128xbf16> to vector<8x128xbf16>
    %432 = vector.shape_cast %429 : vector<8x128xbf16> to vector<1x8x128xbf16>
    tpu.vector_store %arg21[%c3_119, %c0_120, %c0_121], %432 {strides = array<i32>} : memref<8x8x128xbf16, #tpu.memory_space<vmem>>, vector<1x8x128xbf16>,
    %c32_122 = arith.constant 32 : index
    %c0_123 = arith.constant 0 : index
    %433 = vector.load %arg19[%c32_122, %c0_123] : memref<64x384xf32, #tpu.memory_space<vmem>>, vector<8x384xf32>
    %434 = arith.truncf %428 : vector<8x128xf32> to vector<8x128xbf16>
    %cst_124 = arith.constant dense<0.000000e+00> : vector<8x384xf32>
    %435 = tpu.matmul %434, %293, %cst_124 {dimension_numbers = #tpu.dot_dimension_numbers<[1], [0], [0], [1], [0, 0, 1, 1], [], []>} : vector<8x128xbf16>, vector<128x384xbf16>, vector<8x384xf32> -> vector<8x384xf32>
    %436 = arith.addf %435, %296 : vector<8x384xf32>
    %437 = vector.extract_strided_slice %433 {offsets = [0, 0], sizes = [8, 128], strides = [1, 1]} : vector<8x384xf32> to vector<8x128xf32>
    %438 = vector.extract_strided_slice %433 {offsets = [0, 128], sizes = [8, 128], strides = [1, 1]} : vector<8x384xf32> to vector<8x128xf32>
    %439 = vector.extract_strided_slice %433 {offsets = [0, 256], sizes = [8, 128], strides = [1, 1]} : vector<8x384xf32> to vector<8x128xf32>
    %440 = vector.extract_strided_slice %436 {offsets = [0, 0], sizes = [8, 128], strides = [1, 1]} : vector<8x384xf32> to vector<8x128xf32>
    %441 = vector.extract_strided_slice %436 {offsets = [0, 128], sizes = [8, 128], strides = [1, 1]} : vector<8x384xf32> to vector<8x128xf32>
    %442 = vector.extract_strided_slice %436 {offsets = [0, 256], sizes = [8, 128], strides = [1, 1]} : vector<8x384xf32> to vector<8x128xf32>
    %443 = arith.addf %437, %440 : vector<8x128xf32>
    %444 = arith.negf %443 : vector<8x128xf32>
    %445 = math.exp %444 : vector<8x128xf32>
    %cst_125 = arith.constant 1.000000e+00 : f32
    %446 = vector.broadcast %cst_125 : f32 to vector<8x128xf32>
    %447 = arith.addf %446, %445 : vector<8x128xf32>
    %448 = arith.divf %446, %447 : vector<8x128xf32>
    %449 = arith.addf %438, %441 : vector<8x128xf32>
    %450 = arith.negf %449 : vector<8x128xf32>
    %451 = math.exp %450 : vector<8x128xf32>
    %cst_126 = arith.constant 1.000000e+00 : f32
    %452 = vector.broadcast %cst_126 : f32 to vector<8x128xf32>
    %453 = arith.addf %452, %451 : vector<8x128xf32>
    %454 = arith.divf %452, %453 : vector<8x128xf32>
    %455 = arith.mulf %448, %442 : vector<8x128xf32>
    %456 = arith.addf %439, %455 : vector<8x128xf32>
    %457 = math.tanh %456 : vector<8x128xf32>
    %cst_127 = arith.constant 1.000000e+00 : f32
    %458 = vector.broadcast %cst_127 : f32 to vector<8x128xf32>
    %459 = arith.subf %458, %454 : vector<8x128xf32>
    %460 = arith.mulf %459, %457 : vector<8x128xf32>
    %461 = arith.mulf %454, %428 : vector<8x128xf32>
    %462 = arith.addf %460, %461 : vector<8x128xf32>
    %463 = arith.truncf %462 : vector<8x128xf32> to vector<8x128xbf16>
    %c4_128 = arith.constant 4 : index
    %c0_129 = arith.constant 0 : index
    %c0_130 = arith.constant 0 : index
    %464 = vector.load %arg21[%c4_128, %c0_129, %c0_130] : memref<8x8x128xbf16, #tpu.memory_space<vmem>>, vector<1x8x128xbf16>
    %465 = vector.shape_cast %464 : vector<1x8x128xbf16> to vector<8x128xbf16>
    %466 = vector.shape_cast %463 : vector<8x128xbf16> to vector<1x8x128xbf16>
    tpu.vector_store %arg21[%c4_128, %c0_129, %c0_130], %466 {strides = array<i32>} : memref<8x8x128xbf16, #tpu.memory_space<vmem>>, vector<1x8x128xbf16>,
    %c40_131 = arith.constant 40 : index
    %c0_132 = arith.constant 0 : index
    %467 = vector.load %arg19[%c40_131, %c0_132] : memref<64x384xf32, #tpu.memory_space<vmem>>, vector<8x384xf32>
    %468 = arith.truncf %462 : vector<8x128xf32> to vector<8x128xbf16>
    %cst_133 = arith.constant dense<0.000000e+00> : vector<8x384xf32>
    %469 = tpu.matmul %468, %293, %cst_133 {dimension_numbers = #tpu.dot_dimension_numbers<[1], [0], [0], [1], [0, 0, 1, 1], [], []>} : vector<8x128xbf16>, vector<128x384xbf16>, vector<8x384xf32> -> vector<8x384xf32>
    %470 = arith.addf %469, %296 : vector<8x384xf32>
    %471 = vector.extract_strided_slice %467 {offsets = [0, 0], sizes = [8, 128], strides = [1, 1]} : vector<8x384xf32> to vector<8x128xf32>
    %472 = vector.extract_strided_slice %467 {offsets = [0, 128], sizes = [8, 128], strides = [1, 1]} : vector<8x384xf32> to vector<8x128xf32>
    %473 = vector.extract_strided_slice %467 {offsets = [0, 256], sizes = [8, 128], strides = [1, 1]} : vector<8x384xf32> to vector<8x128xf32>
    %474 = vector.extract_strided_slice %470 {offsets = [0, 0], sizes = [8, 128], strides = [1, 1]} : vector<8x384xf32> to vector<8x128xf32>
    %475 = vector.extract_strided_slice %470 {offsets = [0, 128], sizes = [8, 128], strides = [1, 1]} : vector<8x384xf32> to vector<8x128xf32>
    %476 = vector.extract_strided_slice %470 {offsets = [0, 256], sizes = [8, 128], strides = [1, 1]} : vector<8x384xf32> to vector<8x128xf32>
    %477 = arith.addf %471, %474 : vector<8x128xf32>
    %478 = arith.negf %477 : vector<8x128xf32>
    %479 = math.exp %478 : vector<8x128xf32>
    %cst_134 = arith.constant 1.000000e+00 : f32
    %480 = vector.broadcast %cst_134 : f32 to vector<8x128xf32>
    %481 = arith.addf %480, %479 : vector<8x128xf32>
    %482 = arith.divf %480, %481 : vector<8x128xf32>
    %483 = arith.addf %472, %475 : vector<8x128xf32>
    %484 = arith.negf %483 : vector<8x128xf32>
    %485 = math.exp %484 : vector<8x128xf32>
    %cst_135 = arith.constant 1.000000e+00 : f32
    %486 = vector.broadcast %cst_135 : f32 to vector<8x128xf32>
    %487 = arith.addf %486, %485 : vector<8x128xf32>
    %488 = arith.divf %486, %487 : vector<8x128xf32>
    %489 = arith.mulf %482, %476 : vector<8x128xf32>
    %490 = arith.addf %473, %489 : vector<8x128xf32>
    %491 = math.tanh %490 : vector<8x128xf32>
    %cst_136 = arith.constant 1.000000e+00 : f32
    %492 = vector.broadcast %cst_136 : f32 to vector<8x128xf32>
    %493 = arith.subf %492, %488 : vector<8x128xf32>
    %494 = arith.mulf %493, %491 : vector<8x128xf32>
    %495 = arith.mulf %488, %462 : vector<8x128xf32>
    %496 = arith.addf %494, %495 : vector<8x128xf32>
    %497 = arith.truncf %496 : vector<8x128xf32> to vector<8x128xbf16>
    %c5_137 = arith.constant 5 : index
    %c0_138 = arith.constant 0 : index
    %c0_139 = arith.constant 0 : index
    %498 = vector.load %arg21[%c5_137, %c0_138, %c0_139] : memref<8x8x128xbf16, #tpu.memory_space<vmem>>, vector<1x8x128xbf16>
    %499 = vector.shape_cast %498 : vector<1x8x128xbf16> to vector<8x128xbf16>
    %500 = vector.shape_cast %497 : vector<8x128xbf16> to vector<1x8x128xbf16>
    tpu.vector_store %arg21[%c5_137, %c0_138, %c0_139], %500 {strides = array<i32>} : memref<8x8x128xbf16, #tpu.memory_space<vmem>>, vector<1x8x128xbf16>,
    %c48_140 = arith.constant 48 : index
    %c0_141 = arith.constant 0 : index
    %501 = vector.load %arg19[%c48_140, %c0_141] : memref<64x384xf32, #tpu.memory_space<vmem>>, vector<8x384xf32>
    %502 = arith.truncf %496 : vector<8x128xf32> to vector<8x128xbf16>
    %cst_142 = arith.constant dense<0.000000e+00> : vector<8x384xf32>
    %503 = tpu.matmul %502, %293, %cst_142 {dimension_numbers = #tpu.dot_dimension_numbers<[1], [0], [0], [1], [0, 0, 1, 1], [], []>} : vector<8x128xbf16>, vector<128x384xbf16>, vector<8x384xf32> -> vector<8x384xf32>
    %504 = arith.addf %503, %296 : vector<8x384xf32>
    %505 = vector.extract_strided_slice %501 {offsets = [0, 0], sizes = [8, 128], strides = [1, 1]} : vector<8x384xf32> to vector<8x128xf32>
    %506 = vector.extract_strided_slice %501 {offsets = [0, 128], sizes = [8, 128], strides = [1, 1]} : vector<8x384xf32> to vector<8x128xf32>
    %507 = vector.extract_strided_slice %501 {offsets = [0, 256], sizes = [8, 128], strides = [1, 1]} : vector<8x384xf32> to vector<8x128xf32>
    %508 = vector.extract_strided_slice %504 {offsets = [0, 0], sizes = [8, 128], strides = [1, 1]} : vector<8x384xf32> to vector<8x128xf32>
    %509 = vector.extract_strided_slice %504 {offsets = [0, 128], sizes = [8, 128], strides = [1, 1]} : vector<8x384xf32> to vector<8x128xf32>
    %510 = vector.extract_strided_slice %504 {offsets = [0, 256], sizes = [8, 128], strides = [1, 1]} : vector<8x384xf32> to vector<8x128xf32>
    %511 = arith.addf %505, %508 : vector<8x128xf32>
    %512 = arith.negf %511 : vector<8x128xf32>
    %513 = math.exp %512 : vector<8x128xf32>
    %cst_143 = arith.constant 1.000000e+00 : f32
    %514 = vector.broadcast %cst_143 : f32 to vector<8x128xf32>
    %515 = arith.addf %514, %513 : vector<8x128xf32>
    %516 = arith.divf %514, %515 : vector<8x128xf32>
    %517 = arith.addf %506, %509 : vector<8x128xf32>
    %518 = arith.negf %517 : vector<8x128xf32>
    %519 = math.exp %518 : vector<8x128xf32>
    %cst_144 = arith.constant 1.000000e+00 : f32
    %520 = vector.broadcast %cst_144 : f32 to vector<8x128xf32>
    %521 = arith.addf %520, %519 : vector<8x128xf32>
    %522 = arith.divf %520, %521 : vector<8x128xf32>
    %523 = arith.mulf %516, %510 : vector<8x128xf32>
    %524 = arith.addf %507, %523 : vector<8x128xf32>
    %525 = math.tanh %524 : vector<8x128xf32>
    %cst_145 = arith.constant 1.000000e+00 : f32
    %526 = vector.broadcast %cst_145 : f32 to vector<8x128xf32>
    %527 = arith.subf %526, %522 : vector<8x128xf32>
    %528 = arith.mulf %527, %525 : vector<8x128xf32>
    %529 = arith.mulf %522, %496 : vector<8x128xf32>
    %530 = arith.addf %528, %529 : vector<8x128xf32>
    %531 = arith.truncf %530 : vector<8x128xf32> to vector<8x128xbf16>
    %c6_146 = arith.constant 6 : index
    %c0_147 = arith.constant 0 : index
    %c0_148 = arith.constant 0 : index
    %532 = vector.load %arg21[%c6_146, %c0_147, %c0_148] : memref<8x8x128xbf16, #tpu.memory_space<vmem>>, vector<1x8x128xbf16>
    %533 = vector.shape_cast %532 : vector<1x8x128xbf16> to vector<8x128xbf16>
    %534 = vector.shape_cast %531 : vector<8x128xbf16> to vector<1x8x128xbf16>
    tpu.vector_store %arg21[%c6_146, %c0_147, %c0_148], %534 {strides = array<i32>} : memref<8x8x128xbf16, #tpu.memory_space<vmem>>, vector<1x8x128xbf16>,
    %c56_149 = arith.constant 56 : index
    %c0_150 = arith.constant 0 : index
    %535 = vector.load %arg19[%c56_149, %c0_150] : memref<64x384xf32, #tpu.memory_space<vmem>>, vector<8x384xf32>
    %536 = arith.truncf %530 : vector<8x128xf32> to vector<8x128xbf16>
    %cst_151 = arith.constant dense<0.000000e+00> : vector<8x384xf32>
    %537 = tpu.matmul %536, %293, %cst_151 {dimension_numbers = #tpu.dot_dimension_numbers<[1], [0], [0], [1], [0, 0, 1, 1], [], []>} : vector<8x128xbf16>, vector<128x384xbf16>, vector<8x384xf32> -> vector<8x384xf32>
    %538 = arith.addf %537, %296 : vector<8x384xf32>
    %539 = vector.extract_strided_slice %535 {offsets = [0, 0], sizes = [8, 128], strides = [1, 1]} : vector<8x384xf32> to vector<8x128xf32>
    %540 = vector.extract_strided_slice %535 {offsets = [0, 128], sizes = [8, 128], strides = [1, 1]} : vector<8x384xf32> to vector<8x128xf32>
    %541 = vector.extract_strided_slice %535 {offsets = [0, 256], sizes = [8, 128], strides = [1, 1]} : vector<8x384xf32> to vector<8x128xf32>
    %542 = vector.extract_strided_slice %538 {offsets = [0, 0], sizes = [8, 128], strides = [1, 1]} : vector<8x384xf32> to vector<8x128xf32>
    %543 = vector.extract_strided_slice %538 {offsets = [0, 128], sizes = [8, 128], strides = [1, 1]} : vector<8x384xf32> to vector<8x128xf32>
    %544 = vector.extract_strided_slice %538 {offsets = [0, 256], sizes = [8, 128], strides = [1, 1]} : vector<8x384xf32> to vector<8x128xf32>
    %545 = arith.addf %539, %542 : vector<8x128xf32>
    %546 = arith.negf %545 : vector<8x128xf32>
    %547 = math.exp %546 : vector<8x128xf32>
    %cst_152 = arith.constant 1.000000e+00 : f32
    %548 = vector.broadcast %cst_152 : f32 to vector<8x128xf32>
    %549 = arith.addf %548, %547 : vector<8x128xf32>
    %550 = arith.divf %548, %549 : vector<8x128xf32>
    %551 = arith.addf %540, %543 : vector<8x128xf32>
    %552 = arith.negf %551 : vector<8x128xf32>
    %553 = math.exp %552 : vector<8x128xf32>
    %cst_153 = arith.constant 1.000000e+00 : f32
    %554 = vector.broadcast %cst_153 : f32 to vector<8x128xf32>
    %555 = arith.addf %554, %553 : vector<8x128xf32>
    %556 = arith.divf %554, %555 : vector<8x128xf32>
    %557 = arith.mulf %550, %544 : vector<8x128xf32>
    %558 = arith.addf %541, %557 : vector<8x128xf32>
    %559 = math.tanh %558 : vector<8x128xf32>
    %cst_154 = arith.constant 1.000000e+00 : f32
    %560 = vector.broadcast %cst_154 : f32 to vector<8x128xf32>
    %561 = arith.subf %560, %556 : vector<8x128xf32>
    %562 = arith.mulf %561, %559 : vector<8x128xf32>
    %563 = arith.mulf %556, %530 : vector<8x128xf32>
    %564 = arith.addf %562, %563 : vector<8x128xf32>
    %565 = arith.truncf %564 : vector<8x128xf32> to vector<8x128xbf16>
    %c7_155 = arith.constant 7 : index
    %c0_156 = arith.constant 0 : index
    %c0_157 = arith.constant 0 : index
    %566 = vector.load %arg21[%c7_155, %c0_156, %c0_157] : memref<8x8x128xbf16, #tpu.memory_space<vmem>>, vector<1x8x128xbf16>
    %567 = vector.shape_cast %566 : vector<1x8x128xbf16> to vector<8x128xbf16>
    %568 = vector.shape_cast %565 : vector<8x128xbf16> to vector<1x8x128xbf16>
    tpu.vector_store %arg21[%c7_155, %c0_156, %c0_157], %568 {strides = array<i32>} : memref<8x8x128xbf16, #tpu.memory_space<vmem>>, vector<1x8x128xbf16>,
    %c0_158 = arith.constant 0 : index
    %c0_159 = arith.constant 0 : index
    %569 = vector.load %arg17[%c0_158, %c0_159] : memref<8x128xf32, #tpu.memory_space<vmem>>, vector<8x128xf32>
    tpu.vector_store %arg17[%c0_158, %c0_159], %564 {strides = array<i32>} : memref<8x128xf32, #tpu.memory_space<vmem>>, vector<8x128xf32>,
    %c0_160 = arith.constant 0 : index
    %c0_161 = arith.constant 0 : index
    %c0_162 = arith.constant 0 : index
    %570 = vector.load %arg20[%c0_160, %c0_161, %c0_162] : memref<8x8x128xbf16, #tpu.memory_space<vmem>>, vector<8x8x128xbf16>
    %c0_163 = arith.constant 0 : index
    %c0_164 = arith.constant 0 : index
    %c0_165 = arith.constant 0 : index
    %571 = vector.load %arg21[%c0_163, %c0_164, %c0_165] : memref<8x8x128xbf16, #tpu.memory_space<vmem>>, vector<8x8x128xbf16>
    %572 = vector.extract_strided_slice %571 {offsets = [0, 0, 0], sizes = [8, 1, 128], strides = [1, 1, 1]} : vector<8x8x128xbf16> to vector<8x1x128xbf16>
    %573 = vector.shape_cast %572 : vector<8x1x128xbf16> to vector<8x128xbf16>
    %574 = vector.extract_strided_slice %570 {offsets = [0, 0, 0], sizes = [8, 1, 128], strides = [1, 1, 1]} : vector<8x8x128xbf16> to vector<8x1x128xbf16>
    %575 = vector.shape_cast %574 : vector<8x1x128xbf16> to vector<8x128xbf16>
    %cst_166 = arith.constant dense<0.000000e+00> : vector<8x8xf32>
    %576 = tpu.matmul %573, %575, %cst_166 {dimension_numbers = #tpu.dot_dimension_numbers<[1], [1], [0], [0], [0, 0, 1, 0], [], []>} : vector<8x128xbf16>, vector<8x128xbf16>, vector<8x8xf32> -> vector<8x8xf32>
    %cst_167 = arith.constant dense<0xFF800000> : vector<8xf32>
    %577 = vector.multi_reduction <maximumf>, %576, %cst_167 [1] : vector<8x8xf32> to vector<8xf32>
    %578 = vector.shape_cast %577 : vector<8xf32> to vector<8x1xf32>
    %579 = vector.broadcast %578 : vector<8x1xf32> to vector<8x8xf32>
    %580 = arith.subf %576, %579 : vector<8x8xf32>
    %581 = math.exp %580 : vector<8x8xf32>
    %cst_168 = arith.constant dense<0.000000e+00> : vector<8xf32>
    %582 = vector.multi_reduction <add>, %581, %cst_168 [1] : vector<8x8xf32> to vector<8xf32>
    %583 = vector.shape_cast %582 : vector<8xf32> to vector<8x1xf32>
    %584 = vector.broadcast %583 : vector<8x1xf32> to vector<8x8xf32>
    %585 = arith.divf %581, %584 : vector<8x8xf32>
    %586 = arith.truncf %585 : vector<8x8xf32> to vector<8x8xbf16>
    %cst_169 = arith.constant dense<0.000000e+00> : vector<8x128xf32>
    %587 = tpu.matmul %586, %575, %cst_169 {dimension_numbers = #tpu.dot_dimension_numbers<[1], [0], [0], [1], [0, 0, 1, 1], [], []>} : vector<8x8xbf16>, vector<8x128xbf16>, vector<8x128xf32> -> vector<8x128xf32>
    %588 = vector.shape_cast %587 : vector<8x128xf32> to vector<8x1x128xf32>
    %589 = vector.extract_strided_slice %571 {offsets = [0, 1, 0], sizes = [8, 1, 128], strides = [1, 1, 1]} : vector<8x8x128xbf16> to vector<8x1x128xbf16>
    %590 = vector.shape_cast %589 : vector<8x1x128xbf16> to vector<8x128xbf16>
    %591 = vector.extract_strided_slice %570 {offsets = [0, 1, 0], sizes = [8, 1, 128], strides = [1, 1, 1]} : vector<8x8x128xbf16> to vector<8x1x128xbf16>
    %592 = vector.shape_cast %591 : vector<8x1x128xbf16> to vector<8x128xbf16>
    %cst_170 = arith.constant dense<0.000000e+00> : vector<8x8xf32>
    %593 = tpu.matmul %590, %592, %cst_170 {dimension_numbers = #tpu.dot_dimension_numbers<[1], [1], [0], [0], [0, 0, 1, 0], [], []>} : vector<8x128xbf16>, vector<8x128xbf16>, vector<8x8xf32> -> vector<8x8xf32>
    %cst_171 = arith.constant dense<0xFF800000> : vector<8xf32>
    %594 = vector.multi_reduction <maximumf>, %593, %cst_171 [1] : vector<8x8xf32> to vector<8xf32>
    %595 = vector.shape_cast %594 : vector<8xf32> to vector<8x1xf32>
    %596 = vector.broadcast %595 : vector<8x1xf32> to vector<8x8xf32>
    %597 = arith.subf %593, %596 : vector<8x8xf32>
    %598 = math.exp %597 : vector<8x8xf32>
    %cst_172 = arith.constant dense<0.000000e+00> : vector<8xf32>
    %599 = vector.multi_reduction <add>, %598, %cst_172 [1] : vector<8x8xf32> to vector<8xf32>
    %600 = vector.shape_cast %599 : vector<8xf32> to vector<8x1xf32>
    %601 = vector.broadcast %600 : vector<8x1xf32> to vector<8x8xf32>
    %602 = arith.divf %598, %601 : vector<8x8xf32>
    %603 = arith.truncf %602 : vector<8x8xf32> to vector<8x8xbf16>
    %cst_173 = arith.constant dense<0.000000e+00> : vector<8x128xf32>
    %604 = tpu.matmul %603, %592, %cst_173 {dimension_numbers = #tpu.dot_dimension_numbers<[1], [0], [0], [1], [0, 0, 1, 1], [], []>} : vector<8x8xbf16>, vector<8x128xbf16>, vector<8x128xf32> -> vector<8x128xf32>
    %605 = vector.shape_cast %604 : vector<8x128xf32> to vector<8x1x128xf32>
    %606 = vector.extract_strided_slice %571 {offsets = [0, 2, 0], sizes = [8, 1, 128], strides = [1, 1, 1]} : vector<8x8x128xbf16> to vector<8x1x128xbf16>
    %607 = vector.shape_cast %606 : vector<8x1x128xbf16> to vector<8x128xbf16>
    %608 = vector.extract_strided_slice %570 {offsets = [0, 2, 0], sizes = [8, 1, 128], strides = [1, 1, 1]} : vector<8x8x128xbf16> to vector<8x1x128xbf16>
    %609 = vector.shape_cast %608 : vector<8x1x128xbf16> to vector<8x128xbf16>
    %cst_174 = arith.constant dense<0.000000e+00> : vector<8x8xf32>
    %610 = tpu.matmul %607, %609, %cst_174 {dimension_numbers = #tpu.dot_dimension_numbers<[1], [1], [0], [0], [0, 0, 1, 0], [], []>} : vector<8x128xbf16>, vector<8x128xbf16>, vector<8x8xf32> -> vector<8x8xf32>
    %cst_175 = arith.constant dense<0xFF800000> : vector<8xf32>
    %611 = vector.multi_reduction <maximumf>, %610, %cst_175 [1] : vector<8x8xf32> to vector<8xf32>
    %612 = vector.shape_cast %611 : vector<8xf32> to vector<8x1xf32>
    %613 = vector.broadcast %612 : vector<8x1xf32> to vector<8x8xf32>
    %614 = arith.subf %610, %613 : vector<8x8xf32>
    %615 = math.exp %614 : vector<8x8xf32>
    %cst_176 = arith.constant dense<0.000000e+00> : vector<8xf32>
    %616 = vector.multi_reduction <add>, %615, %cst_176 [1] : vector<8x8xf32> to vector<8xf32>
    %617 = vector.shape_cast %616 : vector<8xf32> to vector<8x1xf32>
    %618 = vector.broadcast %617 : vector<8x1xf32> to vector<8x8xf32>
    %619 = arith.divf %615, %618 : vector<8x8xf32>
    %620 = arith.truncf %619 : vector<8x8xf32> to vector<8x8xbf16>
    %cst_177 = arith.constant dense<0.000000e+00> : vector<8x128xf32>
    %621 = tpu.matmul %620, %609, %cst_177 {dimension_numbers = #tpu.dot_dimension_numbers<[1], [0], [0], [1], [0, 0, 1, 1], [], []>} : vector<8x8xbf16>, vector<8x128xbf16>, vector<8x128xf32> -> vector<8x128xf32>
    %622 = vector.shape_cast %621 : vector<8x128xf32> to vector<8x1x128xf32>
    %623 = vector.extract_strided_slice %571 {offsets = [0, 3, 0], sizes = [8, 1, 128], strides = [1, 1, 1]} : vector<8x8x128xbf16> to vector<8x1x128xbf16>
    %624 = vector.shape_cast %623 : vector<8x1x128xbf16> to vector<8x128xbf16>
    %625 = vector.extract_strided_slice %570 {offsets = [0, 3, 0], sizes = [8, 1, 128], strides = [1, 1, 1]} : vector<8x8x128xbf16> to vector<8x1x128xbf16>
    %626 = vector.shape_cast %625 : vector<8x1x128xbf16> to vector<8x128xbf16>
    %cst_178 = arith.constant dense<0.000000e+00> : vector<8x8xf32>
    %627 = tpu.matmul %624, %626, %cst_178 {dimension_numbers = #tpu.dot_dimension_numbers<[1], [1], [0], [0], [0, 0, 1, 0], [], []>} : vector<8x128xbf16>, vector<8x128xbf16>, vector<8x8xf32> -> vector<8x8xf32>
    %cst_179 = arith.constant dense<0xFF800000> : vector<8xf32>
    %628 = vector.multi_reduction <maximumf>, %627, %cst_179 [1] : vector<8x8xf32> to vector<8xf32>
    %629 = vector.shape_cast %628 : vector<8xf32> to vector<8x1xf32>
    %630 = vector.broadcast %629 : vector<8x1xf32> to vector<8x8xf32>
    %631 = arith.subf %627, %630 : vector<8x8xf32>
    %632 = math.exp %631 : vector<8x8xf32>
    %cst_180 = arith.constant dense<0.000000e+00> : vector<8xf32>
    %633 = vector.multi_reduction <add>, %632, %cst_180 [1] : vector<8x8xf32> to vector<8xf32>
    %634 = vector.shape_cast %633 : vector<8xf32> to vector<8x1xf32>
    %635 = vector.broadcast %634 : vector<8x1xf32> to vector<8x8xf32>
    %636 = arith.divf %632, %635 : vector<8x8xf32>
    %637 = arith.truncf %636 : vector<8x8xf32> to vector<8x8xbf16>
    %cst_181 = arith.constant dense<0.000000e+00> : vector<8x128xf32>
    %638 = tpu.matmul %637, %626, %cst_181 {dimension_numbers = #tpu.dot_dimension_numbers<[1], [0], [0], [1], [0, 0, 1, 1], [], []>} : vector<8x8xbf16>, vector<8x128xbf16>, vector<8x128xf32> -> vector<8x128xf32>
    %639 = vector.shape_cast %638 : vector<8x128xf32> to vector<8x1x128xf32>
    %640 = vector.extract_strided_slice %571 {offsets = [0, 4, 0], sizes = [8, 1, 128], strides = [1, 1, 1]} : vector<8x8x128xbf16> to vector<8x1x128xbf16>
    %641 = vector.shape_cast %640 : vector<8x1x128xbf16> to vector<8x128xbf16>
    %642 = vector.extract_strided_slice %570 {offsets = [0, 4, 0], sizes = [8, 1, 128], strides = [1, 1, 1]} : vector<8x8x128xbf16> to vector<8x1x128xbf16>
    %643 = vector.shape_cast %642 : vector<8x1x128xbf16> to vector<8x128xbf16>
    %cst_182 = arith.constant dense<0.000000e+00> : vector<8x8xf32>
    %644 = tpu.matmul %641, %643, %cst_182 {dimension_numbers = #tpu.dot_dimension_numbers<[1], [1], [0], [0], [0, 0, 1, 0], [], []>} : vector<8x128xbf16>, vector<8x128xbf16>, vector<8x8xf32> -> vector<8x8xf32>
    %cst_183 = arith.constant dense<0xFF800000> : vector<8xf32>
    %645 = vector.multi_reduction <maximumf>, %644, %cst_183 [1] : vector<8x8xf32> to vector<8xf32>
    %646 = vector.shape_cast %645 : vector<8xf32> to vector<8x1xf32>
    %647 = vector.broadcast %646 : vector<8x1xf32> to vector<8x8xf32>
    %648 = arith.subf %644, %647 : vector<8x8xf32>
    %649 = math.exp %648 : vector<8x8xf32>
    %cst_184 = arith.constant dense<0.000000e+00> : vector<8xf32>
    %650 = vector.multi_reduction <add>, %649, %cst_184 [1] : vector<8x8xf32> to vector<8xf32>
    %651 = vector.shape_cast %650 : vector<8xf32> to vector<8x1xf32>
    %652 = vector.broadcast %651 : vector<8x1xf32> to vector<8x8xf32>
    %653 = arith.divf %649, %652 : vector<8x8xf32>
    %654 = arith.truncf %653 : vector<8x8xf32> to vector<8x8xbf16>
    %cst_185 = arith.constant dense<0.000000e+00> : vector<8x128xf32>
    %655 = tpu.matmul %654, %643, %cst_185 {dimension_numbers = #tpu.dot_dimension_numbers<[1], [0], [0], [1], [0, 0, 1, 1], [], []>} : vector<8x8xbf16>, vector<8x128xbf16>, vector<8x128xf32> -> vector<8x128xf32>
    %656 = vector.shape_cast %655 : vector<8x128xf32> to vector<8x1x128xf32>
    %657 = vector.extract_strided_slice %571 {offsets = [0, 5, 0], sizes = [8, 1, 128], strides = [1, 1, 1]} : vector<8x8x128xbf16> to vector<8x1x128xbf16>
    %658 = vector.shape_cast %657 : vector<8x1x128xbf16> to vector<8x128xbf16>
    %659 = vector.extract_strided_slice %570 {offsets = [0, 5, 0], sizes = [8, 1, 128], strides = [1, 1, 1]} : vector<8x8x128xbf16> to vector<8x1x128xbf16>
    %660 = vector.shape_cast %659 : vector<8x1x128xbf16> to vector<8x128xbf16>
    %cst_186 = arith.constant dense<0.000000e+00> : vector<8x8xf32>
    %661 = tpu.matmul %658, %660, %cst_186 {dimension_numbers = #tpu.dot_dimension_numbers<[1], [1], [0], [0], [0, 0, 1, 0], [], []>} : vector<8x128xbf16>, vector<8x128xbf16>, vector<8x8xf32> -> vector<8x8xf32>
    %cst_187 = arith.constant dense<0xFF800000> : vector<8xf32>
    %662 = vector.multi_reduction <maximumf>, %661, %cst_187 [1] : vector<8x8xf32> to vector<8xf32>
    %663 = vector.shape_cast %662 : vector<8xf32> to vector<8x1xf32>
    %664 = vector.broadcast %663 : vector<8x1xf32> to vector<8x8xf32>
    %665 = arith.subf %661, %664 : vector<8x8xf32>
    %666 = math.exp %665 : vector<8x8xf32>
    %cst_188 = arith.constant dense<0.000000e+00> : vector<8xf32>
    %667 = vector.multi_reduction <add>, %666, %cst_188 [1] : vector<8x8xf32> to vector<8xf32>
    %668 = vector.shape_cast %667 : vector<8xf32> to vector<8x1xf32>
    %669 = vector.broadcast %668 : vector<8x1xf32> to vector<8x8xf32>
    %670 = arith.divf %666, %669 : vector<8x8xf32>
    %671 = arith.truncf %670 : vector<8x8xf32> to vector<8x8xbf16>
    %cst_189 = arith.constant dense<0.000000e+00> : vector<8x128xf32>
    %672 = tpu.matmul %671, %660, %cst_189 {dimension_numbers = #tpu.dot_dimension_numbers<[1], [0], [0], [1], [0, 0, 1, 1], [], []>} : vector<8x8xbf16>, vector<8x128xbf16>, vector<8x128xf32> -> vector<8x128xf32>
    %673 = vector.shape_cast %672 : vector<8x128xf32> to vector<8x1x128xf32>
    %674 = vector.extract_strided_slice %571 {offsets = [0, 6, 0], sizes = [8, 1, 128], strides = [1, 1, 1]} : vector<8x8x128xbf16> to vector<8x1x128xbf16>
    %675 = vector.shape_cast %674 : vector<8x1x128xbf16> to vector<8x128xbf16>
    %676 = vector.extract_strided_slice %570 {offsets = [0, 6, 0], sizes = [8, 1, 128], strides = [1, 1, 1]} : vector<8x8x128xbf16> to vector<8x1x128xbf16>
    %677 = vector.shape_cast %676 : vector<8x1x128xbf16> to vector<8x128xbf16>
    %cst_190 = arith.constant dense<0.000000e+00> : vector<8x8xf32>
    %678 = tpu.matmul %675, %677, %cst_190 {dimension_numbers = #tpu.dot_dimension_numbers<[1], [1], [0], [0], [0, 0, 1, 0], [], []>} : vector<8x128xbf16>, vector<8x128xbf16>, vector<8x8xf32> -> vector<8x8xf32>
    %cst_191 = arith.constant dense<0xFF800000> : vector<8xf32>
    %679 = vector.multi_reduction <maximumf>, %678, %cst_191 [1] : vector<8x8xf32> to vector<8xf32>
    %680 = vector.shape_cast %679 : vector<8xf32> to vector<8x1xf32>
    %681 = vector.broadcast %680 : vector<8x1xf32> to vector<8x8xf32>
    %682 = arith.subf %678, %681 : vector<8x8xf32>
    %683 = math.exp %682 : vector<8x8xf32>
    %cst_192 = arith.constant dense<0.000000e+00> : vector<8xf32>
    %684 = vector.multi_reduction <add>, %683, %cst_192 [1] : vector<8x8xf32> to vector<8xf32>
    %685 = vector.shape_cast %684 : vector<8xf32> to vector<8x1xf32>
    %686 = vector.broadcast %685 : vector<8x1xf32> to vector<8x8xf32>
    %687 = arith.divf %683, %686 : vector<8x8xf32>
    %688 = arith.truncf %687 : vector<8x8xf32> to vector<8x8xbf16>
    %cst_193 = arith.constant dense<0.000000e+00> : vector<8x128xf32>
    %689 = tpu.matmul %688, %677, %cst_193 {dimension_numbers = #tpu.dot_dimension_numbers<[1], [0], [0], [1], [0, 0, 1, 1], [], []>} : vector<8x8xbf16>, vector<8x128xbf16>, vector<8x128xf32> -> vector<8x128xf32>
    %690 = vector.shape_cast %689 : vector<8x128xf32> to vector<8x1x128xf32>
    %691 = vector.extract_strided_slice %571 {offsets = [0, 7, 0], sizes = [8, 1, 128], strides = [1, 1, 1]} : vector<8x8x128xbf16> to vector<8x1x128xbf16>
    %692 = vector.shape_cast %691 : vector<8x1x128xbf16> to vector<8x128xbf16>
    %693 = vector.extract_strided_slice %570 {offsets = [0, 7, 0], sizes = [8, 1, 128], strides = [1, 1, 1]} : vector<8x8x128xbf16> to vector<8x1x128xbf16>
    %694 = vector.shape_cast %693 : vector<8x1x128xbf16> to vector<8x128xbf16>
    %cst_194 = arith.constant dense<0.000000e+00> : vector<8x8xf32>
    %695 = tpu.matmul %692, %694, %cst_194 {dimension_numbers = #tpu.dot_dimension_numbers<[1], [1], [0], [0], [0, 0, 1, 0], [], []>} : vector<8x128xbf16>, vector<8x128xbf16>, vector<8x8xf32> -> vector<8x8xf32>
    %cst_195 = arith.constant dense<0xFF800000> : vector<8xf32>
    %696 = vector.multi_reduction <maximumf>, %695, %cst_195 [1] : vector<8x8xf32> to vector<8xf32>
    %697 = vector.shape_cast %696 : vector<8xf32> to vector<8x1xf32>
    %698 = vector.broadcast %697 : vector<8x1xf32> to vector<8x8xf32>
    %699 = arith.subf %695, %698 : vector<8x8xf32>
    %700 = math.exp %699 : vector<8x8xf32>
    %cst_196 = arith.constant dense<0.000000e+00> : vector<8xf32>
    %701 = vector.multi_reduction <add>, %700, %cst_196 [1] : vector<8x8xf32> to vector<8xf32>
    %702 = vector.shape_cast %701 : vector<8xf32> to vector<8x1xf32>
    %703 = vector.broadcast %702 : vector<8x1xf32> to vector<8x8xf32>
    %704 = arith.divf %700, %703 : vector<8x8xf32>
    %705 = arith.truncf %704 : vector<8x8xf32> to vector<8x8xbf16>
    %cst_197 = arith.constant dense<0.000000e+00> : vector<8x128xf32>
    %706 = tpu.matmul %705, %694, %cst_197 {dimension_numbers = #tpu.dot_dimension_numbers<[1], [0], [0], [1], [0, 0, 1, 1], [], []>} : vector<8x8xbf16>, vector<8x128xbf16>, vector<8x128xf32> -> vector<8x128xf32>
    %707 = vector.shape_cast %706 : vector<8x128xf32> to vector<8x1x128xf32>
    %708 = tpu.concatenate %588, %605, %622, %639, %656, %673, %690, %707 in 1 : vector<8x1x128xf32>, vector<8x1x128xf32>, vector<8x1x128xf32>, vector<8x1x128xf32>, vector<8x1x128xf32>, vector<8x1x128xf32>, vector<8x1x128xf32>, vector<8x1x128xf32> -> vector<8x8x128xf32>
    %709 = vector.shape_cast %708 : vector<8x8x128xf32> to vector<64x128xf32>
    %710 = vector.shape_cast %571 : vector<8x8x128xbf16> to vector<64x128xbf16>
    %c0_198 = arith.constant 0 : index
    %c0_199 = arith.constant 0 : index
    %711 = vector.load %arg11[%c0_198, %c0_199] : memref<128x128xbf16, #tpu.memory_space<vmem>>, vector<128x128xbf16>
    %cst_200 = arith.constant dense<0.000000e+00> : vector<64x128xf32>
    %712 = tpu.matmul %710, %711, %cst_200 {dimension_numbers = #tpu.dot_dimension_numbers<[1], [0], [0], [1], [0, 0, 1, 1], [], []>} : vector<64x128xbf16>, vector<128x128xbf16>, vector<64x128xf32> -> vector<64x128xf32>
    %713 = arith.truncf %709 : vector<64x128xf32> to vector<64x128xbf16>
    %c0_201 = arith.constant 0 : index
    %c0_202 = arith.constant 0 : index
    %714 = vector.load %arg12[%c0_201, %c0_202] : memref<128x128xbf16, #tpu.memory_space<vmem>>, vector<128x128xbf16>
    %cst_203 = arith.constant dense<0.000000e+00> : vector<64x128xf32>
    %715 = tpu.matmul %713, %714, %cst_203 {dimension_numbers = #tpu.dot_dimension_numbers<[1], [0], [0], [1], [0, 0, 1, 1], [], []>} : vector<64x128xbf16>, vector<128x128xbf16>, vector<64x128xf32> -> vector<64x128xf32>
    %716 = arith.addf %712, %715 : vector<64x128xf32>
    %c0_204 = arith.constant 0 : index
    %c0_205 = arith.constant 0 : index
    %717 = vector.load %arg13[%c0_204, %c0_205] : memref<1x128xf32, #tpu.memory_space<vmem>>, vector<1x128xf32>
    %718 = vector.broadcast %717 : vector<1x128xf32> to vector<64x128xf32>
    %719 = arith.addf %716, %718 : vector<64x128xf32>
    %720 = math.tanh %719 : vector<64x128xf32>
    %721 = arith.truncf %720 : vector<64x128xf32> to vector<64x128xbf16>
    %c0_206 = arith.constant 0 : index
    %c0_207 = arith.constant 0 : index
    %722 = vector.load %arg14[%c0_206, %c0_207] : memref<128x128xbf16, #tpu.memory_space<vmem>>, vector<128x128xbf16>
    %cst_208 = arith.constant dense<0.000000e+00> : vector<64x128xf32>
    %723 = tpu.matmul %721, %722, %cst_208 {dimension_numbers = #tpu.dot_dimension_numbers<[1], [0], [0], [1], [0, 0, 1, 1], [], []>} : vector<64x128xbf16>, vector<128x128xbf16>, vector<64x128xf32> -> vector<64x128xf32>
    %c0_209 = arith.constant 0 : index
    %c0_210 = arith.constant 0 : index
    %724 = vector.load %arg15[%c0_209, %c0_210] : memref<1x128xf32, #tpu.memory_space<vmem>>, vector<1x128xf32>
    %725 = vector.broadcast %724 : vector<1x128xf32> to vector<64x128xf32>
    %726 = arith.addf %723, %725 : vector<64x128xf32>
    %cst_211 = arith.constant dense<0xFF800000> : vector<64xf32>
    %727 = vector.multi_reduction <maximumf>, %726, %cst_211 [1] : vector<64x128xf32> to vector<64xf32>
    %728 = vector.shape_cast %727 : vector<64xf32> to vector<64x1xf32>
    %729 = vector.broadcast %728 : vector<64x1xf32> to vector<64x128xf32>
    %730 = arith.subf %726, %729 : vector<64x128xf32>
    %731 = math.exp %730 : vector<64x128xf32>
    %cst_212 = arith.constant dense<0.000000e+00> : vector<64xf32>
    %732 = vector.multi_reduction <add>, %731, %cst_212 [1] : vector<64x128xf32> to vector<64xf32>
    %733 = vector.shape_cast %732 : vector<64xf32> to vector<64x1xf32>
    %734 = math.log %733 : vector<64x1xf32>
    %735 = arith.addf %728, %734 : vector<64x1xf32>
    %736 = vector.broadcast %735 : vector<64x1xf32> to vector<64x128xf32>
    %737 = arith.subf %726, %736 : vector<64x128xf32>
    %738 = vector.shape_cast %737 : vector<64x128xf32> to vector<8x8x128xf32>
    %c0_213 = arith.constant 0 : index
    %c0_214 = arith.constant 0 : index
    %c0_215 = arith.constant 0 : index
    %739 = vector.load %arg16[%c0_213, %c0_214, %c0_215] : memref<8x8x128xf32, #tpu.memory_space<vmem>>, vector<8x8x128xf32>
    tpu.vector_store %arg16[%c0_213, %c0_214, %c0_215], %738 {strides = array<i32>} : memref<8x8x128xf32, #tpu.memory_space<vmem>>, vector<8x8x128xf32>,
    return
  }
}

</mosaic_0001>

<llo_original>
// kernel: dns_forward.1
$region0: #{dns_forward.1}
  #allocation0 [shape = 'u32[]', space=smem, size = 0x4, offset = 0x4, fixed_abs, tag = 'smem constant byte address 0x4 - core index']
  #allocation1 [shape = 'u32[144,128]{1,0:T(1,128)}', space=vmem, size = 0x12000, scoped, tag = 'internal scratch']
  #allocation2 [shape = 'f32[64,384]{1,0:T(8,128)}', space=vmem, size = 0x18000, scoped, tag = 'scratch operand']
  #allocation3 [shape = 'f32[64,384]{1,0:T(8,128)}', space=vmem, size = 0x18000, scoped, tag = 'scratch operand']
  #allocation4 [shape = 'bf16[8,8,128]{2,1,0:T(8,128)(2,1)}', space=vmem, size = 0x4000, scoped, tag = 'scratch operand']
  #allocation5 [shape = 'bf16[8,8,128]{2,1,0:T(8,128)(2,1)}', space=vmem, size = 0x4000, scoped, tag = 'scratch operand']
  %s0 = inlined_call_operand.vmem [shape: bf16[8,8,128], index: 0, kind: input, shape index: {}]
  %s1 = inlined_call_operand.vmem [shape: bf16[8,8,128], index: 1, kind: input, shape index: {}]
  %s2 = inlined_call_operand.vmem [shape: f32[8,128], index: 2, kind: input, shape index: {}]
  %s3 = inlined_call_operand.vmem [shape: bf16[128,384], index: 3, kind: input, shape index: {}]
  %s4 = inlined_call_operand.vmem [shape: bf16[128,384], index: 4, kind: input, shape index: {}]
  %s5 = inlined_call_operand.vmem [shape: f32[1,384], index: 5, kind: input, shape index: {}]
  %s6 = inlined_call_operand.vmem [shape: f32[1,384], index: 6, kind: input, shape index: {}]
  %s7 = inlined_call_operand.vmem [shape: bf16[128,384], index: 7, kind: input, shape index: {}]
  %s8 = inlined_call_operand.vmem [shape: bf16[128,384], index: 8, kind: input, shape index: {}]
  %s9 = inlined_call_operand.vmem [shape: f32[1,384], index: 9, kind: input, shape index: {}]
  %s10 = inlined_call_operand.vmem [shape: f32[1,384], index: 10, kind: input, shape index: {}]
  %s11 = inlined_call_operand.vmem [shape: bf16[128,128], index: 11, kind: input, shape index: {}]
  %s12 = inlined_call_operand.vmem [shape: bf16[128,128], index: 12, kind: input, shape index: {}]
  %s13 = inlined_call_operand.vmem [shape: f32[1,128], index: 13, kind: input, shape index: {}]
  %s14 = inlined_call_operand.vmem [shape: bf16[128,128], index: 14, kind: input, shape index: {}]
  %s15 = inlined_call_operand.vmem [shape: f32[1,128], index: 15, kind: input, shape index: {}]
  %s16 = inlined_call_operand.vmem [shape: f32[8,8,128], index: 16, kind: output, shape index: {0}]
  %s17 = inlined_call_operand.vmem [shape: f32[8,128], index: 17, kind: output, shape index: {1}]
  %18 = xla_tuple %s16, %s17
  %s19 = sld [smem:[#allocation0]]
  $region82: #{dns_forward.1} parent=0
    _
  %s21 = ssub.s32 1, %s19
  %s22 = scalar_select 0, %s21, %s19
  // Predicated region
  $region2: #{dns_forward.1} parent=0 // pred_check
    _
  $region3: #{dns_forward.1} parent=0 // pred_check_branch
    %24 = sbr.rel (0) target = $region5
  $region4: #{dns_forward.1} parent=0 // pred_region
    _
  $region5: #{dns_forward.1} parent=0 // pred_fallthru
    _
  // Predicated region
  $region6: #{dns_forward.1} parent=0 // pred_check
    _
  $region7: #{dns_forward.1} parent=0 // pred_check_branch
    %26 = sbr.rel (0) target = $region9
  $region8: #{dns_forward.1} parent=0 // pred_region
    _
  $region9: #{dns_forward.1} parent=0 // pred_fallthru
    _
  // Predicated region
  $region10: #{dns_forward.1} parent=0 // pred_check
    _
  $region11: #{dns_forward.1} parent=0 // pred_check_branch
    %28 = sbr.rel (0) target = $region13
  $region12: #{dns_forward.1} parent=0 // pred_region
    _
  $region13: #{dns_forward.1} parent=0 // pred_fallthru
    _
  // Predicated region
  $region14: #{dns_forward.1} parent=0 // pred_check
    _
  $region15: #{dns_forward.1} parent=0 // pred_check_branch
    %30 = sbr.rel (0) target = $region17
  $region16: #{dns_forward.1} parent=0 // pred_region
    _
  $region17: #{dns_forward.1} parent=0 // pred_fallthru
    _
  // Predicated region
  $region18: #{dns_forward.1} parent=0 // pred_check
    _
  $region19: #{dns_forward.1} parent=0 // pred_check_branch
    %32 = sbr.rel (0) target = $region21
  $region20: #{dns_forward.1} parent=0 // pred_region
    _
  $region21: #{dns_forward.1} parent=0 // pred_fallthru
    _
  // Predicated region
  $region22: #{dns_forward.1} parent=0 // pred_check
    _
  $region23: #{dns_forward.1} parent=0 // pred_check_branch
    %34 = sbr.rel (0) target = $region25
  $region24: #{dns_forward.1} parent=0 // pred_region
    _
  $region25: #{dns_forward.1} parent=0 // pred_fallthru
    _
  // Predicated region
  $region26: #{dns_forward.1} parent=0 // pred_check
    _
  $region27: #{dns_forward.1} parent=0 // pred_check_branch
    %36 = sbr.rel (0) target = $region29
  $region28: #{dns_forward.1} parent=0 // pred_region
    _
  $region29: #{dns_forward.1} parent=0 // pred_fallthru
    _
  // Predicated region
  $region30: #{dns_forward.1} parent=0 // pred_check
    _
  $region31: #{dns_forward.1} parent=0 // pred_check_branch
    %38 = sbr.rel (0) target = $region33
  $region32: #{dns_forward.1} parent=0 // pred_region
    _
  $region33: #{dns_forward.1} parent=0 // pred_fallthru
    _
  // Predicated region
  $region34: #{dns_forward.1} parent=0 // pred_check
    _
  $region35: #{dns_forward.1} parent=0 // pred_check_branch
    %40 = sbr.rel (0) target = $region37
  $region36: #{dns_forward.1} parent=0 // pred_region
    _
  $region37: #{dns_forward.1} parent=0 // pred_fallthru
    _
  // Predicated region
  $region38: #{dns_forward.1} parent=0 // pred_check
    _
  $region39: #{dns_forward.1} parent=0 // pred_check_branch
    %42 = sbr.rel (0) target = $region41
  $region40: #{dns_forward.1} parent=0 // pred_region
    _
  $region41: #{dns_forward.1} parent=0 // pred_fallthru
    _
  // Predicated region
  $region42: #{dns_forward.1} parent=0 // pred_check
    _
  $region43: #{dns_forward.1} parent=0 // pred_check_branch
    %44 = sbr.rel (0) target = $region45
  $region44: #{dns_forward.1} parent=0 // pred_region
    _
  $region45: #{dns_forward.1} parent=0 // pred_fallthru
    _
  // Predicated region
  $region46: #{dns_forward.1} parent=0 // pred_check
    _
  $region47: #{dns_forward.1} parent=0 // pred_check_branch
    %46 = sbr.rel (0) target = $region49
  $region48: #{dns_forward.1} parent=0 // pred_region
    _
  $region49: #{dns_forward.1} parent=0 // pred_fallthru
    _
  // Predicated region
  $region50: #{dns_forward.1} parent=0 // pred_check
    _
  $region51: #{dns_forward.1} parent=0 // pred_check_branch
    %48 = sbr.rel (0) target = $region53
  $region52: #{dns_forward.1} parent=0 // pred_region
    _
  $region53: #{dns_forward.1} parent=0 // pred_fallthru
    _
  // Predicated region
  $region54: #{dns_forward.1} parent=0 // pred_check
    _
  $region55: #{dns_forward.1} parent=0 // pred_check_branch
    %50 = sbr.rel (0) target = $region57
  $region56: #{dns_forward.1} parent=0 // pred_region
    _
  $region57: #{dns_forward.1} parent=0 // pred_fallthru
    _
  // Predicated region
  $region58: #{dns_forward.1} parent=0 // pred_check
    _
  $region59: #{dns_forward.1} parent=0 // pred_check_branch
    %52 = sbr.rel (0) target = $region61
  $region60: #{dns_forward.1} parent=0 // pred_region
    _
  $region61: #{dns_forward.1} parent=0 // pred_fallthru
    _
  // Predicated region
  $region62: #{dns_forward.1} parent=0 // pred_check
    _
  $region63: #{dns_forward.1} parent=0 // pred_check_branch
    %54 = sbr.rel (0) target = $region65
  $region64: #{dns_forward.1} parent=0 // pred_region
    _
  $region65: #{dns_forward.1} parent=0 // pred_fallthru
    _
  %v56 = vld [vmem:[%s0] sm:$0xf]
  %v57 = vld [vmem:[%s0 + $0x4] sm:$0xf]
  %v58 = vld [vmem:[%s0 + $0x8] sm:$0xf]
  %v59 = vld [vmem:[%s0 + $0xc] sm:$0xf]
  %v60 = vld [vmem:[%s0 + $0x10] sm:$0xf]
  %v61 = vld [vmem:[%s0 + $0x14] sm:$0xf]
  %v62 = vld [vmem:[%s0 + $0x18] sm:$0xf]
  %v63 = vld [vmem:[%s0 + $0x1c] sm:$0xf]
  %v64 = vld [vmem:[%s3] sm:$0xff]
  %v65 = vld [vmem:[%s3 + $0x8] sm:$0xf]
  %v66 = vld [vmem:[%s3 + $0xc] sm:$0xff]
  %v67 = vld [vmem:[%s3 + $0x14] sm:$0xf]
  %v68 = vld [vmem:[%s3 + $0x18] sm:$0xff]
  %v69 = vld [vmem:[%s3 + $0x20] sm:$0xf]
  %v70 = vld [vmem:[%s3 + $0x24] sm:$0xff]
  %v71 = vld [vmem:[%s3 + $0x2c] sm:$0xf]
  %v72 = vld [vmem:[%s3 + $0x30] sm:$0xff]
  %v73 = vld [vmem:[%s3 + $0x38] sm:$0xf]
  %v74 = vld [vmem:[%s3 + $0x3c] sm:$0xff]
  %v75 = vld [vmem:[%s3 + $0x44] sm:$0xf]
  %v76 = vld [vmem:[%s3 + $0x48] sm:$0xff]
  %v77 = vld [vmem:[%s3 + $0x50] sm:$0xf]
  %v78 = vld [vmem:[%s3 + $0x54] sm:$0xff]
  %v79 = vld [vmem:[%s3 + $0x5c] sm:$0xf]
  %v80 = vld [vmem:[%s3 + $0x60] sm:$0xff]
  %v81 = vld [vmem:[%s3 + $0x68] sm:$0xf]
  %v82 = vld [vmem:[%s3 + $0x6c] sm:$0xff]
  %v83 = vld [vmem:[%s3 + $0x74] sm:$0xf]
  %v84 = vld [vmem:[%s3 + $0x78] sm:$0xff]
  %v85 = vld [vmem:[%s3 + $0x80] sm:$0xf]
  %v86 = vld [vmem:[%s3 + $0x84] sm:$0xff]
  %v87 = vld [vmem:[%s3 + $0x8c] sm:$0xf]
  %v88 = vld [vmem:[%s3 + $0x90] sm:$0xff]
  %v89 = vld [vmem:[%s3 + $0x98] sm:$0xf]
  %v90 = vld [vmem:[%s3 + $0x9c] sm:$0xff]
  %v91 = vld [vmem:[%s3 + $0xa4] sm:$0xf]
  %v92 = vld [vmem:[%s3 + $0xa8] sm:$0xff]
  %v93 = vld [vmem:[%s3 + $0xb0] sm:$0xf]
  %v94 = vld [vmem:[%s3 + $0xb4] sm:$0xff]
  %v95 = vld [vmem:[%s3 + $0xbc] sm:$0xf]
  %v96 = vld [vmem:[%s5] sm:$0x7]
  %v98 = vlaneseq
  %v99 = vshrl.u32 %v98, 7
  %v100 = vsub.s32 0, %v99
  %v101 = vrot.slane %v96, %v100
  %v102 = vlaneseq
  %v103 = vshrl.u32 %v102, 7
  %v104 = vsub.s32 1, %v103
  %v105 = vrot.slane %v96, %v104
  %v106 = vlaneseq
  %v107 = vshrl.u32 %v106, 7
  %v108 = vsub.s32 2, %v107
  %v109 = vrot.slane %v96, %v108
  %v121 = vunpack.c.l.b16 %v56
  %v122 = vunpack.c.l.b16 %v57
  %v123 = vunpack.c.l.b16 %v58
  %v124 = vunpack.c.l.b16 %v59
  %v125 = vunpack.c.l.b16 %v60
  %v126 = vunpack.c.l.b16 %v61
  %v127 = vunpack.c.l.b16 %v62
  %v128 = vunpack.c.l.b16 %v63
  %v129 = vpack.c.b16 %v122, %v121
  %v130 = vpack.c.b16 %v124, %v123
  %v131 = vpack.c.b16 %v126, %v125
  %v132 = vpack.c.b16 %v128, %v127
  %v169 = vunpack.c.l.b16 %v64
  %v170 = vunpack.c.h.b16 %v64
  %v171 = vunpack.c.l.b16 %v65
  %v172 = vunpack.c.l.b16 %v66
  %v173 = vunpack.c.h.b16 %v66
  %v174 = vunpack.c.l.b16 %v67
  %v175 = vunpack.c.l.b16 %v68
  %v176 = vunpack.c.h.b16 %v68
  %v177 = vunpack.c.l.b16 %v69
  %v178 = vunpack.c.l.b16 %v70
  %v179 = vunpack.c.h.b16 %v70
  %v180 = vunpack.c.l.b16 %v71
  %v181 = vunpack.c.l.b16 %v72
  %v182 = vunpack.c.h.b16 %v72
  %v183 = vunpack.c.l.b16 %v73
  %v184 = vunpack.c.l.b16 %v74
  %v185 = vunpack.c.h.b16 %v74
  %v186 = vunpack.c.l.b16 %v75
  %v187 = vunpack.c.l.b16 %v76
  %v188 = vunpack.c.h.b16 %v76
  %v189 = vunpack.c.l.b16 %v77
  %v190 = vunpack.c.l.b16 %v78
  %v191 = vunpack.c.h.b16 %v78
  %v192 = vunpack.c.l.b16 %v79
  %v193 = vunpack.c.l.b16 %v80
  %v194 = vunpack.c.h.b16 %v80
  %v195 = vunpack.c.l.b16 %v81
  %v196 = vunpack.c.l.b16 %v82
  %v197 = vunpack.c.h.b16 %v82
  %v198 = vunpack.c.l.b16 %v83
  %v199 = vunpack.c.l.b16 %v84
  %v200 = vunpack.c.h.b16 %v84
  %v201 = vunpack.c.l.b16 %v85
  %v202 = vunpack.c.l.b16 %v86
  %v203 = vunpack.c.h.b16 %v86
  %v204 = vunpack.c.l.b16 %v87
  %v205 = vunpack.c.l.b16 %v88
  %v206 = vunpack.c.h.b16 %v88
  %v207 = vunpack.c.l.b16 %v89
  %v208 = vunpack.c.l.b16 %v90
  %v209 = vunpack.c.h.b16 %v90
  %v210 = vunpack.c.l.b16 %v91
  %v211 = vunpack.c.l.b16 %v92
  %v212 = vunpack.c.h.b16 %v92
  %v213 = vunpack.c.l.b16 %v93
  %v214 = vunpack.c.l.b16 %v94
  %v215 = vunpack.c.h.b16 %v94
  %v216 = vunpack.c.l.b16 %v95
  %v217 = vpack.c.b16 %v172, %v169
  %v218 = vpack.c.b16 %v173, %v170
  %v219 = vpack.c.b16 %v174, %v171
  %v220 = vpack.c.b16 %v178, %v175
  %v221 = vpack.c.b16 %v179, %v176
  %v222 = vpack.c.b16 %v180, %v177
  %v223 = vpack.c.b16 %v184, %v181
  %v224 = vpack.c.b16 %v185, %v182
  %v225 = vpack.c.b16 %v186, %v183
  %v226 = vpack.c.b16 %v190, %v187
  %v227 = vpack.c.b16 %v191, %v188
  %v228 = vpack.c.b16 %v192, %v189
  %v229 = vpack.c.b16 %v196, %v193
  %v230 = vpack.c.b16 %v197, %v194
  %v231 = vpack.c.b16 %v198, %v195
  %v232 = vpack.c.b16 %v202, %v199
  %v233 = vpack.c.b16 %v203, %v200
  %v234 = vpack.c.b16 %v204, %v201
  %v235 = vpack.c.b16 %v208, %v205
  %v236 = vpack.c.b16 %v209, %v206
  %v237 = vpack.c.b16 %v210, %v207
  %v238 = vpack.c.b16 %v214, %v211
  %v239 = vpack.c.b16 %v215, %v212
  %v240 = vpack.c.b16 %v216, %v213
  %265 = vmatprep.subr.bf16.mxu0 %v218
  %266 = vmatpush1.bf16.msra.mxu0 %v217
  %267 = vmatprep.subr.bf16.mxu0 %v221
  %268 = vmatpush1.bf16.msra.mxu0 %v220
  %269 = vmatprep.subr.bf16.mxu0 %v224
  %270 = vmatpush1.bf16.msra.mxu0 %v223
  %271 = vmatprep.subr.bf16.mxu0 %v227
  %272 = vmatpush1.bf16.msra.mxu0 %v226
  %273 = vmatprep.subr.bf16.mxu0 %v230
  %274 = vmatpush1.bf16.msra.mxu0 %v229
  %275 = vmatprep.subr.bf16.mxu0 %v233
  %276 = vmatpush1.bf16.msra.mxu0 %v232
  %277 = vmatprep.subr.bf16.mxu0 %v236
  %278 = vmatpush1.bf16.msra.mxu0 %v235
  %279 = vmatprep.subr.bf16.mxu0 %v239
  %280 = vmatpush1.bf16.msra.mxu0 %v238
  %281 = vmatprep.subr.bf16.mxu0 0
  %282 = vmatpush1.bf16.msra.mxu0 0
  %283 = vmatprep.subr.bf16.mxu0 0
  %284 = vmatpush1.bf16.msra.mxu0 0
  %285 = vmatprep.subr.bf16.mxu0 0
  %286 = vmatpush1.bf16.msra.mxu0 0
  %287 = vmatprep.subr.bf16.mxu0 0
  %288 = vmatpush1.bf16.msra.mxu0 0
  %289 = vmatprep.subr.bf16.mxu0 0
  %290 = vmatpush1.bf16.msra.mxu0 0
  %291 = vmatprep.subr.bf16.mxu0 0
  %292 = vmatpush1.bf16.msra.mxu0 0
  %293 = vmatprep.subr.bf16.mxu0 0
  %294 = vmatpush1.bf16.msra.mxu0 0
  %295 = vmatprep.subr.bf16.mxu0 0
  %296 = vmatpush1.bf16.msra.mxu0 0
  %297 = vmatprep.mubr.bf16.mxu0 0
  %298 = vmatmul.mubr.bf16.gmra.mrb[0].mxu0 %v129
  %v299 = vpop.f32.mrb[0].mxu0
  %v300 = vadd.f32 %v101, %v299
  %v301 = vpop.f32.mrb[0].mxu0
  %v302 = vadd.f32 %v105, %v301
  %v303 = vpop.f32.mrb[0].mxu0
  %v304 = vadd.f32 %v101, %v303
  %v305 = vpop.f32.mrb[0].mxu0
  %v306 = vadd.f32 %v105, %v305
  %307 = vmatprep.mubr.bf16.mxu0 0
  %308 = vmatmul.mubr.bf16.gmra.mrb[0].mxu0 %v130
  %v309 = vpop.f32.mrb[0].mxu0
  %v310 = vadd.f32 %v101, %v309
  %v311 = vpop.f32.mrb[0].mxu0
  %v312 = vadd.f32 %v105, %v311
  %v313 = vpop.f32.mrb[0].mxu0
  %v314 = vadd.f32 %v101, %v313
  %v315 = vpop.f32.mrb[0].mxu0
  %v316 = vadd.f32 %v105, %v315
  %317 = vmatprep.mubr.bf16.mxu0 0
  %318 = vmatmul.mubr.bf16.gmra.mrb[0].mxu0 %v131
  %v319 = vpop.f32.mrb[0].mxu0
  %v320 = vadd.f32 %v101, %v319
  %v321 = vpop.f32.mrb[0].mxu0
  %v322 = vadd.f32 %v105, %v321
  %v323 = vpop.f32.mrb[0].mxu0
  %v324 = vadd.f32 %v101, %v323
  %v325 = vpop.f32.mrb[0].mxu0
  %v326 = vadd.f32 %v105, %v325
  %327 = vmatprep.mubr.bf16.mxu0 0
  %328 = vmatmul.mubr.bf16.gmra.mrb[0].mxu0 %v132
  %v329 = vpop.f32.mrb[0].mxu0
  %v330 = vadd.f32 %v101, %v329
  %v331 = vpop.f32.mrb[0].mxu0
  %v332 = vadd.f32 %v105, %v331
  %v333 = vpop.f32.mrb[0].mxu0
  %v334 = vadd.f32 %v101, %v333
  %v335 = vpop.f32.mrb[0].mxu0
  %v336 = vadd.f32 %v105, %v335
  %337 = vdwg.mxu0
  %338 = vmatprep.subr.bf16.mxu0 0
  %339 = vmatpush1.bf16.msra.mxu0 %v219
  %340 = vmatprep.subr.bf16.mxu0 0
  %341 = vmatpush1.bf16.msra.mxu0 %v222
  %342 = vmatprep.subr.bf16.mxu0 0
  %343 = vmatpush1.bf16.msra.mxu0 %v225
  %344 = vmatprep.subr.bf16.mxu0 0
  %345 = vmatpush1.bf16.msra.mxu0 %v228
  %346 = vmatprep.subr.bf16.mxu0 0
  %347 = vmatpush1.bf16.msra.mxu0 %v231
  %348 = vmatprep.subr.bf16.mxu0 0
  %349 = vmatpush1.bf16.msra.mxu0 %v234
  %350 = vmatprep.subr.bf16.mxu0 0
  %351 = vmatpush1.bf16.msra.mxu0 %v237
  %352 = vmatprep.subr.bf16.mxu0 0
  %353 = vmatpush1.bf16.msra.mxu0 %v240
  %354 = vmatprep.subr.bf16.mxu0 0
  %355 = vmatpush1.bf16.msra.mxu0 0
  %356 = vmatprep.subr.bf16.mxu0 0
  %357 = vmatpush1.bf16.msra.mxu0 0
  %358 = vmatprep.subr.bf16.mxu0 0
  %359 = vmatpush1.bf16.msra.mxu0 0
  %360 = vmatprep.subr.bf16.mxu0 0
  %361 = vmatpush1.bf16.msra.mxu0 0
  %362 = vmatprep.subr.bf16.mxu0 0
  %363 = vmatpush1.bf16.msra.mxu0 0
  %364 = vmatprep.subr.bf16.mxu0 0
  %365 = vmatpush1.bf16.msra.mxu0 0
  %366 = vmatprep.subr.bf16.mxu0 0
  %367 = vmatpush1.bf16.msra.mxu0 0
  %368 = vmatprep.subr.bf16.mxu0 0
  %369 = vmatpush1.bf16.msra.mxu0 0
  %370 = vmatprep.mubr.bf16.mxu0 0
  %371 = vmatmul.mubr.bf16.gmra.mrb[0].mxu0 %v129
  %v372 = vpop.f32.mrb[0].mxu0
  %v373 = vadd.f32 %v109, %v372
  %v374 = vpop.f32.mrb[0].mxu0
  %v375 = vpop.f32.mrb[0].mxu0
  %v376 = vadd.f32 %v109, %v375
  %v377 = vpop.f32.mrb[0].mxu0
  %378 = vmatprep.mubr.bf16.mxu0 0
  %379 = vmatmul.mubr.bf16.gmra.mrb[0].mxu0 %v130
  %v380 = vpop.f32.mrb[0].mxu0
  %v381 = vadd.f32 %v109, %v380
  %v382 = vpop.f32.mrb[0].mxu0
  %v383 = vpop.f32.mrb[0].mxu0
  %v384 = vadd.f32 %v109, %v383
  %v385 = vpop.f32.mrb[0].mxu0
  %386 = vmatprep.mubr.bf16.mxu0 0
  %387 = vmatmul.mubr.bf16.gmra.mrb[0].mxu0 %v131
  %v388 = vpop.f32.mrb[0].mxu0
  %v389 = vadd.f32 %v109, %v388
  %v390 = vpop.f32.mrb[0].mxu0
  %v391 = vpop.f32.mrb[0].mxu0
  %v392 = vadd.f32 %v109, %v391
  %v393 = vpop.f32.mrb[0].mxu0
  %394 = vmatprep.mubr.bf16.mxu0 0
  %395 = vmatmul.mubr.bf16.gmra.mrb[0].mxu0 %v132
  %v396 = vpop.f32.mrb[0].mxu0
  %v397 = vadd.f32 %v109, %v396
  %v398 = vpop.f32.mrb[0].mxu0
  %v399 = vpop.f32.mrb[0].mxu0
  %v400 = vadd.f32 %v109, %v399
  %v401 = vpop.f32.mrb[0].mxu0
  %402 = vdwg.mxu0
  %403 = vst [vmem:[#allocation2] sm:$0xff] %v300
  %404 = vst [vmem:[#allocation2 + $0x8] sm:$0xff] %v302
  %405 = vst [vmem:[#allocation2 + $0x10] sm:$0xff] %v373
  %406 = vst [vmem:[#allocation2 + $0x18] sm:$0xff] %v304
  %407 = vst [vmem:[#allocation2 + $0x20] sm:$0xff] %v306
  %408 = vst [vmem:[#allocation2 + $0x28] sm:$0xff] %v376
  %409 = vst [vmem:[#allocation2 + $0x30] sm:$0xff] %v310
  %410 = vst [vmem:[#allocation2 + $0x38] sm:$0xff] %v312
  %411 = vst [vmem:[#allocation2 + $0x40] sm:$0xff] %v381
  %412 = vst [vmem:[#allocation2 + $0x48] sm:$0xff] %v314
  %413 = vst [vmem:[#allocation2 + $0x50] sm:$0xff] %v316
  %414 = vst [vmem:[#allocation2 + $0x58] sm:$0xff] %v384
  %415 = vst [vmem:[#allocation2 + $0x60] sm:$0xff] %v320
  %416 = vst [vmem:[#allocation2 + $0x68] sm:$0xff] %v322
  %417 = vst [vmem:[#allocation2 + $0x70] sm:$0xff] %v389
  %418 = vst [vmem:[#allocation2 + $0x78] sm:$0xff] %v324
  %419 = vst [vmem:[#allocation2 + $0x80] sm:$0xff] %v326
  %420 = vst [vmem:[#allocation2 + $0x88] sm:$0xff] %v392
  %421 = vst [vmem:[#allocation2 + $0x90] sm:$0xff] %v330
  %422 = vst [vmem:[#allocation2 + $0x98] sm:$0xff] %v332
  %423 = vst [vmem:[#allocation2 + $0xa0] sm:$0xff] %v397
  %424 = vst [vmem:[#allocation2 + $0xa8] sm:$0xff] %v334
  %425 = vst [vmem:[#allocation2 + $0xb0] sm:$0xff] %v336
  %426 = vst [vmem:[#allocation2 + $0xb8] sm:$0xff] %v400
  %v427 = vld [vmem:[%s4] sm:$0xff]
  %v428 = vld [vmem:[%s4 + $0x8] sm:$0xf]
  %v429 = vld [vmem:[%s4 + $0xc] sm:$0xff]
  %v430 = vld [vmem:[%s4 + $0x14] sm:$0xf]
  %v431 = vld [vmem:[%s4 + $0x18] sm:$0xff]
  %v432 = vld [vmem:[%s4 + $0x20] sm:$0xf]
  %v433 = vld [vmem:[%s4 + $0x24] sm:$0xff]
  %v434 = vld [vmem:[%s4 + $0x2c] sm:$0xf]
  %v435 = vld [vmem:[%s4 + $0x30] sm:$0xff]
  %v436 = vld [vmem:[%s4 + $0x38] sm:$0xf]
  %v437 = vld [vmem:[%s4 + $0x3c] sm:$0xff]
  %v438 = vld [vmem:[%s4 + $0x44] sm:$0xf]
  %v439 = vld [vmem:[%s4 + $0x48] sm:$0xff]
  %v440 = vld [vmem:[%s4 + $0x50] sm:$0xf]
  %v441 = vld [vmem:[%s4 + $0x54] sm:$0xff]
  %v442 = vld [vmem:[%s4 + $0x5c] sm:$0xf]
  %v443 = vld [vmem:[%s4 + $0x60] sm:$0xff]
  %v444 = vld [vmem:[%s4 + $0x68] sm:$0xf]
  %v445 = vld [vmem:[%s4 + $0x6c] sm:$0xff]
  %v446 = vld [vmem:[%s4 + $0x74] sm:$0xf]
  %v447 = vld [vmem:[%s4 + $0x78] sm:$0xff]
  %v448 = vld [vmem:[%s4 + $0x80] sm:$0xf]
  %v449 = vld [vmem:[%s4 + $0x84] sm:$0xff]
  %v450 = vld [vmem:[%s4 + $0x8c] sm:$0xf]
  %v451 = vld [vmem:[%s4 + $0x90] sm:$0xff]
  %v452 = vld [vmem:[%s4 + $0x98] sm:$0xf]
  %v453 = vld [vmem:[%s4 + $0x9c] sm:$0xff]
  %v454 = vld [vmem:[%s4 + $0xa4] sm:$0xf]
  %v455 = vld [vmem:[%s4 + $0xa8] sm:$0xff]
  %v456 = vld [vmem:[%s4 + $0xb0] sm:$0xf]
  %v457 = vld [vmem:[%s4 + $0xb4] sm:$0xff]
  %v458 = vld [vmem:[%s4 + $0xbc] sm:$0xf]
  %v459 = vld [vmem:[%s6] sm:$0x7]
  %v461 = vlaneseq
  %v462 = vshrl.u32 %v461, 7
  %v463 = vsub.s32 0, %v462
  %v464 = vrot.slane %v459, %v463
  %v465 = vlaneseq
  %v466 = vshrl.u32 %v465, 7
  %v467 = vsub.s32 1, %v466
  %v468 = vrot.slane %v459, %v467
  %v469 = vlaneseq
  %v470 = vshrl.u32 %v469, 7
  %v471 = vsub.s32 2, %v470
  %v472 = vrot.slane %v459, %v471
  %v476 = vld [vmem:[%s2] sm:$0xff]
  %v477 = vld [vmem:[#allocation2] sm:$0xff]
  %v478 = vld [vmem:[#allocation2 + $0x8] sm:$0xff]
  %v479 = vld [vmem:[#allocation2 + $0x10] sm:$0xff]
  %v480 = vpack.c.bf16 %v476, %v476
  %v513 = vunpack.c.l.b16 %v427
  %v514 = vunpack.c.h.b16 %v427
  %v515 = vunpack.c.l.b16 %v428
  %v516 = vunpack.c.l.b16 %v429
  %v517 = vunpack.c.h.b16 %v429
  %v518 = vunpack.c.l.b16 %v430
  %v519 = vunpack.c.l.b16 %v431
  %v520 = vunpack.c.h.b16 %v431
  %v521 = vunpack.c.l.b16 %v432
  %v522 = vunpack.c.l.b16 %v433
  %v523 = vunpack.c.h.b16 %v433
  %v524 = vunpack.c.l.b16 %v434
  %v525 = vunpack.c.l.b16 %v435
  %v526 = vunpack.c.h.b16 %v435
  %v527 = vunpack.c.l.b16 %v436
  %v528 = vunpack.c.l.b16 %v437
  %v529 = vunpack.c.h.b16 %v437
  %v530 = vunpack.c.l.b16 %v438
  %v531 = vunpack.c.l.b16 %v439
  %v532 = vunpack.c.h.b16 %v439
  %v533 = vunpack.c.l.b16 %v440
  %v534 = vunpack.c.l.b16 %v441
  %v535 = vunpack.c.h.b16 %v441
  %v536 = vunpack.c.l.b16 %v442
  %v537 = vunpack.c.l.b16 %v443
  %v538 = vunpack.c.h.b16 %v443
  %v539 = vunpack.c.l.b16 %v444
  %v540 = vunpack.c.l.b16 %v445
  %v541 = vunpack.c.h.b16 %v445
  %v542 = vunpack.c.l.b16 %v446
  %v543 = vunpack.c.l.b16 %v447
  %v544 = vunpack.c.h.b16 %v447
  %v545 = vunpack.c.l.b16 %v448
  %v546 = vunpack.c.l.b16 %v449
  %v547 = vunpack.c.h.b16 %v449
  %v548 = vunpack.c.l.b16 %v450
  %v549 = vunpack.c.l.b16 %v451
  %v550 = vunpack.c.h.b16 %v451
  %v551 = vunpack.c.l.b16 %v452
  %v552 = vunpack.c.l.b16 %v453
  %v553 = vunpack.c.h.b16 %v453
  %v554 = vunpack.c.l.b16 %v454
  %v555 = vunpack.c.l.b16 %v455
  %v556 = vunpack.c.h.b16 %v455
  %v557 = vunpack.c.l.b16 %v456
  %v558 = vunpack.c.l.b16 %v457
  %v559 = vunpack.c.h.b16 %v457
  %v560 = vunpack.c.l.b16 %v458
  %v561 = vpack.c.b16 %v516, %v513
  %v562 = vpack.c.b16 %v517, %v514
  %v563 = vpack.c.b16 %v518, %v515
  %v564 = vpack.c.b16 %v522, %v519
  %v565 = vpack.c.b16 %v523, %v520
  %v566 = vpack.c.b16 %v524, %v521
  %v567 = vpack.c.b16 %v528, %v525
  %v568 = vpack.c.b16 %v529, %v526
  %v569 = vpack.c.b16 %v530, %v527
  %v570 = vpack.c.b16 %v534, %v531
  %v571 = vpack.c.b16 %v535, %v532
  %v572 = vpack.c.b16 %v536, %v533
  %v573 = vpack.c.b16 %v540, %v537
  %v574 = vpack.c.b16 %v541, %v538
  %v575 = vpack.c.b16 %v542, %v539
  %v576 = vpack.c.b16 %v546, %v543
  %v577 = vpack.c.b16 %v547, %v544
  %v578 = vpack.c.b16 %v548, %v545
  %v579 = vpack.c.b16 %v552, %v549
  %v580 = vpack.c.b16 %v553, %v550
  %v581 = vpack.c.b16 %v554, %v551
  %v582 = vpack.c.b16 %v558, %v555
  %v583 = vpack.c.b16 %v559, %v556
  %v584 = vpack.c.b16 %v560, %v557
  %609 = vmatprep.subr.bf16.mxu0 %v562
  %610 = vmatpush1.bf16.msra.mxu0 %v561
  %611 = vmatprep.subr.bf16.mxu0 %v565
  %612 = vmatpush1.bf16.msra.mxu0 %v564
  %613 = vmatprep.subr.bf16.mxu0 %v568
  %614 = vmatpush1.bf16.msra.mxu0 %v567
  %615 = vmatprep.subr.bf16.mxu0 %v571
  %616 = vmatpush1.bf16.msra.mxu0 %v570
  %617 = vmatprep.subr.bf16.mxu0 %v574
  %618 = vmatpush1.bf16.msra.mxu0 %v573
  %619 = vmatprep.subr.bf16.mxu0 %v577
  %620 = vmatpush1.bf16.msra.mxu0 %v576
  %621 = vmatprep.subr.bf16.mxu0 %v580
  %622 = vmatpush1.bf16.msra.mxu0 %v579
  %623 = vmatprep.subr.bf16.mxu0 %v583
  %624 = vmatpush1.bf16.msra.mxu0 %v582
  %625 = vmatprep.subr.bf16.mxu0 0
  %626 = vmatpush1.bf16.msra.mxu0 0
  %627 = vmatprep.subr.bf16.mxu0 0
  %628 = vmatpush1.bf16.msra.mxu0 0
  %629 = vmatprep.subr.bf16.mxu0 0
  %630 = vmatpush1.bf16.msra.mxu0 0
  %631 = vmatprep.subr.bf16.mxu0 0
  %632 = vmatpush1.bf16.msra.mxu0 0
  %633 = vmatprep.subr.bf16.mxu0 0
  %634 = vmatpush1.bf16.msra.mxu0 0
  %635 = vmatprep.subr.bf16.mxu0 0
  %636 = vmatpush1.bf16.msra.mxu0 0
  %637 = vmatprep.subr.bf16.mxu0 0
  %638 = vmatpush1.bf16.msra.mxu0 0
  %639 = vmatprep.subr.bf16.mxu0 0
  %640 = vmatpush1.bf16.msra.mxu0 0
  %641 = vmatprep.mubr.bf16.mxu0 0
  %642 = vmatmul.mubr.bf16.gmra.mrb[0].mxu0 %v480
  %v643 = vpop.f32.mrb[0].mxu0
  %v644 = vadd.f32 %v464, %v643
  %v645 = vpop.f32.mrb[0].mxu0
  %v646 = vadd.f32 %v468, %v645
  %v647 = vpop.f32.mrb[0].mxu0
  %v648 = vpop.f32.mrb[0].mxu0
  %649 = vdwg.mxu0
  %650 = vmatprep.subr.bf16.mxu0 0
  %651 = vmatpush1.bf16.msra.mxu0 %v563
  %652 = vmatprep.subr.bf16.mxu0 0
  %653 = vmatpush1.bf16.msra.mxu0 %v566
  %654 = vmatprep.subr.bf16.mxu0 0
  %655 = vmatpush1.bf16.msra.mxu0 %v569
  %656 = vmatprep.subr.bf16.mxu0 0
  %657 = vmatpush1.bf16.msra.mxu0 %v572
  %658 = vmatprep.subr.bf16.mxu0 0
  %659 = vmatpush1.bf16.msra.mxu0 %v575
  %660 = vmatprep.subr.bf16.mxu0 0
  %661 = vmatpush1.bf16.msra.mxu0 %v578
  %662 = vmatprep.subr.bf16.mxu0 0
  %663 = vmatpush1.bf16.msra.mxu0 %v581
  %664 = vmatprep.subr.bf16.mxu0 0
  %665 = vmatpush1.bf16.msra.mxu0 %v584
  %666 = vmatprep.subr.bf16.mxu0 0
  %667 = vmatpush1.bf16.msra.mxu0 0
  %668 = vmatprep.subr.bf16.mxu0 0
  %669 = vmatpush1.bf16.msra.mxu0 0
  %670 = vmatprep.subr.bf16.mxu0 0
  %671 = vmatpush1.bf16.msra.mxu0 0
  %672 = vmatprep.subr.bf16.mxu0 0
  %673 = vmatpush1.bf16.msra.mxu0 0
  %674 = vmatprep.subr.bf16.mxu0 0
  %675 = vmatpush1.bf16.msra.mxu0 0
  %676 = vmatprep.subr.bf16.mxu0 0
  %677 = vmatpush1.bf16.msra.mxu0 0
  %678 = vmatprep.subr.bf16.mxu0 0
  %679 = vmatpush1.bf16.msra.mxu0 0
  %680 = vmatprep.subr.bf16.mxu0 0
  %681 = vmatpush1.bf16.msra.mxu0 0
  %682 = vmatprep.mubr.bf16.mxu0 0
  %683 = vmatmul.mubr.bf16.gmra.mrb[0].mxu0 %v480
  %v684 = vpop.f32.mrb[0].mxu0
  %v685 = vadd.f32 %v472, %v684
  %v686 = vpop.f32.mrb[0].mxu0
  %v687 = vpop.f32.mrb[0].mxu0
  %v688 = vpop.f32.mrb[0].mxu0
  %689 = vdwg.mxu0
  %v690 = vadd.f32 %v477, %v644
  %v691 = vxor.u32 %v690, 2147483648
  %v692 = vmul.f32 %v691, 1.442695
  %v693 = vpow.pop %v692
  %v694 = vadd.f32 %v693, 1.0
  %v695 = vrcp.pop %v694
  %v696 = vmul.f32 1.0, %v695
  %v697 = vadd.f32 %v478, %v646
  %v698 = vxor.u32 %v697, 2147483648
  %v699 = vmul.f32 %v698, 1.442695
  %v700 = vpow.pop %v699
  %v701 = vadd.f32 %v700, 1.0
  %v702 = vrcp.pop %v701
  %v703 = vmul.f32 1.0, %v702
  %v704 = vmul.f32 %v696, %v685
  %v705 = vadd.f32 %v479, %v704
  %v706 = vtanh.pop %v705
  %v707 = vsub.f32 1.0, %v703
  %v708 = vmul.f32 %v707, %v706
  %v709 = vmul.f32 %v703, %v476
  %v710 = vadd.f32 %v708, %v709
  %v711 = vpack.c.bf16 %v710, %v710
  %712 = vst [vmem:[#allocation4] sm:$0xf] %v711
  %v713 = vld [vmem:[#allocation2 + $0x18] sm:$0xff]
  %v714 = vld [vmem:[#allocation2 + $0x20] sm:$0xff]
  %v715 = vld [vmem:[#allocation2 + $0x28] sm:$0xff]
  %716 = vmatprep.subr.bf16.mxu0 %v562
  %717 = vmatpush1.bf16.msra.mxu0 %v561
  %718 = vmatprep.subr.bf16.mxu0 %v565
  %719 = vmatpush1.bf16.msra.mxu0 %v564
  %720 = vmatprep.subr.bf16.mxu0 %v568
  %721 = vmatpush1.bf16.msra.mxu0 %v567
  %722 = vmatprep.subr.bf16.mxu0 %v571
  %723 = vmatpush1.bf16.msra.mxu0 %v570
  %724 = vmatprep.subr.bf16.mxu0 %v574
  %725 = vmatpush1.bf16.msra.mxu0 %v573
  %726 = vmatprep.subr.bf16.mxu0 %v577
  %727 = vmatpush1.bf16.msra.mxu0 %v576
  %728 = vmatprep.subr.bf16.mxu0 %v580
  %729 = vmatpush1.bf16.msra.mxu0 %v579
  %730 = vmatprep.subr.bf16.mxu0 %v583
  %731 = vmatpush1.bf16.msra.mxu0 %v582
  %732 = vmatprep.subr.bf16.mxu0 0
  %733 = vmatpush1.bf16.msra.mxu0 0
  %734 = vmatprep.subr.bf16.mxu0 0
  %735 = vmatpush1.bf16.msra.mxu0 0
  %736 = vmatprep.subr.bf16.mxu0 0
  %737 = vmatpush1.bf16.msra.mxu0 0
  %738 = vmatprep.subr.bf16.mxu0 0
  %739 = vmatpush1.bf16.msra.mxu0 0
  %740 = vmatprep.subr.bf16.mxu0 0
  %741 = vmatpush1.bf16.msra.mxu0 0
  %742 = vmatprep.subr.bf16.mxu0 0
  %743 = vmatpush1.bf16.msra.mxu0 0
  %744 = vmatprep.subr.bf16.mxu0 0
  %745 = vmatpush1.bf16.msra.mxu0 0
  %746 = vmatprep.subr.bf16.mxu0 0
  %747 = vmatpush1.bf16.msra.mxu0 0
  %748 = vmatprep.mubr.bf16.mxu0 0
  %749 = vmatmul.mubr.bf16.gmra.mrb[0].mxu0 %v711
  %v750 = vpop.f32.mrb[0].mxu0
  %v751 = vadd.f32 %v464, %v750
  %v752 = vpop.f32.mrb[0].mxu0
  %v753 = vadd.f32 %v468, %v752
  %v754 = vpop.f32.mrb[0].mxu0
  %v755 = vpop.f32.mrb[0].mxu0
  %756 = vdwg.mxu0
  %757 = vmatprep.subr.bf16.mxu0 0
  %758 = vmatpush1.bf16.msra.mxu0 %v563
  %759 = vmatprep.subr.bf16.mxu0 0
  %760 = vmatpush1.bf16.msra.mxu0 %v566
  %761 = vmatprep.subr.bf16.mxu0 0
  %762 = vmatpush1.bf16.msra.mxu0 %v569
  %763 = vmatprep.subr.bf16.mxu0 0
  %764 = vmatpush1.bf16.msra.mxu0 %v572
  %765 = vmatprep.subr.bf16.mxu0 0
  %766 = vmatpush1.bf16.msra.mxu0 %v575
  %767 = vmatprep.subr.bf16.mxu0 0
  %768 = vmatpush1.bf16.msra.mxu0 %v578
  %769 = vmatprep.subr.bf16.mxu0 0
  %770 = vmatpush1.bf16.msra.mxu0 %v581
  %771 = vmatprep.subr.bf16.mxu0 0
  %772 = vmatpush1.bf16.msra.mxu0 %v584
  %773 = vmatprep.subr.bf16.mxu0 0
  %774 = vmatpush1.bf16.msra.mxu0 0
  %775 = vmatprep.subr.bf16.mxu0 0
  %776 = vmatpush1.bf16.msra.mxu0 0
  %777 = vmatprep.subr.bf16.mxu0 0
  %778 = vmatpush1.bf16.msra.mxu0 0
  %779 = vmatprep.subr.bf16.mxu0 0
  %780 = vmatpush1.bf16.msra.mxu0 0
  %781 = vmatprep.subr.bf16.mxu0 0
  %782 = vmatpush1.bf16.msra.mxu0 0
  %783 = vmatprep.subr.bf16.mxu0 0
  %784 = vmatpush1.bf16.msra.mxu0 0
  %785 = vmatprep.subr.bf16.mxu0 0
  %786 = vmatpush1.bf16.msra.mxu0 0
  %787 = vmatprep.subr.bf16.mxu0 0
  %788 = vmatpush1.bf16.msra.mxu0 0
  %789 = vmatprep.mubr.bf16.mxu0 0
  %790 = vmatmul.mubr.bf16.gmra.mrb[0].mxu0 %v711
  %v791 = vpop.f32.mrb[0].mxu0
  %v792 = vadd.f32 %v472, %v791
  %v793 = vpop.f32.mrb[0].mxu0
  %v794 = vpop.f32.mrb[0].mxu0
  %v795 = vpop.f32.mrb[0].mxu0
  %796 = vdwg.mxu0
  %v797 = vadd.f32 %v713, %v751
  %v798 = vxor.u32 %v797, 2147483648
  %v799 = vmul.f32 %v798, 1.442695
  %v800 = vpow.pop %v799
  %v801 = vadd.f32 %v800, 1.0
  %v802 = vrcp.pop %v801
  %v803 = vmul.f32 1.0, %v802
  %v804 = vadd.f32 %v714, %v753
  %v805 = vxor.u32 %v804, 2147483648
  %v806 = vmul.f32 %v805, 1.442695
  %v807 = vpow.pop %v806
  %v808 = vadd.f32 %v807, 1.0
  %v809 = vrcp.pop %v808
  %v810 = vmul.f32 1.0, %v809
  %v811 = vmul.f32 %v803, %v792
  %v812 = vadd.f32 %v715, %v811
  %v813 = vtanh.pop %v812
  %v814 = vsub.f32 1.0, %v810
  %v815 = vmul.f32 %v814, %v813
  %v816 = vmul.f32 %v810, %v710
  %v817 = vadd.f32 %v815, %v816
  %v818 = vpack.c.bf16 %v817, %v817
  %s819 = scalar_lea.vmem [#allocation4], 4
  %820 = vst [vmem:[%s819] sm:$0xf] %v818
  %v821 = vld [vmem:[#allocation2 + $0x30] sm:$0xff]
  %v822 = vld [vmem:[#allocation2 + $0x38] sm:$0xff]
  %v823 = vld [vmem:[#allocation2 + $0x40] sm:$0xff]
  %824 = vmatprep.subr.bf16.mxu0 %v562
  %825 = vmatpush1.bf16.msra.mxu0 %v561
  %826 = vmatprep.subr.bf16.mxu0 %v565
  %827 = vmatpush1.bf16.msra.mxu0 %v564
  %828 = vmatprep.subr.bf16.mxu0 %v568
  %829 = vmatpush1.bf16.msra.mxu0 %v567
  %830 = vmatprep.subr.bf16.mxu0 %v571
  %831 = vmatpush1.bf16.msra.mxu0 %v570
  %832 = vmatprep.subr.bf16.mxu0 %v574
  %833 = vmatpush1.bf16.msra.mxu0 %v573
  %834 = vmatprep.subr.bf16.mxu0 %v577
  %835 = vmatpush1.bf16.msra.mxu0 %v576
  %836 = vmatprep.subr.bf16.mxu0 %v580
  %837 = vmatpush1.bf16.msra.mxu0 %v579
  %838 = vmatprep.subr.bf16.mxu0 %v583
  %839 = vmatpush1.bf16.msra.mxu0 %v582
  %840 = vmatprep.subr.bf16.mxu0 0
  %841 = vmatpush1.bf16.msra.mxu0 0
  %842 = vmatprep.subr.bf16.mxu0 0
  %843 = vmatpush1.bf16.msra.mxu0 0
  %844 = vmatprep.subr.bf16.mxu0 0
  %845 = vmatpush1.bf16.msra.mxu0 0
  %846 = vmatprep.subr.bf16.mxu0 0
  %847 = vmatpush1.bf16.msra.mxu0 0
  %848 = vmatprep.subr.bf16.mxu0 0
  %849 = vmatpush1.bf16.msra.mxu0 0
  %850 = vmatprep.subr.bf16.mxu0 0
  %851 = vmatpush1.bf16.msra.mxu0 0
  %852 = vmatprep.subr.bf16.mxu0 0
  %853 = vmatpush1.bf16.msra.mxu0 0
  %854 = vmatprep.subr.bf16.mxu0 0
  %855 = vmatpush1.bf16.msra.mxu0 0
  %856 = vmatprep.mubr.bf16.mxu0 0
  %857 = vmatmul.mubr.bf16.gmra.mrb[0].mxu0 %v818
  %v858 = vpop.f32.mrb[0].mxu0
  %v859 = vadd.f32 %v464, %v858
  %v860 = vpop.f32.mrb[0].mxu0
  %v861 = vadd.f32 %v468, %v860
  %v862 = vpop.f32.mrb[0].mxu0
  %v863 = vpop.f32.mrb[0].mxu0
  %864 = vdwg.mxu0
  %865 = vmatprep.subr.bf16.mxu0 0
  %866 = vmatpush1.bf16.msra.mxu0 %v563
  %867 = vmatprep.subr.bf16.mxu0 0
  %868 = vmatpush1.bf16.msra.mxu0 %v566
  %869 = vmatprep.subr.bf16.mxu0 0
  %870 = vmatpush1.bf16.msra.mxu0 %v569
  %871 = vmatprep.subr.bf16.mxu0 0
  %872 = vmatpush1.bf16.msra.mxu0 %v572
  %873 = vmatprep.subr.bf16.mxu0 0
  %874 = vmatpush1.bf16.msra.mxu0 %v575
  %875 = vmatprep.subr.bf16.mxu0 0
  %876 = vmatpush1.bf16.msra.mxu0 %v578
  %877 = vmatprep.subr.bf16.mxu0 0
  %878 = vmatpush1.bf16.msra.mxu0 %v581
  %879 = vmatprep.subr.bf16.mxu0 0
  %880 = vmatpush1.bf16.msra.mxu0 %v584
  %881 = vmatprep.subr.bf16.mxu0 0
  %882 = vmatpush1.bf16.msra.mxu0 0
  %883 = vmatprep.subr.bf16.mxu0 0
  %884 = vmatpush1.bf16.msra.mxu0 0
  %885 = vmatprep.subr.bf16.mxu0 0
  %886 = vmatpush1.bf16.msra.mxu0 0
  %887 = vmatprep.subr.bf16.mxu0 0
  %888 = vmatpush1.bf16.msra.mxu0 0
  %889 = vmatprep.subr.bf16.mxu0 0
  %890 = vmatpush1.bf16.msra.mxu0 0
  %891 = vmatprep.subr.bf16.mxu0 0
  %892 = vmatpush1.bf16.msra.mxu0 0
  %893 = vmatprep.subr.bf16.mxu0 0
  %894 = vmatpush1.bf16.msra.mxu0 0
  %895 = vmatprep.subr.bf16.mxu0 0
  %896 = vmatpush1.bf16.msra.mxu0 0
  %897 = vmatprep.mubr.bf16.mxu0 0
  %898 = vmatmul.mubr.bf16.gmra.mrb[0].mxu0 %v818
  %v899 = vpop.f32.mrb[0].mxu0
  %v900 = vadd.f32 %v472, %v899
  %v901 = vpop.f32.mrb[0].mxu0
  %v902 = vpop.f32.mrb[0].mxu0
  %v903 = vpop.f32.mrb[0].mxu0
  %904 = vdwg.mxu0
  %v905 = vadd.f32 %v821, %v859
  %v906 = vxor.u32 %v905, 2147483648
  %v907 = vmul.f32 %v906, 1.442695
  %v908 = vpow.pop %v907
  %v909 = vadd.f32 %v908, 1.0
  %v910 = vrcp.pop %v909
  %v911 = vmul.f32 1.0, %v910
  %v912 = vadd.f32 %v822, %v861
  %v913 = vxor.u32 %v912, 2147483648
  %v914 = vmul.f32 %v913, 1.442695
  %v915 = vpow.pop %v914
  %v916 = vadd.f32 %v915, 1.0
  %v917 = vrcp.pop %v916
  %v918 = vmul.f32 1.0, %v917
  %v919 = vmul.f32 %v911, %v900
  %v920 = vadd.f32 %v823, %v919
  %v921 = vtanh.pop %v920
  %v922 = vsub.f32 1.0, %v918
  %v923 = vmul.f32 %v922, %v921
  %v924 = vmul.f32 %v918, %v817
  %v925 = vadd.f32 %v923, %v924
  %v926 = vpack.c.bf16 %v925, %v925
  %s927 = scalar_lea.vmem [#allocation4], 8
  %928 = vst [vmem:[%s927] sm:$0xf] %v926
  %v929 = vld [vmem:[#allocation2 + $0x48] sm:$0xff]
  %v930 = vld [vmem:[#allocation2 + $0x50] sm:$0xff]
  %v931 = vld [vmem:[#allocation2 + $0x58] sm:$0xff]
  %932 = vmatprep.subr.bf16.mxu0 %v562
  %933 = vmatpush1.bf16.msra.mxu0 %v561
  %934 = vmatprep.subr.bf16.mxu0 %v565
  %935 = vmatpush1.bf16.msra.mxu0 %v564
  %936 = vmatprep.subr.bf16.mxu0 %v568
  %937 = vmatpush1.bf16.msra.mxu0 %v567
  %938 = vmatprep.subr.bf16.mxu0 %v571
  %939 = vmatpush1.bf16.msra.mxu0 %v570
  %940 = vmatprep.subr.bf16.mxu0 %v574
  %941 = vmatpush1.bf16.msra.mxu0 %v573
  %942 = vmatprep.subr.bf16.mxu0 %v577
  %943 = vmatpush1.bf16.msra.mxu0 %v576
  %944 = vmatprep.subr.bf16.mxu0 %v580
  %945 = vmatpush1.bf16.msra.mxu0 %v579
  %946 = vmatprep.subr.bf16.mxu0 %v583
  %947 = vmatpush1.bf16.msra.mxu0 %v582
  %948 = vmatprep.subr.bf16.mxu0 0
  %949 = vmatpush1.bf16.msra.mxu0 0
  %950 = vmatprep.subr.bf16.mxu0 0
  %951 = vmatpush1.bf16.msra.mxu0 0
  %952 = vmatprep.subr.bf16.mxu0 0
  %953 = vmatpush1.bf16.msra.mxu0 0
  %954 = vmatprep.subr.bf16.mxu0 0
  %955 = vmatpush1.bf16.msra.mxu0 0
  %956 = vmatprep.subr.bf16.mxu0 0
  %957 = vmatpush1.bf16.msra.mxu0 0
  %958 = vmatprep.subr.bf16.mxu0 0
  %959 = vmatpush1.bf16.msra.mxu0 0
  %960 = vmatprep.subr.bf16.mxu0 0
  %961 = vmatpush1.bf16.msra.mxu0 0
  %962 = vmatprep.subr.bf16.mxu0 0
  %963 = vmatpush1.bf16.msra.mxu0 0
  %964 = vmatprep.mubr.bf16.mxu0 0
  %965 = vmatmul.mubr.bf16.gmra.mrb[0].mxu0 %v926
  %v966 = vpop.f32.mrb[0].mxu0
  %v967 = vadd.f32 %v464, %v966
  %v968 = vpop.f32.mrb[0].mxu0
  %v969 = vadd.f32 %v468, %v968
  %v970 = vpop.f32.mrb[0].mxu0
  %v971 = vpop.f32.mrb[0].mxu0
  %972 = vdwg.mxu0
  %973 = vmatprep.subr.bf16.mxu0 0
  %974 = vmatpush1.bf16.msra.mxu0 %v563
  %975 = vmatprep.subr.bf16.mxu0 0
  %976 = vmatpush1.bf16.msra.mxu0 %v566
  %977 = vmatprep.subr.bf16.mxu0 0
  %978 = vmatpush1.bf16.msra.mxu0 %v569
  %979 = vmatprep.subr.bf16.mxu0 0
  %980 = vmatpush1.bf16.msra.mxu0 %v572
  %981 = vmatprep.subr.bf16.mxu0 0
  %982 = vmatpush1.bf16.msra.mxu0 %v575
  %983 = vmatprep.subr.bf16.mxu0 0
  %984 = vmatpush1.bf16.msra.mxu0 %v578
  %985 = vmatprep.subr.bf16.mxu0 0
  %986 = vmatpush1.bf16.msra.mxu0 %v581
  %987 = vmatprep.subr.bf16.mxu0 0
  %988 = vmatpush1.bf16.msra.mxu0 %v584
  %989 = vmatprep.subr.bf16.mxu0 0
  %990 = vmatpush1.bf16.msra.mxu0 0
  %991 = vmatprep.subr.bf16.mxu0 0
  %992 = vmatpush1.bf16.msra.mxu0 0
  %993 = vmatprep.subr.bf16.mxu0 0
  %994 = vmatpush1.bf16.msra.mxu0 0
  %995 = vmatprep.subr.bf16.mxu0 0
  %996 = vmatpush1.bf16.msra.mxu0 0
  %997 = vmatprep.subr.bf16.mxu0 0
  %998 = vmatpush1.bf16.msra.mxu0 0
  %999 = vmatprep.subr.bf16.mxu0 0
  %1000 = vmatpush1.bf16.msra.mxu0 0
  %1001 = vmatprep.subr.bf16.mxu0 0
  %1002 = vmatpush1.bf16.msra.mxu0 0
  %1003 = vmatprep.subr.bf16.mxu0 0
  %1004 = vmatpush1.bf16.msra.mxu0 0
  %1005 = vmatprep.mubr.bf16.mxu0 0
  %1006 = vmatmul.mubr.bf16.gmra.mrb[0].mxu0 %v926
  %v1007 = vpop.f32.mrb[0].mxu0
  %v1008 = vadd.f32 %v472, %v1007
  %v1009 = vpop.f32.mrb[0].mxu0
  %v1010 = vpop.f32.mrb[0].mxu0
  %v1011 = vpop.f32.mrb[0].mxu0
  %1012 = vdwg.mxu0
  %v1013 = vadd.f32 %v929, %v967
  %v1014 = vxor.u32 %v1013, 2147483648
  %v1015 = vmul.f32 %v1014, 1.442695
  %v1016 = vpow.pop %v1015
  %v1017 = vadd.f32 %v1016, 1.0
  %v1018 = vrcp.pop %v1017
  %v1019 = vmul.f32 1.0, %v1018
  %v1020 = vadd.f32 %v930, %v969
  %v1021 = vxor.u32 %v1020, 2147483648
  %v1022 = vmul.f32 %v1021, 1.442695
  %v1023 = vpow.pop %v1022
  %v1024 = vadd.f32 %v1023, 1.0
  %v1025 = vrcp.pop %v1024
  %v1026 = vmul.f32 1.0, %v1025
  %v1027 = vmul.f32 %v1019, %v1008
  %v1028 = vadd.f32 %v931, %v1027
  %v1029 = vtanh.pop %v1028
  %v1030 = vsub.f32 1.0, %v1026
  %v1031 = vmul.f32 %v1030, %v1029
  %v1032 = vmul.f32 %v1026, %v925
  %v1033 = vadd.f32 %v1031, %v1032
  %v1034 = vpack.c.bf16 %v1033, %v1033
  %s1035 = scalar_lea.vmem [#allocation4], 12
  %1036 = vst [vmem:[%s1035] sm:$0xf] %v1034
  %v1037 = vld [vmem:[#allocation2 + $0x60] sm:$0xff]
  %v1038 = vld [vmem:[#allocation2 + $0x68] sm:$0xff]
  %v1039 = vld [vmem:[#allocation2 + $0x70] sm:$0xff]
  %1040 = vmatprep.subr.bf16.mxu0 %v562
  %1041 = vmatpush1.bf16.msra.mxu0 %v561
  %1042 = vmatprep.subr.bf16.mxu0 %v565
  %1043 = vmatpush1.bf16.msra.mxu0 %v564
  %1044 = vmatprep.subr.bf16.mxu0 %v568
  %1045 = vmatpush1.bf16.msra.mxu0 %v567
  %1046 = vmatprep.subr.bf16.mxu0 %v571
  %1047 = vmatpush1.bf16.msra.mxu0 %v570
  %1048 = vmatprep.subr.bf16.mxu0 %v574
  %1049 = vmatpush1.bf16.msra.mxu0 %v573
  %1050 = vmatprep.subr.bf16.mxu0 %v577
  %1051 = vmatpush1.bf16.msra.mxu0 %v576
  %1052 = vmatprep.subr.bf16.mxu0 %v580
  %1053 = vmatpush1.bf16.msra.mxu0 %v579
  %1054 = vmatprep.subr.bf16.mxu0 %v583
  %1055 = vmatpush1.bf16.msra.mxu0 %v582
  %1056 = vmatprep.subr.bf16.mxu0 0
  %1057 = vmatpush1.bf16.msra.mxu0 0
  %1058 = vmatprep.subr.bf16.mxu0 0
  %1059 = vmatpush1.bf16.msra.mxu0 0
  %1060 = vmatprep.subr.bf16.mxu0 0
  %1061 = vmatpush1.bf16.msra.mxu0 0
  %1062 = vmatprep.subr.bf16.mxu0 0
  %1063 = vmatpush1.bf16.msra.mxu0 0
  %1064 = vmatprep.subr.bf16.mxu0 0
  %1065 = vmatpush1.bf16.msra.mxu0 0
  %1066 = vmatprep.subr.bf16.mxu0 0
  %1067 = vmatpush1.bf16.msra.mxu0 0
  %1068 = vmatprep.subr.bf16.mxu0 0
  %1069 = vmatpush1.bf16.msra.mxu0 0
  %1070 = vmatprep.subr.bf16.mxu0 0
  %1071 = vmatpush1.bf16.msra.mxu0 0
  %1072 = vmatprep.mubr.bf16.mxu0 0
  %1073 = vmatmul.mubr.bf16.gmra.mrb[0].mxu0 %v1034
  %v1074 = vpop.f32.mrb[0].mxu0
  %v1075 = vadd.f32 %v464, %v1074
  %v1076 = vpop.f32.mrb[0].mxu0
  %v1077 = vadd.f32 %v468, %v1076
  %v1078 = vpop.f32.mrb[0].mxu0
  %v1079 = vpop.f32.mrb[0].mxu0
  %1080 = vdwg.mxu0
  %1081 = vmatprep.subr.bf16.mxu0 0
  %1082 = vmatpush1.bf16.msra.mxu0 %v563
  %1083 = vmatprep.subr.bf16.mxu0 0
  %1084 = vmatpush1.bf16.msra.mxu0 %v566
  %1085 = vmatprep.subr.bf16.mxu0 0
  %1086 = vmatpush1.bf16.msra.mxu0 %v569
  %1087 = vmatprep.subr.bf16.mxu0 0
  %1088 = vmatpush1.bf16.msra.mxu0 %v572
  %1089 = vmatprep.subr.bf16.mxu0 0
  %1090 = vmatpush1.bf16.msra.mxu0 %v575
  %1091 = vmatprep.subr.bf16.mxu0 0
  %1092 = vmatpush1.bf16.msra.mxu0 %v578
  %1093 = vmatprep.subr.bf16.mxu0 0
  %1094 = vmatpush1.bf16.msra.mxu0 %v581
  %1095 = vmatprep.subr.bf16.mxu0 0
  %1096 = vmatpush1.bf16.msra.mxu0 %v584
  %1097 = vmatprep.subr.bf16.mxu0 0
  %1098 = vmatpush1.bf16.msra.mxu0 0
  %1099 = vmatprep.subr.bf16.mxu0 0
  %1100 = vmatpush1.bf16.msra.mxu0 0
  %1101 = vmatprep.subr.bf16.mxu0 0
  %1102 = vmatpush1.bf16.msra.mxu0 0
  %1103 = vmatprep.subr.bf16.mxu0 0
  %1104 = vmatpush1.bf16.msra.mxu0 0
  %1105 = vmatprep.subr.bf16.mxu0 0
  %1106 = vmatpush1.bf16.msra.mxu0 0
  %1107 = vmatprep.subr.bf16.mxu0 0
  %1108 = vmatpush1.bf16.msra.mxu0 0
  %1109 = vmatprep.subr.bf16.mxu0 0
  %1110 = vmatpush1.bf16.msra.mxu0 0
  %1111 = vmatprep.subr.bf16.mxu0 0
  %1112 = vmatpush1.bf16.msra.mxu0 0
  %1113 = vmatprep.mubr.bf16.mxu0 0
  %1114 = vmatmul.mubr.bf16.gmra.mrb[0].mxu0 %v1034
  %v1115 = vpop.f32.mrb[0].mxu0
  %v1116 = vadd.f32 %v472, %v1115
  %v1117 = vpop.f32.mrb[0].mxu0
  %v1118 = vpop.f32.mrb[0].mxu0
  %v1119 = vpop.f32.mrb[0].mxu0
  %1120 = vdwg.mxu0
  %v1121 = vadd.f32 %v1037, %v1075
  %v1122 = vxor.u32 %v1121, 2147483648
  %v1123 = vmul.f32 %v1122, 1.442695
  %v1124 = vpow.pop %v1123
  %v1125 = vadd.f32 %v1124, 1.0
  %v1126 = vrcp.pop %v1125
  %v1127 = vmul.f32 1.0, %v1126
  %v1128 = vadd.f32 %v1038, %v1077
  %v1129 = vxor.u32 %v1128, 2147483648
  %v1130 = vmul.f32 %v1129, 1.442695
  %v1131 = vpow.pop %v1130
  %v1132 = vadd.f32 %v1131, 1.0
  %v1133 = vrcp.pop %v1132
  %v1134 = vmul.f32 1.0, %v1133
  %v1135 = vmul.f32 %v1127, %v1116
  %v1136 = vadd.f32 %v1039, %v1135
  %v1137 = vtanh.pop %v1136
  %v1138 = vsub.f32 1.0, %v1134
  %v1139 = vmul.f32 %v1138, %v1137
  %v1140 = vmul.f32 %v1134, %v1033
  %v1141 = vadd.f32 %v1139, %v1140
  %v1142 = vpack.c.bf16 %v1141, %v1141
  %s1143 = scalar_lea.vmem [#allocation4], 16
  %1144 = vst [vmem:[%s1143] sm:$0xf] %v1142
  %v1145 = vld [vmem:[#allocation2 + $0x78] sm:$0xff]
  %v1146 = vld [vmem:[#allocation2 + $0x80] sm:$0xff]
  %v1147 = vld [vmem:[#allocation2 + $0x88] sm:$0xff]
  %1148 = vmatprep.subr.bf16.mxu0 %v562
  %1149 = vmatpush1.bf16.msra.mxu0 %v561
  %1150 = vmatprep.subr.bf16.mxu0 %v565
  %1151 = vmatpush1.bf16.msra.mxu0 %v564
  %1152 = vmatprep.subr.bf16.mxu0 %v568
  %1153 = vmatpush1.bf16.msra.mxu0 %v567
  %1154 = vmatprep.subr.bf16.mxu0 %v571
  %1155 = vmatpush1.bf16.msra.mxu0 %v570
  %1156 = vmatprep.subr.bf16.mxu0 %v574
  %1157 = vmatpush1.bf16.msra.mxu0 %v573
  %1158 = vmatprep.subr.bf16.mxu0 %v577
  %1159 = vmatpush1.bf16.msra.mxu0 %v576
  %1160 = vmatprep.subr.bf16.mxu0 %v580
  %1161 = vmatpush1.bf16.msra.mxu0 %v579
  %1162 = vmatprep.subr.bf16.mxu0 %v583
  %1163 = vmatpush1.bf16.msra.mxu0 %v582
  %1164 = vmatprep.subr.bf16.mxu0 0
  %1165 = vmatpush1.bf16.msra.mxu0 0
  %1166 = vmatprep.subr.bf16.mxu0 0
  %1167 = vmatpush1.bf16.msra.mxu0 0
  %1168 = vmatprep.subr.bf16.mxu0 0
  %1169 = vmatpush1.bf16.msra.mxu0 0
  %1170 = vmatprep.subr.bf16.mxu0 0
  %1171 = vmatpush1.bf16.msra.mxu0 0
  %1172 = vmatprep.subr.bf16.mxu0 0
  %1173 = vmatpush1.bf16.msra.mxu0 0
  %1174 = vmatprep.subr.bf16.mxu0 0
  %1175 = vmatpush1.bf16.msra.mxu0 0
  %1176 = vmatprep.subr.bf16.mxu0 0
  %1177 = vmatpush1.bf16.msra.mxu0 0
  %1178 = vmatprep.subr.bf16.mxu0 0
  %1179 = vmatpush1.bf16.msra.mxu0 0
  %1180 = vmatprep.mubr.bf16.mxu0 0
  %1181 = vmatmul.mubr.bf16.gmra.mrb[0].mxu0 %v1142
  %v1182 = vpop.f32.mrb[0].mxu0
  %v1183 = vadd.f32 %v464, %v1182
  %v1184 = vpop.f32.mrb[0].mxu0
  %v1185 = vadd.f32 %v468, %v1184
  %v1186 = vpop.f32.mrb[0].mxu0
  %v1187 = vpop.f32.mrb[0].mxu0
  %1188 = vdwg.mxu0
  %1189 = vmatprep.subr.bf16.mxu0 0
  %1190 = vmatpush1.bf16.msra.mxu0 %v563
  %1191 = vmatprep.subr.bf16.mxu0 0
  %1192 = vmatpush1.bf16.msra.mxu0 %v566
  %1193 = vmatprep.subr.bf16.mxu0 0
  %1194 = vmatpush1.bf16.msra.mxu0 %v569
  %1195 = vmatprep.subr.bf16.mxu0 0
  %1196 = vmatpush1.bf16.msra.mxu0 %v572
  %1197 = vmatprep.subr.bf16.mxu0 0
  %1198 = vmatpush1.bf16.msra.mxu0 %v575
  %1199 = vmatprep.subr.bf16.mxu0 0
  %1200 = vmatpush1.bf16.msra.mxu0 %v578
  %1201 = vmatprep.subr.bf16.mxu0 0
  %1202 = vmatpush1.bf16.msra.mxu0 %v581
  %1203 = vmatprep.subr.bf16.mxu0 0
  %1204 = vmatpush1.bf16.msra.mxu0 %v584
  %1205 = vmatprep.subr.bf16.mxu0 0
  %1206 = vmatpush1.bf16.msra.mxu0 0
  %1207 = vmatprep.subr.bf16.mxu0 0
  %1208 = vmatpush1.bf16.msra.mxu0 0
  %1209 = vmatprep.subr.bf16.mxu0 0
  %1210 = vmatpush1.bf16.msra.mxu0 0
  %1211 = vmatprep.subr.bf16.mxu0 0
  %1212 = vmatpush1.bf16.msra.mxu0 0
  %1213 = vmatprep.subr.bf16.mxu0 0
  %1214 = vmatpush1.bf16.msra.mxu0 0
  %1215 = vmatprep.subr.bf16.mxu0 0
  %1216 = vmatpush1.bf16.msra.mxu0 0
  %1217 = vmatprep.subr.bf16.mxu0 0
  %1218 = vmatpush1.bf16.msra.mxu0 0
  %1219 = vmatprep.subr.bf16.mxu0 0
  %1220 = vmatpush1.bf16.msra.mxu0 0
  %1221 = vmatprep.mubr.bf16.mxu0 0
  %1222 = vmatmul.mubr.bf16.gmra.mrb[0].mxu0 %v1142
  %v1223 = vpop.f32.mrb[0].mxu0
  %v1224 = vadd.f32 %v472, %v1223
  %v1225 = vpop.f32.mrb[0].mxu0
  %v1226 = vpop.f32.mrb[0].mxu0
  %v1227 = vpop.f32.mrb[0].mxu0
  %1228 = vdwg.mxu0
  %v1229 = vadd.f32 %v1145, %v1183
  %v1230 = vxor.u32 %v1229, 2147483648
  %v1231 = vmul.f32 %v1230, 1.442695
  %v1232 = vpow.pop %v1231
  %v1233 = vadd.f32 %v1232, 1.0
  %v1234 = vrcp.pop %v1233
  %v1235 = vmul.f32 1.0, %v1234
  %v1236 = vadd.f32 %v1146, %v1185
  %v1237 = vxor.u32 %v1236, 2147483648
  %v1238 = vmul.f32 %v1237, 1.442695
  %v1239 = vpow.pop %v1238
  %v1240 = vadd.f32 %v1239, 1.0
  %v1241 = vrcp.pop %v1240
  %v1242 = vmul.f32 1.0, %v1241
  %v1243 = vmul.f32 %v1235, %v1224
  %v1244 = vadd.f32 %v1147, %v1243
  %v1245 = vtanh.pop %v1244
  %v1246 = vsub.f32 1.0, %v1242
  %v1247 = vmul.f32 %v1246, %v1245
  %v1248 = vmul.f32 %v1242, %v1141
  %v1249 = vadd.f32 %v1247, %v1248
  %v1250 = vpack.c.bf16 %v1249, %v1249
  %s1251 = scalar_lea.vmem [#allocation4], 20
  %1252 = vst [vmem:[%s1251] sm:$0xf] %v1250
  %v1253 = vld [vmem:[#allocation2 + $0x90] sm:$0xff]
  %v1254 = vld [vmem:[#allocation2 + $0x98] sm:$0xff]
  %v1255 = vld [vmem:[#allocation2 + $0xa0] sm:$0xff]
  %1256 = vmatprep.subr.bf16.mxu0 %v562
  %1257 = vmatpush1.bf16.msra.mxu0 %v561
  %1258 = vmatprep.subr.bf16.mxu0 %v565
  %1259 = vmatpush1.bf16.msra.mxu0 %v564
  %1260 = vmatprep.subr.bf16.mxu0 %v568
  %1261 = vmatpush1.bf16.msra.mxu0 %v567
  %1262 = vmatprep.subr.bf16.mxu0 %v571
  %1263 = vmatpush1.bf16.msra.mxu0 %v570
  %1264 = vmatprep.subr.bf16.mxu0 %v574
  %1265 = vmatpush1.bf16.msra.mxu0 %v573
  %1266 = vmatprep.subr.bf16.mxu0 %v577
  %1267 = vmatpush1.bf16.msra.mxu0 %v576
  %1268 = vmatprep.subr.bf16.mxu0 %v580
  %1269 = vmatpush1.bf16.msra.mxu0 %v579
  %1270 = vmatprep.subr.bf16.mxu0 %v583
  %1271 = vmatpush1.bf16.msra.mxu0 %v582
  %1272 = vmatprep.subr.bf16.mxu0 0
  %1273 = vmatpush1.bf16.msra.mxu0 0
  %1274 = vmatprep.subr.bf16.mxu0 0
  %1275 = vmatpush1.bf16.msra.mxu0 0
  %1276 = vmatprep.subr.bf16.mxu0 0
  %1277 = vmatpush1.bf16.msra.mxu0 0
  %1278 = vmatprep.subr.bf16.mxu0 0
  %1279 = vmatpush1.bf16.msra.mxu0 0
  %1280 = vmatprep.subr.bf16.mxu0 0
  %1281 = vmatpush1.bf16.msra.mxu0 0
  %1282 = vmatprep.subr.bf16.mxu0 0
  %1283 = vmatpush1.bf16.msra.mxu0 0
  %1284 = vmatprep.subr.bf16.mxu0 0
  %1285 = vmatpush1.bf16.msra.mxu0 0
  %1286 = vmatprep.subr.bf16.mxu0 0
  %1287 = vmatpush1.bf16.msra.mxu0 0
  %1288 = vmatprep.mubr.bf16.mxu0 0
  %1289 = vmatmul.mubr.bf16.gmra.mrb[0].mxu0 %v1250
  %v1290 = vpop.f32.mrb[0].mxu0
  %v1291 = vadd.f32 %v464, %v1290
  %v1292 = vpop.f32.mrb[0].mxu0
  %v1293 = vadd.f32 %v468, %v1292
  %v1294 = vpop.f32.mrb[0].mxu0
  %v1295 = vpop.f32.mrb[0].mxu0
  %1296 = vdwg.mxu0
  %1297 = vmatprep.subr.bf16.mxu0 0
  %1298 = vmatpush1.bf16.msra.mxu0 %v563
  %1299 = vmatprep.subr.bf16.mxu0 0
  %1300 = vmatpush1.bf16.msra.mxu0 %v566
  %1301 = vmatprep.subr.bf16.mxu0 0
  %1302 = vmatpush1.bf16.msra.mxu0 %v569
  %1303 = vmatprep.subr.bf16.mxu0 0
  %1304 = vmatpush1.bf16.msra.mxu0 %v572
  %1305 = vmatprep.subr.bf16.mxu0 0
  %1306 = vmatpush1.bf16.msra.mxu0 %v575
  %1307 = vmatprep.subr.bf16.mxu0 0
  %1308 = vmatpush1.bf16.msra.mxu0 %v578
  %1309 = vmatprep.subr.bf16.mxu0 0
  %1310 = vmatpush1.bf16.msra.mxu0 %v581
  %1311 = vmatprep.subr.bf16.mxu0 0
  %1312 = vmatpush1.bf16.msra.mxu0 %v584
  %1313 = vmatprep.subr.bf16.mxu0 0
  %1314 = vmatpush1.bf16.msra.mxu0 0
  %1315 = vmatprep.subr.bf16.mxu0 0
  %1316 = vmatpush1.bf16.msra.mxu0 0
  %1317 = vmatprep.subr.bf16.mxu0 0
  %1318 = vmatpush1.bf16.msra.mxu0 0
  %1319 = vmatprep.subr.bf16.mxu0 0
  %1320 = vmatpush1.bf16.msra.mxu0 0
  %1321 = vmatprep.subr.bf16.mxu0 0
  %1322 = vmatpush1.bf16.msra.mxu0 0
  %1323 = vmatprep.subr.bf16.mxu0 0
  %1324 = vmatpush1.bf16.msra.mxu0 0
  %1325 = vmatprep.subr.bf16.mxu0 0
  %1326 = vmatpush1.bf16.msra.mxu0 0
  %1327 = vmatprep.subr.bf16.mxu0 0
  %1328 = vmatpush1.bf16.msra.mxu0 0
  %1329 = vmatprep.mubr.bf16.mxu0 0
  %1330 = vmatmul.mubr.bf16.gmra.mrb[0].mxu0 %v1250
  %v1331 = vpop.f32.mrb[0].mxu0
  %v1332 = vadd.f32 %v472, %v1331
  %v1333 = vpop.f32.mrb[0].mxu0
  %v1334 = vpop.f32.mrb[0].mxu0
  %v1335 = vpop.f32.mrb[0].mxu0
  %1336 = vdwg.mxu0
  %v1337 = vadd.f32 %v1253, %v1291
  %v1338 = vxor.u32 %v1337, 2147483648
  %v1339 = vmul.f32 %v1338, 1.442695
  %v1340 = vpow.pop %v1339
  %v1341 = vadd.f32 %v1340, 1.0
  %v1342 = vrcp.pop %v1341
  %v1343 = vmul.f32 1.0, %v1342
  %v1344 = vadd.f32 %v1254, %v1293
  %v1345 = vxor.u32 %v1344, 2147483648
  %v1346 = vmul.f32 %v1345, 1.442695
  %v1347 = vpow.pop %v1346
  %v1348 = vadd.f32 %v1347, 1.0
  %v1349 = vrcp.pop %v1348
  %v1350 = vmul.f32 1.0, %v1349
  %v1351 = vmul.f32 %v1343, %v1332
  %v1352 = vadd.f32 %v1255, %v1351
  %v1353 = vtanh.pop %v1352
  %v1354 = vsub.f32 1.0, %v1350
  %v1355 = vmul.f32 %v1354, %v1353
  %v1356 = vmul.f32 %v1350, %v1249
  %v1357 = vadd.f32 %v1355, %v1356
  %v1358 = vpack.c.bf16 %v1357, %v1357
  %s1359 = scalar_lea.vmem [#allocation4], 24
  %1360 = vst [vmem:[%s1359] sm:$0xf] %v1358
  %v1361 = vld [vmem:[#allocation2 + $0xa8] sm:$0xff]
  %v1362 = vld [vmem:[#allocation2 + $0xb0] sm:$0xff]
  %v1363 = vld [vmem:[#allocation2 + $0xb8] sm:$0xff]
  %1364 = vmatprep.subr.bf16.mxu0 %v562
  %1365 = vmatpush1.bf16.msra.mxu0 %v561
  %1366 = vmatprep.subr.bf16.mxu0 %v565
  %1367 = vmatpush1.bf16.msra.mxu0 %v564
  %1368 = vmatprep.subr.bf16.mxu0 %v568
  %1369 = vmatpush1.bf16.msra.mxu0 %v567
  %1370 = vmatprep.subr.bf16.mxu0 %v571
  %1371 = vmatpush1.bf16.msra.mxu0 %v570
  %1372 = vmatprep.subr.bf16.mxu0 %v574
  %1373 = vmatpush1.bf16.msra.mxu0 %v573
  %1374 = vmatprep.subr.bf16.mxu0 %v577
  %1375 = vmatpush1.bf16.msra.mxu0 %v576
  %1376 = vmatprep.subr.bf16.mxu0 %v580
  %1377 = vmatpush1.bf16.msra.mxu0 %v579
  %1378 = vmatprep.subr.bf16.mxu0 %v583
  %1379 = vmatpush1.bf16.msra.mxu0 %v582
  %1380 = vmatprep.subr.bf16.mxu0 0
  %1381 = vmatpush1.bf16.msra.mxu0 0
  %1382 = vmatprep.subr.bf16.mxu0 0
  %1383 = vmatpush1.bf16.msra.mxu0 0
  %1384 = vmatprep.subr.bf16.mxu0 0
  %1385 = vmatpush1.bf16.msra.mxu0 0
  %1386 = vmatprep.subr.bf16.mxu0 0
  %1387 = vmatpush1.bf16.msra.mxu0 0
  %1388 = vmatprep.subr.bf16.mxu0 0
  %1389 = vmatpush1.bf16.msra.mxu0 0
  %1390 = vmatprep.subr.bf16.mxu0 0
  %1391 = vmatpush1.bf16.msra.mxu0 0
  %1392 = vmatprep.subr.bf16.mxu0 0
  %1393 = vmatpush1.bf16.msra.mxu0 0
  %1394 = vmatprep.subr.bf16.mxu0 0
  %1395 = vmatpush1.bf16.msra.mxu0 0
  %1396 = vmatprep.mubr.bf16.mxu0 0
  %1397 = vmatmul.mubr.bf16.gmra.mrb[0].mxu0 %v1358
  %v1398 = vpop.f32.mrb[0].mxu0
  %v1399 = vadd.f32 %v464, %v1398
  %v1400 = vpop.f32.mrb[0].mxu0
  %v1401 = vadd.f32 %v468, %v1400
  %v1402 = vpop.f32.mrb[0].mxu0
  %v1403 = vpop.f32.mrb[0].mxu0
  %1404 = vdwg.mxu0
  %1405 = vmatprep.subr.bf16.mxu0 0
  %1406 = vmatpush1.bf16.msra.mxu0 %v563
  %1407 = vmatprep.subr.bf16.mxu0 0
  %1408 = vmatpush1.bf16.msra.mxu0 %v566
  %1409 = vmatprep.subr.bf16.mxu0 0
  %1410 = vmatpush1.bf16.msra.mxu0 %v569
  %1411 = vmatprep.subr.bf16.mxu0 0
  %1412 = vmatpush1.bf16.msra.mxu0 %v572
  %1413 = vmatprep.subr.bf16.mxu0 0
  %1414 = vmatpush1.bf16.msra.mxu0 %v575
  %1415 = vmatprep.subr.bf16.mxu0 0
  %1416 = vmatpush1.bf16.msra.mxu0 %v578
  %1417 = vmatprep.subr.bf16.mxu0 0
  %1418 = vmatpush1.bf16.msra.mxu0 %v581
  %1419 = vmatprep.subr.bf16.mxu0 0
  %1420 = vmatpush1.bf16.msra.mxu0 %v584
  %1421 = vmatprep.subr.bf16.mxu0 0
  %1422 = vmatpush1.bf16.msra.mxu0 0
  %1423 = vmatprep.subr.bf16.mxu0 0
  %1424 = vmatpush1.bf16.msra.mxu0 0
  %1425 = vmatprep.subr.bf16.mxu0 0
  %1426 = vmatpush1.bf16.msra.mxu0 0
  %1427 = vmatprep.subr.bf16.mxu0 0
  %1428 = vmatpush1.bf16.msra.mxu0 0
  %1429 = vmatprep.subr.bf16.mxu0 0
  %1430 = vmatpush1.bf16.msra.mxu0 0
  %1431 = vmatprep.subr.bf16.mxu0 0
  %1432 = vmatpush1.bf16.msra.mxu0 0
  %1433 = vmatprep.subr.bf16.mxu0 0
  %1434 = vmatpush1.bf16.msra.mxu0 0
  %1435 = vmatprep.subr.bf16.mxu0 0
  %1436 = vmatpush1.bf16.msra.mxu0 0
  %1437 = vmatprep.mubr.bf16.mxu0 0
  %1438 = vmatmul.mubr.bf16.gmra.mrb[0].mxu0 %v1358
  %v1439 = vpop.f32.mrb[0].mxu0
  %v1440 = vadd.f32 %v472, %v1439
  %v1441 = vpop.f32.mrb[0].mxu0
  %v1442 = vpop.f32.mrb[0].mxu0
  %v1443 = vpop.f32.mrb[0].mxu0
  %1444 = vdwg.mxu0
  %v1445 = vadd.f32 %v1361, %v1399
  %v1446 = vxor.u32 %v1445, 2147483648
  %v1447 = vmul.f32 %v1446, 1.442695
  %v1448 = vpow.pop %v1447
  %v1449 = vadd.f32 %v1448, 1.0
  %v1450 = vrcp.pop %v1449
  %v1451 = vmul.f32 1.0, %v1450
  %v1452 = vadd.f32 %v1362, %v1401
  %v1453 = vxor.u32 %v1452, 2147483648
  %v1454 = vmul.f32 %v1453, 1.442695
  %v1455 = vpow.pop %v1454
  %v1456 = vadd.f32 %v1455, 1.0
  %v1457 = vrcp.pop %v1456
  %v1458 = vmul.f32 1.0, %v1457
  %v1459 = vmul.f32 %v1451, %v1440
  %v1460 = vadd.f32 %v1363, %v1459
  %v1461 = vtanh.pop %v1460
  %v1462 = vsub.f32 1.0, %v1458
  %v1463 = vmul.f32 %v1462, %v1461
  %v1464 = vmul.f32 %v1458, %v1357
  %v1465 = vadd.f32 %v1463, %v1464
  %v1466 = vpack.c.bf16 %v1465, %v1465
  %s1467 = scalar_lea.vmem [#allocation4], 28
  %1468 = vst [vmem:[%s1467] sm:$0xf] %v1466
  %v1469 = vld [vmem:[%s1] sm:$0xf]
  %v1470 = vld [vmem:[%s1 + $0x4] sm:$0xf]
  %v1471 = vld [vmem:[%s1 + $0x8] sm:$0xf]
  %v1472 = vld [vmem:[%s1 + $0xc] sm:$0xf]
  %v1473 = vld [vmem:[%s1 + $0x10] sm:$0xf]
  %v1474 = vld [vmem:[%s1 + $0x14] sm:$0xf]
  %v1475 = vld [vmem:[%s1 + $0x18] sm:$0xf]
  %v1476 = vld [vmem:[%s1 + $0x1c] sm:$0xf]
  %v1477 = vld [vmem:[%s7] sm:$0xff]
  %v1478 = vld [vmem:[%s7 + $0x8] sm:$0xf]
  %v1479 = vld [vmem:[%s7 + $0xc] sm:$0xff]
  %v1480 = vld [vmem:[%s7 + $0x14] sm:$0xf]
  %v1481 = vld [vmem:[%s7 + $0x18] sm:$0xff]
  %v1482 = vld [vmem:[%s7 + $0x20] sm:$0xf]
  %v1483 = vld [vmem:[%s7 + $0x24] sm:$0xff]
  %v1484 = vld [vmem:[%s7 + $0x2c] sm:$0xf]
  %v1485 = vld [vmem:[%s7 + $0x30] sm:$0xff]
  %v1486 = vld [vmem:[%s7 + $0x38] sm:$0xf]
  %v1487 = vld [vmem:[%s7 + $0x3c] sm:$0xff]
  %v1488 = vld [vmem:[%s7 + $0x44] sm:$0xf]
  %v1489 = vld [vmem:[%s7 + $0x48] sm:$0xff]
  %v1490 = vld [vmem:[%s7 + $0x50] sm:$0xf]
  %v1491 = vld [vmem:[%s7 + $0x54] sm:$0xff]
  %v1492 = vld [vmem:[%s7 + $0x5c] sm:$0xf]
  %v1493 = vld [vmem:[%s7 + $0x60] sm:$0xff]
  %v1494 = vld [vmem:[%s7 + $0x68] sm:$0xf]
  %v1495 = vld [vmem:[%s7 + $0x6c] sm:$0xff]
  %v1496 = vld [vmem:[%s7 + $0x74] sm:$0xf]
  %v1497 = vld [vmem:[%s7 + $0x78] sm:$0xff]
  %v1498 = vld [vmem:[%s7 + $0x80] sm:$0xf]
  %v1499 = vld [vmem:[%s7 + $0x84] sm:$0xff]
  %v1500 = vld [vmem:[%s7 + $0x8c] sm:$0xf]
  %v1501 = vld [vmem:[%s7 + $0x90] sm:$0xff]
  %v1502 = vld [vmem:[%s7 + $0x98] sm:$0xf]
  %v1503 = vld [vmem:[%s7 + $0x9c] sm:$0xff]
  %v1504 = vld [vmem:[%s7 + $0xa4] sm:$0xf]
  %v1505 = vld [vmem:[%s7 + $0xa8] sm:$0xff]
  %v1506 = vld [vmem:[%s7 + $0xb0] sm:$0xf]
  %v1507 = vld [vmem:[%s7 + $0xb4] sm:$0xff]
  %v1508 = vld [vmem:[%s7 + $0xbc] sm:$0xf]
  %v1509 = vld [vmem:[%s9] sm:$0x7]
  %v1511 = vlaneseq
  %v1512 = vshrl.u32 %v1511, 7
  %v1513 = vsub.s32 0, %v1512
  %v1514 = vrot.slane %v1509, %v1513
  %v1515 = vlaneseq
  %v1516 = vshrl.u32 %v1515, 7
  %v1517 = vsub.s32 1, %v1516
  %v1518 = vrot.slane %v1509, %v1517
  %v1519 = vlaneseq
  %v1520 = vshrl.u32 %v1519, 7
  %v1521 = vsub.s32 2, %v1520
  %v1522 = vrot.slane %v1509, %v1521
  %v1534 = vunpack.c.l.b16 %v1469
  %v1535 = vunpack.c.l.b16 %v1470
  %v1536 = vunpack.c.l.b16 %v1471
  %v1537 = vunpack.c.l.b16 %v1472
  %v1538 = vunpack.c.l.b16 %v1473
  %v1539 = vunpack.c.l.b16 %v1474
  %v1540 = vunpack.c.l.b16 %v1475
  %v1541 = vunpack.c.l.b16 %v1476
  %v1542 = vpack.c.b16 %v1535, %v1534
  %v1543 = vpack.c.b16 %v1537, %v1536
  %v1544 = vpack.c.b16 %v1539, %v1538
  %v1545 = vpack.c.b16 %v1541, %v1540
  %v1582 = vunpack.c.l.b16 %v1477
  %v1583 = vunpack.c.h.b16 %v1477
  %v1584 = vunpack.c.l.b16 %v1478
  %v1585 = vunpack.c.l.b16 %v1479
  %v1586 = vunpack.c.h.b16 %v1479
  %v1587 = vunpack.c.l.b16 %v1480
  %v1588 = vunpack.c.l.b16 %v1481
  %v1589 = vunpack.c.h.b16 %v1481
  %v1590 = vunpack.c.l.b16 %v1482
  %v1591 = vunpack.c.l.b16 %v1483
  %v1592 = vunpack.c.h.b16 %v1483
  %v1593 = vunpack.c.l.b16 %v1484
  %v1594 = vunpack.c.l.b16 %v1485
  %v1595 = vunpack.c.h.b16 %v1485
  %v1596 = vunpack.c.l.b16 %v1486
  %v1597 = vunpack.c.l.b16 %v1487
  %v1598 = vunpack.c.h.b16 %v1487
  %v1599 = vunpack.c.l.b16 %v1488
  %v1600 = vunpack.c.l.b16 %v1489
  %v1601 = vunpack.c.h.b16 %v1489
  %v1602 = vunpack.c.l.b16 %v1490
  %v1603 = vunpack.c.l.b16 %v1491
  %v1604 = vunpack.c.h.b16 %v1491
  %v1605 = vunpack.c.l.b16 %v1492
  %v1606 = vunpack.c.l.b16 %v1493
  %v1607 = vunpack.c.h.b16 %v1493
  %v1608 = vunpack.c.l.b16 %v1494
  %v1609 = vunpack.c.l.b16 %v1495
  %v1610 = vunpack.c.h.b16 %v1495
  %v1611 = vunpack.c.l.b16 %v1496
  %v1612 = vunpack.c.l.b16 %v1497
  %v1613 = vunpack.c.h.b16 %v1497
  %v1614 = vunpack.c.l.b16 %v1498
  %v1615 = vunpack.c.l.b16 %v1499
  %v1616 = vunpack.c.h.b16 %v1499
  %v1617 = vunpack.c.l.b16 %v1500
  %v1618 = vunpack.c.l.b16 %v1501
  %v1619 = vunpack.c.h.b16 %v1501
  %v1620 = vunpack.c.l.b16 %v1502
  %v1621 = vunpack.c.l.b16 %v1503
  %v1622 = vunpack.c.h.b16 %v1503
  %v1623 = vunpack.c.l.b16 %v1504
  %v1624 = vunpack.c.l.b16 %v1505
  %v1625 = vunpack.c.h.b16 %v1505
  %v1626 = vunpack.c.l.b16 %v1506
  %v1627 = vunpack.c.l.b16 %v1507
  %v1628 = vunpack.c.h.b16 %v1507
  %v1629 = vunpack.c.l.b16 %v1508
  %v1630 = vpack.c.b16 %v1585, %v1582
  %v1631 = vpack.c.b16 %v1586, %v1583
  %v1632 = vpack.c.b16 %v1587, %v1584
  %v1633 = vpack.c.b16 %v1591, %v1588
  %v1634 = vpack.c.b16 %v1592, %v1589
  %v1635 = vpack.c.b16 %v1593, %v1590
  %v1636 = vpack.c.b16 %v1597, %v1594
  %v1637 = vpack.c.b16 %v1598, %v1595
  %v1638 = vpack.c.b16 %v1599, %v1596
  %v1639 = vpack.c.b16 %v1603, %v1600
  %v1640 = vpack.c.b16 %v1604, %v1601
  %v1641 = vpack.c.b16 %v1605, %v1602
  %v1642 = vpack.c.b16 %v1609, %v1606
  %v1643 = vpack.c.b16 %v1610, %v1607
  %v1644 = vpack.c.b16 %v1611, %v1608
  %v1645 = vpack.c.b16 %v1615, %v1612
  %v1646 = vpack.c.b16 %v1616, %v1613
  %v1647 = vpack.c.b16 %v1617, %v1614
  %v1648 = vpack.c.b16 %v1621, %v1618
  %v1649 = vpack.c.b16 %v1622, %v1619
  %v1650 = vpack.c.b16 %v1623, %v1620
  %v1651 = vpack.c.b16 %v1627, %v1624
  %v1652 = vpack.c.b16 %v1628, %v1625
  %v1653 = vpack.c.b16 %v1629, %v1626
  %1678 = vmatprep.subr.bf16.mxu0 %v1631
  %1679 = vmatpush1.bf16.msra.mxu0 %v1630
  %1680 = vmatprep.subr.bf16.mxu0 %v1634
  %1681 = vmatpush1.bf16.msra.mxu0 %v1633
  %1682 = vmatprep.subr.bf16.mxu0 %v1637
  %1683 = vmatpush1.bf16.msra.mxu0 %v1636
  %1684 = vmatprep.subr.bf16.mxu0 %v1640
  %1685 = vmatpush1.bf16.msra.mxu0 %v1639
  %1686 = vmatprep.subr.bf16.mxu0 %v1643
  %1687 = vmatpush1.bf16.msra.mxu0 %v1642
  %1688 = vmatprep.subr.bf16.mxu0 %v1646
  %1689 = vmatpush1.bf16.msra.mxu0 %v1645
  %1690 = vmatprep.subr.bf16.mxu0 %v1649
  %1691 = vmatpush1.bf16.msra.mxu0 %v1648
  %1692 = vmatprep.subr.bf16.mxu0 %v1652
  %1693 = vmatpush1.bf16.msra.mxu0 %v1651
  %1694 = vmatprep.subr.bf16.mxu0 0
  %1695 = vmatpush1.bf16.msra.mxu0 0
  %1696 = vmatprep.subr.bf16.mxu0 0
  %1697 = vmatpush1.bf16.msra.mxu0 0
  %1698 = vmatprep.subr.bf16.mxu0 0
  %1699 = vmatpush1.bf16.msra.mxu0 0
  %1700 = vmatprep.subr.bf16.mxu0 0
  %1701 = vmatpush1.bf16.msra.mxu0 0
  %1702 = vmatprep.subr.bf16.mxu0 0
  %1703 = vmatpush1.bf16.msra.mxu0 0
  %1704 = vmatprep.subr.bf16.mxu0 0
  %1705 = vmatpush1.bf16.msra.mxu0 0
  %1706 = vmatprep.subr.bf16.mxu0 0
  %1707 = vmatpush1.bf16.msra.mxu0 0
  %1708 = vmatprep.subr.bf16.mxu0 0
  %1709 = vmatpush1.bf16.msra.mxu0 0
  %1710 = vmatprep.mubr.bf16.mxu0 0
  %1711 = vmatmul.mubr.bf16.gmra.mrb[0].mxu0 %v1542
  %v1712 = vpop.f32.mrb[0].mxu0
  %v1713 = vadd.f32 %v1514, %v1712
  %v1714 = vpop.f32.mrb[0].mxu0
  %v1715 = vadd.f32 %v1518, %v1714
  %v1716 = vpop.f32.mrb[0].mxu0
  %v1717 = vadd.f32 %v1514, %v1716
  %v1718 = vpop.f32.mrb[0].mxu0
  %v1719 = vadd.f32 %v1518, %v1718
  %1720 = vmatprep.mubr.bf16.mxu0 0
  %1721 = vmatmul.mubr.bf16.gmra.mrb[0].mxu0 %v1543
  %v1722 = vpop.f32.mrb[0].mxu0
  %v1723 = vadd.f32 %v1514, %v1722
  %v1724 = vpop.f32.mrb[0].mxu0
  %v1725 = vadd.f32 %v1518, %v1724
  %v1726 = vpop.f32.mrb[0].mxu0
  %v1727 = vadd.f32 %v1514, %v1726
  %v1728 = vpop.f32.mrb[0].mxu0
  %v1729 = vadd.f32 %v1518, %v1728
  %1730 = vmatprep.mubr.bf16.mxu0 0
  %1731 = vmatmul.mubr.bf16.gmra.mrb[0].mxu0 %v1544
  %v1732 = vpop.f32.mrb[0].mxu0
  %v1733 = vadd.f32 %v1514, %v1732
  %v1734 = vpop.f32.mrb[0].mxu0
  %v1735 = vadd.f32 %v1518, %v1734
  %v1736 = vpop.f32.mrb[0].mxu0
  %v1737 = vadd.f32 %v1514, %v1736
  %v1738 = vpop.f32.mrb[0].mxu0
  %v1739 = vadd.f32 %v1518, %v1738
  %1740 = vmatprep.mubr.bf16.mxu0 0
  %1741 = vmatmul.mubr.bf16.gmra.mrb[0].mxu0 %v1545
  %v1742 = vpop.f32.mrb[0].mxu0
  %v1743 = vadd.f32 %v1514, %v1742
  %v1744 = vpop.f32.mrb[0].mxu0
  %v1745 = vadd.f32 %v1518, %v1744
  %v1746 = vpop.f32.mrb[0].mxu0
  %v1747 = vadd.f32 %v1514, %v1746
  %v1748 = vpop.f32.mrb[0].mxu0
  %v1749 = vadd.f32 %v1518, %v1748
  %1750 = vdwg.mxu0
  %1751 = vmatprep.subr.bf16.mxu0 0
  %1752 = vmatpush1.bf16.msra.mxu0 %v1632
  %1753 = vmatprep.subr.bf16.mxu0 0
  %1754 = vmatpush1.bf16.msra.mxu0 %v1635
  %1755 = vmatprep.subr.bf16.mxu0 0
  %1756 = vmatpush1.bf16.msra.mxu0 %v1638
  %1757 = vmatprep.subr.bf16.mxu0 0
  %1758 = vmatpush1.bf16.msra.mxu0 %v1641
  %1759 = vmatprep.subr.bf16.mxu0 0
  %1760 = vmatpush1.bf16.msra.mxu0 %v1644
  %1761 = vmatprep.subr.bf16.mxu0 0
  %1762 = vmatpush1.bf16.msra.mxu0 %v1647
  %1763 = vmatprep.subr.bf16.mxu0 0
  %1764 = vmatpush1.bf16.msra.mxu0 %v1650
  %1765 = vmatprep.subr.bf16.mxu0 0
  %1766 = vmatpush1.bf16.msra.mxu0 %v1653
  %1767 = vmatprep.subr.bf16.mxu0 0
  %1768 = vmatpush1.bf16.msra.mxu0 0
  %1769 = vmatprep.subr.bf16.mxu0 0
  %1770 = vmatpush1.bf16.msra.mxu0 0
  %1771 = vmatprep.subr.bf16.mxu0 0
  %1772 = vmatpush1.bf16.msra.mxu0 0
  %1773 = vmatprep.subr.bf16.mxu0 0
  %1774 = vmatpush1.bf16.msra.mxu0 0
  %1775 = vmatprep.subr.bf16.mxu0 0
  %1776 = vmatpush1.bf16.msra.mxu0 0
  %1777 = vmatprep.subr.bf16.mxu0 0
  %1778 = vmatpush1.bf16.msra.mxu0 0
  %1779 = vmatprep.subr.bf16.mxu0 0
  %1780 = vmatpush1.bf16.msra.mxu0 0
  %1781 = vmatprep.subr.bf16.mxu0 0
  %1782 = vmatpush1.bf16.msra.mxu0 0
  %1783 = vmatprep.mubr.bf16.mxu0 0
  %1784 = vmatmul.mubr.bf16.gmra.mrb[0].mxu0 %v1542
  %v1785 = vpop.f32.mrb[0].mxu0
  %v1786 = vadd.f32 %v1522, %v1785
  %v1787 = vpop.f32.mrb[0].mxu0
  %v1788 = vpop.f32.mrb[0].mxu0
  %v1789 = vadd.f32 %v1522, %v1788
  %v1790 = vpop.f32.mrb[0].mxu0
  %1791 = vmatprep.mubr.bf16.mxu0 0
  %1792 = vmatmul.mubr.bf16.gmra.mrb[0].mxu0 %v1543
  %v1793 = vpop.f32.mrb[0].mxu0
  %v1794 = vadd.f32 %v1522, %v1793
  %v1795 = vpop.f32.mrb[0].mxu0
  %v1796 = vpop.f32.mrb[0].mxu0
  %v1797 = vadd.f32 %v1522, %v1796
  %v1798 = vpop.f32.mrb[0].mxu0
  %1799 = vmatprep.mubr.bf16.mxu0 0
  %1800 = vmatmul.mubr.bf16.gmra.mrb[0].mxu0 %v1544
  %v1801 = vpop.f32.mrb[0].mxu0
  %v1802 = vadd.f32 %v1522, %v1801
  %v1803 = vpop.f32.mrb[0].mxu0
  %v1804 = vpop.f32.mrb[0].mxu0
  %v1805 = vadd.f32 %v1522, %v1804
  %v1806 = vpop.f32.mrb[0].mxu0
  %1807 = vmatprep.mubr.bf16.mxu0 0
  %1808 = vmatmul.mubr.bf16.gmra.mrb[0].mxu0 %v1545
  %v1809 = vpop.f32.mrb[0].mxu0
  %v1810 = vadd.f32 %v1522, %v1809
  %v1811 = vpop.f32.mrb[0].mxu0
  %v1812 = vpop.f32.mrb[0].mxu0
  %v1813 = vadd.f32 %v1522, %v1812
  %v1814 = vpop.f32.mrb[0].mxu0
  %1815 = vdwg.mxu0
  %1816 = vst [vmem:[#allocation3] sm:$0xff] %v1713
  %1817 = vst [vmem:[#allocation3 + $0x8] sm:$0xff] %v1715
  %1818 = vst [vmem:[#allocation3 + $0x10] sm:$0xff] %v1786
  %1819 = vst [vmem:[#allocation3 + $0x18] sm:$0xff] %v1717
  %1820 = vst [vmem:[#allocation3 + $0x20] sm:$0xff] %v1719
  %1821 = vst [vmem:[#allocation3 + $0x28] sm:$0xff] %v1789
  %1822 = vst [vmem:[#allocation3 + $0x30] sm:$0xff] %v1723
  %1823 = vst [vmem:[#allocation3 + $0x38] sm:$0xff] %v1725
  %1824 = vst [vmem:[#allocation3 + $0x40] sm:$0xff] %v1794
  %1825 = vst [vmem:[#allocation3 + $0x48] sm:$0xff] %v1727
  %1826 = vst [vmem:[#allocation3 + $0x50] sm:$0xff] %v1729
  %1827 = vst [vmem:[#allocation3 + $0x58] sm:$0xff] %v1797
  %1828 = vst [vmem:[#allocation3 + $0x60] sm:$0xff] %v1733
  %1829 = vst [vmem:[#allocation3 + $0x68] sm:$0xff] %v1735
  %1830 = vst [vmem:[#allocation3 + $0x70] sm:$0xff] %v1802
  %1831 = vst [vmem:[#allocation3 + $0x78] sm:$0xff] %v1737
  %1832 = vst [vmem:[#allocation3 + $0x80] sm:$0xff] %v1739
  %1833 = vst [vmem:[#allocation3 + $0x88] sm:$0xff] %v1805
  %1834 = vst [vmem:[#allocation3 + $0x90] sm:$0xff] %v1743
  %1835 = vst [vmem:[#allocation3 + $0x98] sm:$0xff] %v1745
  %1836 = vst [vmem:[#allocation3 + $0xa0] sm:$0xff] %v1810
  %1837 = vst [vmem:[#allocation3 + $0xa8] sm:$0xff] %v1747
  %1838 = vst [vmem:[#allocation3 + $0xb0] sm:$0xff] %v1749
  %1839 = vst [vmem:[#allocation3 + $0xb8] sm:$0xff] %v1813
  %v1840 = vld [vmem:[%s8] sm:$0xff]
  %v1841 = vld [vmem:[%s8 + $0x8] sm:$0xf]
  %v1842 = vld [vmem:[%s8 + $0xc] sm:$0xff]
  %v1843 = vld [vmem:[%s8 + $0x14] sm:$0xf]
  %v1844 = vld [vmem:[%s8 + $0x18] sm:$0xff]
  %v1845 = vld [vmem:[%s8 + $0x20] sm:$0xf]
  %v1846 = vld [vmem:[%s8 + $0x24] sm:$0xff]
  %v1847 = vld [vmem:[%s8 + $0x2c] sm:$0xf]
  %v1848 = vld [vmem:[%s8 + $0x30] sm:$0xff]
  %v1849 = vld [vmem:[%s8 + $0x38] sm:$0xf]
  %v1850 = vld [vmem:[%s8 + $0x3c] sm:$0xff]
  %v1851 = vld [vmem:[%s8 + $0x44] sm:$0xf]
  %v1852 = vld [vmem:[%s8 + $0x48] sm:$0xff]
  %v1853 = vld [vmem:[%s8 + $0x50] sm:$0xf]
  %v1854 = vld [vmem:[%s8 + $0x54] sm:$0xff]
  %v1855 = vld [vmem:[%s8 + $0x5c] sm:$0xf]
  %v1856 = vld [vmem:[%s8 + $0x60] sm:$0xff]
  %v1857 = vld [vmem:[%s8 + $0x68] sm:$0xf]
  %v1858 = vld [vmem:[%s8 + $0x6c] sm:$0xff]
  %v1859 = vld [vmem:[%s8 + $0x74] sm:$0xf]
  %v1860 = vld [vmem:[%s8 + $0x78] sm:$0xff]
  %v1861 = vld [vmem:[%s8 + $0x80] sm:$0xf]
  %v1862 = vld [vmem:[%s8 + $0x84] sm:$0xff]
  %v1863 = vld [vmem:[%s8 + $0x8c] sm:$0xf]
  %v1864 = vld [vmem:[%s8 + $0x90] sm:$0xff]
  %v1865 = vld [vmem:[%s8 + $0x98] sm:$0xf]
  %v1866 = vld [vmem:[%s8 + $0x9c] sm:$0xff]
  %v1867 = vld [vmem:[%s8 + $0xa4] sm:$0xf]
  %v1868 = vld [vmem:[%s8 + $0xa8] sm:$0xff]
  %v1869 = vld [vmem:[%s8 + $0xb0] sm:$0xf]
  %v1870 = vld [vmem:[%s8 + $0xb4] sm:$0xff]
  %v1871 = vld [vmem:[%s8 + $0xbc] sm:$0xf]
  %v1872 = vld [vmem:[%s10] sm:$0x7]
  %v1874 = vlaneseq
  %v1875 = vshrl.u32 %v1874, 7
  %v1876 = vsub.s32 0, %v1875
  %v1877 = vrot.slane %v1872, %v1876
  %v1878 = vlaneseq
  %v1879 = vshrl.u32 %v1878, 7
  %v1880 = vsub.s32 1, %v1879
  %v1881 = vrot.slane %v1872, %v1880
  %v1882 = vlaneseq
  %v1883 = vshrl.u32 %v1882, 7
  %v1884 = vsub.s32 2, %v1883
  %v1885 = vrot.slane %v1872, %v1884
  %v1889 = vld [vmem:[#allocation3] sm:$0xff]
  %v1890 = vld [vmem:[#allocation3 + $0x8] sm:$0xff]
  %v1891 = vld [vmem:[#allocation3 + $0x10] sm:$0xff]
  %v1924 = vunpack.c.l.b16 %v1840
  %v1925 = vunpack.c.h.b16 %v1840
  %v1926 = vunpack.c.l.b16 %v1841
  %v1927 = vunpack.c.l.b16 %v1842
  %v1928 = vunpack.c.h.b16 %v1842
  %v1929 = vunpack.c.l.b16 %v1843
  %v1930 = vunpack.c.l.b16 %v1844
  %v1931 = vunpack.c.h.b16 %v1844
  %v1932 = vunpack.c.l.b16 %v1845
  %v1933 = vunpack.c.l.b16 %v1846
  %v1934 = vunpack.c.h.b16 %v1846
  %v1935 = vunpack.c.l.b16 %v1847
  %v1936 = vunpack.c.l.b16 %v1848
  %v1937 = vunpack.c.h.b16 %v1848
  %v1938 = vunpack.c.l.b16 %v1849
  %v1939 = vunpack.c.l.b16 %v1850
  %v1940 = vunpack.c.h.b16 %v1850
  %v1941 = vunpack.c.l.b16 %v1851
  %v1942 = vunpack.c.l.b16 %v1852
  %v1943 = vunpack.c.h.b16 %v1852
  %v1944 = vunpack.c.l.b16 %v1853
  %v1945 = vunpack.c.l.b16 %v1854
  %v1946 = vunpack.c.h.b16 %v1854
  %v1947 = vunpack.c.l.b16 %v1855
  %v1948 = vunpack.c.l.b16 %v1856
  %v1949 = vunpack.c.h.b16 %v1856
  %v1950 = vunpack.c.l.b16 %v1857
  %v1951 = vunpack.c.l.b16 %v1858
  %v1952 = vunpack.c.h.b16 %v1858
  %v1953 = vunpack.c.l.b16 %v1859
  %v1954 = vunpack.c.l.b16 %v1860
  %v1955 = vunpack.c.h.b16 %v1860
  %v1956 = vunpack.c.l.b16 %v1861
  %v1957 = vunpack.c.l.b16 %v1862
  %v1958 = vunpack.c.h.b16 %v1862
  %v1959 = vunpack.c.l.b16 %v1863
  %v1960 = vunpack.c.l.b16 %v1864
  %v1961 = vunpack.c.h.b16 %v1864
  %v1962 = vunpack.c.l.b16 %v1865
  %v1963 = vunpack.c.l.b16 %v1866
  %v1964 = vunpack.c.h.b16 %v1866
  %v1965 = vunpack.c.l.b16 %v1867
  %v1966 = vunpack.c.l.b16 %v1868
  %v1967 = vunpack.c.h.b16 %v1868
  %v1968 = vunpack.c.l.b16 %v1869
  %v1969 = vunpack.c.l.b16 %v1870
  %v1970 = vunpack.c.h.b16 %v1870
  %v1971 = vunpack.c.l.b16 %v1871
  %v1972 = vpack.c.b16 %v1927, %v1924
  %v1973 = vpack.c.b16 %v1928, %v1925
  %v1974 = vpack.c.b16 %v1929, %v1926
  %v1975 = vpack.c.b16 %v1933, %v1930
  %v1976 = vpack.c.b16 %v1934, %v1931
  %v1977 = vpack.c.b16 %v1935, %v1932
  %v1978 = vpack.c.b16 %v1939, %v1936
  %v1979 = vpack.c.b16 %v1940, %v1937
  %v1980 = vpack.c.b16 %v1941, %v1938
  %v1981 = vpack.c.b16 %v1945, %v1942
  %v1982 = vpack.c.b16 %v1946, %v1943
  %v1983 = vpack.c.b16 %v1947, %v1944
  %v1984 = vpack.c.b16 %v1951, %v1948
  %v1985 = vpack.c.b16 %v1952, %v1949
  %v1986 = vpack.c.b16 %v1953, %v1950
  %v1987 = vpack.c.b16 %v1957, %v1954
  %v1988 = vpack.c.b16 %v1958, %v1955
  %v1989 = vpack.c.b16 %v1959, %v1956
  %v1990 = vpack.c.b16 %v1963, %v1960
  %v1991 = vpack.c.b16 %v1964, %v1961
  %v1992 = vpack.c.b16 %v1965, %v1962
  %v1993 = vpack.c.b16 %v1969, %v1966
  %v1994 = vpack.c.b16 %v1970, %v1967
  %v1995 = vpack.c.b16 %v1971, %v1968
  %2020 = vmatprep.subr.bf16.mxu0 %v1973
  %2021 = vmatpush1.bf16.msra.mxu0 %v1972
  %2022 = vmatprep.subr.bf16.mxu0 %v1976
  %2023 = vmatpush1.bf16.msra.mxu0 %v1975
  %2024 = vmatprep.subr.bf16.mxu0 %v1979
  %2025 = vmatpush1.bf16.msra.mxu0 %v1978
  %2026 = vmatprep.subr.bf16.mxu0 %v1982
  %2027 = vmatpush1.bf16.msra.mxu0 %v1981
  %2028 = vmatprep.subr.bf16.mxu0 %v1985
  %2029 = vmatpush1.bf16.msra.mxu0 %v1984
  %2030 = vmatprep.subr.bf16.mxu0 %v1988
  %2031 = vmatpush1.bf16.msra.mxu0 %v1987
  %2032 = vmatprep.subr.bf16.mxu0 %v1991
  %2033 = vmatpush1.bf16.msra.mxu0 %v1990
  %2034 = vmatprep.subr.bf16.mxu0 %v1994
  %2035 = vmatpush1.bf16.msra.mxu0 %v1993
  %2036 = vmatprep.subr.bf16.mxu0 0
  %2037 = vmatpush1.bf16.msra.mxu0 0
  %2038 = vmatprep.subr.bf16.mxu0 0
  %2039 = vmatpush1.bf16.msra.mxu0 0
  %2040 = vmatprep.subr.bf16.mxu0 0
  %2041 = vmatpush1.bf16.msra.mxu0 0
  %2042 = vmatprep.subr.bf16.mxu0 0
  %2043 = vmatpush1.bf16.msra.mxu0 0
  %2044 = vmatprep.subr.bf16.mxu0 0
  %2045 = vmatpush1.bf16.msra.mxu0 0
  %2046 = vmatprep.subr.bf16.mxu0 0
  %2047 = vmatpush1.bf16.msra.mxu0 0
  %2048 = vmatprep.subr.bf16.mxu0 0
  %2049 = vmatpush1.bf16.msra.mxu0 0
  %2050 = vmatprep.subr.bf16.mxu0 0
  %2051 = vmatpush1.bf16.msra.mxu0 0
  %2052 = vmatprep.mubr.bf16.mxu0 0
  %2053 = vmatmul.mubr.bf16.gmra.mrb[0].mxu0 %v1466
  %v2054 = vpop.f32.mrb[0].mxu0
  %v2055 = vadd.f32 %v1877, %v2054
  %v2056 = vpop.f32.mrb[0].mxu0
  %v2057 = vadd.f32 %v1881, %v2056
  %v2058 = vpop.f32.mrb[0].mxu0
  %v2059 = vpop.f32.mrb[0].mxu0
  %2060 = vdwg.mxu0
  %2061 = vmatprep.subr.bf16.mxu0 0
  %2062 = vmatpush1.bf16.msra.mxu0 %v1974
  %2063 = vmatprep.subr.bf16.mxu0 0
  %2064 = vmatpush1.bf16.msra.mxu0 %v1977
  %2065 = vmatprep.subr.bf16.mxu0 0
  %2066 = vmatpush1.bf16.msra.mxu0 %v1980
  %2067 = vmatprep.subr.bf16.mxu0 0
  %2068 = vmatpush1.bf16.msra.mxu0 %v1983
  %2069 = vmatprep.subr.bf16.mxu0 0
  %2070 = vmatpush1.bf16.msra.mxu0 %v1986
  %2071 = vmatprep.subr.bf16.mxu0 0
  %2072 = vmatpush1.bf16.msra.mxu0 %v1989
  %2073 = vmatprep.subr.bf16.mxu0 0
  %2074 = vmatpush1.bf16.msra.mxu0 %v1992
  %2075 = vmatprep.subr.bf16.mxu0 0
  %2076 = vmatpush1.bf16.msra.mxu0 %v1995
  %2077 = vmatprep.subr.bf16.mxu0 0
  %2078 = vmatpush1.bf16.msra.mxu0 0
  %2079 = vmatprep.subr.bf16.mxu0 0
  %2080 = vmatpush1.bf16.msra.mxu0 0
  %2081 = vmatprep.subr.bf16.mxu0 0
  %2082 = vmatpush1.bf16.msra.mxu0 0
  %2083 = vmatprep.subr.bf16.mxu0 0
  %2084 = vmatpush1.bf16.msra.mxu0 0
  %2085 = vmatprep.subr.bf16.mxu0 0
  %2086 = vmatpush1.bf16.msra.mxu0 0
  %2087 = vmatprep.subr.bf16.mxu0 0
  %2088 = vmatpush1.bf16.msra.mxu0 0
  %2089 = vmatprep.subr.bf16.mxu0 0
  %2090 = vmatpush1.bf16.msra.mxu0 0
  %2091 = vmatprep.subr.bf16.mxu0 0
  %2092 = vmatpush1.bf16.msra.mxu0 0
  %2093 = vmatprep.mubr.bf16.mxu0 0
  %2094 = vmatmul.mubr.bf16.gmra.mrb[0].mxu0 %v1466
  %v2095 = vpop.f32.mrb[0].mxu0
  %v2096 = vadd.f32 %v1885, %v2095
  %v2097 = vpop.f32.mrb[0].mxu0
  %v2098 = vpop.f32.mrb[0].mxu0
  %v2099 = vpop.f32.mrb[0].mxu0
  %2100 = vdwg.mxu0
  %v2101 = vadd.f32 %v1889, %v2055
  %v2102 = vxor.u32 %v2101, 2147483648
  %v2103 = vmul.f32 %v2102, 1.442695
  %v2104 = vpow.pop %v2103
  %v2105 = vadd.f32 %v2104, 1.0
  %v2106 = vrcp.pop %v2105
  %v2107 = vmul.f32 1.0, %v2106
  %v2108 = vadd.f32 %v1890, %v2057
  %v2109 = vxor.u32 %v2108, 2147483648
  %v2110 = vmul.f32 %v2109, 1.442695
  %v2111 = vpow.pop %v2110
  %v2112 = vadd.f32 %v2111, 1.0
  %v2113 = vrcp.pop %v2112
  %v2114 = vmul.f32 1.0, %v2113
  %v2115 = vmul.f32 %v2107, %v2096
  %v2116 = vadd.f32 %v1891, %v2115
  %v2117 = vtanh.pop %v2116
  %v2118 = vsub.f32 1.0, %v2114
  %v2119 = vmul.f32 %v2118, %v2117
  %v2120 = vmul.f32 %v2114, %v1465
  %v2121 = vadd.f32 %v2119, %v2120
  %v2122 = vpack.c.bf16 %v2121, %v2121
  %2123 = vst [vmem:[#allocation5] sm:$0xf] %v2122
  %v2124 = vld [vmem:[#allocation3 + $0x18] sm:$0xff]
  %v2125 = vld [vmem:[#allocation3 + $0x20] sm:$0xff]
  %v2126 = vld [vmem:[#allocation3 + $0x28] sm:$0xff]
  %2127 = vmatprep.subr.bf16.mxu0 %v1973
  %2128 = vmatpush1.bf16.msra.mxu0 %v1972
  %2129 = vmatprep.subr.bf16.mxu0 %v1976
  %2130 = vmatpush1.bf16.msra.mxu0 %v1975
  %2131 = vmatprep.subr.bf16.mxu0 %v1979
  %2132 = vmatpush1.bf16.msra.mxu0 %v1978
  %2133 = vmatprep.subr.bf16.mxu0 %v1982
  %2134 = vmatpush1.bf16.msra.mxu0 %v1981
  %2135 = vmatprep.subr.bf16.mxu0 %v1985
  %2136 = vmatpush1.bf16.msra.mxu0 %v1984
  %2137 = vmatprep.subr.bf16.mxu0 %v1988
  %2138 = vmatpush1.bf16.msra.mxu0 %v1987
  %2139 = vmatprep.subr.bf16.mxu0 %v1991
  %2140 = vmatpush1.bf16.msra.mxu0 %v1990
  %2141 = vmatprep.subr.bf16.mxu0 %v1994
  %2142 = vmatpush1.bf16.msra.mxu0 %v1993
  %2143 = vmatprep.subr.bf16.mxu0 0
  %2144 = vmatpush1.bf16.msra.mxu0 0
  %2145 = vmatprep.subr.bf16.mxu0 0
  %2146 = vmatpush1.bf16.msra.mxu0 0
  %2147 = vmatprep.subr.bf16.mxu0 0
  %2148 = vmatpush1.bf16.msra.mxu0 0
  %2149 = vmatprep.subr.bf16.mxu0 0
  %2150 = vmatpush1.bf16.msra.mxu0 0
  %2151 = vmatprep.subr.bf16.mxu0 0
  %2152 = vmatpush1.bf16.msra.mxu0 0
  %2153 = vmatprep.subr.bf16.mxu0 0
  %2154 = vmatpush1.bf16.msra.mxu0 0
  %2155 = vmatprep.subr.bf16.mxu0 0
  %2156 = vmatpush1.bf16.msra.mxu0 0
  %2157 = vmatprep.subr.bf16.mxu0 0
  %2158 = vmatpush1.bf16.msra.mxu0 0
  %2159 = vmatprep.mubr.bf16.mxu0 0
  %2160 = vmatmul.mubr.bf16.gmra.mrb[0].mxu0 %v2122
  %v2161 = vpop.f32.mrb[0].mxu0
  %v2162 = vadd.f32 %v1877, %v2161
  %v2163 = vpop.f32.mrb[0].mxu0
  %v2164 = vadd.f32 %v1881, %v2163
  %v2165 = vpop.f32.mrb[0].mxu0
  %v2166 = vpop.f32.mrb[0].mxu0
  %2167 = vdwg.mxu0
  %2168 = vmatprep.subr.bf16.mxu0 0
  %2169 = vmatpush1.bf16.msra.mxu0 %v1974
  %2170 = vmatprep.subr.bf16.mxu0 0
  %2171 = vmatpush1.bf16.msra.mxu0 %v1977
  %2172 = vmatprep.subr.bf16.mxu0 0
  %2173 = vmatpush1.bf16.msra.mxu0 %v1980
  %2174 = vmatprep.subr.bf16.mxu0 0
  %2175 = vmatpush1.bf16.msra.mxu0 %v1983
  %2176 = vmatprep.subr.bf16.mxu0 0
  %2177 = vmatpush1.bf16.msra.mxu0 %v1986
  %2178 = vmatprep.subr.bf16.mxu0 0
  %2179 = vmatpush1.bf16.msra.mxu0 %v1989
  %2180 = vmatprep.subr.bf16.mxu0 0
  %2181 = vmatpush1.bf16.msra.mxu0 %v1992
  %2182 = vmatprep.subr.bf16.mxu0 0
  %2183 = vmatpush1.bf16.msra.mxu0 %v1995
  %2184 = vmatprep.subr.bf16.mxu0 0
  %2185 = vmatpush1.bf16.msra.mxu0 0
  %2186 = vmatprep.subr.bf16.mxu0 0
  %2187 = vmatpush1.bf16.msra.mxu0 0
  %2188 = vmatprep.subr.bf16.mxu0 0
  %2189 = vmatpush1.bf16.msra.mxu0 0
  %2190 = vmatprep.subr.bf16.mxu0 0
  %2191 = vmatpush1.bf16.msra.mxu0 0
  %2192 = vmatprep.subr.bf16.mxu0 0
  %2193 = vmatpush1.bf16.msra.mxu0 0
  %2194 = vmatprep.subr.bf16.mxu0 0
  %2195 = vmatpush1.bf16.msra.mxu0 0
  %2196 = vmatprep.subr.bf16.mxu0 0
  %2197 = vmatpush1.bf16.msra.mxu0 0
  %2198 = vmatprep.subr.bf16.mxu0 0
  %2199 = vmatpush1.bf16.msra.mxu0 0
  %2200 = vmatprep.mubr.bf16.mxu0 0
  %2201 = vmatmul.mubr.bf16.gmra.mrb[0].mxu0 %v2122
  %v2202 = vpop.f32.mrb[0].mxu0
  %v2203 = vadd.f32 %v1885, %v2202
  %v2204 = vpop.f32.mrb[0].mxu0
  %v2205 = vpop.f32.mrb[0].mxu0
  %v2206 = vpop.f32.mrb[0].mxu0
  %2207 = vdwg.mxu0
  %v2208 = vadd.f32 %v2124, %v2162
  %v2209 = vxor.u32 %v2208, 2147483648
  %v2210 = vmul.f32 %v2209, 1.442695
  %v2211 = vpow.pop %v2210
  %v2212 = vadd.f32 %v2211, 1.0
  %v2213 = vrcp.pop %v2212
  %v2214 = vmul.f32 1.0, %v2213
  %v2215 = vadd.f32 %v2125, %v2164
  %v2216 = vxor.u32 %v2215, 2147483648
  %v2217 = vmul.f32 %v2216, 1.442695
  %v2218 = vpow.pop %v2217
  %v2219 = vadd.f32 %v2218, 1.0
  %v2220 = vrcp.pop %v2219
  %v2221 = vmul.f32 1.0, %v2220
  %v2222 = vmul.f32 %v2214, %v2203
  %v2223 = vadd.f32 %v2126, %v2222
  %v2224 = vtanh.pop %v2223
  %v2225 = vsub.f32 1.0, %v2221
  %v2226 = vmul.f32 %v2225, %v2224
  %v2227 = vmul.f32 %v2221, %v2121
  %v2228 = vadd.f32 %v2226, %v2227
  %v2229 = vpack.c.bf16 %v2228, %v2228
  %s2230 = scalar_lea.vmem [#allocation5], 4
  %2231 = vst [vmem:[%s2230] sm:$0xf] %v2229
  %v2232 = vld [vmem:[#allocation3 + $0x30] sm:$0xff]
  %v2233 = vld [vmem:[#allocation3 + $0x38] sm:$0xff]
  %v2234 = vld [vmem:[#allocation3 + $0x40] sm:$0xff]
  %2235 = vmatprep.subr.bf16.mxu0 %v1973
  %2236 = vmatpush1.bf16.msra.mxu0 %v1972
  %2237 = vmatprep.subr.bf16.mxu0 %v1976
  %2238 = vmatpush1.bf16.msra.mxu0 %v1975
  %2239 = vmatprep.subr.bf16.mxu0 %v1979
  %2240 = vmatpush1.bf16.msra.mxu0 %v1978
  %2241 = vmatprep.subr.bf16.mxu0 %v1982
  %2242 = vmatpush1.bf16.msra.mxu0 %v1981
  %2243 = vmatprep.subr.bf16.mxu0 %v1985
  %2244 = vmatpush1.bf16.msra.mxu0 %v1984
  %2245 = vmatprep.subr.bf16.mxu0 %v1988
  %2246 = vmatpush1.bf16.msra.mxu0 %v1987
  %2247 = vmatprep.subr.bf16.mxu0 %v1991
  %2248 = vmatpush1.bf16.msra.mxu0 %v1990
  %2249 = vmatprep.subr.bf16.mxu0 %v1994
  %2250 = vmatpush1.bf16.msra.mxu0 %v1993
  %2251 = vmatprep.subr.bf16.mxu0 0
  %2252 = vmatpush1.bf16.msra.mxu0 0
  %2253 = vmatprep.subr.bf16.mxu0 0
  %2254 = vmatpush1.bf16.msra.mxu0 0
  %2255 = vmatprep.subr.bf16.mxu0 0
  %2256 = vmatpush1.bf16.msra.mxu0 0
  %2257 = vmatprep.subr.bf16.mxu0 0
  %2258 = vmatpush1.bf16.msra.mxu0 0
  %2259 = vmatprep.subr.bf16.mxu0 0
  %2260 = vmatpush1.bf16.msra.mxu0 0
  %2261 = vmatprep.subr.bf16.mxu0 0
  %2262 = vmatpush1.bf16.msra.mxu0 0
  %2263 = vmatprep.subr.bf16.mxu0 0
  %2264 = vmatpush1.bf16.msra.mxu0 0
  %2265 = vmatprep.subr.bf16.mxu0 0
  %2266 = vmatpush1.bf16.msra.mxu0 0
  %2267 = vmatprep.mubr.bf16.mxu0 0
  %2268 = vmatmul.mubr.bf16.gmra.mrb[0].mxu0 %v2229
  %v2269 = vpop.f32.mrb[0].mxu0
  %v2270 = vadd.f32 %v1877, %v2269
  %v2271 = vpop.f32.mrb[0].mxu0
  %v2272 = vadd.f32 %v1881, %v2271
  %v2273 = vpop.f32.mrb[0].mxu0
  %v2274 = vpop.f32.mrb[0].mxu0
  %2275 = vdwg.mxu0
  %2276 = vmatprep.subr.bf16.mxu0 0
  %2277 = vmatpush1.bf16.msra.mxu0 %v1974
  %2278 = vmatprep.subr.bf16.mxu0 0
  %2279 = vmatpush1.bf16.msra.mxu0 %v1977
  %2280 = vmatprep.subr.bf16.mxu0 0
  %2281 = vmatpush1.bf16.msra.mxu0 %v1980
  %2282 = vmatprep.subr.bf16.mxu0 0
  %2283 = vmatpush1.bf16.msra.mxu0 %v1983
  %2284 = vmatprep.subr.bf16.mxu0 0
  %2285 = vmatpush1.bf16.msra.mxu0 %v1986
  %2286 = vmatprep.subr.bf16.mxu0 0
  %2287 = vmatpush1.bf16.msra.mxu0 %v1989
  %2288 = vmatprep.subr.bf16.mxu0 0
  %2289 = vmatpush1.bf16.msra.mxu0 %v1992
  %2290 = vmatprep.subr.bf16.mxu0 0
  %2291 = vmatpush1.bf16.msra.mxu0 %v1995
  %2292 = vmatprep.subr.bf16.mxu0 0
  %2293 = vmatpush1.bf16.msra.mxu0 0
  %2294 = vmatprep.subr.bf16.mxu0 0
  %2295 = vmatpush1.bf16.msra.mxu0 0
  %2296 = vmatprep.subr.bf16.mxu0 0
  %2297 = vmatpush1.bf16.msra.mxu0 0
  %2298 = vmatprep.subr.bf16.mxu0 0
  %2299 = vmatpush1.bf16.msra.mxu0 0
  %2300 = vmatprep.subr.bf16.mxu0 0
  %2301 = vmatpush1.bf16.msra.mxu0 0
  %2302 = vmatprep.subr.bf16.mxu0 0
  %2303 = vmatpush1.bf16.msra.mxu0 0
  %2304 = vmatprep.subr.bf16.mxu0 0
  %2305 = vmatpush1.bf16.msra.mxu0 0
  %2306 = vmatprep.subr.bf16.mxu0 0
  %2307 = vmatpush1.bf16.msra.mxu0 0
  %2308 = vmatprep.mubr.bf16.mxu0 0
  %2309 = vmatmul.mubr.bf16.gmra.mrb[0].mxu0 %v2229
  %v2310 = vpop.f32.mrb[0].mxu0
  %v2311 = vadd.f32 %v1885, %v2310
  %v2312 = vpop.f32.mrb[0].mxu0
  %v2313 = vpop.f32.mrb[0].mxu0
  %v2314 = vpop.f32.mrb[0].mxu0
  %2315 = vdwg.mxu0
  %v2316 = vadd.f32 %v2232, %v2270
  %v2317 = vxor.u32 %v2316, 2147483648
  %v2318 = vmul.f32 %v2317, 1.442695
  %v2319 = vpow.pop %v2318
  %v2320 = vadd.f32 %v2319, 1.0
  %v2321 = vrcp.pop %v2320
  %v2322 = vmul.f32 1.0, %v2321
  %v2323 = vadd.f32 %v2233, %v2272
  %v2324 = vxor.u32 %v2323, 2147483648
  %v2325 = vmul.f32 %v2324, 1.442695
  %v2326 = vpow.pop %v2325
  %v2327 = vadd.f32 %v2326, 1.0
  %v2328 = vrcp.pop %v2327
  %v2329 = vmul.f32 1.0, %v2328
  %v2330 = vmul.f32 %v2322, %v2311
  %v2331 = vadd.f32 %v2234, %v2330
  %v2332 = vtanh.pop %v2331
  %v2333 = vsub.f32 1.0, %v2329
  %v2334 = vmul.f32 %v2333, %v2332
  %v2335 = vmul.f32 %v2329, %v2228
  %v2336 = vadd.f32 %v2334, %v2335
  %v2337 = vpack.c.bf16 %v2336, %v2336
  %s2338 = scalar_lea.vmem [#allocation5], 8
  %2339 = vst [vmem:[%s2338] sm:$0xf] %v2337
  %v2340 = vld [vmem:[#allocation3 + $0x48] sm:$0xff]
  %v2341 = vld [vmem:[#allocation3 + $0x50] sm:$0xff]
  %v2342 = vld [vmem:[#allocation3 + $0x58] sm:$0xff]
  %2343 = vmatprep.subr.bf16.mxu0 %v1973
  %2344 = vmatpush1.bf16.msra.mxu0 %v1972
  %2345 = vmatprep.subr.bf16.mxu0 %v1976
  %2346 = vmatpush1.bf16.msra.mxu0 %v1975
  %2347 = vmatprep.subr.bf16.mxu0 %v1979
  %2348 = vmatpush1.bf16.msra.mxu0 %v1978
  %2349 = vmatprep.subr.bf16.mxu0 %v1982
  %2350 = vmatpush1.bf16.msra.mxu0 %v1981
  %2351 = vmatprep.subr.bf16.mxu0 %v1985
  %2352 = vmatpush1.bf16.msra.mxu0 %v1984
  %2353 = vmatprep.subr.bf16.mxu0 %v1988
  %2354 = vmatpush1.bf16.msra.mxu0 %v1987
  %2355 = vmatprep.subr.bf16.mxu0 %v1991
  %2356 = vmatpush1.bf16.msra.mxu0 %v1990
  %2357 = vmatprep.subr.bf16.mxu0 %v1994
  %2358 = vmatpush1.bf16.msra.mxu0 %v1993
  %2359 = vmatprep.subr.bf16.mxu0 0
  %2360 = vmatpush1.bf16.msra.mxu0 0
  %2361 = vmatprep.subr.bf16.mxu0 0
  %2362 = vmatpush1.bf16.msra.mxu0 0
  %2363 = vmatprep.subr.bf16.mxu0 0
  %2364 = vmatpush1.bf16.msra.mxu0 0
  %2365 = vmatprep.subr.bf16.mxu0 0
  %2366 = vmatpush1.bf16.msra.mxu0 0
  %2367 = vmatprep.subr.bf16.mxu0 0
  %2368 = vmatpush1.bf16.msra.mxu0 0
  %2369 = vmatprep.subr.bf16.mxu0 0
  %2370 = vmatpush1.bf16.msra.mxu0 0
  %2371 = vmatprep.subr.bf16.mxu0 0
  %2372 = vmatpush1.bf16.msra.mxu0 0
  %2373 = vmatprep.subr.bf16.mxu0 0
  %2374 = vmatpush1.bf16.msra.mxu0 0
  %2375 = vmatprep.mubr.bf16.mxu0 0
  %2376 = vmatmul.mubr.bf16.gmra.mrb[0].mxu0 %v2337
  %v2377 = vpop.f32.mrb[0].mxu0
  %v2378 = vadd.f32 %v1877, %v2377
  %v2379 = vpop.f32.mrb[0].mxu0
  %v2380 = vadd.f32 %v1881, %v2379
  %v2381 = vpop.f32.mrb[0].mxu0
  %v2382 = vpop.f32.mrb[0].mxu0
  %2383 = vdwg.mxu0
  %2384 = vmatprep.subr.bf16.mxu0 0
  %2385 = vmatpush1.bf16.msra.mxu0 %v1974
  %2386 = vmatprep.subr.bf16.mxu0 0
  %2387 = vmatpush1.bf16.msra.mxu0 %v1977
  %2388 = vmatprep.subr.bf16.mxu0 0
  %2389 = vmatpush1.bf16.msra.mxu0 %v1980
  %2390 = vmatprep.subr.bf16.mxu0 0
  %2391 = vmatpush1.bf16.msra.mxu0 %v1983
  %2392 = vmatprep.subr.bf16.mxu0 0
  %2393 = vmatpush1.bf16.msra.mxu0 %v1986
  %2394 = vmatprep.subr.bf16.mxu0 0
  %2395 = vmatpush1.bf16.msra.mxu0 %v1989
  %2396 = vmatprep.subr.bf16.mxu0 0
  %2397 = vmatpush1.bf16.msra.mxu0 %v1992
  %2398 = vmatprep.subr.bf16.mxu0 0
  %2399 = vmatpush1.bf16.msra.mxu0 %v1995
  %2400 = vmatprep.subr.bf16.mxu0 0
  %2401 = vmatpush1.bf16.msra.mxu0 0
  %2402 = vmatprep.subr.bf16.mxu0 0
  %2403 = vmatpush1.bf16.msra.mxu0 0
  %2404 = vmatprep.subr.bf16.mxu0 0
  %2405 = vmatpush1.bf16.msra.mxu0 0
  %2406 = vmatprep.subr.bf16.mxu0 0
  %2407 = vmatpush1.bf16.msra.mxu0 0
  %2408 = vmatprep.subr.bf16.mxu0 0
  %2409 = vmatpush1.bf16.msra.mxu0 0
  %2410 = vmatprep.subr.bf16.mxu0 0
  %2411 = vmatpush1.bf16.msra.mxu0 0
  %2412 = vmatprep.subr.bf16.mxu0 0
  %2413 = vmatpush1.bf16.msra.mxu0 0
  %2414 = vmatprep.subr.bf16.mxu0 0
  %2415 = vmatpush1.bf16.msra.mxu0 0
  %2416 = vmatprep.mubr.bf16.mxu0 0
  %2417 = vmatmul.mubr.bf16.gmra.mrb[0].mxu0 %v2337
  %v2418 = vpop.f32.mrb[0].mxu0
  %v2419 = vadd.f32 %v1885, %v2418
  %v2420 = vpop.f32.mrb[0].mxu0
  %v2421 = vpop.f32.mrb[0].mxu0
  %v2422 = vpop.f32.mrb[0].mxu0
  %2423 = vdwg.mxu0
  %v2424 = vadd.f32 %v2340, %v2378
  %v2425 = vxor.u32 %v2424, 2147483648
  %v2426 = vmul.f32 %v2425, 1.442695
  %v2427 = vpow.pop %v2426
  %v2428 = vadd.f32 %v2427, 1.0
  %v2429 = vrcp.pop %v2428
  %v2430 = vmul.f32 1.0, %v2429
  %v2431 = vadd.f32 %v2341, %v2380
  %v2432 = vxor.u32 %v2431, 2147483648
  %v2433 = vmul.f32 %v2432, 1.442695
  %v2434 = vpow.pop %v2433
  %v2435 = vadd.f32 %v2434, 1.0
  %v2436 = vrcp.pop %v2435
  %v2437 = vmul.f32 1.0, %v2436
  %v2438 = vmul.f32 %v2430, %v2419
  %v2439 = vadd.f32 %v2342, %v2438
  %v2440 = vtanh.pop %v2439
  %v2441 = vsub.f32 1.0, %v2437
  %v2442 = vmul.f32 %v2441, %v2440
  %v2443 = vmul.f32 %v2437, %v2336
  %v2444 = vadd.f32 %v2442, %v2443
  %v2445 = vpack.c.bf16 %v2444, %v2444
  %s2446 = scalar_lea.vmem [#allocation5], 12
  %2447 = vst [vmem:[%s2446] sm:$0xf] %v2445
  %v2448 = vld [vmem:[#allocation3 + $0x60] sm:$0xff]
  %v2449 = vld [vmem:[#allocation3 + $0x68] sm:$0xff]
  %v2450 = vld [vmem:[#allocation3 + $0x70] sm:$0xff]
  %2451 = vmatprep.subr.bf16.mxu0 %v1973
  %2452 = vmatpush1.bf16.msra.mxu0 %v1972
  %2453 = vmatprep.subr.bf16.mxu0 %v1976
  %2454 = vmatpush1.bf16.msra.mxu0 %v1975
  %2455 = vmatprep.subr.bf16.mxu0 %v1979
  %2456 = vmatpush1.bf16.msra.mxu0 %v1978
  %2457 = vmatprep.subr.bf16.mxu0 %v1982
  %2458 = vmatpush1.bf16.msra.mxu0 %v1981
  %2459 = vmatprep.subr.bf16.mxu0 %v1985
  %2460 = vmatpush1.bf16.msra.mxu0 %v1984
  %2461 = vmatprep.subr.bf16.mxu0 %v1988
  %2462 = vmatpush1.bf16.msra.mxu0 %v1987
  %2463 = vmatprep.subr.bf16.mxu0 %v1991
  %2464 = vmatpush1.bf16.msra.mxu0 %v1990
  %2465 = vmatprep.subr.bf16.mxu0 %v1994
  %2466 = vmatpush1.bf16.msra.mxu0 %v1993
  %2467 = vmatprep.subr.bf16.mxu0 0
  %2468 = vmatpush1.bf16.msra.mxu0 0
  %2469 = vmatprep.subr.bf16.mxu0 0
  %2470 = vmatpush1.bf16.msra.mxu0 0
  %2471 = vmatprep.subr.bf16.mxu0 0
  %2472 = vmatpush1.bf16.msra.mxu0 0
  %2473 = vmatprep.subr.bf16.mxu0 0
  %2474 = vmatpush1.bf16.msra.mxu0 0
  %2475 = vmatprep.subr.bf16.mxu0 0
  %2476 = vmatpush1.bf16.msra.mxu0 0
  %2477 = vmatprep.subr.bf16.mxu0 0
  %2478 = vmatpush1.bf16.msra.mxu0 0
  %2479 = vmatprep.subr.bf16.mxu0 0
  %2480 = vmatpush1.bf16.msra.mxu0 0
  %2481 = vmatprep.subr.bf16.mxu0 0
  %2482 = vmatpush1.bf16.msra.mxu0 0
  %2483 = vmatprep.mubr.bf16.mxu0 0
  %2484 = vmatmul.mubr.bf16.gmra.mrb[0].mxu0 %v2445
  %v2485 = vpop.f32.mrb[0].mxu0
  %v2486 = vadd.f32 %v1877, %v2485
  %v2487 = vpop.f32.mrb[0].mxu0
  %v2488 = vadd.f32 %v1881, %v2487
  %v2489 = vpop.f32.mrb[0].mxu0
  %v2490 = vpop.f32.mrb[0].mxu0
  %2491 = vdwg.mxu0
  %2492 = vmatprep.subr.bf16.mxu0 0
  %2493 = vmatpush1.bf16.msra.mxu0 %v1974
  %2494 = vmatprep.subr.bf16.mxu0 0
  %2495 = vmatpush1.bf16.msra.mxu0 %v1977
  %2496 = vmatprep.subr.bf16.mxu0 0
  %2497 = vmatpush1.bf16.msra.mxu0 %v1980
  %2498 = vmatprep.subr.bf16.mxu0 0
  %2499 = vmatpush1.bf16.msra.mxu0 %v1983
  %2500 = vmatprep.subr.bf16.mxu0 0
  %2501 = vmatpush1.bf16.msra.mxu0 %v1986
  %2502 = vmatprep.subr.bf16.mxu0 0
  %2503 = vmatpush1.bf16.msra.mxu0 %v1989
  %2504 = vmatprep.subr.bf16.mxu0 0
  %2505 = vmatpush1.bf16.msra.mxu0 %v1992
  %2506 = vmatprep.subr.bf16.mxu0 0
  %2507 = vmatpush1.bf16.msra.mxu0 %v1995
  %2508 = vmatprep.subr.bf16.mxu0 0
  %2509 = vmatpush1.bf16.msra.mxu0 0
  %2510 = vmatprep.subr.bf16.mxu0 0
  %2511 = vmatpush1.bf16.msra.mxu0 0
  %2512 = vmatprep.subr.bf16.mxu0 0
  %2513 = vmatpush1.bf16.msra.mxu0 0
  %2514 = vmatprep.subr.bf16.mxu0 0
  %2515 = vmatpush1.bf16.msra.mxu0 0
  %2516 = vmatprep.subr.bf16.mxu0 0
  %2517 = vmatpush1.bf16.msra.mxu0 0
  %2518 = vmatprep.subr.bf16.mxu0 0
  %2519 = vmatpush1.bf16.msra.mxu0 0
  %2520 = vmatprep.subr.bf16.mxu0 0
  %2521 = vmatpush1.bf16.msra.mxu0 0
  %2522 = vmatprep.subr.bf16.mxu0 0
  %2523 = vmatpush1.bf16.msra.mxu0 0
  %2524 = vmatprep.mubr.bf16.mxu0 0
  %2525 = vmatmul.mubr.bf16.gmra.mrb[0].mxu0 %v2445
  %v2526 = vpop.f32.mrb[0].mxu0
  %v2527 = vadd.f32 %v1885, %v2526
  %v2528 = vpop.f32.mrb[0].mxu0
  %v2529 = vpop.f32.mrb[0].mxu0
  %v2530 = vpop.f32.mrb[0].mxu0
  %2531 = vdwg.mxu0
  %v2532 = vadd.f32 %v2448, %v2486
  %v2533 = vxor.u32 %v2532, 2147483648
  %v2534 = vmul.f32 %v2533, 1.442695
  %v2535 = vpow.pop %v2534
  %v2536 = vadd.f32 %v2535, 1.0
  %v2537 = vrcp.pop %v2536
  %v2538 = vmul.f32 1.0, %v2537
  %v2539 = vadd.f32 %v2449, %v2488
  %v2540 = vxor.u32 %v2539, 2147483648
  %v2541 = vmul.f32 %v2540, 1.442695
  %v2542 = vpow.pop %v2541
  %v2543 = vadd.f32 %v2542, 1.0
  %v2544 = vrcp.pop %v2543
  %v2545 = vmul.f32 1.0, %v2544
  %v2546 = vmul.f32 %v2538, %v2527
  %v2547 = vadd.f32 %v2450, %v2546
  %v2548 = vtanh.pop %v2547
  %v2549 = vsub.f32 1.0, %v2545
  %v2550 = vmul.f32 %v2549, %v2548
  %v2551 = vmul.f32 %v2545, %v2444
  %v2552 = vadd.f32 %v2550, %v2551
  %v2553 = vpack.c.bf16 %v2552, %v2552
  %s2554 = scalar_lea.vmem [#allocation5], 16
  %2555 = vst [vmem:[%s2554] sm:$0xf] %v2553
  %v2556 = vld [vmem:[#allocation3 + $0x78] sm:$0xff]
  %v2557 = vld [vmem:[#allocation3 + $0x80] sm:$0xff]
  %v2558 = vld [vmem:[#allocation3 + $0x88] sm:$0xff]
  %2559 = vmatprep.subr.bf16.mxu0 %v1973
  %2560 = vmatpush1.bf16.msra.mxu0 %v1972
  %2561 = vmatprep.subr.bf16.mxu0 %v1976
  %2562 = vmatpush1.bf16.msra.mxu0 %v1975
  %2563 = vmatprep.subr.bf16.mxu0 %v1979
  %2564 = vmatpush1.bf16.msra.mxu0 %v1978
  %2565 = vmatprep.subr.bf16.mxu0 %v1982
  %2566 = vmatpush1.bf16.msra.mxu0 %v1981
  %2567 = vmatprep.subr.bf16.mxu0 %v1985
  %2568 = vmatpush1.bf16.msra.mxu0 %v1984
  %2569 = vmatprep.subr.bf16.mxu0 %v1988
  %2570 = vmatpush1.bf16.msra.mxu0 %v1987
  %2571 = vmatprep.subr.bf16.mxu0 %v1991
  %2572 = vmatpush1.bf16.msra.mxu0 %v1990
  %2573 = vmatprep.subr.bf16.mxu0 %v1994
  %2574 = vmatpush1.bf16.msra.mxu0 %v1993
  %2575 = vmatprep.subr.bf16.mxu0 0
  %2576 = vmatpush1.bf16.msra.mxu0 0
  %2577 = vmatprep.subr.bf16.mxu0 0
  %2578 = vmatpush1.bf16.msra.mxu0 0
  %2579 = vmatprep.subr.bf16.mxu0 0
  %2580 = vmatpush1.bf16.msra.mxu0 0
  %2581 = vmatprep.subr.bf16.mxu0 0
  %2582 = vmatpush1.bf16.msra.mxu0 0
  %2583 = vmatprep.subr.bf16.mxu0 0
  %2584 = vmatpush1.bf16.msra.mxu0 0
  %2585 = vmatprep.subr.bf16.mxu0 0
  %2586 = vmatpush1.bf16.msra.mxu0 0
  %2587 = vmatprep.subr.bf16.mxu0 0
  %2588 = vmatpush1.bf16.msra.mxu0 0
  %2589 = vmatprep.subr.bf16.mxu0 0
  %2590 = vmatpush1.bf16.msra.mxu0 0
  %2591 = vmatprep.mubr.bf16.mxu0 0
  %2592 = vmatmul.mubr.bf16.gmra.mrb[0].mxu0 %v2553
  %v2593 = vpop.f32.mrb[0].mxu0
  %v2594 = vadd.f32 %v1877, %v2593
  %v2595 = vpop.f32.mrb[0].mxu0
  %v2596 = vadd.f32 %v1881, %v2595
  %v2597 = vpop.f32.mrb[0].mxu0
  %v2598 = vpop.f32.mrb[0].mxu0
  %2599 = vdwg.mxu0
  %2600 = vmatprep.subr.bf16.mxu0 0
  %2601 = vmatpush1.bf16.msra.mxu0 %v1974
  %2602 = vmatprep.subr.bf16.mxu0 0
  %2603 = vmatpush1.bf16.msra.mxu0 %v1977
  %2604 = vmatprep.subr.bf16.mxu0 0
  %2605 = vmatpush1.bf16.msra.mxu0 %v1980
  %2606 = vmatprep.subr.bf16.mxu0 0
  %2607 = vmatpush1.bf16.msra.mxu0 %v1983
  %2608 = vmatprep.subr.bf16.mxu0 0
  %2609 = vmatpush1.bf16.msra.mxu0 %v1986
  %2610 = vmatprep.subr.bf16.mxu0 0
  %2611 = vmatpush1.bf16.msra.mxu0 %v1989
  %2612 = vmatprep.subr.bf16.mxu0 0
  %2613 = vmatpush1.bf16.msra.mxu0 %v1992
  %2614 = vmatprep.subr.bf16.mxu0 0
  %2615 = vmatpush1.bf16.msra.mxu0 %v1995
  %2616 = vmatprep.subr.bf16.mxu0 0
  %2617 = vmatpush1.bf16.msra.mxu0 0
  %2618 = vmatprep.subr.bf16.mxu0 0
  %2619 = vmatpush1.bf16.msra.mxu0 0
  %2620 = vmatprep.subr.bf16.mxu0 0
  %2621 = vmatpush1.bf16.msra.mxu0 0
  %2622 = vmatprep.subr.bf16.mxu0 0
  %2623 = vmatpush1.bf16.msra.mxu0 0
  %2624 = vmatprep.subr.bf16.mxu0 0
  %2625 = vmatpush1.bf16.msra.mxu0 0
  %2626 = vmatprep.subr.bf16.mxu0 0
  %2627 = vmatpush1.bf16.msra.mxu0 0
  %2628 = vmatprep.subr.bf16.mxu0 0
  %2629 = vmatpush1.bf16.msra.mxu0 0
  %2630 = vmatprep.subr.bf16.mxu0 0
  %2631 = vmatpush1.bf16.msra.mxu0 0
  %2632 = vmatprep.mubr.bf16.mxu0 0
  %2633 = vmatmul.mubr.bf16.gmra.mrb[0].mxu0 %v2553
  %v2634 = vpop.f32.mrb[0].mxu0
  %v2635 = vadd.f32 %v1885, %v2634
  %v2636 = vpop.f32.mrb[0].mxu0
  %v2637 = vpop.f32.mrb[0].mxu0
  %v2638 = vpop.f32.mrb[0].mxu0
  %2639 = vdwg.mxu0
  %v2640 = vadd.f32 %v2556, %v2594
  %v2641 = vxor.u32 %v2640, 2147483648
  %v2642 = vmul.f32 %v2641, 1.442695
  %v2643 = vpow.pop %v2642
  %v2644 = vadd.f32 %v2643, 1.0
  %v2645 = vrcp.pop %v2644
  %v2646 = vmul.f32 1.0, %v2645
  %v2647 = vadd.f32 %v2557, %v2596
  %v2648 = vxor.u32 %v2647, 2147483648
  %v2649 = vmul.f32 %v2648, 1.442695
  %v2650 = vpow.pop %v2649
  %v2651 = vadd.f32 %v2650, 1.0
  %v2652 = vrcp.pop %v2651
  %v2653 = vmul.f32 1.0, %v2652
  %v2654 = vmul.f32 %v2646, %v2635
  %v2655 = vadd.f32 %v2558, %v2654
  %v2656 = vtanh.pop %v2655
  %v2657 = vsub.f32 1.0, %v2653
  %v2658 = vmul.f32 %v2657, %v2656
  %v2659 = vmul.f32 %v2653, %v2552
  %v2660 = vadd.f32 %v2658, %v2659
  %v2661 = vpack.c.bf16 %v2660, %v2660
  %s2662 = scalar_lea.vmem [#allocation5], 20
  %2663 = vst [vmem:[%s2662] sm:$0xf] %v2661
  %v2664 = vld [vmem:[#allocation3 + $0x90] sm:$0xff]
  %v2665 = vld [vmem:[#allocation3 + $0x98] sm:$0xff]
  %v2666 = vld [vmem:[#allocation3 + $0xa0] sm:$0xff]
  %2667 = vmatprep.subr.bf16.mxu0 %v1973
  %2668 = vmatpush1.bf16.msra.mxu0 %v1972
  %2669 = vmatprep.subr.bf16.mxu0 %v1976
  %2670 = vmatpush1.bf16.msra.mxu0 %v1975
  %2671 = vmatprep.subr.bf16.mxu0 %v1979
  %2672 = vmatpush1.bf16.msra.mxu0 %v1978
  %2673 = vmatprep.subr.bf16.mxu0 %v1982
  %2674 = vmatpush1.bf16.msra.mxu0 %v1981
  %2675 = vmatprep.subr.bf16.mxu0 %v1985
  %2676 = vmatpush1.bf16.msra.mxu0 %v1984
  %2677 = vmatprep.subr.bf16.mxu0 %v1988
  %2678 = vmatpush1.bf16.msra.mxu0 %v1987
  %2679 = vmatprep.subr.bf16.mxu0 %v1991
  %2680 = vmatpush1.bf16.msra.mxu0 %v1990
  %2681 = vmatprep.subr.bf16.mxu0 %v1994
  %2682 = vmatpush1.bf16.msra.mxu0 %v1993
  %2683 = vmatprep.subr.bf16.mxu0 0
  %2684 = vmatpush1.bf16.msra.mxu0 0
  %2685 = vmatprep.subr.bf16.mxu0 0
  %2686 = vmatpush1.bf16.msra.mxu0 0
  %2687 = vmatprep.subr.bf16.mxu0 0
  %2688 = vmatpush1.bf16.msra.mxu0 0
  %2689 = vmatprep.subr.bf16.mxu0 0
  %2690 = vmatpush1.bf16.msra.mxu0 0
  %2691 = vmatprep.subr.bf16.mxu0 0
  %2692 = vmatpush1.bf16.msra.mxu0 0
  %2693 = vmatprep.subr.bf16.mxu0 0
  %2694 = vmatpush1.bf16.msra.mxu0 0
  %2695 = vmatprep.subr.bf16.mxu0 0
  %2696 = vmatpush1.bf16.msra.mxu0 0
  %2697 = vmatprep.subr.bf16.mxu0 0
  %2698 = vmatpush1.bf16.msra.mxu0 0
  %2699 = vmatprep.mubr.bf16.mxu0 0
  %2700 = vmatmul.mubr.bf16.gmra.mrb[0].mxu0 %v2661
  %v2701 = vpop.f32.mrb[0].mxu0
  %v2702 = vadd.f32 %v1877, %v2701
  %v2703 = vpop.f32.mrb[0].mxu0
  %v2704 = vadd.f32 %v1881, %v2703
  %v2705 = vpop.f32.mrb[0].mxu0
  %v2706 = vpop.f32.mrb[0].mxu0
  %2707 = vdwg.mxu0
  %2708 = vmatprep.subr.bf16.mxu0 0
  %2709 = vmatpush1.bf16.msra.mxu0 %v1974
  %2710 = vmatprep.subr.bf16.mxu0 0
  %2711 = vmatpush1.bf16.msra.mxu0 %v1977
  %2712 = vmatprep.subr.bf16.mxu0 0
  %2713 = vmatpush1.bf16.msra.mxu0 %v1980
  %2714 = vmatprep.subr.bf16.mxu0 0
  %2715 = vmatpush1.bf16.msra.mxu0 %v1983
  %2716 = vmatprep.subr.bf16.mxu0 0
  %2717 = vmatpush1.bf16.msra.mxu0 %v1986
  %2718 = vmatprep.subr.bf16.mxu0 0
  %2719 = vmatpush1.bf16.msra.mxu0 %v1989
  %2720 = vmatprep.subr.bf16.mxu0 0
  %2721 = vmatpush1.bf16.msra.mxu0 %v1992
  %2722 = vmatprep.subr.bf16.mxu0 0
  %2723 = vmatpush1.bf16.msra.mxu0 %v1995
  %2724 = vmatprep.subr.bf16.mxu0 0
  %2725 = vmatpush1.bf16.msra.mxu0 0
  %2726 = vmatprep.subr.bf16.mxu0 0
  %2727 = vmatpush1.bf16.msra.mxu0 0
  %2728 = vmatprep.subr.bf16.mxu0 0
  %2729 = vmatpush1.bf16.msra.mxu0 0
  %2730 = vmatprep.subr.bf16.mxu0 0
  %2731 = vmatpush1.bf16.msra.mxu0 0
  %2732 = vmatprep.subr.bf16.mxu0 0
  %2733 = vmatpush1.bf16.msra.mxu0 0
  %2734 = vmatprep.subr.bf16.mxu0 0
  %2735 = vmatpush1.bf16.msra.mxu0 0
  %2736 = vmatprep.subr.bf16.mxu0 0
  %2737 = vmatpush1.bf16.msra.mxu0 0
  %2738 = vmatprep.subr.bf16.mxu0 0
  %2739 = vmatpush1.bf16.msra.mxu0 0
  %2740 = vmatprep.mubr.bf16.mxu0 0
  %2741 = vmatmul.mubr.bf16.gmra.mrb[0].mxu0 %v2661
  %v2742 = vpop.f32.mrb[0].mxu0
  %v2743 = vadd.f32 %v1885, %v2742
  %v2744 = vpop.f32.mrb[0].mxu0
  %v2745 = vpop.f32.mrb[0].mxu0
  %v2746 = vpop.f32.mrb[0].mxu0
  %2747 = vdwg.mxu0
  %v2748 = vadd.f32 %v2664, %v2702
  %v2749 = vxor.u32 %v2748, 2147483648
  %v2750 = vmul.f32 %v2749, 1.442695
  %v2751 = vpow.pop %v2750
  %v2752 = vadd.f32 %v2751, 1.0
  %v2753 = vrcp.pop %v2752
  %v2754 = vmul.f32 1.0, %v2753
  %v2755 = vadd.f32 %v2665, %v2704
  %v2756 = vxor.u32 %v2755, 2147483648
  %v2757 = vmul.f32 %v2756, 1.442695
  %v2758 = vpow.pop %v2757
  %v2759 = vadd.f32 %v2758, 1.0
  %v2760 = vrcp.pop %v2759
  %v2761 = vmul.f32 1.0, %v2760
  %v2762 = vmul.f32 %v2754, %v2743
  %v2763 = vadd.f32 %v2666, %v2762
  %v2764 = vtanh.pop %v2763
  %v2765 = vsub.f32 1.0, %v2761
  %v2766 = vmul.f32 %v2765, %v2764
  %v2767 = vmul.f32 %v2761, %v2660
  %v2768 = vadd.f32 %v2766, %v2767
  %v2769 = vpack.c.bf16 %v2768, %v2768
  %s2770 = scalar_lea.vmem [#allocation5], 24
  %2771 = vst [vmem:[%s2770] sm:$0xf] %v2769
  %v2772 = vld [vmem:[#allocation3 + $0xa8] sm:$0xff]
  %v2773 = vld [vmem:[#allocation3 + $0xb0] sm:$0xff]
  %v2774 = vld [vmem:[#allocation3 + $0xb8] sm:$0xff]
  %2775 = vmatprep.subr.bf16.mxu0 %v1973
  %2776 = vmatpush1.bf16.msra.mxu0 %v1972
  %2777 = vmatprep.subr.bf16.mxu0 %v1976
  %2778 = vmatpush1.bf16.msra.mxu0 %v1975
  %2779 = vmatprep.subr.bf16.mxu0 %v1979
  %2780 = vmatpush1.bf16.msra.mxu0 %v1978
  %2781 = vmatprep.subr.bf16.mxu0 %v1982
  %2782 = vmatpush1.bf16.msra.mxu0 %v1981
  %2783 = vmatprep.subr.bf16.mxu0 %v1985
  %2784 = vmatpush1.bf16.msra.mxu0 %v1984
  %2785 = vmatprep.subr.bf16.mxu0 %v1988
  %2786 = vmatpush1.bf16.msra.mxu0 %v1987
  %2787 = vmatprep.subr.bf16.mxu0 %v1991
  %2788 = vmatpush1.bf16.msra.mxu0 %v1990
  %2789 = vmatprep.subr.bf16.mxu0 %v1994
  %2790 = vmatpush1.bf16.msra.mxu0 %v1993
  %2791 = vmatprep.subr.bf16.mxu0 0
  %2792 = vmatpush1.bf16.msra.mxu0 0
  %2793 = vmatprep.subr.bf16.mxu0 0
  %2794 = vmatpush1.bf16.msra.mxu0 0
  %2795 = vmatprep.subr.bf16.mxu0 0
  %2796 = vmatpush1.bf16.msra.mxu0 0
  %2797 = vmatprep.subr.bf16.mxu0 0
  %2798 = vmatpush1.bf16.msra.mxu0 0
  %2799 = vmatprep.subr.bf16.mxu0 0
  %2800 = vmatpush1.bf16.msra.mxu0 0
  %2801 = vmatprep.subr.bf16.mxu0 0
  %2802 = vmatpush1.bf16.msra.mxu0 0
  %2803 = vmatprep.subr.bf16.mxu0 0
  %2804 = vmatpush1.bf16.msra.mxu0 0
  %2805 = vmatprep.subr.bf16.mxu0 0
  %2806 = vmatpush1.bf16.msra.mxu0 0
  %2807 = vmatprep.mubr.bf16.mxu0 0
  %2808 = vmatmul.mubr.bf16.gmra.mrb[0].mxu0 %v2769
  %v2809 = vpop.f32.mrb[0].mxu0
  %v2810 = vadd.f32 %v1877, %v2809
  %v2811 = vpop.f32.mrb[0].mxu0
  %v2812 = vadd.f32 %v1881, %v2811
  %v2813 = vpop.f32.mrb[0].mxu0
  %v2814 = vpop.f32.mrb[0].mxu0
  %2815 = vdwg.mxu0
  %2816 = vmatprep.subr.bf16.mxu0 0
  %2817 = vmatpush1.bf16.msra.mxu0 %v1974
  %2818 = vmatprep.subr.bf16.mxu0 0
  %2819 = vmatpush1.bf16.msra.mxu0 %v1977
  %2820 = vmatprep.subr.bf16.mxu0 0
  %2821 = vmatpush1.bf16.msra.mxu0 %v1980
  %2822 = vmatprep.subr.bf16.mxu0 0
  %2823 = vmatpush1.bf16.msra.mxu0 %v1983
  %2824 = vmatprep.subr.bf16.mxu0 0
  %2825 = vmatpush1.bf16.msra.mxu0 %v1986
  %2826 = vmatprep.subr.bf16.mxu0 0
  %2827 = vmatpush1.bf16.msra.mxu0 %v1989
  %2828 = vmatprep.subr.bf16.mxu0 0
  %2829 = vmatpush1.bf16.msra.mxu0 %v1992
  %2830 = vmatprep.subr.bf16.mxu0 0
  %2831 = vmatpush1.bf16.msra.mxu0 %v1995
  %2832 = vmatprep.subr.bf16.mxu0 0
  %2833 = vmatpush1.bf16.msra.mxu0 0
  %2834 = vmatprep.subr.bf16.mxu0 0
  %2835 = vmatpush1.bf16.msra.mxu0 0
  %2836 = vmatprep.subr.bf16.mxu0 0
  %2837 = vmatpush1.bf16.msra.mxu0 0
  %2838 = vmatprep.subr.bf16.mxu0 0
  %2839 = vmatpush1.bf16.msra.mxu0 0
  %2840 = vmatprep.subr.bf16.mxu0 0
  %2841 = vmatpush1.bf16.msra.mxu0 0
  %2842 = vmatprep.subr.bf16.mxu0 0
  %2843 = vmatpush1.bf16.msra.mxu0 0
  %2844 = vmatprep.subr.bf16.mxu0 0
  %2845 = vmatpush1.bf16.msra.mxu0 0
  %2846 = vmatprep.subr.bf16.mxu0 0
  %2847 = vmatpush1.bf16.msra.mxu0 0
  %2848 = vmatprep.mubr.bf16.mxu0 0
  %2849 = vmatmul.mubr.bf16.gmra.mrb[0].mxu0 %v2769
  %v2850 = vpop.f32.mrb[0].mxu0
  %v2851 = vadd.f32 %v1885, %v2850
  %v2852 = vpop.f32.mrb[0].mxu0
  %v2853 = vpop.f32.mrb[0].mxu0
  %v2854 = vpop.f32.mrb[0].mxu0
  %2855 = vdwg.mxu0
  %v2856 = vadd.f32 %v2772, %v2810
  %v2857 = vxor.u32 %v2856, 2147483648
  %v2858 = vmul.f32 %v2857, 1.442695
  %v2859 = vpow.pop %v2858
  %v2860 = vadd.f32 %v2859, 1.0
  %v2861 = vrcp.pop %v2860
  %v2862 = vmul.f32 1.0, %v2861
  %v2863 = vadd.f32 %v2773, %v2812
  %v2864 = vxor.u32 %v2863, 2147483648
  %v2865 = vmul.f32 %v2864, 1.442695
  %v2866 = vpow.pop %v2865
  %v2867 = vadd.f32 %v2866, 1.0
  %v2868 = vrcp.pop %v2867
  %v2869 = vmul.f32 1.0, %v2868
  %v2870 = vmul.f32 %v2862, %v2851
  %v2871 = vadd.f32 %v2774, %v2870
  %v2872 = vtanh.pop %v2871
  %v2873 = vsub.f32 1.0, %v2869
  %v2874 = vmul.f32 %v2873, %v2872
  %v2875 = vmul.f32 %v2869, %v2768
  %v2876 = vadd.f32 %v2874, %v2875
  %v2877 = vpack.c.bf16 %v2876, %v2876
  %s2878 = scalar_lea.vmem [#allocation5], 28
  %2879 = vst [vmem:[%s2878] sm:$0xf] %v2877
  %2880 = vst [vmem:[%s17] sm:$0xff] %v2876
  %v2881 = vld [vmem:[#allocation4] sm:$0xf]
  %v2882 = vld [vmem:[#allocation4 + $0x4] sm:$0xf]
  %v2883 = vld [vmem:[#allocation4 + $0x8] sm:$0xf]
  %v2884 = vld [vmem:[#allocation4 + $0xc] sm:$0xf]
  %v2885 = vld [vmem:[#allocation4 + $0x10] sm:$0xf]
  %v2886 = vld [vmem:[#allocation4 + $0x14] sm:$0xf]
  %v2887 = vld [vmem:[#allocation4 + $0x18] sm:$0xf]
  %v2888 = vld [vmem:[#allocation4 + $0x1c] sm:$0xf]
  %v2889 = vld [vmem:[#allocation5] sm:$0xf]
  %v2890 = vld [vmem:[#allocation5 + $0x4] sm:$0xf]
  %v2891 = vld [vmem:[#allocation5 + $0x8] sm:$0xf]
  %v2892 = vld [vmem:[#allocation5 + $0xc] sm:$0xf]
  %v2893 = vld [vmem:[#allocation5 + $0x10] sm:$0xf]
  %v2894 = vld [vmem:[#allocation5 + $0x14] sm:$0xf]
  %v2895 = vld [vmem:[#allocation5 + $0x18] sm:$0xf]
  %v2896 = vld [vmem:[#allocation5 + $0x1c] sm:$0xf]
  %v2905 = vunpack.c.l.b16 %v2889
  %v2906 = vunpack.c.l.b16 %v2890
  %v2907 = vunpack.c.l.b16 %v2891
  %v2908 = vunpack.c.l.b16 %v2892
  %v2909 = vunpack.c.l.b16 %v2893
  %v2910 = vunpack.c.l.b16 %v2894
  %v2911 = vunpack.c.l.b16 %v2895
  %v2912 = vunpack.c.l.b16 %v2896
  %v2913 = vpack.c.b16 %v2905, %v2905
  %v2914 = vpack.c.b16 %v2906, %v2906
  %v2915 = vpack.c.b16 %v2907, %v2907
  %v2916 = vpack.c.b16 %v2908, %v2908
  %v2917 = vpack.c.b16 %v2909, %v2909
  %v2918 = vpack.c.b16 %v2910, %v2910
  %v2919 = vpack.c.b16 %v2911, %v2911
  %v2920 = vpack.c.b16 %v2912, %v2912
  %v2921 = vunpack.c.l.b16 %v2913
  %v2922 = vunpack.c.l.b16 %v2914
  %v2923 = vunpack.c.l.b16 %v2915
  %v2924 = vunpack.c.l.b16 %v2916
  %v2925 = vunpack.c.l.b16 %v2917
  %v2926 = vunpack.c.l.b16 %v2918
  %v2927 = vunpack.c.l.b16 %v2919
  %v2928 = vunpack.c.l.b16 %v2920
  %v2929 = vrot.slane %v2922, 7
  %vm2930 = vcmask 1041409
  %v2931 = vsel %vm2930, %v2929, %v2921
  %v2932 = vrot.slane %v2923, 6
  %vm2933 = vcmask 1042434
  %v2934 = vsel %vm2933, %v2932, %v2931
  %v2935 = vrot.slane %v2924, 5
  %vm2936 = vcmask 1043459
  %v2937 = vsel %vm2936, %v2935, %v2934
  %v2938 = vrot.slane %v2925, 4
  %vm2939 = vcmask 1044484
  %v2940 = vsel %vm2939, %v2938, %v2937
  %v2941 = vrot.slane %v2926, 3
  %vm2942 = vcmask 1045509
  %v2943 = vsel %vm2942, %v2941, %v2940
  %v2944 = vrot.slane %v2927, 2
  %vm2945 = vcmask 1046534
  %v2946 = vsel %vm2945, %v2944, %v2943
  %v2947 = vrot.slane %v2928, 1
  %vm2948 = vcmask 1047559
  %v2949 = vsel %vm2948, %v2947, %v2946
  %v2950 = vpack.c.b16 %v2949, %v2949
  %v2960 = vunpack.c.l.b16 %v2881
  %v2961 = vunpack.c.l.b16 %v2882
  %v2962 = vunpack.c.l.b16 %v2883
  %v2963 = vunpack.c.l.b16 %v2884
  %v2964 = vunpack.c.l.b16 %v2885
  %v2965 = vunpack.c.l.b16 %v2886
  %v2966 = vunpack.c.l.b16 %v2887
  %v2967 = vunpack.c.l.b16 %v2888
  %v2968 = vpack.c.b16 %v2960, %v2960
  %v2969 = vpack.c.b16 %v2961, %v2961
  %v2970 = vpack.c.b16 %v2962, %v2962
  %v2971 = vpack.c.b16 %v2963, %v2963
  %v2972 = vpack.c.b16 %v2964, %v2964
  %v2973 = vpack.c.b16 %v2965, %v2965
  %v2974 = vpack.c.b16 %v2966, %v2966
  %v2975 = vpack.c.b16 %v2967, %v2967
  %v2976 = vunpack.c.l.b16 %v2968
  %v2977 = vunpack.c.l.b16 %v2969
  %v2978 = vunpack.c.l.b16 %v2970
  %v2979 = vunpack.c.l.b16 %v2971
  %v2980 = vunpack.c.l.b16 %v2972
  %v2981 = vunpack.c.l.b16 %v2973
  %v2982 = vunpack.c.l.b16 %v2974
  %v2983 = vunpack.c.l.b16 %v2975
  %v2984 = vrot.slane %v2977, 7
  %v2985 = vsel %vm2930, %v2984, %v2976
  %v2986 = vrot.slane %v2978, 6
  %v2987 = vsel %vm2933, %v2986, %v2985
  %v2988 = vrot.slane %v2979, 5
  %v2989 = vsel %vm2936, %v2988, %v2987
  %v2990 = vrot.slane %v2980, 4
  %v2991 = vsel %vm2939, %v2990, %v2989
  %v2992 = vrot.slane %v2981, 3
  %v2993 = vsel %vm2942, %v2992, %v2991
  %v2994 = vrot.slane %v2982, 2
  %v2995 = vsel %vm2945, %v2994, %v2993
  %v2996 = vrot.slane %v2983, 1
  %v2997 = vsel %vm2948, %v2996, %v2995
  %v2998 = vpack.c.b16 %v2997, %v2997
  %3000 = vmatprep.subr.bf16.mxu0 0
  %3001 = vmatpush1.bf16.xpose.msra.mxu0 %v2998
  %3002 = vmatprep.subr.bf16.mxu0 0
  %3003 = vmatpush1.bf16.xpose.msra.mxu0 0
  %3004 = vmatprep.subr.bf16.mxu0 0
  %3005 = vmatpush1.bf16.xpose.msra.mxu0 0
  %3006 = vmatprep.subr.bf16.mxu0 0
  %3007 = vmatpush1.bf16.xpose.msra.mxu0 0
  %3008 = vmatprep.subr.bf16.mxu0 0
  %3009 = vmatpush1.bf16.xpose.msra.mxu0 0
  %3010 = vmatprep.subr.bf16.mxu0 0
  %3011 = vmatpush1.bf16.xpose.msra.mxu0 0
  %3012 = vmatprep.subr.bf16.mxu0 0
  %3013 = vmatpush1.bf16.xpose.msra.mxu0 0
  %3014 = vmatprep.subr.bf16.mxu0 0
  %3015 = vmatpush1.bf16.xpose.msra.mxu0 0
  %3016 = vmatprep.subr.bf16.mxu0 0
  %3017 = vmatpush1.bf16.xpose.msra.mxu0 0
  %3018 = vmatprep.subr.bf16.mxu0 0
  %3019 = vmatpush1.bf16.xpose.msra.mxu0 0
  %3020 = vmatprep.subr.bf16.mxu0 0
  %3021 = vmatpush1.bf16.xpose.msra.mxu0 0
  %3022 = vmatprep.subr.bf16.mxu0 0
  %3023 = vmatpush1.bf16.xpose.msra.mxu0 0
  %3024 = vmatprep.subr.bf16.mxu0 0
  %3025 = vmatpush1.bf16.xpose.msra.mxu0 0
  %3026 = vmatprep.subr.bf16.mxu0 0
  %3027 = vmatpush1.bf16.xpose.msra.mxu0 0
  %3028 = vmatprep.subr.bf16.mxu0 0
  %3029 = vmatpush1.bf16.xpose.msra.mxu0 0
  %3030 = vmatprep.subr.bf16.mxu0 0
  %3031 = vmatpush1.bf16.xpose.msra.mxu0 0
  %3032 = vmatprep.mubr.bf16.mxu0 0
  %3033 = vmatmul.mubr.bf16.gmra.mrb[0].mxu0 %v2950
  %v3034 = vpop.f32.mrb[0].mxu0
  %v3035 = vadd.f32 0.0, %v3034
  %v3036 = vpop.f32.mrb[0].mxu0
  %v3037 = vpop.f32.mrb[0].mxu0
  %v3038 = vpop.f32.mrb[0].mxu0
  %3039 = vdwg.mxu0
  %vm3040 = vcmask 64512
  %v3041 = vsel %vm3040, %v3035, -inf
  %3042 = vmax.xlane.f32.xlu0 %v3041
  %v3043 = vpop.xlane.xlu0 %3042
  %v3044 = vsub.f32 %v3035, %v3043
  %v3045 = vmul.f32 %v3044, 1.442695
  %v3046 = vpow.pop %v3045
  %v3047 = vsel %vm3040, %v3046, 0.0
  %3048 = vadd.xlane.f32.xlu0 %v3047
  %v3049 = vpop.xlane.xlu0 %3048
  %v3050 = vrcp.pop %v3049
  %v3051 = vmul.f32 %v3046, %v3050
  %v3052 = vpack.c.bf16 %v3051, %v3051
  %v3054 = vsel %vm3040, %v3052, 0
  %vm3056 = vcmask 1043456
  %v3058 = vsel %vm3056, %v2998, 0
  %3060 = vmatprep.subr.bf16.mxu0 0
  %3061 = vmatpush1.bf16.msra.mxu0 %v3058
  %3062 = vmatprep.subr.bf16.mxu0 0
  %3063 = vmatpush1.bf16.msra.mxu0 0
  %3064 = vmatprep.subr.bf16.mxu0 0
  %3065 = vmatpush1.bf16.msra.mxu0 0
  %3066 = vmatprep.subr.bf16.mxu0 0
  %3067 = vmatpush1.bf16.msra.mxu0 0
  %3068 = vmatprep.subr.bf16.mxu0 0
  %3069 = vmatpush1.bf16.msra.mxu0 0
  %3070 = vmatprep.subr.bf16.mxu0 0
  %3071 = vmatpush1.bf16.msra.mxu0 0
  %3072 = vmatprep.subr.bf16.mxu0 0
  %3073 = vmatpush1.bf16.msra.mxu0 0
  %3074 = vmatprep.subr.bf16.mxu0 0
  %3075 = vmatpush1.bf16.msra.mxu0 0
  %3076 = vmatprep.subr.bf16.mxu0 0
  %3077 = vmatpush1.bf16.msra.mxu0 0
  %3078 = vmatprep.subr.bf16.mxu0 0
  %3079 = vmatpush1.bf16.msra.mxu0 0
  %3080 = vmatprep.subr.bf16.mxu0 0
  %3081 = vmatpush1.bf16.msra.mxu0 0
  %3082 = vmatprep.subr.bf16.mxu0 0
  %3083 = vmatpush1.bf16.msra.mxu0 0
  %3084 = vmatprep.subr.bf16.mxu0 0
  %3085 = vmatpush1.bf16.msra.mxu0 0
  %3086 = vmatprep.subr.bf16.mxu0 0
  %3087 = vmatpush1.bf16.msra.mxu0 0
  %3088 = vmatprep.subr.bf16.mxu0 0
  %3089 = vmatpush1.bf16.msra.mxu0 0
  %3090 = vmatprep.subr.bf16.mxu0 0
  %3091 = vmatpush1.bf16.msra.mxu0 0
  %3092 = vmatprep.mubr.bf16.mxu0 0
  %3093 = vmatmul.mubr.bf16.gmra.mrb[0].mxu0 %v3054
  %v3094 = vpop.f32.mrb[0].mxu0
  %v3095 = vadd.f32 0.0, %v3094
  %v3096 = vpop.f32.mrb[0].mxu0
  %v3097 = vpop.f32.mrb[0].mxu0
  %v3098 = vpop.f32.mrb[0].mxu0
  %3099 = vdwg.mxu0
  %v3101 = vcombine.high %v3095, %v3095
  %v3103 = vunpack.c.l.s4 1966171168
  %v3104 = vunpack.c.0.s8 %v3103
  %v3105 = vlaneseq
  %v3106 = vshrl.u32 %v3105, 7
  %v3107 = vsub.s32 %v3104, %v3106
  %v3108 = vrot.slane %v3095, %v3107
  %v3110 = vunpack.c.l.s4 1966171168
  %v3111 = vunpack.c.0.s8 %v3110
  %v3112 = vlaneseq
  %v3113 = vshrl.u32 %v3112, 7
  %v3114 = vsub.s32 %v3111, %v3113
  %v3115 = vrot.slane %v3101, %v3114
  %v3116 = vcombine.high %v3108, %v3108
  %v3117 = vcombine.high %v3115, %v3115
  %v3119 = vunpack.c.l.s4 1966171168
  %v3120 = vunpack.c.0.s8 %v3119
  %v3121 = vlaneseq
  %v3122 = vshrl.u32 %v3121, 7
  %v3123 = vsub.s32 %v3120, %v3122
  %v3124 = vrot.slane %v3108, %v3123
  %v3126 = vunpack.c.l.s4 1966171168
  %v3127 = vunpack.c.0.s8 %v3126
  %v3128 = vlaneseq
  %v3129 = vshrl.u32 %v3128, 7
  %v3130 = vsub.s32 %v3127, %v3129
  %v3131 = vrot.slane %v3115, %v3130
  %v3133 = vunpack.c.l.s4 1966171168
  %v3134 = vunpack.c.0.s8 %v3133
  %v3135 = vlaneseq
  %v3136 = vshrl.u32 %v3135, 7
  %v3137 = vsub.s32 %v3134, %v3136
  %v3138 = vrot.slane %v3116, %v3137
  %v3140 = vunpack.c.l.s4 1966171168
  %v3141 = vunpack.c.0.s8 %v3140
  %v3142 = vlaneseq
  %v3143 = vshrl.u32 %v3142, 7
  %v3144 = vsub.s32 %v3141, %v3143
  %v3145 = vrot.slane %v3117, %v3144
  %v3146 = vcombine.high %v3124, %v3124
  %v3147 = vcombine.high %v3131, %v3131
  %v3148 = vcombine.high %v3138, %v3138
  %v3149 = vcombine.high %v3145, %v3145
  %v3158 = vrot.slane %v2921, 1
  %v3159 = vsel %vm2930, %v2922, %v3158
  %v3160 = vrot.slane %v2923, 7
  %v3161 = vsel %vm2933, %v3160, %v3159
  %v3162 = vrot.slane %v2924, 6
  %v3163 = vsel %vm2936, %v3162, %v3161
  %v3164 = vrot.slane %v2925, 5
  %v3165 = vsel %vm2939, %v3164, %v3163
  %v3166 = vrot.slane %v2926, 4
  %v3167 = vsel %vm2942, %v3166, %v3165
  %v3168 = vrot.slane %v2927, 3
  %v3169 = vsel %vm2945, %v3168, %v3167
  %v3170 = vrot.slane %v2928, 2
  %v3171 = vsel %vm2948, %v3170, %v3169
  %v3172 = vpack.c.b16 %v3171, %v3171
  %v3174 = vrot.slane %v2976, 1
  %v3175 = vsel %vm2930, %v2977, %v3174
  %v3176 = vrot.slane %v2978, 7
  %v3177 = vsel %vm2933, %v3176, %v3175
  %v3178 = vrot.slane %v2979, 6
  %v3179 = vsel %vm2936, %v3178, %v3177
  %v3180 = vrot.slane %v2980, 5
  %v3181 = vsel %vm2939, %v3180, %v3179
  %v3182 = vrot.slane %v2981, 4
  %v3183 = vsel %vm2942, %v3182, %v3181
  %v3184 = vrot.slane %v2982, 3
  %v3185 = vsel %vm2945, %v3184, %v3183
  %v3186 = vrot.slane %v2983, 2
  %v3187 = vsel %vm2948, %v3186, %v3185
  %v3188 = vpack.c.b16 %v3187, %v3187
  %3190 = vmatprep.subr.bf16.mxu0 0
  %3191 = vmatpush1.bf16.xpose.msra.mxu0 %v3188
  %3192 = vmatprep.subr.bf16.mxu0 0
  %3193 = vmatpush1.bf16.xpose.msra.mxu0 0
  %3194 = vmatprep.subr.bf16.mxu0 0
  %3195 = vmatpush1.bf16.xpose.msra.mxu0 0
  %3196 = vmatprep.subr.bf16.mxu0 0
  %3197 = vmatpush1.bf16.xpose.msra.mxu0 0
  %3198 = vmatprep.subr.bf16.mxu0 0
  %3199 = vmatpush1.bf16.xpose.msra.mxu0 0
  %3200 = vmatprep.subr.bf16.mxu0 0
  %3201 = vmatpush1.bf16.xpose.msra.mxu0 0
  %3202 = vmatprep.subr.bf16.mxu0 0
  %3203 = vmatpush1.bf16.xpose.msra.mxu0 0
  %3204 = vmatprep.subr.bf16.mxu0 0
  %3205 = vmatpush1.bf16.xpose.msra.mxu0 0
  %3206 = vmatprep.subr.bf16.mxu0 0
  %3207 = vmatpush1.bf16.xpose.msra.mxu0 0
  %3208 = vmatprep.subr.bf16.mxu0 0
  %3209 = vmatpush1.bf16.xpose.msra.mxu0 0
  %3210 = vmatprep.subr.bf16.mxu0 0
  %3211 = vmatpush1.bf16.xpose.msra.mxu0 0
  %3212 = vmatprep.subr.bf16.mxu0 0
  %3213 = vmatpush1.bf16.xpose.msra.mxu0 0
  %3214 = vmatprep.subr.bf16.mxu0 0
  %3215 = vmatpush1.bf16.xpose.msra.mxu0 0
  %3216 = vmatprep.subr.bf16.mxu0 0
  %3217 = vmatpush1.bf16.xpose.msra.mxu0 0
  %3218 = vmatprep.subr.bf16.mxu0 0
  %3219 = vmatpush1.bf16.xpose.msra.mxu0 0
  %3220 = vmatprep.subr.bf16.mxu0 0
  %3221 = vmatpush1.bf16.xpose.msra.mxu0 0
  %3222 = vmatprep.mubr.bf16.mxu0 0
  %3223 = vmatmul.mubr.bf16.gmra.mrb[0].mxu0 %v3172
  %v3224 = vpop.f32.mrb[0].mxu0
  %v3225 = vadd.f32 0.0, %v3224
  %v3226 = vpop.f32.mrb[0].mxu0
  %v3227 = vpop.f32.mrb[0].mxu0
  %v3228 = vpop.f32.mrb[0].mxu0
  %3229 = vdwg.mxu0
  %v3230 = vsel %vm3040, %v3225, -inf
  %3231 = vmax.xlane.f32.xlu0 %v3230
  %v3232 = vpop.xlane.xlu0 %3231
  %v3233 = vsub.f32 %v3225, %v3232
  %v3234 = vmul.f32 %v3233, 1.442695
  %v3235 = vpow.pop %v3234
  %v3236 = vsel %vm3040, %v3235, 0.0
  %3237 = vadd.xlane.f32.xlu0 %v3236
  %v3238 = vpop.xlane.xlu0 %3237
  %v3239 = vrcp.pop %v3238
  %v3240 = vmul.f32 %v3235, %v3239
  %v3241 = vpack.c.bf16 %v3240, %v3240
  %v3243 = vsel %vm3040, %v3241, 0
  %v3246 = vsel %vm3056, %v3188, 0
  %3248 = vmatprep.subr.bf16.mxu0 0
  %3249 = vmatpush1.bf16.msra.mxu0 %v3246
  %3250 = vmatprep.subr.bf16.mxu0 0
  %3251 = vmatpush1.bf16.msra.mxu0 0
  %3252 = vmatprep.subr.bf16.mxu0 0
  %3253 = vmatpush1.bf16.msra.mxu0 0
  %3254 = vmatprep.subr.bf16.mxu0 0
  %3255 = vmatpush1.bf16.msra.mxu0 0
  %3256 = vmatprep.subr.bf16.mxu0 0
  %3257 = vmatpush1.bf16.msra.mxu0 0
  %3258 = vmatprep.subr.bf16.mxu0 0
  %3259 = vmatpush1.bf16.msra.mxu0 0
  %3260 = vmatprep.subr.bf16.mxu0 0
  %3261 = vmatpush1.bf16.msra.mxu0 0
  %3262 = vmatprep.subr.bf16.mxu0 0
  %3263 = vmatpush1.bf16.msra.mxu0 0
  %3264 = vmatprep.subr.bf16.mxu0 0
  %3265 = vmatpush1.bf16.msra.mxu0 0
  %3266 = vmatprep.subr.bf16.mxu0 0
  %3267 = vmatpush1.bf16.msra.mxu0 0
  %3268 = vmatprep.subr.bf16.mxu0 0
  %3269 = vmatpush1.bf16.msra.mxu0 0
  %3270 = vmatprep.subr.bf16.mxu0 0
  %3271 = vmatpush1.bf16.msra.mxu0 0
  %3272 = vmatprep.subr.bf16.mxu0 0
  %3273 = vmatpush1.bf16.msra.mxu0 0
  %3274 = vmatprep.subr.bf16.mxu0 0
  %3275 = vmatpush1.bf16.msra.mxu0 0
  %3276 = vmatprep.subr.bf16.mxu0 0
  %3277 = vmatpush1.bf16.msra.mxu0 0
  %3278 = vmatprep.subr.bf16.mxu0 0
  %3279 = vmatpush1.bf16.msra.mxu0 0
  %3280 = vmatprep.mubr.bf16.mxu0 0
  %3281 = vmatmul.mubr.bf16.gmra.mrb[0].mxu0 %v3243
  %v3282 = vpop.f32.mrb[0].mxu0
  %v3283 = vadd.f32 0.0, %v3282
  %v3284 = vpop.f32.mrb[0].mxu0
  %v3285 = vpop.f32.mrb[0].mxu0
  %v3286 = vpop.f32.mrb[0].mxu0
  %3287 = vdwg.mxu0
  %v3289 = vcombine.high %v3283, %v3283
  %v3291 = vunpack.c.l.s4 1966171168
  %v3292 = vunpack.c.0.s8 %v3291
  %v3293 = vlaneseq
  %v3294 = vshrl.u32 %v3293, 7
  %v3295 = vsub.s32 %v3292, %v3294
  %v3296 = vrot.slane %v3283, %v3295
  %v3298 = vunpack.c.l.s4 1966171168
  %v3299 = vunpack.c.0.s8 %v3298
  %v3300 = vlaneseq
  %v3301 = vshrl.u32 %v3300, 7
  %v3302 = vsub.s32 %v3299, %v3301
  %v3303 = vrot.slane %v3289, %v3302
  %v3304 = vcombine.high %v3296, %v3296
  %v3305 = vcombine.high %v3303, %v3303
  %v3307 = vunpack.c.l.s4 1966171168
  %v3308 = vunpack.c.0.s8 %v3307
  %v3309 = vlaneseq
  %v3310 = vshrl.u32 %v3309, 7
  %v3311 = vsub.s32 %v3308, %v3310
  %v3312 = vrot.slane %v3296, %v3311
  %v3314 = vunpack.c.l.s4 1966171168
  %v3315 = vunpack.c.0.s8 %v3314
  %v3316 = vlaneseq
  %v3317 = vshrl.u32 %v3316, 7
  %v3318 = vsub.s32 %v3315, %v3317
  %v3319 = vrot.slane %v3303, %v3318
  %v3321 = vunpack.c.l.s4 1966171168
  %v3322 = vunpack.c.0.s8 %v3321
  %v3323 = vlaneseq
  %v3324 = vshrl.u32 %v3323, 7
  %v3325 = vsub.s32 %v3322, %v3324
  %v3326 = vrot.slane %v3304, %v3325
  %v3328 = vunpack.c.l.s4 1966171168
  %v3329 = vunpack.c.0.s8 %v3328
  %v3330 = vlaneseq
  %v3331 = vshrl.u32 %v3330, 7
  %v3332 = vsub.s32 %v3329, %v3331
  %v3333 = vrot.slane %v3305, %v3332
  %v3334 = vcombine.high %v3312, %v3312
  %v3335 = vcombine.high %v3319, %v3319
  %v3336 = vcombine.high %v3326, %v3326
  %v3337 = vcombine.high %v3333, %v3333
  %v3338 = vrot.slane %v2921, 2
  %v3339 = vrot.slane %v2922, 1
  %v3340 = vsel %vm2930, %v3339, %v3338
  %v3341 = vsel %vm2933, %v2923, %v3340
  %v3342 = vrot.slane %v2924, 7
  %v3343 = vsel %vm2936, %v3342, %v3341
  %v3344 = vrot.slane %v2925, 6
  %v3345 = vsel %vm2939, %v3344, %v3343
  %v3346 = vrot.slane %v2926, 5
  %v3347 = vsel %vm2942, %v3346, %v3345
  %v3348 = vrot.slane %v2927, 4
  %v3349 = vsel %vm2945, %v3348, %v3347
  %v3350 = vrot.slane %v2928, 3
  %v3351 = vsel %vm2948, %v3350, %v3349
  %v3352 = vpack.c.b16 %v3351, %v3351
  %v3354 = vrot.slane %v2976, 2
  %v3355 = vrot.slane %v2977, 1
  %v3356 = vsel %vm2930, %v3355, %v3354
  %v3357 = vsel %vm2933, %v2978, %v3356
  %v3358 = vrot.slane %v2979, 7
  %v3359 = vsel %vm2936, %v3358, %v3357
  %v3360 = vrot.slane %v2980, 6
  %v3361 = vsel %vm2939, %v3360, %v3359
  %v3362 = vrot.slane %v2981, 5
  %v3363 = vsel %vm2942, %v3362, %v3361
  %v3364 = vrot.slane %v2982, 4
  %v3365 = vsel %vm2945, %v3364, %v3363
  %v3366 = vrot.slane %v2983, 3
  %v3367 = vsel %vm2948, %v3366, %v3365
  %v3368 = vpack.c.b16 %v3367, %v3367
  %3370 = vmatprep.subr.bf16.mxu0 0
  %3371 = vmatpush1.bf16.xpose.msra.mxu0 %v3368
  %3372 = vmatprep.subr.bf16.mxu0 0
  %3373 = vmatpush1.bf16.xpose.msra.mxu0 0
  %3374 = vmatprep.subr.bf16.mxu0 0
  %3375 = vmatpush1.bf16.xpose.msra.mxu0 0
  %3376 = vmatprep.subr.bf16.mxu0 0
  %3377 = vmatpush1.bf16.xpose.msra.mxu0 0
  %3378 = vmatprep.subr.bf16.mxu0 0
  %3379 = vmatpush1.bf16.xpose.msra.mxu0 0
  %3380 = vmatprep.subr.bf16.mxu0 0
  %3381 = vmatpush1.bf16.xpose.msra.mxu0 0
  %3382 = vmatprep.subr.bf16.mxu0 0
  %3383 = vmatpush1.bf16.xpose.msra.mxu0 0
  %3384 = vmatprep.subr.bf16.mxu0 0
  %3385 = vmatpush1.bf16.xpose.msra.mxu0 0
  %3386 = vmatprep.subr.bf16.mxu0 0
  %3387 = vmatpush1.bf16.xpose.msra.mxu0 0
  %3388 = vmatprep.subr.bf16.mxu0 0
  %3389 = vmatpush1.bf16.xpose.msra.mxu0 0
  %3390 = vmatprep.subr.bf16.mxu0 0
  %3391 = vmatpush1.bf16.xpose.msra.mxu0 0
  %3392 = vmatprep.subr.bf16.mxu0 0
  %3393 = vmatpush1.bf16.xpose.msra.mxu0 0
  %3394 = vmatprep.subr.bf16.mxu0 0
  %3395 = vmatpush1.bf16.xpose.msra.mxu0 0
  %3396 = vmatprep.subr.bf16.mxu0 0
  %3397 = vmatpush1.bf16.xpose.msra.mxu0 0
  %3398 = vmatprep.subr.bf16.mxu0 0
  %3399 = vmatpush1.bf16.xpose.msra.mxu0 0
  %3400 = vmatprep.subr.bf16.mxu0 0
  %3401 = vmatpush1.bf16.xpose.msra.mxu0 0
  %3402 = vmatprep.mubr.bf16.mxu0 0
  %3403 = vmatmul.mubr.bf16.gmra.mrb[0].mxu0 %v3352
  %v3404 = vpop.f32.mrb[0].mxu0
  %v3405 = vadd.f32 0.0, %v3404
  %v3406 = vpop.f32.mrb[0].mxu0
  %v3407 = vpop.f32.mrb[0].mxu0
  %v3408 = vpop.f32.mrb[0].mxu0
  %3409 = vdwg.mxu0
  %v3410 = vsel %vm3040, %v3405, -inf
  %3411 = vmax.xlane.f32.xlu0 %v3410
  %v3412 = vpop.xlane.xlu0 %3411
  %v3413 = vsub.f32 %v3405, %v3412
  %v3414 = vmul.f32 %v3413, 1.442695
  %v3415 = vpow.pop %v3414
  %v3416 = vsel %vm3040, %v3415, 0.0
  %3417 = vadd.xlane.f32.xlu0 %v3416
  %v3418 = vpop.xlane.xlu0 %3417
  %v3419 = vrcp.pop %v3418
  %v3420 = vmul.f32 %v3415, %v3419
  %v3421 = vpack.c.bf16 %v3420, %v3420
  %v3423 = vsel %vm3040, %v3421, 0
  %v3426 = vsel %vm3056, %v3368, 0
  %3428 = vmatprep.subr.bf16.mxu0 0
  %3429 = vmatpush1.bf16.msra.mxu0 %v3426
  %3430 = vmatprep.subr.bf16.mxu0 0
  %3431 = vmatpush1.bf16.msra.mxu0 0
  %3432 = vmatprep.subr.bf16.mxu0 0
  %3433 = vmatpush1.bf16.msra.mxu0 0
  %3434 = vmatprep.subr.bf16.mxu0 0
  %3435 = vmatpush1.bf16.msra.mxu0 0
  %3436 = vmatprep.subr.bf16.mxu0 0
  %3437 = vmatpush1.bf16.msra.mxu0 0
  %3438 = vmatprep.subr.bf16.mxu0 0
  %3439 = vmatpush1.bf16.msra.mxu0 0
  %3440 = vmatprep.subr.bf16.mxu0 0
  %3441 = vmatpush1.bf16.msra.mxu0 0
  %3442 = vmatprep.subr.bf16.mxu0 0
  %3443 = vmatpush1.bf16.msra.mxu0 0
  %3444 = vmatprep.subr.bf16.mxu0 0
  %3445 = vmatpush1.bf16.msra.mxu0 0
  %3446 = vmatprep.subr.bf16.mxu0 0
  %3447 = vmatpush1.bf16.msra.mxu0 0
  %3448 = vmatprep.subr.bf16.mxu0 0
  %3449 = vmatpush1.bf16.msra.mxu0 0
  %3450 = vmatprep.subr.bf16.mxu0 0
  %3451 = vmatpush1.bf16.msra.mxu0 0
  %3452 = vmatprep.subr.bf16.mxu0 0
  %3453 = vmatpush1.bf16.msra.mxu0 0
  %3454 = vmatprep.subr.bf16.mxu0 0
  %3455 = vmatpush1.bf16.msra.mxu0 0
  %3456 = vmatprep.subr.bf16.mxu0 0
  %3457 = vmatpush1.bf16.msra.mxu0 0
  %3458 = vmatprep.subr.bf16.mxu0 0
  %3459 = vmatpush1.bf16.msra.mxu0 0
  %3460 = vmatprep.mubr.bf16.mxu0 0
  %3461 = vmatmul.mubr.bf16.gmra.mrb[0].mxu0 %v3423
  %v3462 = vpop.f32.mrb[0].mxu0
  %v3463 = vadd.f32 0.0, %v3462
  %v3464 = vpop.f32.mrb[0].mxu0
  %v3465 = vpop.f32.mrb[0].mxu0
  %v3466 = vpop.f32.mrb[0].mxu0
  %3467 = vdwg.mxu0
  %v3469 = vcombine.high %v3463, %v3463
  %v3471 = vunpack.c.l.s4 1966171168
  %v3472 = vunpack.c.0.s8 %v3471
  %v3473 = vlaneseq
  %v3474 = vshrl.u32 %v3473, 7
  %v3475 = vsub.s32 %v3472, %v3474
  %v3476 = vrot.slane %v3463, %v3475
  %v3478 = vunpack.c.l.s4 1966171168
  %v3479 = vunpack.c.0.s8 %v3478
  %v3480 = vlaneseq
  %v3481 = vshrl.u32 %v3480, 7
  %v3482 = vsub.s32 %v3479, %v3481
  %v3483 = vrot.slane %v3469, %v3482
  %v3484 = vcombine.high %v3476, %v3476
  %v3485 = vcombine.high %v3483, %v3483
  %v3487 = vunpack.c.l.s4 1966171168
  %v3488 = vunpack.c.0.s8 %v3487
  %v3489 = vlaneseq
  %v3490 = vshrl.u32 %v3489, 7
  %v3491 = vsub.s32 %v3488, %v3490
  %v3492 = vrot.slane %v3476, %v3491
  %v3494 = vunpack.c.l.s4 1966171168
  %v3495 = vunpack.c.0.s8 %v3494
  %v3496 = vlaneseq
  %v3497 = vshrl.u32 %v3496, 7
  %v3498 = vsub.s32 %v3495, %v3497
  %v3499 = vrot.slane %v3483, %v3498
  %v3501 = vunpack.c.l.s4 1966171168
  %v3502 = vunpack.c.0.s8 %v3501
  %v3503 = vlaneseq
  %v3504 = vshrl.u32 %v3503, 7
  %v3505 = vsub.s32 %v3502, %v3504
  %v3506 = vrot.slane %v3484, %v3505
  %v3508 = vunpack.c.l.s4 1966171168
  %v3509 = vunpack.c.0.s8 %v3508
  %v3510 = vlaneseq
  %v3511 = vshrl.u32 %v3510, 7
  %v3512 = vsub.s32 %v3509, %v3511
  %v3513 = vrot.slane %v3485, %v3512
  %v3514 = vcombine.high %v3492, %v3492
  %v3515 = vcombine.high %v3499, %v3499
  %v3516 = vcombine.high %v3506, %v3506
  %v3517 = vcombine.high %v3513, %v3513
  %v3518 = vrot.slane %v2921, 3
  %v3519 = vrot.slane %v2922, 2
  %v3520 = vsel %vm2930, %v3519, %v3518
  %v3521 = vrot.slane %v2923, 1
  %v3522 = vsel %vm2933, %v3521, %v3520
  %v3523 = vsel %vm2936, %v2924, %v3522
  %v3524 = vrot.slane %v2925, 7
  %v3525 = vsel %vm2939, %v3524, %v3523
  %v3526 = vrot.slane %v2926, 6
  %v3527 = vsel %vm2942, %v3526, %v3525
  %v3528 = vrot.slane %v2927, 5
  %v3529 = vsel %vm2945, %v3528, %v3527
  %v3530 = vrot.slane %v2928, 4
  %v3531 = vsel %vm2948, %v3530, %v3529
  %v3532 = vpack.c.b16 %v3531, %v3531
  %v3534 = vrot.slane %v2976, 3
  %v3535 = vrot.slane %v2977, 2
  %v3536 = vsel %vm2930, %v3535, %v3534
  %v3537 = vrot.slane %v2978, 1
  %v3538 = vsel %vm2933, %v3537, %v3536
  %v3539 = vsel %vm2936, %v2979, %v3538
  %v3540 = vrot.slane %v2980, 7
  %v3541 = vsel %vm2939, %v3540, %v3539
  %v3542 = vrot.slane %v2981, 6
  %v3543 = vsel %vm2942, %v3542, %v3541
  %v3544 = vrot.slane %v2982, 5
  %v3545 = vsel %vm2945, %v3544, %v3543
  %v3546 = vrot.slane %v2983, 4
  %v3547 = vsel %vm2948, %v3546, %v3545
  %v3548 = vpack.c.b16 %v3547, %v3547
  %3550 = vmatprep.subr.bf16.mxu0 0
  %3551 = vmatpush1.bf16.xpose.msra.mxu0 %v3548
  %3552 = vmatprep.subr.bf16.mxu0 0
  %3553 = vmatpush1.bf16.xpose.msra.mxu0 0
  %3554 = vmatprep.subr.bf16.mxu0 0
  %3555 = vmatpush1.bf16.xpose.msra.mxu0 0
  %3556 = vmatprep.subr.bf16.mxu0 0
  %3557 = vmatpush1.bf16.xpose.msra.mxu0 0
  %3558 = vmatprep.subr.bf16.mxu0 0
  %3559 = vmatpush1.bf16.xpose.msra.mxu0 0
  %3560 = vmatprep.subr.bf16.mxu0 0
  %3561 = vmatpush1.bf16.xpose.msra.mxu0 0
  %3562 = vmatprep.subr.bf16.mxu0 0
  %3563 = vmatpush1.bf16.xpose.msra.mxu0 0
  %3564 = vmatprep.subr.bf16.mxu0 0
  %3565 = vmatpush1.bf16.xpose.msra.mxu0 0
  %3566 = vmatprep.subr.bf16.mxu0 0
  %3567 = vmatpush1.bf16.xpose.msra.mxu0 0
  %3568 = vmatprep.subr.bf16.mxu0 0
  %3569 = vmatpush1.bf16.xpose.msra.mxu0 0
  %3570 = vmatprep.subr.bf16.mxu0 0
  %3571 = vmatpush1.bf16.xpose.msra.mxu0 0
  %3572 = vmatprep.subr.bf16.mxu0 0
  %3573 = vmatpush1.bf16.xpose.msra.mxu0 0
  %3574 = vmatprep.subr.bf16.mxu0 0
  %3575 = vmatpush1.bf16.xpose.msra.mxu0 0
  %3576 = vmatprep.subr.bf16.mxu0 0
  %3577 = vmatpush1.bf16.xpose.msra.mxu0 0
  %3578 = vmatprep.subr.bf16.mxu0 0
  %3579 = vmatpush1.bf16.xpose.msra.mxu0 0
  %3580 = vmatprep.subr.bf16.mxu0 0
  %3581 = vmatpush1.bf16.xpose.msra.mxu0 0
  %3582 = vmatprep.mubr.bf16.mxu0 0
  %3583 = vmatmul.mubr.bf16.gmra.mrb[0].mxu0 %v3532
  %v3584 = vpop.f32.mrb[0].mxu0
  %v3585 = vadd.f32 0.0, %v3584
  %v3586 = vpop.f32.mrb[0].mxu0
  %v3587 = vpop.f32.mrb[0].mxu0
  %v3588 = vpop.f32.mrb[0].mxu0
  %3589 = vdwg.mxu0
  %v3590 = vsel %vm3040, %v3585, -inf
  %3591 = vmax.xlane.f32.xlu0 %v3590
  %v3592 = vpop.xlane.xlu0 %3591
  %v3593 = vsub.f32 %v3585, %v3592
  %v3594 = vmul.f32 %v3593, 1.442695
  %v3595 = vpow.pop %v3594
  %v3596 = vsel %vm3040, %v3595, 0.0
  %3597 = vadd.xlane.f32.xlu0 %v3596
  %v3598 = vpop.xlane.xlu0 %3597
  %v3599 = vrcp.pop %v3598
  %v3600 = vmul.f32 %v3595, %v3599
  %v3601 = vpack.c.bf16 %v3600, %v3600
  %v3603 = vsel %vm3040, %v3601, 0
  %v3606 = vsel %vm3056, %v3548, 0
  %3608 = vmatprep.subr.bf16.mxu0 0
  %3609 = vmatpush1.bf16.msra.mxu0 %v3606
  %3610 = vmatprep.subr.bf16.mxu0 0
  %3611 = vmatpush1.bf16.msra.mxu0 0
  %3612 = vmatprep.subr.bf16.mxu0 0
  %3613 = vmatpush1.bf16.msra.mxu0 0
  %3614 = vmatprep.subr.bf16.mxu0 0
  %3615 = vmatpush1.bf16.msra.mxu0 0
  %3616 = vmatprep.subr.bf16.mxu0 0
  %3617 = vmatpush1.bf16.msra.mxu0 0
  %3618 = vmatprep.subr.bf16.mxu0 0
  %3619 = vmatpush1.bf16.msra.mxu0 0
  %3620 = vmatprep.subr.bf16.mxu0 0
  %3621 = vmatpush1.bf16.msra.mxu0 0
  %3622 = vmatprep.subr.bf16.mxu0 0
  %3623 = vmatpush1.bf16.msra.mxu0 0
  %3624 = vmatprep.subr.bf16.mxu0 0
  %3625 = vmatpush1.bf16.msra.mxu0 0
  %3626 = vmatprep.subr.bf16.mxu0 0
  %3627 = vmatpush1.bf16.msra.mxu0 0
  %3628 = vmatprep.subr.bf16.mxu0 0
  %3629 = vmatpush1.bf16.msra.mxu0 0
  %3630 = vmatprep.subr.bf16.mxu0 0
  %3631 = vmatpush1.bf16.msra.mxu0 0
  %3632 = vmatprep.subr.bf16.mxu0 0
  %3633 = vmatpush1.bf16.msra.mxu0 0
  %3634 = vmatprep.subr.bf16.mxu0 0
  %3635 = vmatpush1.bf16.msra.mxu0 0
  %3636 = vmatprep.subr.bf16.mxu0 0
  %3637 = vmatpush1.bf16.msra.mxu0 0
  %3638 = vmatprep.subr.bf16.mxu0 0
  %3639 = vmatpush1.bf16.msra.mxu0 0
  %3640 = vmatprep.mubr.bf16.mxu0 0
  %3641 = vmatmul.mubr.bf16.gmra.mrb[0].mxu0 %v3603
  %v3642 = vpop.f32.mrb[0].mxu0
  %v3643 = vadd.f32 0.0, %v3642
  %v3644 = vpop.f32.mrb[0].mxu0
  %v3645 = vpop.f32.mrb[0].mxu0
  %v3646 = vpop.f32.mrb[0].mxu0
  %3647 = vdwg.mxu0
  %v3649 = vcombine.high %v3643, %v3643
  %v3651 = vunpack.c.l.s4 1966171168
  %v3652 = vunpack.c.0.s8 %v3651
  %v3653 = vlaneseq
  %v3654 = vshrl.u32 %v3653, 7
  %v3655 = vsub.s32 %v3652, %v3654
  %v3656 = vrot.slane %v3643, %v3655
  %v3658 = vunpack.c.l.s4 1966171168
  %v3659 = vunpack.c.0.s8 %v3658
  %v3660 = vlaneseq
  %v3661 = vshrl.u32 %v3660, 7
  %v3662 = vsub.s32 %v3659, %v3661
  %v3663 = vrot.slane %v3649, %v3662
  %v3664 = vcombine.high %v3656, %v3656
  %v3665 = vcombine.high %v3663, %v3663
  %v3667 = vunpack.c.l.s4 1966171168
  %v3668 = vunpack.c.0.s8 %v3667
  %v3669 = vlaneseq
  %v3670 = vshrl.u32 %v3669, 7
  %v3671 = vsub.s32 %v3668, %v3670
  %v3672 = vrot.slane %v3656, %v3671
  %v3674 = vunpack.c.l.s4 1966171168
  %v3675 = vunpack.c.0.s8 %v3674
  %v3676 = vlaneseq
  %v3677 = vshrl.u32 %v3676, 7
  %v3678 = vsub.s32 %v3675, %v3677
  %v3679 = vrot.slane %v3663, %v3678
  %v3681 = vunpack.c.l.s4 1966171168
  %v3682 = vunpack.c.0.s8 %v3681
  %v3683 = vlaneseq
  %v3684 = vshrl.u32 %v3683, 7
  %v3685 = vsub.s32 %v3682, %v3684
  %v3686 = vrot.slane %v3664, %v3685
  %v3688 = vunpack.c.l.s4 1966171168
  %v3689 = vunpack.c.0.s8 %v3688
  %v3690 = vlaneseq
  %v3691 = vshrl.u32 %v3690, 7
  %v3692 = vsub.s32 %v3689, %v3691
  %v3693 = vrot.slane %v3665, %v3692
  %v3694 = vcombine.high %v3672, %v3672
  %v3695 = vcombine.high %v3679, %v3679
  %v3696 = vcombine.high %v3686, %v3686
  %v3697 = vcombine.high %v3693, %v3693
  %v3698 = vrot.slane %v2921, 4
  %v3699 = vrot.slane %v2922, 3
  %v3700 = vsel %vm2930, %v3699, %v3698
  %v3701 = vrot.slane %v2923, 2
  %v3702 = vsel %vm2933, %v3701, %v3700
  %v3703 = vrot.slane %v2924, 1
  %v3704 = vsel %vm2936, %v3703, %v3702
  %v3705 = vsel %vm2939, %v2925, %v3704
  %v3706 = vrot.slane %v2926, 7
  %v3707 = vsel %vm2942, %v3706, %v3705
  %v3708 = vrot.slane %v2927, 6
  %v3709 = vsel %vm2945, %v3708, %v3707
  %v3710 = vrot.slane %v2928, 5
  %v3711 = vsel %vm2948, %v3710, %v3709
  %v3712 = vpack.c.b16 %v3711, %v3711
  %v3714 = vrot.slane %v2976, 4
  %v3715 = vrot.slane %v2977, 3
  %v3716 = vsel %vm2930, %v3715, %v3714
  %v3717 = vrot.slane %v2978, 2
  %v3718 = vsel %vm2933, %v3717, %v3716
  %v3719 = vrot.slane %v2979, 1
  %v3720 = vsel %vm2936, %v3719, %v3718
  %v3721 = vsel %vm2939, %v2980, %v3720
  %v3722 = vrot.slane %v2981, 7
  %v3723 = vsel %vm2942, %v3722, %v3721
  %v3724 = vrot.slane %v2982, 6
  %v3725 = vsel %vm2945, %v3724, %v3723
  %v3726 = vrot.slane %v2983, 5
  %v3727 = vsel %vm2948, %v3726, %v3725
  %v3728 = vpack.c.b16 %v3727, %v3727
  %3730 = vmatprep.subr.bf16.mxu0 0
  %3731 = vmatpush1.bf16.xpose.msra.mxu0 %v3728
  %3732 = vmatprep.subr.bf16.mxu0 0
  %3733 = vmatpush1.bf16.xpose.msra.mxu0 0
  %3734 = vmatprep.subr.bf16.mxu0 0
  %3735 = vmatpush1.bf16.xpose.msra.mxu0 0
  %3736 = vmatprep.subr.bf16.mxu0 0
  %3737 = vmatpush1.bf16.xpose.msra.mxu0 0
  %3738 = vmatprep.subr.bf16.mxu0 0
  %3739 = vmatpush1.bf16.xpose.msra.mxu0 0
  %3740 = vmatprep.subr.bf16.mxu0 0
  %3741 = vmatpush1.bf16.xpose.msra.mxu0 0
  %3742 = vmatprep.subr.bf16.mxu0 0
  %3743 = vmatpush1.bf16.xpose.msra.mxu0 0
  %3744 = vmatprep.subr.bf16.mxu0 0
  %3745 = vmatpush1.bf16.xpose.msra.mxu0 0
  %3746 = vmatprep.subr.bf16.mxu0 0
  %3747 = vmatpush1.bf16.xpose.msra.mxu0 0
  %3748 = vmatprep.subr.bf16.mxu0 0
  %3749 = vmatpush1.bf16.xpose.msra.mxu0 0
  %3750 = vmatprep.subr.bf16.mxu0 0
  %3751 = vmatpush1.bf16.xpose.msra.mxu0 0
  %3752 = vmatprep.subr.bf16.mxu0 0
  %3753 = vmatpush1.bf16.xpose.msra.mxu0 0
  %3754 = vmatprep.subr.bf16.mxu0 0
  %3755 = vmatpush1.bf16.xpose.msra.mxu0 0
  %3756 = vmatprep.subr.bf16.mxu0 0
  %3757 = vmatpush1.bf16.xpose.msra.mxu0 0
  %3758 = vmatprep.subr.bf16.mxu0 0
  %3759 = vmatpush1.bf16.xpose.msra.mxu0 0
  %3760 = vmatprep.subr.bf16.mxu0 0
  %3761 = vmatpush1.bf16.xpose.msra.mxu0 0
  %3762 = vmatprep.mubr.bf16.mxu0 0
  %3763 = vmatmul.mubr.bf16.gmra.mrb[0].mxu0 %v3712
  %v3764 = vpop.f32.mrb[0].mxu0
  %v3765 = vadd.f32 0.0, %v3764
  %v3766 = vpop.f32.mrb[0].mxu0
  %v3767 = vpop.f32.mrb[0].mxu0
  %v3768 = vpop.f32.mrb[0].mxu0
  %3769 = vdwg.mxu0
  %v3770 = vsel %vm3040, %v3765, -inf
  %3771 = vmax.xlane.f32.xlu0 %v3770
  %v3772 = vpop.xlane.xlu0 %3771
  %v3773 = vsub.f32 %v3765, %v3772
  %v3774 = vmul.f32 %v3773, 1.442695
  %v3775 = vpow.pop %v3774
  %v3776 = vsel %vm3040, %v3775, 0.0
  %3777 = vadd.xlane.f32.xlu0 %v3776
  %v3778 = vpop.xlane.xlu0 %3777
  %v3779 = vrcp.pop %v3778
  %v3780 = vmul.f32 %v3775, %v3779
  %v3781 = vpack.c.bf16 %v3780, %v3780
  %v3783 = vsel %vm3040, %v3781, 0
  %v3786 = vsel %vm3056, %v3728, 0
  %3788 = vmatprep.subr.bf16.mxu0 0
  %3789 = vmatpush1.bf16.msra.mxu0 %v3786
  %3790 = vmatprep.subr.bf16.mxu0 0
  %3791 = vmatpush1.bf16.msra.mxu0 0
  %3792 = vmatprep.subr.bf16.mxu0 0
  %3793 = vmatpush1.bf16.msra.mxu0 0
  %3794 = vmatprep.subr.bf16.mxu0 0
  %3795 = vmatpush1.bf16.msra.mxu0 0
  %3796 = vmatprep.subr.bf16.mxu0 0
  %3797 = vmatpush1.bf16.msra.mxu0 0
  %3798 = vmatprep.subr.bf16.mxu0 0
  %3799 = vmatpush1.bf16.msra.mxu0 0
  %3800 = vmatprep.subr.bf16.mxu0 0
  %3801 = vmatpush1.bf16.msra.mxu0 0
  %3802 = vmatprep.subr.bf16.mxu0 0
  %3803 = vmatpush1.bf16.msra.mxu0 0
  %3804 = vmatprep.subr.bf16.mxu0 0
  %3805 = vmatpush1.bf16.msra.mxu0 0
  %3806 = vmatprep.subr.bf16.mxu0 0
  %3807 = vmatpush1.bf16.msra.mxu0 0
  %3808 = vmatprep.subr.bf16.mxu0 0
  %3809 = vmatpush1.bf16.msra.mxu0 0
  %3810 = vmatprep.subr.bf16.mxu0 0
  %3811 = vmatpush1.bf16.msra.mxu0 0
  %3812 = vmatprep.subr.bf16.mxu0 0
  %3813 = vmatpush1.bf16.msra.mxu0 0
  %3814 = vmatprep.subr.bf16.mxu0 0
  %3815 = vmatpush1.bf16.msra.mxu0 0
  %3816 = vmatprep.subr.bf16.mxu0 0
  %3817 = vmatpush1.bf16.msra.mxu0 0
  %3818 = vmatprep.subr.bf16.mxu0 0
  %3819 = vmatpush1.bf16.msra.mxu0 0
  %3820 = vmatprep.mubr.bf16.mxu0 0
  %3821 = vmatmul.mubr.bf16.gmra.mrb[0].mxu0 %v3783
  %v3822 = vpop.f32.mrb[0].mxu0
  %v3823 = vadd.f32 0.0, %v3822
  %v3824 = vpop.f32.mrb[0].mxu0
  %v3825 = vpop.f32.mrb[0].mxu0
  %v3826 = vpop.f32.mrb[0].mxu0
  %3827 = vdwg.mxu0
  %v3829 = vcombine.high %v3823, %v3823
  %v3831 = vunpack.c.l.s4 1966171168
  %v3832 = vunpack.c.0.s8 %v3831
  %v3833 = vlaneseq
  %v3834 = vshrl.u32 %v3833, 7
  %v3835 = vsub.s32 %v3832, %v3834
  %v3836 = vrot.slane %v3823, %v3835
  %v3838 = vunpack.c.l.s4 1966171168
  %v3839 = vunpack.c.0.s8 %v3838
  %v3840 = vlaneseq
  %v3841 = vshrl.u32 %v3840, 7
  %v3842 = vsub.s32 %v3839, %v3841
  %v3843 = vrot.slane %v3829, %v3842
  %v3844 = vcombine.high %v3836, %v3836
  %v3845 = vcombine.high %v3843, %v3843
  %v3847 = vunpack.c.l.s4 1966171168
  %v3848 = vunpack.c.0.s8 %v3847
  %v3849 = vlaneseq
  %v3850 = vshrl.u32 %v3849, 7
  %v3851 = vsub.s32 %v3848, %v3850
  %v3852 = vrot.slane %v3836, %v3851
  %v3854 = vunpack.c.l.s4 1966171168
  %v3855 = vunpack.c.0.s8 %v3854
  %v3856 = vlaneseq
  %v3857 = vshrl.u32 %v3856, 7
  %v3858 = vsub.s32 %v3855, %v3857
  %v3859 = vrot.slane %v3843, %v3858
  %v3861 = vunpack.c.l.s4 1966171168
  %v3862 = vunpack.c.0.s8 %v3861
  %v3863 = vlaneseq
  %v3864 = vshrl.u32 %v3863, 7
  %v3865 = vsub.s32 %v3862, %v3864
  %v3866 = vrot.slane %v3844, %v3865
  %v3868 = vunpack.c.l.s4 1966171168
  %v3869 = vunpack.c.0.s8 %v3868
  %v3870 = vlaneseq
  %v3871 = vshrl.u32 %v3870, 7
  %v3872 = vsub.s32 %v3869, %v3871
  %v3873 = vrot.slane %v3845, %v3872
  %v3874 = vcombine.high %v3852, %v3852
  %v3875 = vcombine.high %v3859, %v3859
  %v3876 = vcombine.high %v3866, %v3866
  %v3877 = vcombine.high %v3873, %v3873
  %v3878 = vrot.slane %v2921, 5
  %v3879 = vrot.slane %v2922, 4
  %v3880 = vsel %vm2930, %v3879, %v3878
  %v3881 = vrot.slane %v2923, 3
  %v3882 = vsel %vm2933, %v3881, %v3880
  %v3883 = vrot.slane %v2924, 2
  %v3884 = vsel %vm2936, %v3883, %v3882
  %v3885 = vrot.slane %v2925, 1
  %v3886 = vsel %vm2939, %v3885, %v3884
  %v3887 = vsel %vm2942, %v2926, %v3886
  %v3888 = vrot.slane %v2927, 7
  %v3889 = vsel %vm2945, %v3888, %v3887
  %v3890 = vrot.slane %v2928, 6
  %v3891 = vsel %vm2948, %v3890, %v3889
  %v3892 = vpack.c.b16 %v3891, %v3891
  %v3894 = vrot.slane %v2976, 5
  %v3895 = vrot.slane %v2977, 4
  %v3896 = vsel %vm2930, %v3895, %v3894
  %v3897 = vrot.slane %v2978, 3
  %v3898 = vsel %vm2933, %v3897, %v3896
  %v3899 = vrot.slane %v2979, 2
  %v3900 = vsel %vm2936, %v3899, %v3898
  %v3901 = vrot.slane %v2980, 1
  %v3902 = vsel %vm2939, %v3901, %v3900
  %v3903 = vsel %vm2942, %v2981, %v3902
  %v3904 = vrot.slane %v2982, 7
  %v3905 = vsel %vm2945, %v3904, %v3903
  %v3906 = vrot.slane %v2983, 6
  %v3907 = vsel %vm2948, %v3906, %v3905
  %v3908 = vpack.c.b16 %v3907, %v3907
  %3910 = vmatprep.subr.bf16.mxu0 0
  %3911 = vmatpush1.bf16.xpose.msra.mxu0 %v3908
  %3912 = vmatprep.subr.bf16.mxu0 0
  %3913 = vmatpush1.bf16.xpose.msra.mxu0 0
  %3914 = vmatprep.subr.bf16.mxu0 0
  %3915 = vmatpush1.bf16.xpose.msra.mxu0 0
  %3916 = vmatprep.subr.bf16.mxu0 0
  %3917 = vmatpush1.bf16.xpose.msra.mxu0 0
  %3918 = vmatprep.subr.bf16.mxu0 0
  %3919 = vmatpush1.bf16.xpose.msra.mxu0 0
  %3920 = vmatprep.subr.bf16.mxu0 0
  %3921 = vmatpush1.bf16.xpose.msra.mxu0 0
  %3922 = vmatprep.subr.bf16.mxu0 0
  %3923 = vmatpush1.bf16.xpose.msra.mxu0 0
  %3924 = vmatprep.subr.bf16.mxu0 0
  %3925 = vmatpush1.bf16.xpose.msra.mxu0 0
  %3926 = vmatprep.subr.bf16.mxu0 0
  %3927 = vmatpush1.bf16.xpose.msra.mxu0 0
  %3928 = vmatprep.subr.bf16.mxu0 0
  %3929 = vmatpush1.bf16.xpose.msra.mxu0 0
  %3930 = vmatprep.subr.bf16.mxu0 0
  %3931 = vmatpush1.bf16.xpose.msra.mxu0 0
  %3932 = vmatprep.subr.bf16.mxu0 0
  %3933 = vmatpush1.bf16.xpose.msra.mxu0 0
  %3934 = vmatprep.subr.bf16.mxu0 0
  %3935 = vmatpush1.bf16.xpose.msra.mxu0 0
  %3936 = vmatprep.subr.bf16.mxu0 0
  %3937 = vmatpush1.bf16.xpose.msra.mxu0 0
  %3938 = vmatprep.subr.bf16.mxu0 0
  %3939 = vmatpush1.bf16.xpose.msra.mxu0 0
  %3940 = vmatprep.subr.bf16.mxu0 0
  %3941 = vmatpush1.bf16.xpose.msra.mxu0 0
  %3942 = vmatprep.mubr.bf16.mxu0 0
  %3943 = vmatmul.mubr.bf16.gmra.mrb[0].mxu0 %v3892
  %v3944 = vpop.f32.mrb[0].mxu0
  %v3945 = vadd.f32 0.0, %v3944
  %v3946 = vpop.f32.mrb[0].mxu0
  %v3947 = vpop.f32.mrb[0].mxu0
  %v3948 = vpop.f32.mrb[0].mxu0
  %3949 = vdwg.mxu0
  %v3950 = vsel %vm3040, %v3945, -inf
  %3951 = vmax.xlane.f32.xlu0 %v3950
  %v3952 = vpop.xlane.xlu0 %3951
  %v3953 = vsub.f32 %v3945, %v3952
  %v3954 = vmul.f32 %v3953, 1.442695
  %v3955 = vpow.pop %v3954
  %v3956 = vsel %vm3040, %v3955, 0.0
  %3957 = vadd.xlane.f32.xlu0 %v3956
  %v3958 = vpop.xlane.xlu0 %3957
  %v3959 = vrcp.pop %v3958
  %v3960 = vmul.f32 %v3955, %v3959
  %v3961 = vpack.c.bf16 %v3960, %v3960
  %v3963 = vsel %vm3040, %v3961, 0
  %v3966 = vsel %vm3056, %v3908, 0
  %3968 = vmatprep.subr.bf16.mxu0 0
  %3969 = vmatpush1.bf16.msra.mxu0 %v3966
  %3970 = vmatprep.subr.bf16.mxu0 0
  %3971 = vmatpush1.bf16.msra.mxu0 0
  %3972 = vmatprep.subr.bf16.mxu0 0
  %3973 = vmatpush1.bf16.msra.mxu0 0
  %3974 = vmatprep.subr.bf16.mxu0 0
  %3975 = vmatpush1.bf16.msra.mxu0 0
  %3976 = vmatprep.subr.bf16.mxu0 0
  %3977 = vmatpush1.bf16.msra.mxu0 0
  %3978 = vmatprep.subr.bf16.mxu0 0
  %3979 = vmatpush1.bf16.msra.mxu0 0
  %3980 = vmatprep.subr.bf16.mxu0 0
  %3981 = vmatpush1.bf16.msra.mxu0 0
  %3982 = vmatprep.subr.bf16.mxu0 0
  %3983 = vmatpush1.bf16.msra.mxu0 0
  %3984 = vmatprep.subr.bf16.mxu0 0
  %3985 = vmatpush1.bf16.msra.mxu0 0
  %3986 = vmatprep.subr.bf16.mxu0 0
  %3987 = vmatpush1.bf16.msra.mxu0 0
  %3988 = vmatprep.subr.bf16.mxu0 0
  %3989 = vmatpush1.bf16.msra.mxu0 0
  %3990 = vmatprep.subr.bf16.mxu0 0
  %3991 = vmatpush1.bf16.msra.mxu0 0
  %3992 = vmatprep.subr.bf16.mxu0 0
  %3993 = vmatpush1.bf16.msra.mxu0 0
  %3994 = vmatprep.subr.bf16.mxu0 0
  %3995 = vmatpush1.bf16.msra.mxu0 0
  %3996 = vmatprep.subr.bf16.mxu0 0
  %3997 = vmatpush1.bf16.msra.mxu0 0
  %3998 = vmatprep.subr.bf16.mxu0 0
  %3999 = vmatpush1.bf16.msra.mxu0 0
  %4000 = vmatprep.mubr.bf16.mxu0 0
  %4001 = vmatmul.mubr.bf16.gmra.mrb[0].mxu0 %v3963
  %v4002 = vpop.f32.mrb[0].mxu0
  %v4003 = vadd.f32 0.0, %v4002
  %v4004 = vpop.f32.mrb[0].mxu0
  %v4005 = vpop.f32.mrb[0].mxu0
  %v4006 = vpop.f32.mrb[0].mxu0
  %4007 = vdwg.mxu0
  %v4009 = vcombine.high %v4003, %v4003
  %v4011 = vunpack.c.l.s4 1966171168
  %v4012 = vunpack.c.0.s8 %v4011
  %v4013 = vlaneseq
  %v4014 = vshrl.u32 %v4013, 7
  %v4015 = vsub.s32 %v4012, %v4014
  %v4016 = vrot.slane %v4003, %v4015
  %v4018 = vunpack.c.l.s4 1966171168
  %v4019 = vunpack.c.0.s8 %v4018
  %v4020 = vlaneseq
  %v4021 = vshrl.u32 %v4020, 7
  %v4022 = vsub.s32 %v4019, %v4021
  %v4023 = vrot.slane %v4009, %v4022
  %v4024 = vcombine.high %v4016, %v4016
  %v4025 = vcombine.high %v4023, %v4023
  %v4027 = vunpack.c.l.s4 1966171168
  %v4028 = vunpack.c.0.s8 %v4027
  %v4029 = vlaneseq
  %v4030 = vshrl.u32 %v4029, 7
  %v4031 = vsub.s32 %v4028, %v4030
  %v4032 = vrot.slane %v4016, %v4031
  %v4034 = vunpack.c.l.s4 1966171168
  %v4035 = vunpack.c.0.s8 %v4034
  %v4036 = vlaneseq
  %v4037 = vshrl.u32 %v4036, 7
  %v4038 = vsub.s32 %v4035, %v4037
  %v4039 = vrot.slane %v4023, %v4038
  %v4041 = vunpack.c.l.s4 1966171168
  %v4042 = vunpack.c.0.s8 %v4041
  %v4043 = vlaneseq
  %v4044 = vshrl.u32 %v4043, 7
  %v4045 = vsub.s32 %v4042, %v4044
  %v4046 = vrot.slane %v4024, %v4045
  %v4048 = vunpack.c.l.s4 1966171168
  %v4049 = vunpack.c.0.s8 %v4048
  %v4050 = vlaneseq
  %v4051 = vshrl.u32 %v4050, 7
  %v4052 = vsub.s32 %v4049, %v4051
  %v4053 = vrot.slane %v4025, %v4052
  %v4054 = vcombine.high %v4032, %v4032
  %v4055 = vcombine.high %v4039, %v4039
  %v4056 = vcombine.high %v4046, %v4046
  %v4057 = vcombine.high %v4053, %v4053
  %v4058 = vrot.slane %v2921, 6
  %v4059 = vrot.slane %v2922, 5
  %v4060 = vsel %vm2930, %v4059, %v4058
  %v4061 = vrot.slane %v2923, 4
  %v4062 = vsel %vm2933, %v4061, %v4060
  %v4063 = vrot.slane %v2924, 3
  %v4064 = vsel %vm2936, %v4063, %v4062
  %v4065 = vrot.slane %v2925, 2
  %v4066 = vsel %vm2939, %v4065, %v4064
  %v4067 = vrot.slane %v2926, 1
  %v4068 = vsel %vm2942, %v4067, %v4066
  %v4069 = vsel %vm2945, %v2927, %v4068
  %v4070 = vrot.slane %v2928, 7
  %v4071 = vsel %vm2948, %v4070, %v4069
  %v4072 = vpack.c.b16 %v4071, %v4071
  %v4074 = vrot.slane %v2976, 6
  %v4075 = vrot.slane %v2977, 5
  %v4076 = vsel %vm2930, %v4075, %v4074
  %v4077 = vrot.slane %v2978, 4
  %v4078 = vsel %vm2933, %v4077, %v4076
  %v4079 = vrot.slane %v2979, 3
  %v4080 = vsel %vm2936, %v4079, %v4078
  %v4081 = vrot.slane %v2980, 2
  %v4082 = vsel %vm2939, %v4081, %v4080
  %v4083 = vrot.slane %v2981, 1
  %v4084 = vsel %vm2942, %v4083, %v4082
  %v4085 = vsel %vm2945, %v2982, %v4084
  %v4086 = vrot.slane %v2983, 7
  %v4087 = vsel %vm2948, %v4086, %v4085
  %v4088 = vpack.c.b16 %v4087, %v4087
  %4090 = vmatprep.subr.bf16.mxu0 0
  %4091 = vmatpush1.bf16.xpose.msra.mxu0 %v4088
  %4092 = vmatprep.subr.bf16.mxu0 0
  %4093 = vmatpush1.bf16.xpose.msra.mxu0 0
  %4094 = vmatprep.subr.bf16.mxu0 0
  %4095 = vmatpush1.bf16.xpose.msra.mxu0 0
  %4096 = vmatprep.subr.bf16.mxu0 0
  %4097 = vmatpush1.bf16.xpose.msra.mxu0 0
  %4098 = vmatprep.subr.bf16.mxu0 0
  %4099 = vmatpush1.bf16.xpose.msra.mxu0 0
  %4100 = vmatprep.subr.bf16.mxu0 0
  %4101 = vmatpush1.bf16.xpose.msra.mxu0 0
  %4102 = vmatprep.subr.bf16.mxu0 0
  %4103 = vmatpush1.bf16.xpose.msra.mxu0 0
  %4104 = vmatprep.subr.bf16.mxu0 0
  %4105 = vmatpush1.bf16.xpose.msra.mxu0 0
  %4106 = vmatprep.subr.bf16.mxu0 0
  %4107 = vmatpush1.bf16.xpose.msra.mxu0 0
  %4108 = vmatprep.subr.bf16.mxu0 0
  %4109 = vmatpush1.bf16.xpose.msra.mxu0 0
  %4110 = vmatprep.subr.bf16.mxu0 0
  %4111 = vmatpush1.bf16.xpose.msra.mxu0 0
  %4112 = vmatprep.subr.bf16.mxu0 0
  %4113 = vmatpush1.bf16.xpose.msra.mxu0 0
  %4114 = vmatprep.subr.bf16.mxu0 0
  %4115 = vmatpush1.bf16.xpose.msra.mxu0 0
  %4116 = vmatprep.subr.bf16.mxu0 0
  %4117 = vmatpush1.bf16.xpose.msra.mxu0 0
  %4118 = vmatprep.subr.bf16.mxu0 0
  %4119 = vmatpush1.bf16.xpose.msra.mxu0 0
  %4120 = vmatprep.subr.bf16.mxu0 0
  %4121 = vmatpush1.bf16.xpose.msra.mxu0 0
  %4122 = vmatprep.mubr.bf16.mxu0 0
  %4123 = vmatmul.mubr.bf16.gmra.mrb[0].mxu0 %v4072
  %v4124 = vpop.f32.mrb[0].mxu0
  %v4125 = vadd.f32 0.0, %v4124
  %v4126 = vpop.f32.mrb[0].mxu0
  %v4127 = vpop.f32.mrb[0].mxu0
  %v4128 = vpop.f32.mrb[0].mxu0
  %4129 = vdwg.mxu0
  %v4130 = vsel %vm3040, %v4125, -inf
  %4131 = vmax.xlane.f32.xlu0 %v4130
  %v4132 = vpop.xlane.xlu0 %4131
  %v4133 = vsub.f32 %v4125, %v4132
  %v4134 = vmul.f32 %v4133, 1.442695
  %v4135 = vpow.pop %v4134
  %v4136 = vsel %vm3040, %v4135, 0.0
  %4137 = vadd.xlane.f32.xlu0 %v4136
  %v4138 = vpop.xlane.xlu0 %4137
  %v4139 = vrcp.pop %v4138
  %v4140 = vmul.f32 %v4135, %v4139
  %v4141 = vpack.c.bf16 %v4140, %v4140
  %v4143 = vsel %vm3040, %v4141, 0
  %v4146 = vsel %vm3056, %v4088, 0
  %4148 = vmatprep.subr.bf16.mxu0 0
  %4149 = vmatpush1.bf16.msra.mxu0 %v4146
  %4150 = vmatprep.subr.bf16.mxu0 0
  %4151 = vmatpush1.bf16.msra.mxu0 0
  %4152 = vmatprep.subr.bf16.mxu0 0
  %4153 = vmatpush1.bf16.msra.mxu0 0
  %4154 = vmatprep.subr.bf16.mxu0 0
  %4155 = vmatpush1.bf16.msra.mxu0 0
  %4156 = vmatprep.subr.bf16.mxu0 0
  %4157 = vmatpush1.bf16.msra.mxu0 0
  %4158 = vmatprep.subr.bf16.mxu0 0
  %4159 = vmatpush1.bf16.msra.mxu0 0
  %4160 = vmatprep.subr.bf16.mxu0 0
  %4161 = vmatpush1.bf16.msra.mxu0 0
  %4162 = vmatprep.subr.bf16.mxu0 0
  %4163 = vmatpush1.bf16.msra.mxu0 0
  %4164 = vmatprep.subr.bf16.mxu0 0
  %4165 = vmatpush1.bf16.msra.mxu0 0
  %4166 = vmatprep.subr.bf16.mxu0 0
  %4167 = vmatpush1.bf16.msra.mxu0 0
  %4168 = vmatprep.subr.bf16.mxu0 0
  %4169 = vmatpush1.bf16.msra.mxu0 0
  %4170 = vmatprep.subr.bf16.mxu0 0
  %4171 = vmatpush1.bf16.msra.mxu0 0
  %4172 = vmatprep.subr.bf16.mxu0 0
  %4173 = vmatpush1.bf16.msra.mxu0 0
  %4174 = vmatprep.subr.bf16.mxu0 0
  %4175 = vmatpush1.bf16.msra.mxu0 0
  %4176 = vmatprep.subr.bf16.mxu0 0
  %4177 = vmatpush1.bf16.msra.mxu0 0
  %4178 = vmatprep.subr.bf16.mxu0 0
  %4179 = vmatpush1.bf16.msra.mxu0 0
  %4180 = vmatprep.mubr.bf16.mxu0 0
  %4181 = vmatmul.mubr.bf16.gmra.mrb[0].mxu0 %v4143
  %v4182 = vpop.f32.mrb[0].mxu0
  %v4183 = vadd.f32 0.0, %v4182
  %v4184 = vpop.f32.mrb[0].mxu0
  %v4185 = vpop.f32.mrb[0].mxu0
  %v4186 = vpop.f32.mrb[0].mxu0
  %4187 = vdwg.mxu0
  %v4189 = vcombine.high %v4183, %v4183
  %v4191 = vunpack.c.l.s4 1966171168
  %v4192 = vunpack.c.0.s8 %v4191
  %v4193 = vlaneseq
  %v4194 = vshrl.u32 %v4193, 7
  %v4195 = vsub.s32 %v4192, %v4194
  %v4196 = vrot.slane %v4183, %v4195
  %v4198 = vunpack.c.l.s4 1966171168
  %v4199 = vunpack.c.0.s8 %v4198
  %v4200 = vlaneseq
  %v4201 = vshrl.u32 %v4200, 7
  %v4202 = vsub.s32 %v4199, %v4201
  %v4203 = vrot.slane %v4189, %v4202
  %v4204 = vcombine.high %v4196, %v4196
  %v4205 = vcombine.high %v4203, %v4203
  %v4207 = vunpack.c.l.s4 1966171168
  %v4208 = vunpack.c.0.s8 %v4207
  %v4209 = vlaneseq
  %v4210 = vshrl.u32 %v4209, 7
  %v4211 = vsub.s32 %v4208, %v4210
  %v4212 = vrot.slane %v4196, %v4211
  %v4214 = vunpack.c.l.s4 1966171168
  %v4215 = vunpack.c.0.s8 %v4214
  %v4216 = vlaneseq
  %v4217 = vshrl.u32 %v4216, 7
  %v4218 = vsub.s32 %v4215, %v4217
  %v4219 = vrot.slane %v4203, %v4218
  %v4221 = vunpack.c.l.s4 1966171168
  %v4222 = vunpack.c.0.s8 %v4221
  %v4223 = vlaneseq
  %v4224 = vshrl.u32 %v4223, 7
  %v4225 = vsub.s32 %v4222, %v4224
  %v4226 = vrot.slane %v4204, %v4225
  %v4228 = vunpack.c.l.s4 1966171168
  %v4229 = vunpack.c.0.s8 %v4228
  %v4230 = vlaneseq
  %v4231 = vshrl.u32 %v4230, 7
  %v4232 = vsub.s32 %v4229, %v4231
  %v4233 = vrot.slane %v4205, %v4232
  %v4234 = vcombine.high %v4212, %v4212
  %v4235 = vcombine.high %v4219, %v4219
  %v4236 = vcombine.high %v4226, %v4226
  %v4237 = vcombine.high %v4233, %v4233
  %v4238 = vrot.slane %v2921, 7
  %v4239 = vrot.slane %v2922, 6
  %v4240 = vsel %vm2930, %v4239, %v4238
  %v4241 = vrot.slane %v2923, 5
  %v4242 = vsel %vm2933, %v4241, %v4240
  %v4243 = vrot.slane %v2924, 4
  %v4244 = vsel %vm2936, %v4243, %v4242
  %v4245 = vrot.slane %v2925, 3
  %v4246 = vsel %vm2939, %v4245, %v4244
  %v4247 = vrot.slane %v2926, 2
  %v4248 = vsel %vm2942, %v4247, %v4246
  %v4249 = vrot.slane %v2927, 1
  %v4250 = vsel %vm2945, %v4249, %v4248
  %v4251 = vsel %vm2948, %v2928, %v4250
  %v4252 = vpack.c.b16 %v4251, %v4251
  %v4254 = vrot.slane %v2976, 7
  %v4255 = vrot.slane %v2977, 6
  %v4256 = vsel %vm2930, %v4255, %v4254
  %v4257 = vrot.slane %v2978, 5
  %v4258 = vsel %vm2933, %v4257, %v4256
  %v4259 = vrot.slane %v2979, 4
  %v4260 = vsel %vm2936, %v4259, %v4258
  %v4261 = vrot.slane %v2980, 3
  %v4262 = vsel %vm2939, %v4261, %v4260
  %v4263 = vrot.slane %v2981, 2
  %v4264 = vsel %vm2942, %v4263, %v4262
  %v4265 = vrot.slane %v2982, 1
  %v4266 = vsel %vm2945, %v4265, %v4264
  %v4267 = vsel %vm2948, %v2983, %v4266
  %v4268 = vpack.c.b16 %v4267, %v4267
  %4270 = vmatprep.subr.bf16.mxu0 0
  %4271 = vmatpush1.bf16.xpose.msra.mxu0 %v4268
  %4272 = vmatprep.subr.bf16.mxu0 0
  %4273 = vmatpush1.bf16.xpose.msra.mxu0 0
  %4274 = vmatprep.subr.bf16.mxu0 0
  %4275 = vmatpush1.bf16.xpose.msra.mxu0 0
  %4276 = vmatprep.subr.bf16.mxu0 0
  %4277 = vmatpush1.bf16.xpose.msra.mxu0 0
  %4278 = vmatprep.subr.bf16.mxu0 0
  %4279 = vmatpush1.bf16.xpose.msra.mxu0 0
  %4280 = vmatprep.subr.bf16.mxu0 0
  %4281 = vmatpush1.bf16.xpose.msra.mxu0 0
  %4282 = vmatprep.subr.bf16.mxu0 0
  %4283 = vmatpush1.bf16.xpose.msra.mxu0 0
  %4284 = vmatprep.subr.bf16.mxu0 0
  %4285 = vmatpush1.bf16.xpose.msra.mxu0 0
  %4286 = vmatprep.subr.bf16.mxu0 0
  %4287 = vmatpush1.bf16.xpose.msra.mxu0 0
  %4288 = vmatprep.subr.bf16.mxu0 0
  %4289 = vmatpush1.bf16.xpose.msra.mxu0 0
  %4290 = vmatprep.subr.bf16.mxu0 0
  %4291 = vmatpush1.bf16.xpose.msra.mxu0 0
  %4292 = vmatprep.subr.bf16.mxu0 0
  %4293 = vmatpush1.bf16.xpose.msra.mxu0 0
  %4294 = vmatprep.subr.bf16.mxu0 0
  %4295 = vmatpush1.bf16.xpose.msra.mxu0 0
  %4296 = vmatprep.subr.bf16.mxu0 0
  %4297 = vmatpush1.bf16.xpose.msra.mxu0 0
  %4298 = vmatprep.subr.bf16.mxu0 0
  %4299 = vmatpush1.bf16.xpose.msra.mxu0 0
  %4300 = vmatprep.subr.bf16.mxu0 0
  %4301 = vmatpush1.bf16.xpose.msra.mxu0 0
  %4302 = vmatprep.mubr.bf16.mxu0 0
  %4303 = vmatmul.mubr.bf16.gmra.mrb[0].mxu0 %v4252
  %v4304 = vpop.f32.mrb[0].mxu0
  %v4305 = vadd.f32 0.0, %v4304
  %v4306 = vpop.f32.mrb[0].mxu0
  %v4307 = vpop.f32.mrb[0].mxu0
  %v4308 = vpop.f32.mrb[0].mxu0
  %4309 = vdwg.mxu0
  %v4310 = vsel %vm3040, %v4305, -inf
  %4311 = vmax.xlane.f32.xlu0 %v4310
  %v4312 = vpop.xlane.xlu0 %4311
  %v4313 = vsub.f32 %v4305, %v4312
  %v4314 = vmul.f32 %v4313, 1.442695
  %v4315 = vpow.pop %v4314
  %v4316 = vsel %vm3040, %v4315, 0.0
  %4317 = vadd.xlane.f32.xlu0 %v4316
  %v4318 = vpop.xlane.xlu0 %4317
  %v4319 = vrcp.pop %v4318
  %v4320 = vmul.f32 %v4315, %v4319
  %v4321 = vpack.c.bf16 %v4320, %v4320
  %v4323 = vsel %vm3040, %v4321, 0
  %v4326 = vsel %vm3056, %v4268, 0
  %4328 = vmatprep.subr.bf16.mxu0 0
  %4329 = vmatpush1.bf16.msra.mxu0 %v4326
  %4330 = vmatprep.subr.bf16.mxu0 0
  %4331 = vmatpush1.bf16.msra.mxu0 0
  %4332 = vmatprep.subr.bf16.mxu0 0
  %4333 = vmatpush1.bf16.msra.mxu0 0
  %4334 = vmatprep.subr.bf16.mxu0 0
  %4335 = vmatpush1.bf16.msra.mxu0 0
  %4336 = vmatprep.subr.bf16.mxu0 0
  %4337 = vmatpush1.bf16.msra.mxu0 0
  %4338 = vmatprep.subr.bf16.mxu0 0
  %4339 = vmatpush1.bf16.msra.mxu0 0
  %4340 = vmatprep.subr.bf16.mxu0 0
  %4341 = vmatpush1.bf16.msra.mxu0 0
  %4342 = vmatprep.subr.bf16.mxu0 0
  %4343 = vmatpush1.bf16.msra.mxu0 0
  %4344 = vmatprep.subr.bf16.mxu0 0
  %4345 = vmatpush1.bf16.msra.mxu0 0
  %4346 = vmatprep.subr.bf16.mxu0 0
  %4347 = vmatpush1.bf16.msra.mxu0 0
  %4348 = vmatprep.subr.bf16.mxu0 0
  %4349 = vmatpush1.bf16.msra.mxu0 0
  %4350 = vmatprep.subr.bf16.mxu0 0
  %4351 = vmatpush1.bf16.msra.mxu0 0
  %4352 = vmatprep.subr.bf16.mxu0 0
  %4353 = vmatpush1.bf16.msra.mxu0 0
  %4354 = vmatprep.subr.bf16.mxu0 0
  %4355 = vmatpush1.bf16.msra.mxu0 0
  %4356 = vmatprep.subr.bf16.mxu0 0
  %4357 = vmatpush1.bf16.msra.mxu0 0
  %4358 = vmatprep.subr.bf16.mxu0 0
  %4359 = vmatpush1.bf16.msra.mxu0 0
  %4360 = vmatprep.mubr.bf16.mxu0 0
  %4361 = vmatmul.mubr.bf16.gmra.mrb[0].mxu0 %v4323
  %v4362 = vpop.f32.mrb[0].mxu0
  %v4363 = vadd.f32 0.0, %v4362
  %v4364 = vpop.f32.mrb[0].mxu0
  %v4365 = vpop.f32.mrb[0].mxu0
  %v4366 = vpop.f32.mrb[0].mxu0
  %4367 = vdwg.mxu0
  %v4369 = vcombine.high %v4363, %v4363
  %v4371 = vunpack.c.l.s4 1966171168
  %v4372 = vunpack.c.0.s8 %v4371
  %v4373 = vlaneseq
  %v4374 = vshrl.u32 %v4373, 7
  %v4375 = vsub.s32 %v4372, %v4374
  %v4376 = vrot.slane %v4363, %v4375
  %v4378 = vunpack.c.l.s4 1966171168
  %v4379 = vunpack.c.0.s8 %v4378
  %v4380 = vlaneseq
  %v4381 = vshrl.u32 %v4380, 7
  %v4382 = vsub.s32 %v4379, %v4381
  %v4383 = vrot.slane %v4369, %v4382
  %v4384 = vcombine.high %v4376, %v4376
  %v4385 = vcombine.high %v4383, %v4383
  %v4387 = vunpack.c.l.s4 1966171168
  %v4388 = vunpack.c.0.s8 %v4387
  %v4389 = vlaneseq
  %v4390 = vshrl.u32 %v4389, 7
  %v4391 = vsub.s32 %v4388, %v4390
  %v4392 = vrot.slane %v4376, %v4391
  %v4394 = vunpack.c.l.s4 1966171168
  %v4395 = vunpack.c.0.s8 %v4394
  %v4396 = vlaneseq
  %v4397 = vshrl.u32 %v4396, 7
  %v4398 = vsub.s32 %v4395, %v4397
  %v4399 = vrot.slane %v4383, %v4398
  %v4401 = vunpack.c.l.s4 1966171168
  %v4402 = vunpack.c.0.s8 %v4401
  %v4403 = vlaneseq
  %v4404 = vshrl.u32 %v4403, 7
  %v4405 = vsub.s32 %v4402, %v4404
  %v4406 = vrot.slane %v4384, %v4405
  %v4408 = vunpack.c.l.s4 1966171168
  %v4409 = vunpack.c.0.s8 %v4408
  %v4410 = vlaneseq
  %v4411 = vshrl.u32 %v4410, 7
  %v4412 = vsub.s32 %v4409, %v4411
  %v4413 = vrot.slane %v4385, %v4412
  %v4414 = vcombine.high %v4392, %v4392
  %v4415 = vcombine.high %v4399, %v4399
  %v4416 = vcombine.high %v4406, %v4406
  %v4417 = vcombine.high %v4413, %v4413
  %v4418 = vlaneseq
  %v4419 = vshrl.u32 %v4418, 7
  %v4420 = vsub.s32 0, %v4419
  %v4421 = vrot.slane %v3312, %v4420
  %v4422 = vlaneseq
  %v4423 = vshrl.u32 %v4422, 7
  %v4424 = vsub.s32 0, %v4423
  %v4425 = vrot.slane %v3326, %v4424
  %v4426 = vlaneseq
  %v4427 = vshrl.u32 %v4426, 7
  %v4428 = vsub.s32 0, %v4427
  %v4429 = vrot.slane %v3334, %v4428
  %v4430 = vlaneseq
  %v4431 = vshrl.u32 %v4430, 7
  %v4432 = vsub.s32 0, %v4431
  %v4433 = vrot.slane %v3336, %v4432
  %v4434 = vlaneseq
  %v4435 = vshrl.u32 %v4434, 7
  %v4436 = vsub.s32 0, %v4435
  %v4437 = vrot.slane %v3319, %v4436
  %v4438 = vlaneseq
  %v4439 = vshrl.u32 %v4438, 7
  %v4440 = vsub.s32 0, %v4439
  %v4441 = vrot.slane %v3333, %v4440
  %v4442 = vlaneseq
  %v4443 = vshrl.u32 %v4442, 7
  %v4444 = vsub.s32 0, %v4443
  %v4445 = vrot.slane %v3335, %v4444
  %v4446 = vlaneseq
  %v4447 = vshrl.u32 %v4446, 7
  %v4448 = vsub.s32 0, %v4447
  %v4449 = vrot.slane %v3337, %v4448
  %v4458 = vlaneseq
  %v4459 = vshrl.u32 %v4458, 7
  %v4460 = vsub.s32 0, %v4459
  %v4461 = vrot.slane %v3492, %v4460
  %v4462 = vlaneseq
  %v4463 = vshrl.u32 %v4462, 7
  %v4464 = vsub.s32 0, %v4463
  %v4465 = vrot.slane %v3506, %v4464
  %v4466 = vlaneseq
  %v4467 = vshrl.u32 %v4466, 7
  %v4468 = vsub.s32 0, %v4467
  %v4469 = vrot.slane %v3514, %v4468
  %v4470 = vlaneseq
  %v4471 = vshrl.u32 %v4470, 7
  %v4472 = vsub.s32 0, %v4471
  %v4473 = vrot.slane %v3516, %v4472
  %v4474 = vlaneseq
  %v4475 = vshrl.u32 %v4474, 7
  %v4476 = vsub.s32 0, %v4475
  %v4477 = vrot.slane %v3499, %v4476
  %v4478 = vlaneseq
  %v4479 = vshrl.u32 %v4478, 7
  %v4480 = vsub.s32 0, %v4479
  %v4481 = vrot.slane %v3513, %v4480
  %v4482 = vlaneseq
  %v4483 = vshrl.u32 %v4482, 7
  %v4484 = vsub.s32 0, %v4483
  %v4485 = vrot.slane %v3515, %v4484
  %v4486 = vlaneseq
  %v4487 = vshrl.u32 %v4486, 7
  %v4488 = vsub.s32 0, %v4487
  %v4489 = vrot.slane %v3517, %v4488
  %v4498 = vlaneseq
  %v4499 = vshrl.u32 %v4498, 7
  %v4500 = vsub.s32 0, %v4499
  %v4501 = vrot.slane %v3672, %v4500
  %v4502 = vlaneseq
  %v4503 = vshrl.u32 %v4502, 7
  %v4504 = vsub.s32 0, %v4503
  %v4505 = vrot.slane %v3686, %v4504
  %v4506 = vlaneseq
  %v4507 = vshrl.u32 %v4506, 7
  %v4508 = vsub.s32 0, %v4507
  %v4509 = vrot.slane %v3694, %v4508
  %v4510 = vlaneseq
  %v4511 = vshrl.u32 %v4510, 7
  %v4512 = vsub.s32 0, %v4511
  %v4513 = vrot.slane %v3696, %v4512
  %v4514 = vlaneseq
  %v4515 = vshrl.u32 %v4514, 7
  %v4516 = vsub.s32 0, %v4515
  %v4517 = vrot.slane %v3679, %v4516
  %v4518 = vlaneseq
  %v4519 = vshrl.u32 %v4518, 7
  %v4520 = vsub.s32 0, %v4519
  %v4521 = vrot.slane %v3693, %v4520
  %v4522 = vlaneseq
  %v4523 = vshrl.u32 %v4522, 7
  %v4524 = vsub.s32 0, %v4523
  %v4525 = vrot.slane %v3695, %v4524
  %v4526 = vlaneseq
  %v4527 = vshrl.u32 %v4526, 7
  %v4528 = vsub.s32 0, %v4527
  %v4529 = vrot.slane %v3697, %v4528
  %v4538 = vlaneseq
  %v4539 = vshrl.u32 %v4538, 7
  %v4540 = vsub.s32 0, %v4539
  %v4541 = vrot.slane %v3852, %v4540
  %v4542 = vlaneseq
  %v4543 = vshrl.u32 %v4542, 7
  %v4544 = vsub.s32 0, %v4543
  %v4545 = vrot.slane %v3866, %v4544
  %v4546 = vlaneseq
  %v4547 = vshrl.u32 %v4546, 7
  %v4548 = vsub.s32 0, %v4547
  %v4549 = vrot.slane %v3874, %v4548
  %v4550 = vlaneseq
  %v4551 = vshrl.u32 %v4550, 7
  %v4552 = vsub.s32 0, %v4551
  %v4553 = vrot.slane %v3876, %v4552
  %v4554 = vlaneseq
  %v4555 = vshrl.u32 %v4554, 7
  %v4556 = vsub.s32 0, %v4555
  %v4557 = vrot.slane %v3859, %v4556
  %v4558 = vlaneseq
  %v4559 = vshrl.u32 %v4558, 7
  %v4560 = vsub.s32 0, %v4559
  %v4561 = vrot.slane %v3873, %v4560
  %v4562 = vlaneseq
  %v4563 = vshrl.u32 %v4562, 7
  %v4564 = vsub.s32 0, %v4563
  %v4565 = vrot.slane %v3875, %v4564
  %v4566 = vlaneseq
  %v4567 = vshrl.u32 %v4566, 7
  %v4568 = vsub.s32 0, %v4567
  %v4569 = vrot.slane %v3877, %v4568
  %v4578 = vlaneseq
  %v4579 = vshrl.u32 %v4578, 7
  %v4580 = vsub.s32 0, %v4579
  %v4581 = vrot.slane %v4032, %v4580
  %v4582 = vlaneseq
  %v4583 = vshrl.u32 %v4582, 7
  %v4584 = vsub.s32 0, %v4583
  %v4585 = vrot.slane %v4046, %v4584
  %v4586 = vlaneseq
  %v4587 = vshrl.u32 %v4586, 7
  %v4588 = vsub.s32 0, %v4587
  %v4589 = vrot.slane %v4054, %v4588
  %v4590 = vlaneseq
  %v4591 = vshrl.u32 %v4590, 7
  %v4592 = vsub.s32 0, %v4591
  %v4593 = vrot.slane %v4056, %v4592
  %v4594 = vlaneseq
  %v4595 = vshrl.u32 %v4594, 7
  %v4596 = vsub.s32 0, %v4595
  %v4597 = vrot.slane %v4039, %v4596
  %v4598 = vlaneseq
  %v4599 = vshrl.u32 %v4598, 7
  %v4600 = vsub.s32 0, %v4599
  %v4601 = vrot.slane %v4053, %v4600
  %v4602 = vlaneseq
  %v4603 = vshrl.u32 %v4602, 7
  %v4604 = vsub.s32 0, %v4603
  %v4605 = vrot.slane %v4055, %v4604
  %v4606 = vlaneseq
  %v4607 = vshrl.u32 %v4606, 7
  %v4608 = vsub.s32 0, %v4607
  %v4609 = vrot.slane %v4057, %v4608
  %v4618 = vlaneseq
  %v4619 = vshrl.u32 %v4618, 7
  %v4620 = vsub.s32 0, %v4619
  %v4621 = vrot.slane %v4212, %v4620
  %v4622 = vlaneseq
  %v4623 = vshrl.u32 %v4622, 7
  %v4624 = vsub.s32 0, %v4623
  %v4625 = vrot.slane %v4226, %v4624
  %v4626 = vlaneseq
  %v4627 = vshrl.u32 %v4626, 7
  %v4628 = vsub.s32 0, %v4627
  %v4629 = vrot.slane %v4234, %v4628
  %v4630 = vlaneseq
  %v4631 = vshrl.u32 %v4630, 7
  %v4632 = vsub.s32 0, %v4631
  %v4633 = vrot.slane %v4236, %v4632
  %v4634 = vlaneseq
  %v4635 = vshrl.u32 %v4634, 7
  %v4636 = vsub.s32 0, %v4635
  %v4637 = vrot.slane %v4219, %v4636
  %v4638 = vlaneseq
  %v4639 = vshrl.u32 %v4638, 7
  %v4640 = vsub.s32 0, %v4639
  %v4641 = vrot.slane %v4233, %v4640
  %v4642 = vlaneseq
  %v4643 = vshrl.u32 %v4642, 7
  %v4644 = vsub.s32 0, %v4643
  %v4645 = vrot.slane %v4235, %v4644
  %v4646 = vlaneseq
  %v4647 = vshrl.u32 %v4646, 7
  %v4648 = vsub.s32 0, %v4647
  %v4649 = vrot.slane %v4237, %v4648
  %v4658 = vlaneseq
  %v4659 = vshrl.u32 %v4658, 7
  %v4660 = vsub.s32 0, %v4659
  %v4661 = vrot.slane %v4392, %v4660
  %v4662 = vlaneseq
  %v4663 = vshrl.u32 %v4662, 7
  %v4664 = vsub.s32 0, %v4663
  %v4665 = vrot.slane %v4406, %v4664
  %v4666 = vlaneseq
  %v4667 = vshrl.u32 %v4666, 7
  %v4668 = vsub.s32 0, %v4667
  %v4669 = vrot.slane %v4414, %v4668
  %v4670 = vlaneseq
  %v4671 = vshrl.u32 %v4670, 7
  %v4672 = vsub.s32 0, %v4671
  %v4673 = vrot.slane %v4416, %v4672
  %v4674 = vlaneseq
  %v4675 = vshrl.u32 %v4674, 7
  %v4676 = vsub.s32 0, %v4675
  %v4677 = vrot.slane %v4399, %v4676
  %v4678 = vlaneseq
  %v4679 = vshrl.u32 %v4678, 7
  %v4680 = vsub.s32 0, %v4679
  %v4681 = vrot.slane %v4413, %v4680
  %v4682 = vlaneseq
  %v4683 = vshrl.u32 %v4682, 7
  %v4684 = vsub.s32 0, %v4683
  %v4685 = vrot.slane %v4415, %v4684
  %v4686 = vlaneseq
  %v4687 = vshrl.u32 %v4686, 7
  %v4688 = vsub.s32 0, %v4687
  %v4689 = vrot.slane %v4417, %v4688
  %vm4698 = vcmask 1040384
  %v4699 = vsel %vm4698, %v3124, %v4421
  %v4700 = vsel %vm4698, %v3138, %v4425
  %v4701 = vsel %vm4698, %v3146, %v4429
  %v4702 = vsel %vm4698, %v3148, %v4433
  %v4703 = vsel %vm4698, %v3131, %v4437
  %v4704 = vsel %vm4698, %v3145, %v4441
  %v4705 = vsel %vm4698, %v3147, %v4445
  %v4706 = vsel %vm4698, %v3149, %v4449
  %vm4707 = vcmask 1041408
  %v4708 = vsel %vm4707, %v4699, %v4461
  %v4709 = vsel %vm4707, %v4700, %v4465
  %v4710 = vsel %vm4707, %v4701, %v4469
  %v4711 = vsel %vm4707, %v4702, %v4473
  %v4712 = vsel %vm4707, %v4703, %v4477
  %v4713 = vsel %vm4707, %v4704, %v4481
  %v4714 = vsel %vm4707, %v4705, %v4485
  %v4715 = vsel %vm4707, %v4706, %v4489
  %vm4716 = vcmask 1042432
  %v4717 = vsel %vm4716, %v4708, %v4501
  %v4718 = vsel %vm4716, %v4709, %v4505
  %v4719 = vsel %vm4716, %v4710, %v4509
  %v4720 = vsel %vm4716, %v4711, %v4513
  %v4721 = vsel %vm4716, %v4712, %v4517
  %v4722 = vsel %vm4716, %v4713, %v4521
  %v4723 = vsel %vm4716, %v4714, %v4525
  %v4724 = vsel %vm4716, %v4715, %v4529
  %v4725 = vsel %vm3056, %v4717, %v4541
  %v4726 = vsel %vm3056, %v4718, %v4545
  %v4727 = vsel %vm3056, %v4719, %v4549
  %v4728 = vsel %vm3056, %v4720, %v4553
  %v4729 = vsel %vm3056, %v4721, %v4557
  %v4730 = vsel %vm3056, %v4722, %v4561
  %v4731 = vsel %vm3056, %v4723, %v4565
  %v4732 = vsel %vm3056, %v4724, %v4569
  %vm4733 = vcmask 1044480
  %v4734 = vsel %vm4733, %v4725, %v4581
  %v4735 = vsel %vm4733, %v4726, %v4585
  %v4736 = vsel %vm4733, %v4727, %v4589
  %v4737 = vsel %vm4733, %v4728, %v4593
  %v4738 = vsel %vm4733, %v4729, %v4597
  %v4739 = vsel %vm4733, %v4730, %v4601
  %v4740 = vsel %vm4733, %v4731, %v4605
  %v4741 = vsel %vm4733, %v4732, %v4609
  %vm4742 = vcmask 1045504
  %v4743 = vsel %vm4742, %v4734, %v4621
  %v4744 = vsel %vm4742, %v4735, %v4625
  %v4745 = vsel %vm4742, %v4736, %v4629
  %v4746 = vsel %vm4742, %v4737, %v4633
  %v4747 = vsel %vm4742, %v4738, %v4637
  %v4748 = vsel %vm4742, %v4739, %v4641
  %v4749 = vsel %vm4742, %v4740, %v4645
  %v4750 = vsel %vm4742, %v4741, %v4649
  %vm4751 = vcmask 1046528
  %v4752 = vsel %vm4751, %v4743, %v4661
  %v4753 = vsel %vm4751, %v4744, %v4665
  %v4754 = vsel %vm4751, %v4745, %v4669
  %v4755 = vsel %vm4751, %v4746, %v4673
  %v4756 = vsel %vm4751, %v4747, %v4677
  %v4757 = vsel %vm4751, %v4748, %v4681
  %v4758 = vsel %vm4751, %v4749, %v4685
  %v4759 = vsel %vm4751, %v4750, %v4689
  %v4760 = vld [vmem:[%s11] sm:$0xf]
  %v4761 = vld [vmem:[%s11 + $0x4] sm:$0xf]
  %v4762 = vld [vmem:[%s11 + $0x8] sm:$0xf]
  %v4763 = vld [vmem:[%s11 + $0xc] sm:$0xf]
  %v4764 = vld [vmem:[%s11 + $0x10] sm:$0xf]
  %v4765 = vld [vmem:[%s11 + $0x14] sm:$0xf]
  %v4766 = vld [vmem:[%s11 + $0x18] sm:$0xf]
  %v4767 = vld [vmem:[%s11 + $0x1c] sm:$0xf]
  %v4768 = vld [vmem:[%s11 + $0x20] sm:$0xf]
  %v4769 = vld [vmem:[%s11 + $0x24] sm:$0xf]
  %v4770 = vld [vmem:[%s11 + $0x28] sm:$0xf]
  %v4771 = vld [vmem:[%s11 + $0x2c] sm:$0xf]
  %v4772 = vld [vmem:[%s11 + $0x30] sm:$0xf]
  %v4773 = vld [vmem:[%s11 + $0x34] sm:$0xf]
  %v4774 = vld [vmem:[%s11 + $0x38] sm:$0xf]
  %v4775 = vld [vmem:[%s11 + $0x3c] sm:$0xf]
  %v4776 = vpack.c.bf16 %v4753, %v4752
  %v4777 = vpack.c.bf16 %v4755, %v4754
  %v4778 = vpack.c.bf16 %v4757, %v4756
  %v4779 = vpack.c.bf16 %v4759, %v4758
  %v4780 = vld [vmem:[%s12] sm:$0xf]
  %v4781 = vld [vmem:[%s12 + $0x4] sm:$0xf]
  %v4782 = vld [vmem:[%s12 + $0x8] sm:$0xf]
  %v4783 = vld [vmem:[%s12 + $0xc] sm:$0xf]
  %v4784 = vld [vmem:[%s12 + $0x10] sm:$0xf]
  %v4785 = vld [vmem:[%s12 + $0x14] sm:$0xf]
  %v4786 = vld [vmem:[%s12 + $0x18] sm:$0xf]
  %v4787 = vld [vmem:[%s12 + $0x1c] sm:$0xf]
  %v4788 = vld [vmem:[%s12 + $0x20] sm:$0xf]
  %v4789 = vld [vmem:[%s12 + $0x24] sm:$0xf]
  %v4790 = vld [vmem:[%s12 + $0x28] sm:$0xf]
  %v4791 = vld [vmem:[%s12 + $0x2c] sm:$0xf]
  %v4792 = vld [vmem:[%s12 + $0x30] sm:$0xf]
  %v4793 = vld [vmem:[%s12 + $0x34] sm:$0xf]
  %v4794 = vld [vmem:[%s12 + $0x38] sm:$0xf]
  %v4795 = vld [vmem:[%s12 + $0x3c] sm:$0xf]
  %v4812 = vunpack.c.l.b16 %v4780
  %v4813 = vunpack.c.l.b16 %v4781
  %v4814 = vunpack.c.l.b16 %v4782
  %v4815 = vunpack.c.l.b16 %v4783
  %v4816 = vunpack.c.l.b16 %v4784
  %v4817 = vunpack.c.l.b16 %v4785
  %v4818 = vunpack.c.l.b16 %v4786
  %v4819 = vunpack.c.l.b16 %v4787
  %v4820 = vunpack.c.l.b16 %v4788
  %v4821 = vunpack.c.l.b16 %v4789
  %v4822 = vunpack.c.l.b16 %v4790
  %v4823 = vunpack.c.l.b16 %v4791
  %v4824 = vunpack.c.l.b16 %v4792
  %v4825 = vunpack.c.l.b16 %v4793
  %v4826 = vunpack.c.l.b16 %v4794
  %v4827 = vunpack.c.l.b16 %v4795
  %v4828 = vpack.c.b16 %v4813, %v4812
  %v4829 = vpack.c.b16 %v4815, %v4814
  %v4830 = vpack.c.b16 %v4817, %v4816
  %v4831 = vpack.c.b16 %v4819, %v4818
  %v4832 = vpack.c.b16 %v4821, %v4820
  %v4833 = vpack.c.b16 %v4823, %v4822
  %v4834 = vpack.c.b16 %v4825, %v4824
  %v4835 = vpack.c.b16 %v4827, %v4826
  %4844 = vmatprep.subr.bf16.mxu0 0
  %4845 = vmatpush1.bf16.msra.mxu0 %v4828
  %4846 = vmatprep.subr.bf16.mxu0 0
  %4847 = vmatpush1.bf16.msra.mxu0 %v4829
  %4848 = vmatprep.subr.bf16.mxu0 0
  %4849 = vmatpush1.bf16.msra.mxu0 %v4830
  %4850 = vmatprep.subr.bf16.mxu0 0
  %4851 = vmatpush1.bf16.msra.mxu0 %v4831
  %4852 = vmatprep.subr.bf16.mxu0 0
  %4853 = vmatpush1.bf16.msra.mxu0 %v4832
  %4854 = vmatprep.subr.bf16.mxu0 0
  %4855 = vmatpush1.bf16.msra.mxu0 %v4833
  %4856 = vmatprep.subr.bf16.mxu0 0
  %4857 = vmatpush1.bf16.msra.mxu0 %v4834
  %4858 = vmatprep.subr.bf16.mxu0 0
  %4859 = vmatpush1.bf16.msra.mxu0 %v4835
  %4860 = vmatprep.subr.bf16.mxu0 0
  %4861 = vmatpush1.bf16.msra.mxu0 0
  %4862 = vmatprep.subr.bf16.mxu0 0
  %4863 = vmatpush1.bf16.msra.mxu0 0
  %4864 = vmatprep.subr.bf16.mxu0 0
  %4865 = vmatpush1.bf16.msra.mxu0 0
  %4866 = vmatprep.subr.bf16.mxu0 0
  %4867 = vmatpush1.bf16.msra.mxu0 0
  %4868 = vmatprep.subr.bf16.mxu0 0
  %4869 = vmatpush1.bf16.msra.mxu0 0
  %4870 = vmatprep.subr.bf16.mxu0 0
  %4871 = vmatpush1.bf16.msra.mxu0 0
  %4872 = vmatprep.subr.bf16.mxu0 0
  %4873 = vmatpush1.bf16.msra.mxu0 0
  %4874 = vmatprep.subr.bf16.mxu0 0
  %4875 = vmatpush1.bf16.msra.mxu0 0
  %4876 = vmatprep.mubr.bf16.mxu0 0
  %4877 = vmatmul.mubr.bf16.gmra.mrb[0].mxu0 %v4776
  %v4878 = vpop.f32.mrb[0].mxu0
  %v4879 = vadd.f32 0.0, %v4878
  %v4880 = vpop.f32.mrb[0].mxu0
  %v4881 = vpop.f32.mrb[0].mxu0
  %v4882 = vadd.f32 0.0, %v4881
  %v4883 = vpop.f32.mrb[0].mxu0
  %4884 = vmatprep.mubr.bf16.mxu0 0
  %4885 = vmatmul.mubr.bf16.gmra.mrb[0].mxu0 %v4777
  %v4886 = vpop.f32.mrb[0].mxu0
  %v4887 = vadd.f32 0.0, %v4886
  %v4888 = vpop.f32.mrb[0].mxu0
  %v4889 = vpop.f32.mrb[0].mxu0
  %v4890 = vadd.f32 0.0, %v4889
  %v4891 = vpop.f32.mrb[0].mxu0
  %4892 = vmatprep.mubr.bf16.mxu0 0
  %4893 = vmatmul.mubr.bf16.gmra.mrb[0].mxu0 %v4778
  %v4894 = vpop.f32.mrb[0].mxu0
  %v4895 = vadd.f32 0.0, %v4894
  %v4896 = vpop.f32.mrb[0].mxu0
  %v4897 = vpop.f32.mrb[0].mxu0
  %v4898 = vadd.f32 0.0, %v4897
  %v4899 = vpop.f32.mrb[0].mxu0
  %4900 = vmatprep.mubr.bf16.mxu0 0
  %4901 = vmatmul.mubr.bf16.gmra.mrb[0].mxu0 %v4779
  %v4902 = vpop.f32.mrb[0].mxu0
  %v4903 = vadd.f32 0.0, %v4902
  %v4904 = vpop.f32.mrb[0].mxu0
  %v4905 = vpop.f32.mrb[0].mxu0
  %v4906 = vadd.f32 0.0, %v4905
  %v4907 = vpop.f32.mrb[0].mxu0
  %4908 = vdwg.mxu0
  %v4909 = vpack.c.b16 %v2906, %v2905
  %v4910 = vpack.c.b16 %v2908, %v2907
  %v4911 = vpack.c.b16 %v2910, %v2909
  %v4912 = vpack.c.b16 %v2912, %v2911
  %v4933 = vunpack.c.l.b16 %v4760
  %v4934 = vunpack.c.l.b16 %v4761
  %v4935 = vunpack.c.l.b16 %v4762
  %v4936 = vunpack.c.l.b16 %v4763
  %v4937 = vunpack.c.l.b16 %v4764
  %v4938 = vunpack.c.l.b16 %v4765
  %v4939 = vunpack.c.l.b16 %v4766
  %v4940 = vunpack.c.l.b16 %v4767
  %v4941 = vunpack.c.l.b16 %v4768
  %v4942 = vunpack.c.l.b16 %v4769
  %v4943 = vunpack.c.l.b16 %v4770
  %v4944 = vunpack.c.l.b16 %v4771
  %v4945 = vunpack.c.l.b16 %v4772
  %v4946 = vunpack.c.l.b16 %v4773
  %v4947 = vunpack.c.l.b16 %v4774
  %v4948 = vunpack.c.l.b16 %v4775
  %v4949 = vpack.c.b16 %v4934, %v4933
  %v4950 = vpack.c.b16 %v4936, %v4935
  %v4951 = vpack.c.b16 %v4938, %v4937
  %v4952 = vpack.c.b16 %v4940, %v4939
  %v4953 = vpack.c.b16 %v4942, %v4941
  %v4954 = vpack.c.b16 %v4944, %v4943
  %v4955 = vpack.c.b16 %v4946, %v4945
  %v4956 = vpack.c.b16 %v4948, %v4947
  %4965 = vmatprep.subr.bf16.mxu0 0
  %4966 = vmatpush1.bf16.msra.mxu0 %v4949
  %4967 = vmatprep.subr.bf16.mxu0 0
  %4968 = vmatpush1.bf16.msra.mxu0 %v4950
  %4969 = vmatprep.subr.bf16.mxu0 0
  %4970 = vmatpush1.bf16.msra.mxu0 %v4951
  %4971 = vmatprep.subr.bf16.mxu0 0
  %4972 = vmatpush1.bf16.msra.mxu0 %v4952
  %4973 = vmatprep.subr.bf16.mxu0 0
  %4974 = vmatpush1.bf16.msra.mxu0 %v4953
  %4975 = vmatprep.subr.bf16.mxu0 0
  %4976 = vmatpush1.bf16.msra.mxu0 %v4954
  %4977 = vmatprep.subr.bf16.mxu0 0
  %4978 = vmatpush1.bf16.msra.mxu0 %v4955
  %4979 = vmatprep.subr.bf16.mxu0 0
  %4980 = vmatpush1.bf16.msra.mxu0 %v4956
  %4981 = vmatprep.subr.bf16.mxu0 0
  %4982 = vmatpush1.bf16.msra.mxu0 0
  %4983 = vmatprep.subr.bf16.mxu0 0
  %4984 = vmatpush1.bf16.msra.mxu0 0
  %4985 = vmatprep.subr.bf16.mxu0 0
  %4986 = vmatpush1.bf16.msra.mxu0 0
  %4987 = vmatprep.subr.bf16.mxu0 0
  %4988 = vmatpush1.bf16.msra.mxu0 0
  %4989 = vmatprep.subr.bf16.mxu0 0
  %4990 = vmatpush1.bf16.msra.mxu0 0
  %4991 = vmatprep.subr.bf16.mxu0 0
  %4992 = vmatpush1.bf16.msra.mxu0 0
  %4993 = vmatprep.subr.bf16.mxu0 0
  %4994 = vmatpush1.bf16.msra.mxu0 0
  %4995 = vmatprep.subr.bf16.mxu0 0
  %4996 = vmatpush1.bf16.msra.mxu0 0
  %4997 = vmatprep.mubr.bf16.mxu0 0
  %4998 = vmatmul.mubr.bf16.gmra.mrb[0].mxu0 %v4909
  %v4999 = vpop.f32.mrb[0].mxu0
  %v5000 = vadd.f32 %v4879, %v4999
  %v5001 = vpop.f32.mrb[0].mxu0
  %v5002 = vpop.f32.mrb[0].mxu0
  %v5003 = vadd.f32 %v4882, %v5002
  %v5004 = vpop.f32.mrb[0].mxu0
  %5005 = vmatprep.mubr.bf16.mxu0 0
  %5006 = vmatmul.mubr.bf16.gmra.mrb[0].mxu0 %v4910
  %v5007 = vpop.f32.mrb[0].mxu0
  %v5008 = vadd.f32 %v4887, %v5007
  %v5009 = vpop.f32.mrb[0].mxu0
  %v5010 = vpop.f32.mrb[0].mxu0
  %v5011 = vadd.f32 %v4890, %v5010
  %v5012 = vpop.f32.mrb[0].mxu0
  %5013 = vmatprep.mubr.bf16.mxu0 0
  %5014 = vmatmul.mubr.bf16.gmra.mrb[0].mxu0 %v4911
  %v5015 = vpop.f32.mrb[0].mxu0
  %v5016 = vadd.f32 %v4895, %v5015
  %v5017 = vpop.f32.mrb[0].mxu0
  %v5018 = vpop.f32.mrb[0].mxu0
  %v5019 = vadd.f32 %v4898, %v5018
  %v5020 = vpop.f32.mrb[0].mxu0
  %5021 = vmatprep.mubr.bf16.mxu0 0
  %5022 = vmatmul.mubr.bf16.gmra.mrb[0].mxu0 %v4912
  %v5023 = vpop.f32.mrb[0].mxu0
  %v5024 = vadd.f32 %v4903, %v5023
  %v5025 = vpop.f32.mrb[0].mxu0
  %v5026 = vpop.f32.mrb[0].mxu0
  %v5027 = vadd.f32 %v4906, %v5026
  %v5028 = vpop.f32.mrb[0].mxu0
  %5029 = vdwg.mxu0
  %v5030 = vld [vmem:[%s13] sm:$0x1]
  %v5032 = vlaneseq
  %v5033 = vshrl.u32 %v5032, 7
  %v5034 = vsub.s32 0, %v5033
  %v5035 = vrot.slane %v5030, %v5034
  %v5037 = vadd.f32 %v5000, %v5035
  %v5038 = vadd.f32 %v5003, %v5035
  %v5039 = vadd.f32 %v5008, %v5035
  %v5040 = vadd.f32 %v5011, %v5035
  %v5041 = vadd.f32 %v5016, %v5035
  %v5042 = vadd.f32 %v5019, %v5035
  %v5043 = vadd.f32 %v5024, %v5035
  %v5044 = vadd.f32 %v5027, %v5035
  %v5045 = vtanh.pop %v5037
  %v5046 = vtanh.pop %v5038
  %v5047 = vtanh.pop %v5039
  %v5048 = vtanh.pop %v5040
  %v5049 = vtanh.pop %v5041
  %v5050 = vtanh.pop %v5042
  %v5051 = vtanh.pop %v5043
  %v5052 = vtanh.pop %v5044
  %v5053 = vpack.c.bf16 %v5046, %v5045
  %v5054 = vpack.c.bf16 %v5048, %v5047
  %v5055 = vpack.c.bf16 %v5050, %v5049
  %v5056 = vpack.c.bf16 %v5052, %v5051
  %v5057 = vld [vmem:[%s14] sm:$0xf]
  %v5058 = vld [vmem:[%s14 + $0x4] sm:$0xf]
  %v5059 = vld [vmem:[%s14 + $0x8] sm:$0xf]
  %v5060 = vld [vmem:[%s14 + $0xc] sm:$0xf]
  %v5061 = vld [vmem:[%s14 + $0x10] sm:$0xf]
  %v5062 = vld [vmem:[%s14 + $0x14] sm:$0xf]
  %v5063 = vld [vmem:[%s14 + $0x18] sm:$0xf]
  %v5064 = vld [vmem:[%s14 + $0x1c] sm:$0xf]
  %v5065 = vld [vmem:[%s14 + $0x20] sm:$0xf]
  %v5066 = vld [vmem:[%s14 + $0x24] sm:$0xf]
  %v5067 = vld [vmem:[%s14 + $0x28] sm:$0xf]
  %v5068 = vld [vmem:[%s14 + $0x2c] sm:$0xf]
  %v5069 = vld [vmem:[%s14 + $0x30] sm:$0xf]
  %v5070 = vld [vmem:[%s14 + $0x34] sm:$0xf]
  %v5071 = vld [vmem:[%s14 + $0x38] sm:$0xf]
  %v5072 = vld [vmem:[%s14 + $0x3c] sm:$0xf]
  %v5073 = vld [vmem:[%s15] sm:$0x1]
  %v5075 = vlaneseq
  %v5076 = vshrl.u32 %v5075, 7
  %v5077 = vsub.s32 0, %v5076
  %v5078 = vrot.slane %v5073, %v5077
  %v5096 = vunpack.c.l.b16 %v5057
  %v5097 = vunpack.c.l.b16 %v5058
  %v5098 = vunpack.c.l.b16 %v5059
  %v5099 = vunpack.c.l.b16 %v5060
  %v5100 = vunpack.c.l.b16 %v5061
  %v5101 = vunpack.c.l.b16 %v5062
  %v5102 = vunpack.c.l.b16 %v5063
  %v5103 = vunpack.c.l.b16 %v5064
  %v5104 = vunpack.c.l.b16 %v5065
  %v5105 = vunpack.c.l.b16 %v5066
  %v5106 = vunpack.c.l.b16 %v5067
  %v5107 = vunpack.c.l.b16 %v5068
  %v5108 = vunpack.c.l.b16 %v5069
  %v5109 = vunpack.c.l.b16 %v5070
  %v5110 = vunpack.c.l.b16 %v5071
  %v5111 = vunpack.c.l.b16 %v5072
  %v5112 = vpack.c.b16 %v5097, %v5096
  %v5113 = vpack.c.b16 %v5099, %v5098
  %v5114 = vpack.c.b16 %v5101, %v5100
  %v5115 = vpack.c.b16 %v5103, %v5102
  %v5116 = vpack.c.b16 %v5105, %v5104
  %v5117 = vpack.c.b16 %v5107, %v5106
  %v5118 = vpack.c.b16 %v5109, %v5108
  %v5119 = vpack.c.b16 %v5111, %v5110
  %5128 = vmatprep.subr.bf16.mxu0 0
  %5129 = vmatpush1.bf16.msra.mxu0 %v5112
  %5130 = vmatprep.subr.bf16.mxu0 0
  %5131 = vmatpush1.bf16.msra.mxu0 %v5113
  %5132 = vmatprep.subr.bf16.mxu0 0
  %5133 = vmatpush1.bf16.msra.mxu0 %v5114
  %5134 = vmatprep.subr.bf16.mxu0 0
  %5135 = vmatpush1.bf16.msra.mxu0 %v5115
  %5136 = vmatprep.subr.bf16.mxu0 0
  %5137 = vmatpush1.bf16.msra.mxu0 %v5116
  %5138 = vmatprep.subr.bf16.mxu0 0
  %5139 = vmatpush1.bf16.msra.mxu0 %v5117
  %5140 = vmatprep.subr.bf16.mxu0 0
  %5141 = vmatpush1.bf16.msra.mxu0 %v5118
  %5142 = vmatprep.subr.bf16.mxu0 0
  %5143 = vmatpush1.bf16.msra.mxu0 %v5119
  %5144 = vmatprep.subr.bf16.mxu0 0
  %5145 = vmatpush1.bf16.msra.mxu0 0
  %5146 = vmatprep.subr.bf16.mxu0 0
  %5147 = vmatpush1.bf16.msra.mxu0 0
  %5148 = vmatprep.subr.bf16.mxu0 0
  %5149 = vmatpush1.bf16.msra.mxu0 0
  %5150 = vmatprep.subr.bf16.mxu0 0
  %5151 = vmatpush1.bf16.msra.mxu0 0
  %5152 = vmatprep.subr.bf16.mxu0 0
  %5153 = vmatpush1.bf16.msra.mxu0 0
  %5154 = vmatprep.subr.bf16.mxu0 0
  %5155 = vmatpush1.bf16.msra.mxu0 0
  %5156 = vmatprep.subr.bf16.mxu0 0
  %5157 = vmatpush1.bf16.msra.mxu0 0
  %5158 = vmatprep.subr.bf16.mxu0 0
  %5159 = vmatpush1.bf16.msra.mxu0 0
  %5160 = vmatprep.mubr.bf16.mxu0 0
  %5161 = vmatmul.mubr.bf16.gmra.mrb[0].mxu0 %v5053
  %v5162 = vpop.f32.mrb[0].mxu0
  %v5163 = vadd.f32 %v5078, %v5162
  %v5164 = vpop.f32.mrb[0].mxu0
  %v5165 = vpop.f32.mrb[0].mxu0
  %v5166 = vadd.f32 %v5078, %v5165
  %v5167 = vpop.f32.mrb[0].mxu0
  %5168 = vmatprep.mubr.bf16.mxu0 0
  %5169 = vmatmul.mubr.bf16.gmra.mrb[0].mxu0 %v5054
  %v5170 = vpop.f32.mrb[0].mxu0
  %v5171 = vadd.f32 %v5078, %v5170
  %v5172 = vpop.f32.mrb[0].mxu0
  %v5173 = vpop.f32.mrb[0].mxu0
  %v5174 = vadd.f32 %v5078, %v5173
  %v5175 = vpop.f32.mrb[0].mxu0
  %5176 = vmatprep.mubr.bf16.mxu0 0
  %5177 = vmatmul.mubr.bf16.gmra.mrb[0].mxu0 %v5055
  %v5178 = vpop.f32.mrb[0].mxu0
  %v5179 = vadd.f32 %v5078, %v5178
  %v5180 = vpop.f32.mrb[0].mxu0
  %v5181 = vpop.f32.mrb[0].mxu0
  %v5182 = vadd.f32 %v5078, %v5181
  %v5183 = vpop.f32.mrb[0].mxu0
  %5184 = vmatprep.mubr.bf16.mxu0 0
  %5185 = vmatmul.mubr.bf16.gmra.mrb[0].mxu0 %v5056
  %v5186 = vpop.f32.mrb[0].mxu0
  %v5187 = vadd.f32 %v5078, %v5186
  %v5188 = vpop.f32.mrb[0].mxu0
  %v5189 = vpop.f32.mrb[0].mxu0
  %v5190 = vadd.f32 %v5078, %v5189
  %v5191 = vpop.f32.mrb[0].mxu0
  %5192 = vdwg.mxu0
  %5193 = vmax.xlane.f32.xlu0 %v5163
  %v5194 = vpop.xlane.xlu0 %5193
  %5195 = vmax.xlane.f32.xlu0 %v5166
  %v5196 = vpop.xlane.xlu0 %5195
  %5197 = vmax.xlane.f32.xlu0 %v5171
  %v5198 = vpop.xlane.xlu0 %5197
  %5199 = vmax.xlane.f32.xlu0 %v5174
  %v5200 = vpop.xlane.xlu0 %5199
  %5201 = vmax.xlane.f32.xlu0 %v5179
  %v5202 = vpop.xlane.xlu0 %5201
  %5203 = vmax.xlane.f32.xlu0 %v5182
  %v5204 = vpop.xlane.xlu0 %5203
  %5205 = vmax.xlane.f32.xlu0 %v5187
  %v5206 = vpop.xlane.xlu0 %5205
  %5207 = vmax.xlane.f32.xlu0 %v5190
  %v5208 = vpop.xlane.xlu0 %5207
  %v5209 = vsub.f32 %v5163, %v5194
  %v5210 = vsub.f32 %v5166, %v5196
  %v5211 = vsub.f32 %v5171, %v5198
  %v5212 = vsub.f32 %v5174, %v5200
  %v5213 = vsub.f32 %v5179, %v5202
  %v5214 = vsub.f32 %v5182, %v5204
  %v5215 = vsub.f32 %v5187, %v5206
  %v5216 = vsub.f32 %v5190, %v5208
  %v5217 = vmul.f32 %v5209, 1.442695
  %v5218 = vpow.pop %v5217
  %v5219 = vmul.f32 %v5210, 1.442695
  %v5220 = vpow.pop %v5219
  %v5221 = vmul.f32 %v5211, 1.442695
  %v5222 = vpow.pop %v5221
  %v5223 = vmul.f32 %v5212, 1.442695
  %v5224 = vpow.pop %v5223
  %v5225 = vmul.f32 %v5213, 1.442695
  %v5226 = vpow.pop %v5225
  %v5227 = vmul.f32 %v5214, 1.442695
  %v5228 = vpow.pop %v5227
  %v5229 = vmul.f32 %v5215, 1.442695
  %v5230 = vpow.pop %v5229
  %v5231 = vmul.f32 %v5216, 1.442695
  %v5232 = vpow.pop %v5231
  %5233 = vadd.xlane.f32.xlu0 %v5218
  %v5234 = vpop.xlane.xlu0 %5233
  %5235 = vadd.xlane.f32.xlu0 %v5220
  %v5236 = vpop.xlane.xlu0 %5235
  %5237 = vadd.xlane.f32.xlu0 %v5222
  %v5238 = vpop.xlane.xlu0 %5237
  %5239 = vadd.xlane.f32.xlu0 %v5224
  %v5240 = vpop.xlane.xlu0 %5239
  %5241 = vadd.xlane.f32.xlu0 %v5226
  %v5242 = vpop.xlane.xlu0 %5241
  %5243 = vadd.xlane.f32.xlu0 %v5228
  %v5244 = vpop.xlane.xlu0 %5243
  %5245 = vadd.xlane.f32.xlu0 %v5230
  %v5246 = vpop.xlane.xlu0 %5245
  %5247 = vadd.xlane.f32.xlu0 %v5232
  %v5248 = vpop.xlane.xlu0 %5247
  %v5249 = vlog2.pop %v5234
  %v5250 = vmul.f32 %v5249, 0.6931472
  %v5251 = vlog2.pop %v5236
  %v5252 = vmul.f32 %v5251, 0.6931472
  %v5253 = vlog2.pop %v5238
  %v5254 = vmul.f32 %v5253, 0.6931472
  %v5255 = vlog2.pop %v5240
  %v5256 = vmul.f32 %v5255, 0.6931472
  %v5257 = vlog2.pop %v5242
  %v5258 = vmul.f32 %v5257, 0.6931472
  %v5259 = vlog2.pop %v5244
  %v5260 = vmul.f32 %v5259, 0.6931472
  %v5261 = vlog2.pop %v5246
  %v5262 = vmul.f32 %v5261, 0.6931472
  %v5263 = vlog2.pop %v5248
  %v5264 = vmul.f32 %v5263, 0.6931472
  %v5265 = vadd.f32 %v5194, %v5250
  %v5266 = vadd.f32 %v5196, %v5252
  %v5267 = vadd.f32 %v5198, %v5254
  %v5268 = vadd.f32 %v5200, %v5256
  %v5269 = vadd.f32 %v5202, %v5258
  %v5270 = vadd.f32 %v5204, %v5260
  %v5271 = vadd.f32 %v5206, %v5262
  %v5272 = vadd.f32 %v5208, %v5264
  %v5273 = vsub.f32 %v5163, %v5265
  %v5274 = vsub.f32 %v5166, %v5266
  %v5275 = vsub.f32 %v5171, %v5267
  %v5276 = vsub.f32 %v5174, %v5268
  %v5277 = vsub.f32 %v5179, %v5269
  %v5278 = vsub.f32 %v5182, %v5270
  %v5279 = vsub.f32 %v5187, %v5271
  %v5280 = vsub.f32 %v5190, %v5272
  %5281 = vst [vmem:[%s16] sm:$0xff] %v5273
  %5282 = vst [vmem:[%s16 + $0x8] sm:$0xff] %v5274
  %5283 = vst [vmem:[%s16 + $0x10] sm:$0xff] %v5275
  %5284 = vst [vmem:[%s16 + $0x18] sm:$0xff] %v5276
  %5285 = vst [vmem:[%s16 + $0x20] sm:$0xff] %v5277
  %5286 = vst [vmem:[%s16 + $0x28] sm:$0xff] %v5278
  %5287 = vst [vmem:[%s16 + $0x30] sm:$0xff] %v5279
  %5288 = vst [vmem:[%s16 + $0x38] sm:$0xff] %v5280
  // Predicated region
  $region66: #{dns_forward.1} parent=0 // pred_check
    _
  $region67: #{dns_forward.1} parent=0 // pred_check_branch
    %5290 = sbr.rel (0) target = $region69
  $region68: #{dns_forward.1} parent=0 // pred_region
    _
  $region69: #{dns_forward.1} parent=0 // pred_fallthru
    _
  // Predicated region
  $region70: #{dns_forward.1} parent=0 // pred_check
    _
  $region71: #{dns_forward.1} parent=0 // pred_check_branch
    %5292 = sbr.rel (0) target = $region73
  $region72: #{dns_forward.1} parent=0 // pred_region
    _
  $region73: #{dns_forward.1} parent=0 // pred_fallthru
    _
  // Predicated region
  $region74: #{dns_forward.1} parent=0 // pred_check
    _
  $region75: #{dns_forward.1} parent=0 // pred_check_branch
    %5294 = sbr.rel (0) target = $region77
  $region76: #{dns_forward.1} parent=0 // pred_region
    _
  $region77: #{dns_forward.1} parent=0 // pred_fallthru
    _
  // Predicated region
  $region78: #{dns_forward.1} parent=0 // pred_check
    _
  $region79: #{dns_forward.1} parent=0 // pred_check_branch
    %5296 = sbr.rel (0) target = $region81
  $region80: #{dns_forward.1} parent=0 // pred_region
    _
  $region81: #{dns_forward.1} parent=0 // pred_fallthru
    _

</llo_original>
